<compile_context>
chip_gen: v5e
topology: v5e:2x2
jax: 0.10.0
libtpu: 0.0.40
codegen_flags: <defaults>
</compile_context>

<pallas_src>
import numpy as np
import jax
import jax.numpy as jnp
from jax.experimental import pallas as pl
from jax.experimental.pallas import tpu as pltpu

LANE = 128
VMEM_LIMIT = 48 * 1024 * 1024   # <= ~48 MiB: safe on v7x (64 MiB/TC), ample on v5e/v6e


def _round_up(x, m):
    return (x + m - 1) // m * m


# ----------------------------- Pallas kernels ------------------------------

def _conv_pool_kernel(p_ref, w_ref, b_ref, o_ref):
    """Fused 5x5 'same' conv (im2col matmul) + bias + 2x2 max-pool.

    p_ref: (4, TG, Kf)  bf16 im2col patches; slab s = 2*hp + wp holds the patch
           for pooling-window position (hp, wp); rows ordered (n, ho, wo).
    w_ref: (Kf, Cout)   bf16 conv weight (unpadded; Mosaic pads in VMEM).
    b_ref: (1, Cout)    f32 bias.
    o_ref: (TG, Cout)   pooled conv output (real channels only).
    """
    s, tg, kf = p_ref.shape
    co = w_ref.shape[1]
    # One MXU call over all four pooling slabs (4*TG rows), weight pushed once.
    y = jnp.dot(p_ref[...].reshape(s * tg, kf), w_ref[...],
                preferred_element_type=jnp.float32)
    y = y.reshape(s, tg, co)
    m = jnp.maximum(jnp.maximum(y[0], y[1]), jnp.maximum(y[2], y[3]))
    # Bias is common to all slabs: max(y_s) + b == max(y_s + b); add once.
    o_ref[...] = (m + b_ref[...]).astype(o_ref.dtype)


def _conv_pool_mlp_kernel(p_ref, w_ref, b_ref, w1_ref, b1_ref, w2_ref, b2_ref,
                          o_ref):
    """conv3+pool fused with Flatten -> Linear(1024,64) -> Linear(64,10).

    p_ref : (4, P, TN, Kf)   conv3 patches (bf16); pooling slab, spatial pos, batch.
    w_ref : (Kf, 128)        conv3 weight (bf16, Cout zero-padded to 128).
    b_ref : (1, 128)         conv3 bias (f32, zero-padded).
    w1_ref: (P*128, 128)     Linear1 weight, row q*128+c = wl1[:, c*P + q] (bf16, padded).
    b1_ref: (1, 128)         Linear1 bias (f32, zero-padded).
    w2_ref: (128, 128)       Linear2 weight (bf16, zero-padded).
    b2_ref: (1, 128)         Linear2 bias (f32, zero-padded).
    o_ref : (TN, 128)        logits; lanes >= 10 are zero, rows >= N are discarded.
    """
    s, p, tn, kf = p_ref.shape
    cp = w_ref.shape[1]

    y = jnp.dot(p_ref[...].reshape(s * p * tn, kf), w_ref[...],
                preferred_element_type=jnp.float32)
    y = y.reshape(s, p * tn, cp)
    y = jnp.maximum(jnp.maximum(y[0], y[1]), jnp.maximum(y[2], y[3])) + b_ref[...]
    y = y.reshape(p, tn, cp)

    # Flatten + Linear(1024, 64): lane-concatenate the P per-position (TN,128) slabs
    # into one (TN, P*128) LHS and do a single streamed K=P*128 matmul (instead of
    # P latency-bound (TN,128)x(128,128) launches).  Padded lanes of y are exactly 0.
    h_lhs = jnp.concatenate([y[q] for q in range(p)], axis=-1).astype(jnp.bfloat16)
    h = jnp.dot(h_lhs, w1_ref[...], preferred_element_type=jnp.float32) + b1_ref[...]

    # Linear(64, 10)
    o_ref[...] = jnp.dot(h.astype(jnp.bfloat16), w2_ref[...],
                         preferred_element_type=jnp.float32) + b2_ref[...]


# ------------------------------- Wrappers -----------------------------------

def _build_pool_patches(x_nhwc, k, pad, spatial_major=False):
    """im2col patches grouped by 2x2 pooling-window position (pure XLA glue).

    Returns (4, G, K*K*Cin) with rows ordered (n, ho, wo), or (ho, wo, n) if
    spatial_major=True.  No contraction-dim padding (Mosaic pads in VMEM).
    """
    n, h, w, cin = x_nhwc.shape
    ho, wo = h // 2, w // 2
    kf = k * k * cin
    xp = jnp.pad(x_nhwc, ((0, 0), (pad, pad), (pad, pad), (0, 0)))
    slabs = []
    for hp in range(2):
        for wp in range(2):
            taps = []
            for i in range(k):
                for j in range(k):
                    # input element feeding conv output (2*ho+hp, 2*wo+wp), tap (i, j)
                    taps.append(xp[:, hp + i:hp + i + 2 * ho:2,
                                      wp + j:wp + j + 2 * wo:2, :])
            t = jnp.stack(taps, axis=-2)                  # (N, Ho, Wo, K*K, Cin)
            if spatial_major:
                t = jnp.transpose(t, (1, 2, 0, 3, 4))     # (Ho, Wo, N, K*K, Cin)
            slabs.append(t.reshape(n * ho * wo, kf))
    return jnp.stack(slabs, axis=0)                        # (4, G, Kf)


def _conv_weights(w_oihw, b, co):
    """(Cout,Cin,K,K) torch weight -> bf16 (Kf, co) + f32 (1, co) bias (co >= Cout)."""
    cout, cin, k, _ = w_oihw.shape
    kf = k * k * cin
    wf = jnp.transpose(w_oihw, (2, 3, 1, 0)).reshape(kf, cout)
    wf = jnp.pad(wf, ((0, 0), (0, co - cout))).astype(jnp.bfloat16)
    bp = jnp.pad(b, (0, co - cout)).reshape(1, co).astype(jnp.float32)
    return wf, bp


def _pick_tile(g, cap=1024):
    """Largest row tile <= cap dividing g, preferring >= 2 grid steps (2 TCs on v7x)."""
    cands = [c for c in (1024, 512, 256, 128, 64, 32, 16, 8) if c <= cap and g % c == 0]
    for c in cands:
        if g // c >= 2:
            return c
    return cands[0] if cands else g


def _pick_batch_tile(npad):
    """Batch tile for the fused tail (npad is always a multiple of 8)."""
    cands = [c for c in (128, 64, 32, 16, 8) if npad % c == 0]
    for c in cands:
        if npad // c >= 2:
            return c
    return cands[0] if cands else npad


def conv5x5_pool2(x_nhwc, w_oihw, b):
    """Conv2d(kernel=5, stride=1, padding=2) followed by MaxPool2d(2). NHWC."""
    n, h, w, cin = x_nhwc.shape
    cout = w_oihw.shape[0]
    k, pad = 5, 2
    ho, wo = h // 2, w // 2
    g = n * ho * wo
    kf = k * k * cin

    patches = _build_pool_patches(x_nhwc.astype(jnp.bfloat16), k, pad)   # (4, G, Kf)
    wf, bp = _conv_weights(w_oihw, b, cout)

    tg = _pick_tile(g)
    out = pl.pallas_call(
        _conv_pool_kernel,
        out_shape=jax.ShapeDtypeStruct((g, cout), jnp.bfloat16),
        grid=(g // tg,),
        in_specs=[
            pl.BlockSpec((4, tg, kf), lambda i: (0, i, 0)),
            pl.BlockSpec((kf, cout), lambda i: (0, 0)),
            pl.BlockSpec((1, cout), lambda i: (0, 0)),
        ],
        out_specs=pl.BlockSpec((tg, cout), lambda i: (i, 0)),
        compiler_params=pltpu.CompilerParams(
            dimension_semantics=("parallel",),
            vmem_limit_bytes=VMEM_LIMIT),
    )(patches, wf, bp)
    return out.reshape(n, ho, wo, cout)


def conv3_flatten_mlp(x_nhwc, params):
    """Fused Conv2d(32,64,5,p=2)+MaxPool2d(2)+Flatten+Linear(1024,64)+Linear(64,10)."""
    n, h, w, cin = x_nhwc.shape
    w3, b3 = params["w3"], params["b3"]
    cout = w3.shape[0]                            # 64
    k, pad = 5, 2
    ho, wo = h // 2, w // 2
    p = ho * wo                                   # spatial positions per sample (16)
    kf = k * k * cin                              # 800
    hid = params["wl1"].shape[0]                  # 64
    ncls = params["wl2"].shape[0]                 # 10
    npad = _round_up(max(n, 8), 8)                # batch padded so blocks are tile-aligned
    tn = _pick_batch_tile(npad)

    xb = jnp.pad(x_nhwc, ((0, npad - n), (0, 0), (0, 0), (0, 0))).astype(jnp.bfloat16)
    patches = _build_pool_patches(xb, k, pad, spatial_major=True)     # rows (ho, wo, n)
    patches = patches.reshape(4, p, npad, kf)                          # (4, P, Npad, Kf)
    wf, bp = _conv_weights(w3, b3, LANE)

    # torch Flatten order is (c, ho, wo): feature f = c*P + pos.  The kernel builds its
    # Linear1 LHS as lane-concatenated per-position slabs (feature = pos*128 + c), so
    # permute wl1 to [pos, c, d], zero-pad c/d to 128, and flatten to (P*128, 128).
    w1r = params["wl1"].T.reshape(cout, p, hid).transpose(1, 0, 2)     # (P, Cout, HID)
    w1r = jnp.pad(w1r, ((0, 0), (0, LANE - cout), (0, LANE - hid)))
    w1cat = w1r.reshape(p * LANE, LANE).astype(jnp.bfloat16)
    b1p = jnp.pad(params["bl1"], (0, LANE - hid)).reshape(1, LANE).astype(jnp.float32)
    w2p = jnp.pad(params["wl2"].T, ((0, LANE - hid), (0, LANE - ncls))).astype(jnp.bfloat16)
    b2p = jnp.pad(params["bl2"], (0, LANE - ncls)).reshape(1, LANE).astype(jnp.float32)

    out = pl.pallas_call(
        _conv_pool_mlp_kernel,
        out_shape=jax.ShapeDtypeStruct((npad, LANE), jnp.float32),
        grid=(npad // tn,),
        in_specs=[
            pl.BlockSpec((4, p, tn, kf), lambda i: (0, 0, i, 0)),
            pl.BlockSpec((kf, LANE), lambda i: (0, 0)),
            pl.BlockSpec((1, LANE), lambda i: (0, 0)),
            pl.BlockSpec((p * LANE, LANE), lambda i: (0, 0)),
            pl.BlockSpec((1, LANE), lambda i: (0, 0)),
            pl.BlockSpec((LANE, LANE), lambda i: (0, 0)),
            pl.BlockSpec((1, LANE), lambda i: (0, 0)),
        ],
        out_specs=pl.BlockSpec((tn, LANE), lambda i: (i, 0)),
        compiler_params=pltpu.CompilerParams(
            dimension_semantics=("parallel",),
            vmem_limit_bytes=VMEM_LIMIT),
    )(patches, wf, bp, w1cat, b1p, w2p, b2p)
    return out[:n, :ncls]


def tudui_forward(x_nchw, params):
    # NCHW (PyTorch) -> NHWC (kernel layout)
    x = jnp.transpose(x_nchw, (0, 2, 3, 1))
    x = conv5x5_pool2(x, params["w1"], params["b1"])      # (N, 16, 16, 32) bf16
    x = conv5x5_pool2(x, params["w2"], params["b2"])      # (N,  8,  8, 32) bf16
    return conv3_flatten_mlp(x, params)                   # (N, 10) f32


# ------------------------- pure-JAX reference (check) ------------------------

def ref_forward(x, p):
    hi = jax.lax.Precision.HIGHEST

    def convpool(y, w, b):
        y = jax.lax.conv_general_dilated(
            y, w, (1, 1), ((2, 2), (2, 2)),
            dimension_numbers=("NCHW", "OIHW", "NCHW"), precision=hi)
        y = y + b[None, :, None, None]
        return jax.lax.reduce_window(y, -jnp.inf, jax.lax.max,
                                     (1, 1, 2, 2), (1, 1, 2, 2), "VALID")

    y = convpool(x, p["w1"], p["b1"])
    y = convpool(y, p["w2"], p["b2"])
    y = convpool(y, p["w3"], p["b3"])
    y = y.reshape(y.shape[0], -1)
    y = jax.lax.dot(y, p["wl1"].T, precision=hi) + p["bl1"]
    y = jax.lax.dot(y, p["wl2"].T, precision=hi) + p["bl2"]
    return y


# ---------------------------------- main -------------------------------------

def _uniform(key, shape, fan_in):
    bound = 1.0 / np.sqrt(fan_in)
    return jax.random.uniform(key, shape, jnp.float32, -bound, bound)


if __name__ == "__main__":
    key = jax.random.PRNGKey(0)
    ks = jax.random.split(key, 11)

    # Linear(1024,64) implies 64*4*4 after three 2x2 pools -> input must be 3x32x32.
    x = jax.random.normal(ks[0], (2, 3, 32, 32), jnp.float32)

    params = {
        "w1": _uniform(ks[1], (32, 3, 5, 5), 3 * 25),
        "b1": _uniform(ks[2], (32,), 3 * 25),
        "w2": _uniform(ks[3], (32, 32, 5, 5), 32 * 25),
        "b2": _uniform(ks[4], (32,), 32 * 25),
        "w3": _uniform(ks[5], (64, 32, 5, 5), 32 * 25),
        "b3": _uniform(ks[6], (64,), 32 * 25),
        "wl1": _uniform(ks[7], (64, 1024), 1024),
        "bl1": _uniform(ks[8], (64,), 1024),
        "wl2": _uniform(ks[9], (10, 64), 64),
        "bl2": _uniform(ks[10], (10,), 64),
    }

    fwd = jax.jit(tudui_forward)
    out = fwd(x, params)
    jax.block_until_ready(out)
    assert out.shape == (2, 10) and out.dtype == jnp.float32

    ref = ref_forward(x, params)
    # All MXU inputs (conv + MLP) are bf16 with f32 accumulation; 3e-2 covers that.
    np.testing.assert_allclose(np.asarray(out), np.asarray(ref), rtol=3e-2, atol=3e-2)

    print("KERNEL_OK")
</pallas_src>

<mosaic_0001>
module attributes {stable_mosaic.version = 11 : i64} {
  func.func @_conv_pool_kernel(%arg0: i32, %arg1: memref<4x256x75xbf16, #tpu.memory_space<vmem>>, %arg2: memref<75x32xbf16, #tpu.memory_space<vmem>>, %arg3: memref<1x32xf32, #tpu.memory_space<vmem>>, %arg4: memref<256x32xbf16, #tpu.memory_space<vmem>>) attributes {dimension_semantics = [#tpu.dimension_semantics<parallel>], iteration_bounds = array<i64: 2>, scalar_prefetch = 0 : i64, scratch_operands = 0 : i64, tpu.core_type = #tpu.core_type<tc>, window_params = [{transform_indices = @transform_0, window_bounds = array<i64: 4, 256, 75>}, {pipeline_mode = #tpu.pipeline_mode<synchronous>, transform_indices = @transform_1, window_bounds = array<i64: 75, 32>}, {pipeline_mode = #tpu.pipeline_mode<synchronous>, transform_indices = @transform_2, window_bounds = array<i64: 1, 32>}, {transform_indices = @transform_3, window_bounds = array<i64: 256, 32>}]} {
    %c0 = arith.constant 0 : index
    %c0_0 = arith.constant 0 : index
    %c0_1 = arith.constant 0 : index
    %0 = vector.load %arg1[%c0, %c0_0, %c0_1] : memref<4x256x75xbf16, #tpu.memory_space<vmem>>, vector<4x256x75xbf16>
    %1 = vector.shape_cast %0 : vector<4x256x75xbf16> to vector<1024x75xbf16>
    %c0_2 = arith.constant 0 : index
    %c0_3 = arith.constant 0 : index
    %2 = vector.load %arg2[%c0_2, %c0_3] : memref<75x32xbf16, #tpu.memory_space<vmem>>, vector<75x32xbf16>
    %cst = arith.constant dense<0.000000e+00> : vector<1024x32xf32>
    %3 = tpu.matmul %1, %2, %cst {dimension_numbers = #tpu.dot_dimension_numbers<[1], [0], [0], [1], [0, 0, 1, 1], [], []>} : vector<1024x75xbf16>, vector<75x32xbf16>, vector<1024x32xf32> -> vector<1024x32xf32>
    %4 = vector.shape_cast %3 : vector<1024x32xf32> to vector<4x256x32xf32>
    %5 = vector.extract_strided_slice %4 {offsets = [0, 0, 0], sizes = [1, 256, 32], strides = [1, 1, 1]} : vector<4x256x32xf32> to vector<1x256x32xf32>
    %6 = vector.shape_cast %5 : vector<1x256x32xf32> to vector<256x32xf32>
    %7 = vector.extract_strided_slice %4 {offsets = [1, 0, 0], sizes = [1, 256, 32], strides = [1, 1, 1]} : vector<4x256x32xf32> to vector<1x256x32xf32>
    %8 = vector.shape_cast %7 : vector<1x256x32xf32> to vector<256x32xf32>
    %9 = arith.maximumf %6, %8 : vector<256x32xf32>
    %10 = vector.extract_strided_slice %4 {offsets = [2, 0, 0], sizes = [1, 256, 32], strides = [1, 1, 1]} : vector<4x256x32xf32> to vector<1x256x32xf32>
    %11 = vector.shape_cast %10 : vector<1x256x32xf32> to vector<256x32xf32>
    %12 = vector.extract_strided_slice %4 {offsets = [3, 0, 0], sizes = [1, 256, 32], strides = [1, 1, 1]} : vector<4x256x32xf32> to vector<1x256x32xf32>
    %13 = vector.shape_cast %12 : vector<1x256x32xf32> to vector<256x32xf32>
    %14 = arith.maximumf %11, %13 : vector<256x32xf32>
    %15 = arith.maximumf %9, %14 : vector<256x32xf32>
    %c0_4 = arith.constant 0 : index
    %c0_5 = arith.constant 0 : index
    %16 = vector.load %arg3[%c0_4, %c0_5] : memref<1x32xf32, #tpu.memory_space<vmem>>, vector<1x32xf32>
    %17 = vector.broadcast %16 : vector<1x32xf32> to vector<256x32xf32>
    %18 = arith.addf %15, %17 : vector<256x32xf32>
    %19 = arith.truncf %18 : vector<256x32xf32> to vector<256x32xbf16>
    %c0_6 = arith.constant 0 : index
    %c0_7 = arith.constant 0 : index
    %20 = vector.load %arg4[%c0_6, %c0_7] : memref<256x32xbf16, #tpu.memory_space<vmem>>, vector<256x32xbf16>
    tpu.vector_store %arg4[%c0_6, %c0_7], %19 {strides = array<i32>} : memref<256x32xbf16, #tpu.memory_space<vmem>>, vector<256x32xbf16>,
    return
  }
  func.func @transform_0(%arg0: i32) -> (i32, i32, i32) {
    %c0_i32 = arith.constant 0 : i32
    %c0_i32_0 = arith.constant 0 : i32
    %c0_i32_1 = arith.constant 0 : i32
    return %c0_i32, %arg0, %c0_i32_0 : i32, i32, i32
  }
  func.func @transform_1(%arg0: i32) -> (i32, i32) {
    %c0_i32 = arith.constant 0 : i32
    %c0_i32_0 = arith.constant 0 : i32
    %c0_i32_1 = arith.constant 0 : i32
    return %c0_i32, %c0_i32_0 : i32, i32
  }
  func.func @transform_2(%arg0: i32) -> (i32, i32) {
    %c0_i32 = arith.constant 0 : i32
    %c0_i32_0 = arith.constant 0 : i32
    %c0_i32_1 = arith.constant 0 : i32
    return %c0_i32, %c0_i32_0 : i32, i32
  }
  func.func @transform_3(%arg0: i32) -> (i32, i32) {
    %c0_i32 = arith.constant 0 : i32
    %c0_i32_0 = arith.constant 0 : i32
    return %arg0, %c0_i32 : i32, i32
  }
}

module attributes {stable_mosaic.version = 11 : i64} {
  func.func @_conv_pool_kernel(%arg0: i32, %arg1: memref<4x64x800xbf16, #tpu.memory_space<vmem>>, %arg2: memref<800x32xbf16, #tpu.memory_space<vmem>>, %arg3: memref<1x32xf32, #tpu.memory_space<vmem>>, %arg4: memref<64x32xbf16, #tpu.memory_space<vmem>>) attributes {dimension_semantics = [#tpu.dimension_semantics<parallel>], iteration_bounds = array<i64: 2>, scalar_prefetch = 0 : i64, scratch_operands = 0 : i64, tpu.core_type = #tpu.core_type<tc>, window_params = [{transform_indices = @transform_0, window_bounds = array<i64: 4, 64, 800>}, {pipeline_mode = #tpu.pipeline_mode<synchronous>, transform_indices = @transform_1, window_bounds = array<i64: 800, 32>}, {pipeline_mode = #tpu.pipeline_mode<synchronous>, transform_indices = @transform_2, window_bounds = array<i64: 1, 32>}, {transform_indices = @transform_3, window_bounds = array<i64: 64, 32>}]} {
    %c0 = arith.constant 0 : index
    %c0_0 = arith.constant 0 : index
    %c0_1 = arith.constant 0 : index
    %0 = vector.load %arg1[%c0, %c0_0, %c0_1] : memref<4x64x800xbf16, #tpu.memory_space<vmem>>, vector<4x64x800xbf16>
    %1 = vector.shape_cast %0 : vector<4x64x800xbf16> to vector<256x800xbf16>
    %c0_2 = arith.constant 0 : index
    %c0_3 = arith.constant 0 : index
    %2 = vector.load %arg2[%c0_2, %c0_3] : memref<800x32xbf16, #tpu.memory_space<vmem>>, vector<800x32xbf16>
    %cst = arith.constant dense<0.000000e+00> : vector<256x32xf32>
    %3 = tpu.matmul %1, %2, %cst {dimension_numbers = #tpu.dot_dimension_numbers<[1], [0], [0], [1], [0, 0, 1, 1], [], []>} : vector<256x800xbf16>, vector<800x32xbf16>, vector<256x32xf32> -> vector<256x32xf32>
    %4 = vector.shape_cast %3 : vector<256x32xf32> to vector<4x64x32xf32>
    %5 = vector.extract_strided_slice %4 {offsets = [0, 0, 0], sizes = [1, 64, 32], strides = [1, 1, 1]} : vector<4x64x32xf32> to vector<1x64x32xf32>
    %6 = vector.shape_cast %5 : vector<1x64x32xf32> to vector<64x32xf32>
    %7 = vector.extract_strided_slice %4 {offsets = [1, 0, 0], sizes = [1, 64, 32], strides = [1, 1, 1]} : vector<4x64x32xf32> to vector<1x64x32xf32>
    %8 = vector.shape_cast %7 : vector<1x64x32xf32> to vector<64x32xf32>
    %9 = arith.maximumf %6, %8 : vector<64x32xf32>
    %10 = vector.extract_strided_slice %4 {offsets = [2, 0, 0], sizes = [1, 64, 32], strides = [1, 1, 1]} : vector<4x64x32xf32> to vector<1x64x32xf32>
    %11 = vector.shape_cast %10 : vector<1x64x32xf32> to vector<64x32xf32>
    %12 = vector.extract_strided_slice %4 {offsets = [3, 0, 0], sizes = [1, 64, 32], strides = [1, 1, 1]} : vector<4x64x32xf32> to vector<1x64x32xf32>
    %13 = vector.shape_cast %12 : vector<1x64x32xf32> to vector<64x32xf32>
    %14 = arith.maximumf %11, %13 : vector<64x32xf32>
    %15 = arith.maximumf %9, %14 : vector<64x32xf32>
    %c0_4 = arith.constant 0 : index
    %c0_5 = arith.constant 0 : index
    %16 = vector.load %arg3[%c0_4, %c0_5] : memref<1x32xf32, #tpu.memory_space<vmem>>, vector<1x32xf32>
    %17 = vector.broadcast %16 : vector<1x32xf32> to vector<64x32xf32>
    %18 = arith.addf %15, %17 : vector<64x32xf32>
    %19 = arith.truncf %18 : vector<64x32xf32> to vector<64x32xbf16>
    %c0_6 = arith.constant 0 : index
    %c0_7 = arith.constant 0 : index
    %20 = vector.load %arg4[%c0_6, %c0_7] : memref<64x32xbf16, #tpu.memory_space<vmem>>, vector<64x32xbf16>
    tpu.vector_store %arg4[%c0_6, %c0_7], %19 {strides = array<i32>} : memref<64x32xbf16, #tpu.memory_space<vmem>>, vector<64x32xbf16>,
    return
  }
  func.func @transform_0(%arg0: i32) -> (i32, i32, i32) {
    %c0_i32 = arith.constant 0 : i32
    %c0_i32_0 = arith.constant 0 : i32
    %c0_i32_1 = arith.constant 0 : i32
    return %c0_i32, %arg0, %c0_i32_0 : i32, i32, i32
  }
  func.func @transform_1(%arg0: i32) -> (i32, i32) {
    %c0_i32 = arith.constant 0 : i32
    %c0_i32_0 = arith.constant 0 : i32
    %c0_i32_1 = arith.constant 0 : i32
    return %c0_i32, %c0_i32_0 : i32, i32
  }
  func.func @transform_2(%arg0: i32) -> (i32, i32) {
    %c0_i32 = arith.constant 0 : i32
    %c0_i32_0 = arith.constant 0 : i32
    %c0_i32_1 = arith.constant 0 : i32
    return %c0_i32, %c0_i32_0 : i32, i32
  }
  func.func @transform_3(%arg0: i32) -> (i32, i32) {
    %c0_i32 = arith.constant 0 : i32
    %c0_i32_0 = arith.constant 0 : i32
    return %arg0, %c0_i32 : i32, i32
  }
}

module attributes {stable_mosaic.version = 11 : i64} {
  func.func @_conv_pool_mlp_kernel(%arg0: i32, %arg1: memref<4x16x8x800xbf16, #tpu.memory_space<vmem>>, %arg2: memref<800x128xbf16, #tpu.memory_space<vmem>>, %arg3: memref<1x128xf32, #tpu.memory_space<vmem>>, %arg4: memref<2048x128xbf16, #tpu.memory_space<vmem>>, %arg5: memref<1x128xf32, #tpu.memory_space<vmem>>, %arg6: memref<128x128xbf16, #tpu.memory_space<vmem>>, %arg7: memref<1x128xf32, #tpu.memory_space<vmem>>, %arg8: memref<8x128xf32, #tpu.memory_space<vmem>>) attributes {dimension_semantics = [#tpu.dimension_semantics<parallel>], iteration_bounds = array<i64: 1>, scalar_prefetch = 0 : i64, scratch_operands = 0 : i64, tpu.core_type = #tpu.core_type<tc>, window_params = [{transform_indices = @transform_0, window_bounds = array<i64: 4, 16, 8, 800>}, {pipeline_mode = #tpu.pipeline_mode<synchronous>, transform_indices = @transform_1, window_bounds = array<i64: 800, 128>}, {pipeline_mode = #tpu.pipeline_mode<synchronous>, transform_indices = @transform_2, window_bounds = array<i64: 1, 128>}, {pipeline_mode = #tpu.pipeline_mode<synchronous>, transform_indices = @transform_3, window_bounds = array<i64: 2048, 128>}, {pipeline_mode = #tpu.pipeline_mode<synchronous>, transform_indices = @transform_4, window_bounds = array<i64: 1, 128>}, {pipeline_mode = #tpu.pipeline_mode<synchronous>, transform_indices = @transform_5, window_bounds = array<i64: 128, 128>}, {pipeline_mode = #tpu.pipeline_mode<synchronous>, transform_indices = @transform_6, window_bounds = array<i64: 1, 128>}, {transform_indices = @transform_7, window_bounds = array<i64: 8, 128>}]} {
    %c0 = arith.constant 0 : index
    %c0_0 = arith.constant 0 : index
    %c0_1 = arith.constant 0 : index
    %c0_2 = arith.constant 0 : index
    %0 = vector.load %arg1[%c0, %c0_0, %c0_1, %c0_2] : memref<4x16x8x800xbf16, #tpu.memory_space<vmem>>, vector<4x16x8x800xbf16>
    %1 = vector.shape_cast %0 : vector<4x16x8x800xbf16> to vector<512x800xbf16>
    %c0_3 = arith.constant 0 : index
    %c0_4 = arith.constant 0 : index
    %2 = vector.load %arg2[%c0_3, %c0_4] : memref<800x128xbf16, #tpu.memory_space<vmem>>, vector<800x128xbf16>
    %cst = arith.constant dense<0.000000e+00> : vector<512x128xf32>
    %3 = tpu.matmul %1, %2, %cst {dimension_numbers = #tpu.dot_dimension_numbers<[1], [0], [0], [1], [0, 0, 1, 1], [], []>} : vector<512x800xbf16>, vector<800x128xbf16>, vector<512x128xf32> -> vector<512x128xf32>
    %4 = vector.shape_cast %3 : vector<512x128xf32> to vector<4x128x128xf32>
    %5 = vector.extract_strided_slice %4 {offsets = [0, 0, 0], sizes = [1, 128, 128], strides = [1, 1, 1]} : vector<4x128x128xf32> to vector<1x128x128xf32>
    %6 = vector.shape_cast %5 : vector<1x128x128xf32> to vector<128x128xf32>
    %7 = vector.extract_strided_slice %4 {offsets = [1, 0, 0], sizes = [1, 128, 128], strides = [1, 1, 1]} : vector<4x128x128xf32> to vector<1x128x128xf32>
    %8 = vector.shape_cast %7 : vector<1x128x128xf32> to vector<128x128xf32>
    %9 = arith.maximumf %6, %8 : vector<128x128xf32>
    %10 = vector.extract_strided_slice %4 {offsets = [2, 0, 0], sizes = [1, 128, 128], strides = [1, 1, 1]} : vector<4x128x128xf32> to vector<1x128x128xf32>
    %11 = vector.shape_cast %10 : vector<1x128x128xf32> to vector<128x128xf32>
    %12 = vector.extract_strided_slice %4 {offsets = [3, 0, 0], sizes = [1, 128, 128], strides = [1, 1, 1]} : vector<4x128x128xf32> to vector<1x128x128xf32>
    %13 = vector.shape_cast %12 : vector<1x128x128xf32> to vector<128x128xf32>
    %14 = arith.maximumf %11, %13 : vector<128x128xf32>
    %15 = arith.maximumf %9, %14 : vector<128x128xf32>
    %c0_5 = arith.constant 0 : index
    %c0_6 = arith.constant 0 : index
    %16 = vector.load %arg3[%c0_5, %c0_6] : memref<1x128xf32, #tpu.memory_space<vmem>>, vector<1x128xf32>
    %17 = vector.broadcast %16 : vector<1x128xf32> to vector<128x128xf32>
    %18 = arith.addf %15, %17 : vector<128x128xf32>
    %19 = vector.shape_cast %18 : vector<128x128xf32> to vector<16x8x128xf32>
    %20 = vector.extract_strided_slice %19 {offsets = [0, 0, 0], sizes = [1, 8, 128], strides = [1, 1, 1]} : vector<16x8x128xf32> to vector<1x8x128xf32>
    %21 = vector.shape_cast %20 : vector<1x8x128xf32> to vector<8x128xf32>
    %22 = vector.extract_strided_slice %19 {offsets = [1, 0, 0], sizes = [1, 8, 128], strides = [1, 1, 1]} : vector<16x8x128xf32> to vector<1x8x128xf32>
    %23 = vector.shape_cast %22 : vector<1x8x128xf32> to vector<8x128xf32>
    %24 = vector.extract_strided_slice %19 {offsets = [2, 0, 0], sizes = [1, 8, 128], strides = [1, 1, 1]} : vector<16x8x128xf32> to vector<1x8x128xf32>
    %25 = vector.shape_cast %24 : vector<1x8x128xf32> to vector<8x128xf32>
    %26 = vector.extract_strided_slice %19 {offsets = [3, 0, 0], sizes = [1, 8, 128], strides = [1, 1, 1]} : vector<16x8x128xf32> to vector<1x8x128xf32>
    %27 = vector.shape_cast %26 : vector<1x8x128xf32> to vector<8x128xf32>
    %28 = vector.extract_strided_slice %19 {offsets = [4, 0, 0], sizes = [1, 8, 128], strides = [1, 1, 1]} : vector<16x8x128xf32> to vector<1x8x128xf32>
    %29 = vector.shape_cast %28 : vector<1x8x128xf32> to vector<8x128xf32>
    %30 = vector.extract_strided_slice %19 {offsets = [5, 0, 0], sizes = [1, 8, 128], strides = [1, 1, 1]} : vector<16x8x128xf32> to vector<1x8x128xf32>
    %31 = vector.shape_cast %30 : vector<1x8x128xf32> to vector<8x128xf32>
    %32 = vector.extract_strided_slice %19 {offsets = [6, 0, 0], sizes = [1, 8, 128], strides = [1, 1, 1]} : vector<16x8x128xf32> to vector<1x8x128xf32>
    %33 = vector.shape_cast %32 : vector<1x8x128xf32> to vector<8x128xf32>
    %34 = vector.extract_strided_slice %19 {offsets = [7, 0, 0], sizes = [1, 8, 128], strides = [1, 1, 1]} : vector<16x8x128xf32> to vector<1x8x128xf32>
    %35 = vector.shape_cast %34 : vector<1x8x128xf32> to vector<8x128xf32>
    %36 = vector.extract_strided_slice %19 {offsets = [8, 0, 0], sizes = [1, 8, 128], strides = [1, 1, 1]} : vector<16x8x128xf32> to vector<1x8x128xf32>
    %37 = vector.shape_cast %36 : vector<1x8x128xf32> to vector<8x128xf32>
    %38 = vector.extract_strided_slice %19 {offsets = [9, 0, 0], sizes = [1, 8, 128], strides = [1, 1, 1]} : vector<16x8x128xf32> to vector<1x8x128xf32>
    %39 = vector.shape_cast %38 : vector<1x8x128xf32> to vector<8x128xf32>
    %40 = vector.extract_strided_slice %19 {offsets = [10, 0, 0], sizes = [1, 8, 128], strides = [1, 1, 1]} : vector<16x8x128xf32> to vector<1x8x128xf32>
    %41 = vector.shape_cast %40 : vector<1x8x128xf32> to vector<8x128xf32>
    %42 = vector.extract_strided_slice %19 {offsets = [11, 0, 0], sizes = [1, 8, 128], strides = [1, 1, 1]} : vector<16x8x128xf32> to vector<1x8x128xf32>
    %43 = vector.shape_cast %42 : vector<1x8x128xf32> to vector<8x128xf32>
    %44 = vector.extract_strided_slice %19 {offsets = [12, 0, 0], sizes = [1, 8, 128], strides = [1, 1, 1]} : vector<16x8x128xf32> to vector<1x8x128xf32>
    %45 = vector.shape_cast %44 : vector<1x8x128xf32> to vector<8x128xf32>
    %46 = vector.extract_strided_slice %19 {offsets = [13, 0, 0], sizes = [1, 8, 128], strides = [1, 1, 1]} : vector<16x8x128xf32> to vector<1x8x128xf32>
    %47 = vector.shape_cast %46 : vector<1x8x128xf32> to vector<8x128xf32>
    %48 = vector.extract_strided_slice %19 {offsets = [14, 0, 0], sizes = [1, 8, 128], strides = [1, 1, 1]} : vector<16x8x128xf32> to vector<1x8x128xf32>
    %49 = vector.shape_cast %48 : vector<1x8x128xf32> to vector<8x128xf32>
    %50 = vector.extract_strided_slice %19 {offsets = [15, 0, 0], sizes = [1, 8, 128], strides = [1, 1, 1]} : vector<16x8x128xf32> to vector<1x8x128xf32>
    %51 = vector.shape_cast %50 : vector<1x8x128xf32> to vector<8x128xf32>
    %52 = tpu.concatenate %21, %23, %25, %27, %29, %31, %33, %35, %37, %39, %41, %43, %45, %47, %49, %51 in 1 : vector<8x128xf32>, vector<8x128xf32>, vector<8x128xf32>, vector<8x128xf32>, vector<8x128xf32>, vector<8x128xf32>, vector<8x128xf32>, vector<8x128xf32>, vector<8x128xf32>, vector<8x128xf32>, vector<8x128xf32>, vector<8x128xf32>, vector<8x128xf32>, vector<8x128xf32>, vector<8x128xf32>, vector<8x128xf32> -> vector<8x2048xf32>
    %53 = arith.truncf %52 : vector<8x2048xf32> to vector<8x2048xbf16>
    %c0_7 = arith.constant 0 : index
    %c0_8 = arith.constant 0 : index
    %54 = vector.load %arg4[%c0_7, %c0_8] : memref<2048x128xbf16, #tpu.memory_space<vmem>>, vector<2048x128xbf16>
    %cst_9 = arith.constant dense<0.000000e+00> : vector<8x128xf32>
    %55 = tpu.matmul %53, %54, %cst_9 {dimension_numbers = #tpu.dot_dimension_numbers<[1], [0], [0], [1], [0, 0, 1, 1], [], []>} : vector<8x2048xbf16>, vector<2048x128xbf16>, vector<8x128xf32> -> vector<8x128xf32>
    %c0_10 = arith.constant 0 : index
    %c0_11 = arith.constant 0 : index
    %56 = vector.load %arg5[%c0_10, %c0_11] : memref<1x128xf32, #tpu.memory_space<vmem>>, vector<1x128xf32>
    %57 = vector.broadcast %56 : vector<1x128xf32> to vector<8x128xf32>
    %58 = arith.addf %55, %57 : vector<8x128xf32>
    %59 = arith.truncf %58 : vector<8x128xf32> to vector<8x128xbf16>
    %c0_12 = arith.constant 0 : index
    %c0_13 = arith.constant 0 : index
    %60 = vector.load %arg6[%c0_12, %c0_13] : memref<128x128xbf16, #tpu.memory_space<vmem>>, vector<128x128xbf16>
    %cst_14 = arith.constant dense<0.000000e+00> : vector<8x128xf32>
    %61 = tpu.matmul %59, %60, %cst_14 {dimension_numbers = #tpu.dot_dimension_numbers<[1], [0], [0], [1], [0, 0, 1, 1], [], []>} : vector<8x128xbf16>, vector<128x128xbf16>, vector<8x128xf32> -> vector<8x128xf32>
    %c0_15 = arith.constant 0 : index
    %c0_16 = arith.constant 0 : index
    %62 = vector.load %arg7[%c0_15, %c0_16] : memref<1x128xf32, #tpu.memory_space<vmem>>, vector<1x128xf32>
    %63 = vector.broadcast %62 : vector<1x128xf32> to vector<8x128xf32>
    %64 = arith.addf %61, %63 : vector<8x128xf32>
    %c0_17 = arith.constant 0 : index
    %c0_18 = arith.constant 0 : index
    %65 = vector.load %arg8[%c0_17, %c0_18] : memref<8x128xf32, #tpu.memory_space<vmem>>, vector<8x128xf32>
    tpu.vector_store %arg8[%c0_17, %c0_18], %64 {strides = array<i32>} : memref<8x128xf32, #tpu.memory_space<vmem>>, vector<8x128xf32>,
    return
  }
  func.func @transform_0(%arg0: i32) -> (i32, i32, i32, i32) {
    %c0_i32 = arith.constant 0 : i32
    %c0_i32_0 = arith.constant 0 : i32
    %c0_i32_1 = arith.constant 0 : i32
    %c0_i32_2 = arith.constant 0 : i32
    return %c0_i32, %c0_i32_0, %arg0, %c0_i32_1 : i32, i32, i32, i32
  }
  func.func @transform_1(%arg0: i32) -> (i32, i32) {
    %c0_i32 = arith.constant 0 : i32
    %c0_i32_0 = arith.constant 0 : i32
    %c0_i32_1 = arith.constant 0 : i32
    return %c0_i32, %c0_i32_0 : i32, i32
  }
  func.func @transform_2(%arg0: i32) -> (i32, i32) {
    %c0_i32 = arith.constant 0 : i32
    %c0_i32_0 = arith.constant 0 : i32
    %c0_i32_1 = arith.constant 0 : i32
    return %c0_i32, %c0_i32_0 : i32, i32
  }
  func.func @transform_3(%arg0: i32) -> (i32, i32) {
    %c0_i32 = arith.constant 0 : i32
    %c0_i32_0 = arith.constant 0 : i32
    %c0_i32_1 = arith.constant 0 : i32
    return %c0_i32, %c0_i32_0 : i32, i32
  }
  func.func @transform_4(%arg0: i32) -> (i32, i32) {
    %c0_i32 = arith.constant 0 : i32
    %c0_i32_0 = arith.constant 0 : i32
    %c0_i32_1 = arith.constant 0 : i32
    return %c0_i32, %c0_i32_0 : i32, i32
  }
  func.func @transform_5(%arg0: i32) -> (i32, i32) {
    %c0_i32 = arith.constant 0 : i32
    %c0_i32_0 = arith.constant 0 : i32
    %c0_i32_1 = arith.constant 0 : i32
    return %c0_i32, %c0_i32_0 : i32, i32
  }
  func.func @transform_6(%arg0: i32) -> (i32, i32) {
    %c0_i32 = arith.constant 0 : i32
    %c0_i32_0 = arith.constant 0 : i32
    %c0_i32_1 = arith.constant 0 : i32
    return %c0_i32, %c0_i32_0 : i32, i32
  }
  func.func @transform_7(%arg0: i32) -> (i32, i32) {
    %c0_i32 = arith.constant 0 : i32
    %c0_i32_0 = arith.constant 0 : i32
    return %arg0, %c0_i32 : i32, i32
  }
}

</mosaic_0001>

<llo_original>
// kernel: tudui_forward.3
$region0: #{tudui_forward.3}
  #allocation0 [shape = 'u32[]', space=smem, size = 0x4, offset = 0x4, fixed_abs, tag = 'smem constant byte address 0x4 - core index']
  #allocation1 [shape = 'u32[72,128]{1,0:T(1,128)}', space=vmem, size = 0x9000, scoped, tag = 'internal scratch']
  %s0 = inlined_call_operand.vmem [shape: bf16[4,512,75], index: 0, kind: input, shape index: {}]
  %s1 = inlined_call_operand.vmem [shape: bf16[75,32], index: 1, kind: input, shape index: {}]
  %s2 = inlined_call_operand.vmem [shape: f32[1,32], index: 2, kind: input, shape index: {}]
  %s3 = inlined_call_operand.vmem [shape: bf16[512,32], index: 3, kind: output, shape index: {}]
  %s4 = sld [smem:[#allocation0]]
  $region86: #{tudui_forward.3} parent=0
    _
  %s6 = ssub.s32 1, %s4
  %s7 = scalar_select 0, %s6, %s4
  $region1: #{tudui_forward.3} parent=0
    #allocation2 [shape = 'u8[524288]{0}', space=vmem, size = 0x80000, scoped, tag = 'input window, operand 0']
    loop: start=0, step=1, limit=4
    $region2: #{tudui_forward.3} parent=1 // loop_pre_header
      _
    $region3: #{tudui_forward.3} parent=1 // loop_header
      %s9 = sphi 0, %s13
      %p10 = scmp.ge.s32.totalorder %s9, 4
      %s19 = sphi 0, %s21
      %s22 = sphi 0, %s19
      %s23 = sphi 0, %s22
      %s39 = sphi 0, %s23
      %s43 = sphi 0, %s43
      %s45 = sphi 0, %s43
      %s46 = sphi 0, %s45
      %s60 = sphi 0, %s46
      %s64 = sphi 0, %s64
      %s66 = sphi 0, %s64
      %s67 = sphi 0, %s66
      %s81 = sphi 0, %s67
      %s87 = sphi 0, %s89
      %s90 = sphi 0, %s87
      %s91 = sphi 0, %s90
      %s107 = sphi 0, %s91
    $region4: #{tudui_forward.3} parent=1 // loop_header_branch
      %12 = sbr.rel (%p10) target = $region8
    $region5: #{tudui_forward.3} parent=1 // loop_body
      %s14 = ssub.s32 %s9, 1
      %s15 = ssub.s32 %s9, 2
      %s16 = sadd.s32 %s9, 1
      %s17 = ssub.s32 %s9, %s16
      %p18 = scmp.eq.s32.totalorder %s17, 0
      %s20 = sadd.s32 %s19, 1
      %s21 = scalar_select %p18, %s19, %s20
      %p24 = pneg %p18
      %p25 = scmp.eq.s32.totalorder %s9, 1
      %p26 = por %p24, %p25
      %p27 = scmp.ne.s32.totalorder %s19, %s22
      %p28 = scmp.eq.s32.totalorder %s9, 0
      %p29 = por %p27, %p28
      %p30 = scmp.ne.s32.totalorder %s19, %s22
      %p31 = scmp.eq.s32.totalorder %s14, 1
      %p32 = por %p30, %p31
      %p33 = scmp.ne.s32.totalorder %s22, %s23
      %p34 = scmp.eq.s32.totalorder %s14, 0
      %p35 = por %p33, %p34
      %p36 = scmp.ne.s32.totalorder %s22, %s23
      %p37 = scmp.eq.s32.totalorder %s15, 1
      %p38 = por %p36, %p37
      %p40 = scmp.ne.s32.totalorder %s23, %s39
      %p41 = scmp.eq.s32.totalorder %s15, 0
      %p42 = por %p40, %p41
      %s44 = sadd.s32 %s43, 1
      %p47 = scmp.eq.s32.totalorder %s9, 1
      %p48 = scmp.ne.s32.totalorder %s43, %s45
      %p49 = scmp.eq.s32.totalorder %s9, 0
      %p50 = por %p48, %p49
      %p51 = scmp.ne.s32.totalorder %s43, %s45
      %p52 = scmp.eq.s32.totalorder %s14, 1
      %p53 = por %p51, %p52
      %p54 = scmp.ne.s32.totalorder %s45, %s46
      %p55 = scmp.eq.s32.totalorder %s14, 0
      %p56 = por %p54, %p55
      %p57 = scmp.ne.s32.totalorder %s45, %s46
      %p58 = scmp.eq.s32.totalorder %s15, 1
      %p59 = por %p57, %p58
      %p61 = scmp.ne.s32.totalorder %s46, %s60
      %p62 = scmp.eq.s32.totalorder %s15, 0
      %p63 = por %p61, %p62
      %s65 = sadd.s32 %s64, 1
      %p68 = scmp.eq.s32.totalorder %s9, 1
      %p69 = scmp.ne.s32.totalorder %s64, %s66
      %p70 = scmp.eq.s32.totalorder %s9, 0
      %p71 = por %p69, %p70
      %p72 = scmp.ne.s32.totalorder %s64, %s66
      %p73 = scmp.eq.s32.totalorder %s14, 1
      %p74 = por %p72, %p73
      %p75 = scmp.ne.s32.totalorder %s66, %s67
      %p76 = scmp.eq.s32.totalorder %s14, 0
      %p77 = por %p75, %p76
      %p78 = scmp.ne.s32.totalorder %s66, %s67
      %p79 = scmp.eq.s32.totalorder %s15, 1
      %p80 = por %p78, %p79
      %p82 = scmp.ne.s32.totalorder %s67, %s81
      %p83 = scmp.eq.s32.totalorder %s15, 0
      %p84 = por %p82, %p83
      %s85 = ssub.s32 %s9, %s16
      %p86 = scmp.eq.s32.totalorder %s85, 0
      %s88 = sadd.s32 %s87, 1
      %s89 = scalar_select %p86, %s87, %s88
      %p92 = pneg %p86
      %p93 = scmp.eq.s32.totalorder %s9, 1
      %p94 = por %p92, %p93
      %p95 = scmp.ne.s32.totalorder %s87, %s90
      %p96 = scmp.eq.s32.totalorder %s9, 0
      %p97 = por %p95, %p96
      %p98 = scmp.ne.s32.totalorder %s87, %s90
      %p99 = scmp.eq.s32.totalorder %s14, 1
      %p100 = por %p98, %p99
      %p101 = scmp.ne.s32.totalorder %s90, %s91
      %p102 = scmp.eq.s32.totalorder %s14, 0
      %p103 = por %p101, %p102
      %p104 = scmp.ne.s32.totalorder %s90, %s91
      %p105 = scmp.eq.s32.totalorder %s15, 1
      %p106 = por %p104, %p105
      %p108 = scmp.ne.s32.totalorder %s91, %s107
      %p109 = scmp.eq.s32.totalorder %s15, 0
      %p110 = por %p108, %p109
      %p111 = scmp.le.s32.totalorder 1, %s9
      %p112 = scmp.lt.s32.totalorder %s9, 3
      %p113 = pnand %p111, %p112
      %p114 = pneg %p113
      // Predicated region
      $region9: #{tudui_forward.3} parent=5 // pred_check
        _
      $region10: #{tudui_forward.3} parent=5 // pred_check_branch
        %116 = sbr.rel (%p113) target = $region12
      $region11: #{tudui_forward.3} parent=5 // pred_region
        %s117 = ssub.s32 %s9, 1
        // Predicated region
        $region13: #{tudui_forward.3} parent=11 // pred_check
          %p118 = pneg %p56
        $region14: #{tudui_forward.3} parent=11 // pred_check_branch
          %120 = sbr.rel (%p118) target = $region16
        $region15: #{tudui_forward.3} parent=11 // pred_region
          _
        $region16: #{tudui_forward.3} parent=11 // pred_fallthru
          _
        // Predicated region
        $region17: #{tudui_forward.3} parent=11 // pred_check
          %p121 = pneg %p77
        $region18: #{tudui_forward.3} parent=11 // pred_check_branch
          %123 = sbr.rel (%p121) target = $region20
        $region19: #{tudui_forward.3} parent=11 // pred_region
          _
        $region20: #{tudui_forward.3} parent=11 // pred_fallthru
          _
      $region12: #{tudui_forward.3} parent=5 // pred_fallthru
        _
      %p124 = scmp.lt.s32.totalorder %s9, 2
      // Predicated region
      $region21: #{tudui_forward.3} parent=5 // pred_check
        %p125 = pneg %p124
      $region22: #{tudui_forward.3} parent=5 // pred_check_branch
        %127 = sbr.rel (%p125) target = $region24
      $region23: #{tudui_forward.3} parent=5 // pred_region
        // Predicated region
        $region25: #{tudui_forward.3} parent=23 // pred_check
          %p128 = pneg %p29
        $region26: #{tudui_forward.3} parent=23 // pred_check_branch
          %130 = sbr.rel (%p128) target = $region28
        $region27: #{tudui_forward.3} parent=23 // pred_region
          %s131 = sand.u32 %s19, 1
          %s132 = sand.u32 %s19, 1
          %s133 = smul.addr %s132, 512
          %s134 = scalar_lea.vmem [#allocation2], %s133
          %s135 = smul.u32 32, %s9
          %s136 = smul.addr %s135, 4
          %s137 = scalar_lea.vmem %s0, %s136
          // Predicated region
          $region29: #{tudui_forward.3} parent=27 // pred_check
            _
          $region30: #{tudui_forward.3} parent=27 // pred_check_branch
            %139 = sbr.rel (0) target = $region32
          $region31: #{tudui_forward.3} parent=27 // pred_region
            // Predicated region
            $region33: #{tudui_forward.3} parent=31 // pred_check
              _
            $region34: #{tudui_forward.3} parent=31 // pred_check_branch
              %141 = sbr.rel target = $region36
            $region35: #{tudui_forward.3} parent=31 // pred_region
              // Predicated region
              $region48: #{tudui_forward.3} parent=35 // pred_check
                _
              $region49: #{tudui_forward.3} parent=35 // pred_check_branch
                %411 = sbr.rel (0) target = $region51
              $region50: #{tudui_forward.3} parent=35 // pred_region
                loop: start=0, step=1, limit=1
                $region52: #{tudui_forward.3} parent=50 // loop_pre_header
                  _
                $region53: #{tudui_forward.3} parent=50 // loop_header
                  %s413 = sphi 0, %s417
                  %p414 = scmp.ge.s32.totalorder %s413, 1
                  %s418 = sphi %s137, %s137
                  %s419 = sphi %s134, %s134
                $region54: #{tudui_forward.3} parent=50 // loop_header_branch
                  %416 = sbr.rel (%p414) target = $region58
                $region55: #{tudui_forward.3} parent=50 // loop_body
                  _
                $region56: #{tudui_forward.3} parent=50 // loop_footer
                  %s417 = sadd.s32 1, %s413
                $region57: #{tudui_forward.3} parent=50 // loop_footer_branch
                  %412 = sbr.rel target = $region53
                $region58: #{tudui_forward.3} parent=50 // loop_exit
                  _
                %s421 = ssub.s32 16, 1
                loop: start=0, step=1, limit=1
                $region59: #{tudui_forward.3} parent=50 // loop_pre_header
                  _
                $region60: #{tudui_forward.3} parent=50 // loop_header
                  %s423 = sphi 0, %s427
                  %p424 = scmp.ge.s32.totalorder %s423, 1
                  %s428 = sphi %s137, %s137
                  %s429 = sphi %s134, %s134
                $region61: #{tudui_forward.3} parent=50 // loop_header_branch
                  %426 = sbr.rel (%p424) target = $region65
                $region62: #{tudui_forward.3} parent=50 // loop_body
                  %v430 = vld [vmem:[%s428] sm:%s421]
                  %431 = vst [vmem:[%s429] sm:%s421] %v430
                  %v432 = vld [vmem:[%s428 + $0x4] sm:%s421]
                  %433 = vst [vmem:[%s429 + $0x4] sm:%s421] %v432
                  %v434 = vld [vmem:[%s428 + $0x8] sm:%s421]
                  %435 = vst [vmem:[%s429 + $0x8] sm:%s421] %v434
                  %v436 = vld [vmem:[%s428 + $0xc] sm:%s421]
                  %437 = vst [vmem:[%s429 + $0xc] sm:%s421] %v436
                  %v438 = vld [vmem:[%s428 + $0x10] sm:%s421]
                  %439 = vst [vmem:[%s429 + $0x10] sm:%s421] %v438
                  %v440 = vld [vmem:[%s428 + $0x14] sm:%s421]
                  %441 = vst [vmem:[%s429 + $0x14] sm:%s421] %v440
                  %v442 = vld [vmem:[%s428 + $0x18] sm:%s421]
                  %443 = vst [vmem:[%s429 + $0x18] sm:%s421] %v442
                  %v444 = vld [vmem:[%s428 + $0x1c] sm:%s421]
                  %445 = vst [vmem:[%s429 + $0x1c] sm:%s421] %v444
                  %v446 = vld [vmem:[%s428 + $0x20] sm:%s421]
                  %447 = vst [vmem:[%s429 + $0x20] sm:%s421] %v446
                  %v448 = vld [vmem:[%s428 + $0x24] sm:%s421]
                  %449 = vst [vmem:[%s429 + $0x24] sm:%s421] %v448
                  %v450 = vld [vmem:[%s428 + $0x28] sm:%s421]
                  %451 = vst [vmem:[%s429 + $0x28] sm:%s421] %v450
                  %v452 = vld [vmem:[%s428 + $0x2c] sm:%s421]
                  %453 = vst [vmem:[%s429 + $0x2c] sm:%s421] %v452
                  %v454 = vld [vmem:[%s428 + $0x30] sm:%s421]
                  %455 = vst [vmem:[%s429 + $0x30] sm:%s421] %v454
                  %v456 = vld [vmem:[%s428 + $0x34] sm:%s421]
                  %457 = vst [vmem:[%s429 + $0x34] sm:%s421] %v456
                  %v458 = vld [vmem:[%s428 + $0x38] sm:%s421]
                  %459 = vst [vmem:[%s429 + $0x38] sm:%s421] %v458
                  %v460 = vld [vmem:[%s428 + $0x3c] sm:%s421]
                  %461 = vst [vmem:[%s429 + $0x3c] sm:%s421] %v460
                  %v462 = vld [vmem:[%s428 + $0x40] sm:%s421]
                  %463 = vst [vmem:[%s429 + $0x40] sm:%s421] %v462
                  %v464 = vld [vmem:[%s428 + $0x44] sm:%s421]
                  %465 = vst [vmem:[%s429 + $0x44] sm:%s421] %v464
                  %v466 = vld [vmem:[%s428 + $0x48] sm:%s421]
                  %467 = vst [vmem:[%s429 + $0x48] sm:%s421] %v466
                  %v468 = vld [vmem:[%s428 + $0x4c] sm:%s421]
                  %469 = vst [vmem:[%s429 + $0x4c] sm:%s421] %v468
                  %v470 = vld [vmem:[%s428 + $0x50] sm:%s421]
                  %471 = vst [vmem:[%s429 + $0x50] sm:%s421] %v470
                  %v472 = vld [vmem:[%s428 + $0x54] sm:%s421]
                  %473 = vst [vmem:[%s429 + $0x54] sm:%s421] %v472
                  %v474 = vld [vmem:[%s428 + $0x58] sm:%s421]
                  %475 = vst [vmem:[%s429 + $0x58] sm:%s421] %v474
                  %v476 = vld [vmem:[%s428 + $0x5c] sm:%s421]
                  %477 = vst [vmem:[%s429 + $0x5c] sm:%s421] %v476
                  %v478 = vld [vmem:[%s428 + $0x60] sm:%s421]
                  %479 = vst [vmem:[%s429 + $0x60] sm:%s421] %v478
                  %v480 = vld [vmem:[%s428 + $0x64] sm:%s421]
                  %481 = vst [vmem:[%s429 + $0x64] sm:%s421] %v480
                  %v482 = vld [vmem:[%s428 + $0x68] sm:%s421]
                  %483 = vst [vmem:[%s429 + $0x68] sm:%s421] %v482
                  %v484 = vld [vmem:[%s428 + $0x6c] sm:%s421]
                  %485 = vst [vmem:[%s429 + $0x6c] sm:%s421] %v484
                  %v486 = vld [vmem:[%s428 + $0x70] sm:%s421]
                  %487 = vst [vmem:[%s429 + $0x70] sm:%s421] %v486
                  %v488 = vld [vmem:[%s428 + $0x74] sm:%s421]
                  %489 = vst [vmem:[%s429 + $0x74] sm:%s421] %v488
                  %v490 = vld [vmem:[%s428 + $0x78] sm:%s421]
                  %491 = vst [vmem:[%s429 + $0x78] sm:%s421] %v490
                  %v492 = vld [vmem:[%s428 + $0x7c] sm:%s421]
                  %493 = vst [vmem:[%s429 + $0x7c] sm:%s421] %v492
                  %v494 = vld [vmem:[%s428 + $0x100] sm:%s421]
                  %495 = vst [vmem:[%s429 + $0x80] sm:%s421] %v494
                  %v496 = vld [vmem:[%s428 + $0x104] sm:%s421]
                  %497 = vst [vmem:[%s429 + $0x84] sm:%s421] %v496
                  %v498 = vld [vmem:[%s428 + $0x108] sm:%s421]
                  %499 = vst [vmem:[%s429 + $0x88] sm:%s421] %v498
                  %v500 = vld [vmem:[%s428 + $0x10c] sm:%s421]
                  %501 = vst [vmem:[%s429 + $0x8c] sm:%s421] %v500
                  %v502 = vld [vmem:[%s428 + $0x110] sm:%s421]
                  %503 = vst [vmem:[%s429 + $0x90] sm:%s421] %v502
                  %v504 = vld [vmem:[%s428 + $0x114] sm:%s421]
                  %505 = vst [vmem:[%s429 + $0x94] sm:%s421] %v504
                  %v506 = vld [vmem:[%s428 + $0x118] sm:%s421]
                  %507 = vst [vmem:[%s429 + $0x98] sm:%s421] %v506
                  %v508 = vld [vmem:[%s428 + $0x11c] sm:%s421]
                  %509 = vst [vmem:[%s429 + $0x9c] sm:%s421] %v508
                  %v510 = vld [vmem:[%s428 + $0x120] sm:%s421]
                  %511 = vst [vmem:[%s429 + $0xa0] sm:%s421] %v510
                  %v512 = vld [vmem:[%s428 + $0x124] sm:%s421]
                  %513 = vst [vmem:[%s429 + $0xa4] sm:%s421] %v512
                  %v514 = vld [vmem:[%s428 + $0x128] sm:%s421]
                  %515 = vst [vmem:[%s429 + $0xa8] sm:%s421] %v514
                  %v516 = vld [vmem:[%s428 + $0x12c] sm:%s421]
                  %517 = vst [vmem:[%s429 + $0xac] sm:%s421] %v516
                  %v518 = vld [vmem:[%s428 + $0x130] sm:%s421]
                  %519 = vst [vmem:[%s429 + $0xb0] sm:%s421] %v518
                  %v520 = vld [vmem:[%s428 + $0x134] sm:%s421]
                  %521 = vst [vmem:[%s429 + $0xb4] sm:%s421] %v520
                  %v522 = vld [vmem:[%s428 + $0x138] sm:%s421]
                  %523 = vst [vmem:[%s429 + $0xb8] sm:%s421] %v522
                  %v524 = vld [vmem:[%s428 + $0x13c] sm:%s421]
                  %525 = vst [vmem:[%s429 + $0xbc] sm:%s421] %v524
                  %v526 = vld [vmem:[%s428 + $0x140] sm:%s421]
                  %527 = vst [vmem:[%s429 + $0xc0] sm:%s421] %v526
                  %v528 = vld [vmem:[%s428 + $0x144] sm:%s421]
                  %529 = vst [vmem:[%s429 + $0xc4] sm:%s421] %v528
                  %v530 = vld [vmem:[%s428 + $0x148] sm:%s421]
                  %531 = vst [vmem:[%s429 + $0xc8] sm:%s421] %v530
                  %v532 = vld [vmem:[%s428 + $0x14c] sm:%s421]
                  %533 = vst [vmem:[%s429 + $0xcc] sm:%s421] %v532
                  %v534 = vld [vmem:[%s428 + $0x150] sm:%s421]
                  %535 = vst [vmem:[%s429 + $0xd0] sm:%s421] %v534
                  %v536 = vld [vmem:[%s428 + $0x154] sm:%s421]
                  %537 = vst [vmem:[%s429 + $0xd4] sm:%s421] %v536
                  %v538 = vld [vmem:[%s428 + $0x158] sm:%s421]
                  %539 = vst [vmem:[%s429 + $0xd8] sm:%s421] %v538
                  %v540 = vld [vmem:[%s428 + $0x15c] sm:%s421]
                  %541 = vst [vmem:[%s429 + $0xdc] sm:%s421] %v540
                  %v542 = vld [vmem:[%s428 + $0x160] sm:%s421]
                  %543 = vst [vmem:[%s429 + $0xe0] sm:%s421] %v542
                  %v544 = vld [vmem:[%s428 + $0x164] sm:%s421]
                  %545 = vst [vmem:[%s429 + $0xe4] sm:%s421] %v544
                  %v546 = vld [vmem:[%s428 + $0x168] sm:%s421]
                  %547 = vst [vmem:[%s429 + $0xe8] sm:%s421] %v546
                  %v548 = vld [vmem:[%s428 + $0x16c] sm:%s421]
                  %549 = vst [vmem:[%s429 + $0xec] sm:%s421] %v548
                  %v550 = vld [vmem:[%s428 + $0x170] sm:%s421]
                  %551 = vst [vmem:[%s429 + $0xf0] sm:%s421] %v550
                  %v552 = vld [vmem:[%s428 + $0x174] sm:%s421]
                  %553 = vst [vmem:[%s429 + $0xf4] sm:%s421] %v552
                  %v554 = vld [vmem:[%s428 + $0x178] sm:%s421]
                  %555 = vst [vmem:[%s429 + $0xf8] sm:%s421] %v554
                  %v556 = vld [vmem:[%s428 + $0x17c] sm:%s421]
                  %557 = vst [vmem:[%s429 + $0xfc] sm:%s421] %v556
                  %v558 = vld [vmem:[%s428 + $0x200] sm:%s421]
                  %559 = vst [vmem:[%s429 + $0x100] sm:%s421] %v558
                  %v560 = vld [vmem:[%s428 + $0x204] sm:%s421]
                  %561 = vst [vmem:[%s429 + $0x104] sm:%s421] %v560
                  %v562 = vld [vmem:[%s428 + $0x208] sm:%s421]
                  %563 = vst [vmem:[%s429 + $0x108] sm:%s421] %v562
                  %v564 = vld [vmem:[%s428 + $0x20c] sm:%s421]
                  %565 = vst [vmem:[%s429 + $0x10c] sm:%s421] %v564
                  %v566 = vld [vmem:[%s428 + $0x210] sm:%s421]
                  %567 = vst [vmem:[%s429 + $0x110] sm:%s421] %v566
                  %v568 = vld [vmem:[%s428 + $0x214] sm:%s421]
                  %569 = vst [vmem:[%s429 + $0x114] sm:%s421] %v568
                  %v570 = vld [vmem:[%s428 + $0x218] sm:%s421]
                  %571 = vst [vmem:[%s429 + $0x118] sm:%s421] %v570
                  %v572 = vld [vmem:[%s428 + $0x21c] sm:%s421]
                  %573 = vst [vmem:[%s429 + $0x11c] sm:%s421] %v572
                  %v574 = vld [vmem:[%s428 + $0x220] sm:%s421]
                  %575 = vst [vmem:[%s429 + $0x120] sm:%s421] %v574
                  %v576 = vld [vmem:[%s428 + $0x224] sm:%s421]
                  %577 = vst [vmem:[%s429 + $0x124] sm:%s421] %v576
                  %v578 = vld [vmem:[%s428 + $0x228] sm:%s421]
                  %579 = vst [vmem:[%s429 + $0x128] sm:%s421] %v578
                  %v580 = vld [vmem:[%s428 + $0x22c] sm:%s421]
                  %581 = vst [vmem:[%s429 + $0x12c] sm:%s421] %v580
                  %v582 = vld [vmem:[%s428 + $0x230] sm:%s421]
                  %583 = vst [vmem:[%s429 + $0x130] sm:%s421] %v582
                  %v584 = vld [vmem:[%s428 + $0x234] sm:%s421]
                  %585 = vst [vmem:[%s429 + $0x134] sm:%s421] %v584
                  %v586 = vld [vmem:[%s428 + $0x238] sm:%s421]
                  %587 = vst [vmem:[%s429 + $0x138] sm:%s421] %v586
                  %v588 = vld [vmem:[%s428 + $0x23c] sm:%s421]
                  %589 = vst [vmem:[%s429 + $0x13c] sm:%s421] %v588
                  %v590 = vld [vmem:[%s428 + $0x240] sm:%s421]
                  %591 = vst [vmem:[%s429 + $0x140] sm:%s421] %v590
                  %v592 = vld [vmem:[%s428 + $0x244] sm:%s421]
                  %593 = vst [vmem:[%s429 + $0x144] sm:%s421] %v592
                  %v594 = vld [vmem:[%s428 + $0x248] sm:%s421]
                  %595 = vst [vmem:[%s429 + $0x148] sm:%s421] %v594
                  %v596 = vld [vmem:[%s428 + $0x24c] sm:%s421]
                  %597 = vst [vmem:[%s429 + $0x14c] sm:%s421] %v596
                  %v598 = vld [vmem:[%s428 + $0x250] sm:%s421]
                  %599 = vst [vmem:[%s429 + $0x150] sm:%s421] %v598
                  %v600 = vld [vmem:[%s428 + $0x254] sm:%s421]
                  %601 = vst [vmem:[%s429 + $0x154] sm:%s421] %v600
                  %v602 = vld [vmem:[%s428 + $0x258] sm:%s421]
                  %603 = vst [vmem:[%s429 + $0x158] sm:%s421] %v602
                  %v604 = vld [vmem:[%s428 + $0x25c] sm:%s421]
                  %605 = vst [vmem:[%s429 + $0x15c] sm:%s421] %v604
                  %v606 = vld [vmem:[%s428 + $0x260] sm:%s421]
                  %607 = vst [vmem:[%s429 + $0x160] sm:%s421] %v606
                  %v608 = vld [vmem:[%s428 + $0x264] sm:%s421]
                  %609 = vst [vmem:[%s429 + $0x164] sm:%s421] %v608
                  %v610 = vld [vmem:[%s428 + $0x268] sm:%s421]
                  %611 = vst [vmem:[%s429 + $0x168] sm:%s421] %v610
                  %v612 = vld [vmem:[%s428 + $0x26c] sm:%s421]
                  %613 = vst [vmem:[%s429 + $0x16c] sm:%s421] %v612
                  %v614 = vld [vmem:[%s428 + $0x270] sm:%s421]
                  %615 = vst [vmem:[%s429 + $0x170] sm:%s421] %v614
                  %v616 = vld [vmem:[%s428 + $0x274] sm:%s421]
                  %617 = vst [vmem:[%s429 + $0x174] sm:%s421] %v616
                  %v618 = vld [vmem:[%s428 + $0x278] sm:%s421]
                  %619 = vst [vmem:[%s429 + $0x178] sm:%s421] %v618
                  %v620 = vld [vmem:[%s428 + $0x27c] sm:%s421]
                  %621 = vst [vmem:[%s429 + $0x17c] sm:%s421] %v620
                  %v622 = vld [vmem:[%s428 + $0x300] sm:%s421]
                  %623 = vst [vmem:[%s429 + $0x180] sm:%s421] %v622
                  %v624 = vld [vmem:[%s428 + $0x304] sm:%s421]
                  %625 = vst [vmem:[%s429 + $0x184] sm:%s421] %v624
                  %v626 = vld [vmem:[%s428 + $0x308] sm:%s421]
                  %627 = vst [vmem:[%s429 + $0x188] sm:%s421] %v626
                  %v628 = vld [vmem:[%s428 + $0x30c] sm:%s421]
                  %629 = vst [vmem:[%s429 + $0x18c] sm:%s421] %v628
                  %v630 = vld [vmem:[%s428 + $0x310] sm:%s421]
                  %631 = vst [vmem:[%s429 + $0x190] sm:%s421] %v630
                  %v632 = vld [vmem:[%s428 + $0x314] sm:%s421]
                  %633 = vst [vmem:[%s429 + $0x194] sm:%s421] %v632
                  %v634 = vld [vmem:[%s428 + $0x318] sm:%s421]
                  %635 = vst [vmem:[%s429 + $0x198] sm:%s421] %v634
                  %v636 = vld [vmem:[%s428 + $0x31c] sm:%s421]
                  %637 = vst [vmem:[%s429 + $0x19c] sm:%s421] %v636
                  %v638 = vld [vmem:[%s428 + $0x320] sm:%s421]
                  %639 = vst [vmem:[%s429 + $0x1a0] sm:%s421] %v638
                  %v640 = vld [vmem:[%s428 + $0x324] sm:%s421]
                  %641 = vst [vmem:[%s429 + $0x1a4] sm:%s421] %v640
                  %v642 = vld [vmem:[%s428 + $0x328] sm:%s421]
                  %643 = vst [vmem:[%s429 + $0x1a8] sm:%s421] %v642
                  %v644 = vld [vmem:[%s428 + $0x32c] sm:%s421]
                  %645 = vst [vmem:[%s429 + $0x1ac] sm:%s421] %v644
                  %v646 = vld [vmem:[%s428 + $0x330] sm:%s421]
                  %647 = vst [vmem:[%s429 + $0x1b0] sm:%s421] %v646
                  %v648 = vld [vmem:[%s428 + $0x334] sm:%s421]
                  %649 = vst [vmem:[%s429 + $0x1b4] sm:%s421] %v648
                  %v650 = vld [vmem:[%s428 + $0x338] sm:%s421]
                  %651 = vst [vmem:[%s429 + $0x1b8] sm:%s421] %v650
                  %v652 = vld [vmem:[%s428 + $0x33c] sm:%s421]
                  %653 = vst [vmem:[%s429 + $0x1bc] sm:%s421] %v652
                  %v654 = vld [vmem:[%s428 + $0x340] sm:%s421]
                  %655 = vst [vmem:[%s429 + $0x1c0] sm:%s421] %v654
                  %v656 = vld [vmem:[%s428 + $0x344] sm:%s421]
                  %657 = vst [vmem:[%s429 + $0x1c4] sm:%s421] %v656
                  %v658 = vld [vmem:[%s428 + $0x348] sm:%s421]
                  %659 = vst [vmem:[%s429 + $0x1c8] sm:%s421] %v658
                  %v660 = vld [vmem:[%s428 + $0x34c] sm:%s421]
                  %661 = vst [vmem:[%s429 + $0x1cc] sm:%s421] %v660
                  %v662 = vld [vmem:[%s428 + $0x350] sm:%s421]
                  %663 = vst [vmem:[%s429 + $0x1d0] sm:%s421] %v662
                  %v664 = vld [vmem:[%s428 + $0x354] sm:%s421]
                  %665 = vst [vmem:[%s429 + $0x1d4] sm:%s421] %v664
                  %v666 = vld [vmem:[%s428 + $0x358] sm:%s421]
                  %667 = vst [vmem:[%s429 + $0x1d8] sm:%s421] %v666
                  %v668 = vld [vmem:[%s428 + $0x35c] sm:%s421]
                  %669 = vst [vmem:[%s429 + $0x1dc] sm:%s421] %v668
                  %v670 = vld [vmem:[%s428 + $0x360] sm:%s421]
                  %671 = vst [vmem:[%s429 + $0x1e0] sm:%s421] %v670
                  %v672 = vld [vmem:[%s428 + $0x364] sm:%s421]
                  %673 = vst [vmem:[%s429 + $0x1e4] sm:%s421] %v672
                  %v674 = vld [vmem:[%s428 + $0x368] sm:%s421]
                  %675 = vst [vmem:[%s429 + $0x1e8] sm:%s421] %v674
                  %v676 = vld [vmem:[%s428 + $0x36c] sm:%s421]
                  %677 = vst [vmem:[%s429 + $0x1ec] sm:%s421] %v676
                  %v678 = vld [vmem:[%s428 + $0x370] sm:%s421]
                  %679 = vst [vmem:[%s429 + $0x1f0] sm:%s421] %v678
                  %v680 = vld [vmem:[%s428 + $0x374] sm:%s421]
                  %681 = vst [vmem:[%s429 + $0x1f4] sm:%s421] %v680
                  %v682 = vld [vmem:[%s428 + $0x378] sm:%s421]
                  %683 = vst [vmem:[%s429 + $0x1f8] sm:%s421] %v682
                  %v684 = vld [vmem:[%s428 + $0x37c] sm:%s421]
                  %685 = vst [vmem:[%s429 + $0x1fc] sm:%s421] %v684
                $region63: #{tudui_forward.3} parent=50 // loop_footer
                  %s427 = sadd.s32 1, %s423
                $region64: #{tudui_forward.3} parent=50 // loop_footer_branch
                  %422 = sbr.rel target = $region60
                $region65: #{tudui_forward.3} parent=50 // loop_exit
                  _
              $region51: #{tudui_forward.3} parent=35 // pred_fallthru
                _
            $region36: #{tudui_forward.3} parent=31 // pred_fallthru
              _
            // Predicated region
            $region37: #{tudui_forward.3} parent=31 // pred_check
              _
            $region38: #{tudui_forward.3} parent=31 // pred_check_branch
              %143 = sbr.rel (0) target = $region40
            $region39: #{tudui_forward.3} parent=31 // pred_region
              %s145 = ssub.s32 16, 1
              loop: start=0, step=1, limit=1
              $region41: #{tudui_forward.3} parent=39 // loop_pre_header
                _
              $region42: #{tudui_forward.3} parent=39 // loop_header
                %s147 = sphi 0, %s151
                %p148 = scmp.ge.s32.totalorder %s147, 1
                %s152 = sphi %s137, %s137
                %s153 = sphi %s134, %s134
              $region43: #{tudui_forward.3} parent=39 // loop_header_branch
                %150 = sbr.rel (%p148) target = $region47
              $region44: #{tudui_forward.3} parent=39 // loop_body
                %v154 = vld [vmem:[%s152] sm:%s145]
                %155 = vst [vmem:[%s153] sm:%s145] %v154
                %v156 = vld [vmem:[%s152 + $0x4] sm:%s145]
                %157 = vst [vmem:[%s153 + $0x4] sm:%s145] %v156
                %v158 = vld [vmem:[%s152 + $0x8] sm:%s145]
                %159 = vst [vmem:[%s153 + $0x8] sm:%s145] %v158
                %v160 = vld [vmem:[%s152 + $0xc] sm:%s145]
                %161 = vst [vmem:[%s153 + $0xc] sm:%s145] %v160
                %v162 = vld [vmem:[%s152 + $0x10] sm:%s145]
                %163 = vst [vmem:[%s153 + $0x10] sm:%s145] %v162
                %v164 = vld [vmem:[%s152 + $0x14] sm:%s145]
                %165 = vst [vmem:[%s153 + $0x14] sm:%s145] %v164
                %v166 = vld [vmem:[%s152 + $0x18] sm:%s145]
                %167 = vst [vmem:[%s153 + $0x18] sm:%s145] %v166
                %v168 = vld [vmem:[%s152 + $0x1c] sm:%s145]
                %169 = vst [vmem:[%s153 + $0x1c] sm:%s145] %v168
                %v170 = vld [vmem:[%s152 + $0x20] sm:%s145]
                %171 = vst [vmem:[%s153 + $0x20] sm:%s145] %v170
                %v172 = vld [vmem:[%s152 + $0x24] sm:%s145]
                %173 = vst [vmem:[%s153 + $0x24] sm:%s145] %v172
                %v174 = vld [vmem:[%s152 + $0x28] sm:%s145]
                %175 = vst [vmem:[%s153 + $0x28] sm:%s145] %v174
                %v176 = vld [vmem:[%s152 + $0x2c] sm:%s145]
                %177 = vst [vmem:[%s153 + $0x2c] sm:%s145] %v176
                %v178 = vld [vmem:[%s152 + $0x30] sm:%s145]
                %179 = vst [vmem:[%s153 + $0x30] sm:%s145] %v178
                %v180 = vld [vmem:[%s152 + $0x34] sm:%s145]
                %181 = vst [vmem:[%s153 + $0x34] sm:%s145] %v180
                %v182 = vld [vmem:[%s152 + $0x38] sm:%s145]
                %183 = vst [vmem:[%s153 + $0x38] sm:%s145] %v182
                %v184 = vld [vmem:[%s152 + $0x3c] sm:%s145]
                %185 = vst [vmem:[%s153 + $0x3c] sm:%s145] %v184
                %v186 = vld [vmem:[%s152 + $0x40] sm:%s145]
                %187 = vst [vmem:[%s153 + $0x40] sm:%s145] %v186
                %v188 = vld [vmem:[%s152 + $0x44] sm:%s145]
                %189 = vst [vmem:[%s153 + $0x44] sm:%s145] %v188
                %v190 = vld [vmem:[%s152 + $0x48] sm:%s145]
                %191 = vst [vmem:[%s153 + $0x48] sm:%s145] %v190
                %v192 = vld [vmem:[%s152 + $0x4c] sm:%s145]
                %193 = vst [vmem:[%s153 + $0x4c] sm:%s145] %v192
                %v194 = vld [vmem:[%s152 + $0x50] sm:%s145]
                %195 = vst [vmem:[%s153 + $0x50] sm:%s145] %v194
                %v196 = vld [vmem:[%s152 + $0x54] sm:%s145]
                %197 = vst [vmem:[%s153 + $0x54] sm:%s145] %v196
                %v198 = vld [vmem:[%s152 + $0x58] sm:%s145]
                %199 = vst [vmem:[%s153 + $0x58] sm:%s145] %v198
                %v200 = vld [vmem:[%s152 + $0x5c] sm:%s145]
                %201 = vst [vmem:[%s153 + $0x5c] sm:%s145] %v200
                %v202 = vld [vmem:[%s152 + $0x60] sm:%s145]
                %203 = vst [vmem:[%s153 + $0x60] sm:%s145] %v202
                %v204 = vld [vmem:[%s152 + $0x64] sm:%s145]
                %205 = vst [vmem:[%s153 + $0x64] sm:%s145] %v204
                %v206 = vld [vmem:[%s152 + $0x68] sm:%s145]
                %207 = vst [vmem:[%s153 + $0x68] sm:%s145] %v206
                %v208 = vld [vmem:[%s152 + $0x6c] sm:%s145]
                %209 = vst [vmem:[%s153 + $0x6c] sm:%s145] %v208
                %v210 = vld [vmem:[%s152 + $0x70] sm:%s145]
                %211 = vst [vmem:[%s153 + $0x70] sm:%s145] %v210
                %v212 = vld [vmem:[%s152 + $0x74] sm:%s145]
                %213 = vst [vmem:[%s153 + $0x74] sm:%s145] %v212
                %v214 = vld [vmem:[%s152 + $0x78] sm:%s145]
                %215 = vst [vmem:[%s153 + $0x78] sm:%s145] %v214
                %v216 = vld [vmem:[%s152 + $0x7c] sm:%s145]
                %217 = vst [vmem:[%s153 + $0x7c] sm:%s145] %v216
                %v218 = vld [vmem:[%s152 + $0x100] sm:%s145]
                %219 = vst [vmem:[%s153 + $0x80] sm:%s145] %v218
                %v220 = vld [vmem:[%s152 + $0x104] sm:%s145]
                %221 = vst [vmem:[%s153 + $0x84] sm:%s145] %v220
                %v222 = vld [vmem:[%s152 + $0x108] sm:%s145]
                %223 = vst [vmem:[%s153 + $0x88] sm:%s145] %v222
                %v224 = vld [vmem:[%s152 + $0x10c] sm:%s145]
                %225 = vst [vmem:[%s153 + $0x8c] sm:%s145] %v224
                %v226 = vld [vmem:[%s152 + $0x110] sm:%s145]
                %227 = vst [vmem:[%s153 + $0x90] sm:%s145] %v226
                %v228 = vld [vmem:[%s152 + $0x114] sm:%s145]
                %229 = vst [vmem:[%s153 + $0x94] sm:%s145] %v228
                %v230 = vld [vmem:[%s152 + $0x118] sm:%s145]
                %231 = vst [vmem:[%s153 + $0x98] sm:%s145] %v230
                %v232 = vld [vmem:[%s152 + $0x11c] sm:%s145]
                %233 = vst [vmem:[%s153 + $0x9c] sm:%s145] %v232
                %v234 = vld [vmem:[%s152 + $0x120] sm:%s145]
                %235 = vst [vmem:[%s153 + $0xa0] sm:%s145] %v234
                %v236 = vld [vmem:[%s152 + $0x124] sm:%s145]
                %237 = vst [vmem:[%s153 + $0xa4] sm:%s145] %v236
                %v238 = vld [vmem:[%s152 + $0x128] sm:%s145]
                %239 = vst [vmem:[%s153 + $0xa8] sm:%s145] %v238
                %v240 = vld [vmem:[%s152 + $0x12c] sm:%s145]
                %241 = vst [vmem:[%s153 + $0xac] sm:%s145] %v240
                %v242 = vld [vmem:[%s152 + $0x130] sm:%s145]
                %243 = vst [vmem:[%s153 + $0xb0] sm:%s145] %v242
                %v244 = vld [vmem:[%s152 + $0x134] sm:%s145]
                %245 = vst [vmem:[%s153 + $0xb4] sm:%s145] %v244
                %v246 = vld [vmem:[%s152 + $0x138] sm:%s145]
                %247 = vst [vmem:[%s153 + $0xb8] sm:%s145] %v246
                %v248 = vld [vmem:[%s152 + $0x13c] sm:%s145]
                %249 = vst [vmem:[%s153 + $0xbc] sm:%s145] %v248
                %v250 = vld [vmem:[%s152 + $0x140] sm:%s145]
                %251 = vst [vmem:[%s153 + $0xc0] sm:%s145] %v250
                %v252 = vld [vmem:[%s152 + $0x144] sm:%s145]
                %253 = vst [vmem:[%s153 + $0xc4] sm:%s145] %v252
                %v254 = vld [vmem:[%s152 + $0x148] sm:%s145]
                %255 = vst [vmem:[%s153 + $0xc8] sm:%s145] %v254
                %v256 = vld [vmem:[%s152 + $0x14c] sm:%s145]
                %257 = vst [vmem:[%s153 + $0xcc] sm:%s145] %v256
                %v258 = vld [vmem:[%s152 + $0x150] sm:%s145]
                %259 = vst [vmem:[%s153 + $0xd0] sm:%s145] %v258
                %v260 = vld [vmem:[%s152 + $0x154] sm:%s145]
                %261 = vst [vmem:[%s153 + $0xd4] sm:%s145] %v260
                %v262 = vld [vmem:[%s152 + $0x158] sm:%s145]
                %263 = vst [vmem:[%s153 + $0xd8] sm:%s145] %v262
                %v264 = vld [vmem:[%s152 + $0x15c] sm:%s145]
                %265 = vst [vmem:[%s153 + $0xdc] sm:%s145] %v264
                %v266 = vld [vmem:[%s152 + $0x160] sm:%s145]
                %267 = vst [vmem:[%s153 + $0xe0] sm:%s145] %v266
                %v268 = vld [vmem:[%s152 + $0x164] sm:%s145]
                %269 = vst [vmem:[%s153 + $0xe4] sm:%s145] %v268
                %v270 = vld [vmem:[%s152 + $0x168] sm:%s145]
                %271 = vst [vmem:[%s153 + $0xe8] sm:%s145] %v270
                %v272 = vld [vmem:[%s152 + $0x16c] sm:%s145]
                %273 = vst [vmem:[%s153 + $0xec] sm:%s145] %v272
                %v274 = vld [vmem:[%s152 + $0x170] sm:%s145]
                %275 = vst [vmem:[%s153 + $0xf0] sm:%s145] %v274
                %v276 = vld [vmem:[%s152 + $0x174] sm:%s145]
                %277 = vst [vmem:[%s153 + $0xf4] sm:%s145] %v276
                %v278 = vld [vmem:[%s152 + $0x178] sm:%s145]
                %279 = vst [vmem:[%s153 + $0xf8] sm:%s145] %v278
                %v280 = vld [vmem:[%s152 + $0x17c] sm:%s145]
                %281 = vst [vmem:[%s153 + $0xfc] sm:%s145] %v280
                %v282 = vld [vmem:[%s152 + $0x200] sm:%s145]
                %283 = vst [vmem:[%s153 + $0x100] sm:%s145] %v282
                %v284 = vld [vmem:[%s152 + $0x204] sm:%s145]
                %285 = vst [vmem:[%s153 + $0x104] sm:%s145] %v284
                %v286 = vld [vmem:[%s152 + $0x208] sm:%s145]
                %287 = vst [vmem:[%s153 + $0x108] sm:%s145] %v286
                %v288 = vld [vmem:[%s152 + $0x20c] sm:%s145]
                %289 = vst [vmem:[%s153 + $0x10c] sm:%s145] %v288
                %v290 = vld [vmem:[%s152 + $0x210] sm:%s145]
                %291 = vst [vmem:[%s153 + $0x110] sm:%s145] %v290
                %v292 = vld [vmem:[%s152 + $0x214] sm:%s145]
                %293 = vst [vmem:[%s153 + $0x114] sm:%s145] %v292
                %v294 = vld [vmem:[%s152 + $0x218] sm:%s145]
                %295 = vst [vmem:[%s153 + $0x118] sm:%s145] %v294
                %v296 = vld [vmem:[%s152 + $0x21c] sm:%s145]
                %297 = vst [vmem:[%s153 + $0x11c] sm:%s145] %v296
                %v298 = vld [vmem:[%s152 + $0x220] sm:%s145]
                %299 = vst [vmem:[%s153 + $0x120] sm:%s145] %v298
                %v300 = vld [vmem:[%s152 + $0x224] sm:%s145]
                %301 = vst [vmem:[%s153 + $0x124] sm:%s145] %v300
                %v302 = vld [vmem:[%s152 + $0x228] sm:%s145]
                %303 = vst [vmem:[%s153 + $0x128] sm:%s145] %v302
                %v304 = vld [vmem:[%s152 + $0x22c] sm:%s145]
                %305 = vst [vmem:[%s153 + $0x12c] sm:%s145] %v304
                %v306 = vld [vmem:[%s152 + $0x230] sm:%s145]
                %307 = vst [vmem:[%s153 + $0x130] sm:%s145] %v306
                %v308 = vld [vmem:[%s152 + $0x234] sm:%s145]
                %309 = vst [vmem:[%s153 + $0x134] sm:%s145] %v308
                %v310 = vld [vmem:[%s152 + $0x238] sm:%s145]
                %311 = vst [vmem:[%s153 + $0x138] sm:%s145] %v310
                %v312 = vld [vmem:[%s152 + $0x23c] sm:%s145]
                %313 = vst [vmem:[%s153 + $0x13c] sm:%s145] %v312
                %v314 = vld [vmem:[%s152 + $0x240] sm:%s145]
                %315 = vst [vmem:[%s153 + $0x140] sm:%s145] %v314
                %v316 = vld [vmem:[%s152 + $0x244] sm:%s145]
                %317 = vst [vmem:[%s153 + $0x144] sm:%s145] %v316
                %v318 = vld [vmem:[%s152 + $0x248] sm:%s145]
                %319 = vst [vmem:[%s153 + $0x148] sm:%s145] %v318
                %v320 = vld [vmem:[%s152 + $0x24c] sm:%s145]
                %321 = vst [vmem:[%s153 + $0x14c] sm:%s145] %v320
                %v322 = vld [vmem:[%s152 + $0x250] sm:%s145]
                %323 = vst [vmem:[%s153 + $0x150] sm:%s145] %v322
                %v324 = vld [vmem:[%s152 + $0x254] sm:%s145]
                %325 = vst [vmem:[%s153 + $0x154] sm:%s145] %v324
                %v326 = vld [vmem:[%s152 + $0x258] sm:%s145]
                %327 = vst [vmem:[%s153 + $0x158] sm:%s145] %v326
                %v328 = vld [vmem:[%s152 + $0x25c] sm:%s145]
                %329 = vst [vmem:[%s153 + $0x15c] sm:%s145] %v328
                %v330 = vld [vmem:[%s152 + $0x260] sm:%s145]
                %331 = vst [vmem:[%s153 + $0x160] sm:%s145] %v330
                %v332 = vld [vmem:[%s152 + $0x264] sm:%s145]
                %333 = vst [vmem:[%s153 + $0x164] sm:%s145] %v332
                %v334 = vld [vmem:[%s152 + $0x268] sm:%s145]
                %335 = vst [vmem:[%s153 + $0x168] sm:%s145] %v334
                %v336 = vld [vmem:[%s152 + $0x26c] sm:%s145]
                %337 = vst [vmem:[%s153 + $0x16c] sm:%s145] %v336
                %v338 = vld [vmem:[%s152 + $0x270] sm:%s145]
                %339 = vst [vmem:[%s153 + $0x170] sm:%s145] %v338
                %v340 = vld [vmem:[%s152 + $0x274] sm:%s145]
                %341 = vst [vmem:[%s153 + $0x174] sm:%s145] %v340
                %v342 = vld [vmem:[%s152 + $0x278] sm:%s145]
                %343 = vst [vmem:[%s153 + $0x178] sm:%s145] %v342
                %v344 = vld [vmem:[%s152 + $0x27c] sm:%s145]
                %345 = vst [vmem:[%s153 + $0x17c] sm:%s145] %v344
                %v346 = vld [vmem:[%s152 + $0x300] sm:%s145]
                %347 = vst [vmem:[%s153 + $0x180] sm:%s145] %v346
                %v348 = vld [vmem:[%s152 + $0x304] sm:%s145]
                %349 = vst [vmem:[%s153 + $0x184] sm:%s145] %v348
                %v350 = vld [vmem:[%s152 + $0x308] sm:%s145]
                %351 = vst [vmem:[%s153 + $0x188] sm:%s145] %v350
                %v352 = vld [vmem:[%s152 + $0x30c] sm:%s145]
                %353 = vst [vmem:[%s153 + $0x18c] sm:%s145] %v352
                %v354 = vld [vmem:[%s152 + $0x310] sm:%s145]
                %355 = vst [vmem:[%s153 + $0x190] sm:%s145] %v354
                %v356 = vld [vmem:[%s152 + $0x314] sm:%s145]
                %357 = vst [vmem:[%s153 + $0x194] sm:%s145] %v356
                %v358 = vld [vmem:[%s152 + $0x318] sm:%s145]
                %359 = vst [vmem:[%s153 + $0x198] sm:%s145] %v358
                %v360 = vld [vmem:[%s152 + $0x31c] sm:%s145]
                %361 = vst [vmem:[%s153 + $0x19c] sm:%s145] %v360
                %v362 = vld [vmem:[%s152 + $0x320] sm:%s145]
                %363 = vst [vmem:[%s153 + $0x1a0] sm:%s145] %v362
                %v364 = vld [vmem:[%s152 + $0x324] sm:%s145]
                %365 = vst [vmem:[%s153 + $0x1a4] sm:%s145] %v364
                %v366 = vld [vmem:[%s152 + $0x328] sm:%s145]
                %367 = vst [vmem:[%s153 + $0x1a8] sm:%s145] %v366
                %v368 = vld [vmem:[%s152 + $0x32c] sm:%s145]
                %369 = vst [vmem:[%s153 + $0x1ac] sm:%s145] %v368
                %v370 = vld [vmem:[%s152 + $0x330] sm:%s145]
                %371 = vst [vmem:[%s153 + $0x1b0] sm:%s145] %v370
                %v372 = vld [vmem:[%s152 + $0x334] sm:%s145]
                %373 = vst [vmem:[%s153 + $0x1b4] sm:%s145] %v372
                %v374 = vld [vmem:[%s152 + $0x338] sm:%s145]
                %375 = vst [vmem:[%s153 + $0x1b8] sm:%s145] %v374
                %v376 = vld [vmem:[%s152 + $0x33c] sm:%s145]
                %377 = vst [vmem:[%s153 + $0x1bc] sm:%s145] %v376
                %v378 = vld [vmem:[%s152 + $0x340] sm:%s145]
                %379 = vst [vmem:[%s153 + $0x1c0] sm:%s145] %v378
                %v380 = vld [vmem:[%s152 + $0x344] sm:%s145]
                %381 = vst [vmem:[%s153 + $0x1c4] sm:%s145] %v380
                %v382 = vld [vmem:[%s152 + $0x348] sm:%s145]
                %383 = vst [vmem:[%s153 + $0x1c8] sm:%s145] %v382
                %v384 = vld [vmem:[%s152 + $0x34c] sm:%s145]
                %385 = vst [vmem:[%s153 + $0x1cc] sm:%s145] %v384
                %v386 = vld [vmem:[%s152 + $0x350] sm:%s145]
                %387 = vst [vmem:[%s153 + $0x1d0] sm:%s145] %v386
                %v388 = vld [vmem:[%s152 + $0x354] sm:%s145]
                %389 = vst [vmem:[%s153 + $0x1d4] sm:%s145] %v388
                %v390 = vld [vmem:[%s152 + $0x358] sm:%s145]
                %391 = vst [vmem:[%s153 + $0x1d8] sm:%s145] %v390
                %v392 = vld [vmem:[%s152 + $0x35c] sm:%s145]
                %393 = vst [vmem:[%s153 + $0x1dc] sm:%s145] %v392
                %v394 = vld [vmem:[%s152 + $0x360] sm:%s145]
                %395 = vst [vmem:[%s153 + $0x1e0] sm:%s145] %v394
                %v396 = vld [vmem:[%s152 + $0x364] sm:%s145]
                %397 = vst [vmem:[%s153 + $0x1e4] sm:%s145] %v396
                %v398 = vld [vmem:[%s152 + $0x368] sm:%s145]
                %399 = vst [vmem:[%s153 + $0x1e8] sm:%s145] %v398
                %v400 = vld [vmem:[%s152 + $0x36c] sm:%s145]
                %401 = vst [vmem:[%s153 + $0x1ec] sm:%s145] %v400
                %v402 = vld [vmem:[%s152 + $0x370] sm:%s145]
                %403 = vst [vmem:[%s153 + $0x1f0] sm:%s145] %v402
                %v404 = vld [vmem:[%s152 + $0x374] sm:%s145]
                %405 = vst [vmem:[%s153 + $0x1f4] sm:%s145] %v404
                %v406 = vld [vmem:[%s152 + $0x378] sm:%s145]
                %407 = vst [vmem:[%s153 + $0x1f8] sm:%s145] %v406
                %v408 = vld [vmem:[%s152 + $0x37c] sm:%s145]
                %409 = vst [vmem:[%s153 + $0x1fc] sm:%s145] %v408
              $region45: #{tudui_forward.3} parent=39 // loop_footer
                %s151 = sadd.s32 1, %s147
              $region46: #{tudui_forward.3} parent=39 // loop_footer_branch
                %146 = sbr.rel target = $region42
              $region47: #{tudui_forward.3} parent=39 // loop_exit
                _
            $region40: #{tudui_forward.3} parent=31 // pred_fallthru
              _
          $region32: #{tudui_forward.3} parent=27 // pred_fallthru
            _
          %686 = vnop
        $region28: #{tudui_forward.3} parent=23 // pred_fallthru
          _
      $region24: #{tudui_forward.3} parent=5 // pred_fallthru
        _
      %p687 = scmp.le.s32.totalorder 1, %s9
      %p688 = scmp.lt.s32.totalorder %s9, 3
      %p689 = pnand %p687, %p688
      %p690 = pneg %p689
      // Predicated region
      $region66: #{tudui_forward.3} parent=5 // pred_check
        _
      $region67: #{tudui_forward.3} parent=5 // pred_check_branch
        %692 = sbr.rel (%p689) target = $region69
      $region68: #{tudui_forward.3} parent=5 // pred_region
        %s693 = ssub.s32 %s9, 1
        %s694 = sand.u32 %s22, 1
        %s695 = sand.u32 %s22, 1
        %s696 = smul.addr %s695, 512
        %s697 = scalar_lea.vmem [#allocation2], %s696
        // Predicated region
        $region70: #{tudui_forward.3} parent=68 // pred_check
          %p698 = pneg %p35
        $region71: #{tudui_forward.3} parent=68 // pred_check_branch
          %700 = sbr.rel (%p698) target = $region73
        $region72: #{tudui_forward.3} parent=68 // pred_region
          _
        $region73: #{tudui_forward.3} parent=68 // pred_fallthru
          _
        %s701 = sand.u32 %s22, 1
        %s702 = sand.u32 %s22, 1
        %s703 = smul.addr %s702, 512
        %s704 = scalar_lea.vmem [#allocation2], %s703
        %p705 = pneg %p35
        %p706 = pneg %p32
        %p707 = pneg %p56
        %p708 = pneg %p53
        %p709 = pneg %p77
        %p710 = pneg %p74
        %p711 = pneg %p103
        %p712 = pneg %p100
        %s713 = smul.u32 32, %s14
        %p714 = scmp.lt.s32.totalorder %s713, 63
        %s715 = scalar_select %p714, %s713, 63
        %s716 = smul.addr %s715, 4
        %s717 = scalar_lea.vmem %s3, %s716
        %s718 = smul.u32 32, %s14
        %s719 = smul.u32 32, %s14
        %p720 = scmp.lt.s32.totalorder %s719, 63
        %s721 = scalar_select %p720, %s719, 63
        %s722 = smul.addr %s721, 4
        %s723 = scalar_lea.vmem %s3, %s722
        %s724 = smul.u32 32, %s14
        %v726 = vld [vmem:[%s697] sm:$0xf]
        %v727 = vld [vmem:[%s697 + $0x4] sm:$0xf]
        %v728 = vld [vmem:[%s697 + $0x8] sm:$0xf]
        %v729 = vld [vmem:[%s697 + $0xc] sm:$0xf]
        %v730 = vld [vmem:[%s697 + $0x10] sm:$0xf]
        %v731 = vld [vmem:[%s697 + $0x14] sm:$0xf]
        %v732 = vld [vmem:[%s697 + $0x18] sm:$0xf]
        %v733 = vld [vmem:[%s697 + $0x1c] sm:$0xf]
        %v734 = vld [vmem:[%s697 + $0x20] sm:$0xf]
        %v735 = vld [vmem:[%s697 + $0x24] sm:$0xf]
        %v736 = vld [vmem:[%s697 + $0x28] sm:$0xf]
        %v737 = vld [vmem:[%s697 + $0x2c] sm:$0xf]
        %v738 = vld [vmem:[%s697 + $0x30] sm:$0xf]
        %v739 = vld [vmem:[%s697 + $0x34] sm:$0xf]
        %v740 = vld [vmem:[%s697 + $0x38] sm:$0xf]
        %v741 = vld [vmem:[%s697 + $0x3c] sm:$0xf]
        %v742 = vld [vmem:[%s697 + $0x40] sm:$0xf]
        %v743 = vld [vmem:[%s697 + $0x44] sm:$0xf]
        %v744 = vld [vmem:[%s697 + $0x48] sm:$0xf]
        %v745 = vld [vmem:[%s697 + $0x4c] sm:$0xf]
        %v746 = vld [vmem:[%s697 + $0x50] sm:$0xf]
        %v747 = vld [vmem:[%s697 + $0x54] sm:$0xf]
        %v748 = vld [vmem:[%s697 + $0x58] sm:$0xf]
        %v749 = vld [vmem:[%s697 + $0x5c] sm:$0xf]
        %v750 = vld [vmem:[%s697 + $0x60] sm:$0xf]
        %v751 = vld [vmem:[%s697 + $0x64] sm:$0xf]
        %v752 = vld [vmem:[%s697 + $0x68] sm:$0xf]
        %v753 = vld [vmem:[%s697 + $0x6c] sm:$0xf]
        %v754 = vld [vmem:[%s697 + $0x70] sm:$0xf]
        %v755 = vld [vmem:[%s697 + $0x74] sm:$0xf]
        %v756 = vld [vmem:[%s697 + $0x78] sm:$0xf]
        %v757 = vld [vmem:[%s697 + $0x7c] sm:$0xf]
        %v758 = vld [vmem:[%s697 + $0x80] sm:$0xf]
        %v759 = vld [vmem:[%s697 + $0x84] sm:$0xf]
        %v760 = vld [vmem:[%s697 + $0x88] sm:$0xf]
        %v761 = vld [vmem:[%s697 + $0x8c] sm:$0xf]
        %v762 = vld [vmem:[%s697 + $0x90] sm:$0xf]
        %v763 = vld [vmem:[%s697 + $0x94] sm:$0xf]
        %v764 = vld [vmem:[%s697 + $0x98] sm:$0xf]
        %v765 = vld [vmem:[%s697 + $0x9c] sm:$0xf]
        %v766 = vld [vmem:[%s697 + $0xa0] sm:$0xf]
        %v767 = vld [vmem:[%s697 + $0xa4] sm:$0xf]
        %v768 = vld [vmem:[%s697 + $0xa8] sm:$0xf]
        %v769 = vld [vmem:[%s697 + $0xac] sm:$0xf]
        %v770 = vld [vmem:[%s697 + $0xb0] sm:$0xf]
        %v771 = vld [vmem:[%s697 + $0xb4] sm:$0xf]
        %v772 = vld [vmem:[%s697 + $0xb8] sm:$0xf]
        %v773 = vld [vmem:[%s697 + $0xbc] sm:$0xf]
        %v774 = vld [vmem:[%s697 + $0xc0] sm:$0xf]
        %v775 = vld [vmem:[%s697 + $0xc4] sm:$0xf]
        %v776 = vld [vmem:[%s697 + $0xc8] sm:$0xf]
        %v777 = vld [vmem:[%s697 + $0xcc] sm:$0xf]
        %v778 = vld [vmem:[%s697 + $0xd0] sm:$0xf]
        %v779 = vld [vmem:[%s697 + $0xd4] sm:$0xf]
        %v780 = vld [vmem:[%s697 + $0xd8] sm:$0xf]
        %v781 = vld [vmem:[%s697 + $0xdc] sm:$0xf]
        %v782 = vld [vmem:[%s697 + $0xe0] sm:$0xf]
        %v783 = vld [vmem:[%s697 + $0xe4] sm:$0xf]
        %v784 = vld [vmem:[%s697 + $0xe8] sm:$0xf]
        %v785 = vld [vmem:[%s697 + $0xec] sm:$0xf]
        %v786 = vld [vmem:[%s697 + $0xf0] sm:$0xf]
        %v787 = vld [vmem:[%s697 + $0xf4] sm:$0xf]
        %v788 = vld [vmem:[%s697 + $0xf8] sm:$0xf]
        %v789 = vld [vmem:[%s697 + $0xfc] sm:$0xf]
        %v790 = vld [vmem:[%s697 + $0x100] sm:$0xf]
        %v791 = vld [vmem:[%s697 + $0x104] sm:$0xf]
        %v792 = vld [vmem:[%s697 + $0x108] sm:$0xf]
        %v793 = vld [vmem:[%s697 + $0x10c] sm:$0xf]
        %v794 = vld [vmem:[%s697 + $0x110] sm:$0xf]
        %v795 = vld [vmem:[%s697 + $0x114] sm:$0xf]
        %v796 = vld [vmem:[%s697 + $0x118] sm:$0xf]
        %v797 = vld [vmem:[%s697 + $0x11c] sm:$0xf]
        %v798 = vld [vmem:[%s697 + $0x120] sm:$0xf]
        %v799 = vld [vmem:[%s697 + $0x124] sm:$0xf]
        %v800 = vld [vmem:[%s697 + $0x128] sm:$0xf]
        %v801 = vld [vmem:[%s697 + $0x12c] sm:$0xf]
        %v802 = vld [vmem:[%s697 + $0x130] sm:$0xf]
        %v803 = vld [vmem:[%s697 + $0x134] sm:$0xf]
        %v804 = vld [vmem:[%s697 + $0x138] sm:$0xf]
        %v805 = vld [vmem:[%s697 + $0x13c] sm:$0xf]
        %v806 = vld [vmem:[%s697 + $0x140] sm:$0xf]
        %v807 = vld [vmem:[%s697 + $0x144] sm:$0xf]
        %v808 = vld [vmem:[%s697 + $0x148] sm:$0xf]
        %v809 = vld [vmem:[%s697 + $0x14c] sm:$0xf]
        %v810 = vld [vmem:[%s697 + $0x150] sm:$0xf]
        %v811 = vld [vmem:[%s697 + $0x154] sm:$0xf]
        %v812 = vld [vmem:[%s697 + $0x158] sm:$0xf]
        %v813 = vld [vmem:[%s697 + $0x15c] sm:$0xf]
        %v814 = vld [vmem:[%s697 + $0x160] sm:$0xf]
        %v815 = vld [vmem:[%s697 + $0x164] sm:$0xf]
        %v816 = vld [vmem:[%s697 + $0x168] sm:$0xf]
        %v817 = vld [vmem:[%s697 + $0x16c] sm:$0xf]
        %v818 = vld [vmem:[%s697 + $0x170] sm:$0xf]
        %v819 = vld [vmem:[%s697 + $0x174] sm:$0xf]
        %v820 = vld [vmem:[%s697 + $0x178] sm:$0xf]
        %v821 = vld [vmem:[%s697 + $0x17c] sm:$0xf]
        %v822 = vld [vmem:[%s697 + $0x180] sm:$0xf]
        %v823 = vld [vmem:[%s697 + $0x184] sm:$0xf]
        %v824 = vld [vmem:[%s697 + $0x188] sm:$0xf]
        %v825 = vld [vmem:[%s697 + $0x18c] sm:$0xf]
        %v826 = vld [vmem:[%s697 + $0x190] sm:$0xf]
        %v827 = vld [vmem:[%s697 + $0x194] sm:$0xf]
        %v828 = vld [vmem:[%s697 + $0x198] sm:$0xf]
        %v829 = vld [vmem:[%s697 + $0x19c] sm:$0xf]
        %v830 = vld [vmem:[%s697 + $0x1a0] sm:$0xf]
        %v831 = vld [vmem:[%s697 + $0x1a4] sm:$0xf]
        %v832 = vld [vmem:[%s697 + $0x1a8] sm:$0xf]
        %v833 = vld [vmem:[%s697 + $0x1ac] sm:$0xf]
        %v834 = vld [vmem:[%s697 + $0x1b0] sm:$0xf]
        %v835 = vld [vmem:[%s697 + $0x1b4] sm:$0xf]
        %v836 = vld [vmem:[%s697 + $0x1b8] sm:$0xf]
        %v837 = vld [vmem:[%s697 + $0x1bc] sm:$0xf]
        %v838 = vld [vmem:[%s697 + $0x1c0] sm:$0xf]
        %v839 = vld [vmem:[%s697 + $0x1c4] sm:$0xf]
        %v840 = vld [vmem:[%s697 + $0x1c8] sm:$0xf]
        %v841 = vld [vmem:[%s697 + $0x1cc] sm:$0xf]
        %v842 = vld [vmem:[%s697 + $0x1d0] sm:$0xf]
        %v843 = vld [vmem:[%s697 + $0x1d4] sm:$0xf]
        %v844 = vld [vmem:[%s697 + $0x1d8] sm:$0xf]
        %v845 = vld [vmem:[%s697 + $0x1dc] sm:$0xf]
        %v846 = vld [vmem:[%s697 + $0x1e0] sm:$0xf]
        %v847 = vld [vmem:[%s697 + $0x1e4] sm:$0xf]
        %v848 = vld [vmem:[%s697 + $0x1e8] sm:$0xf]
        %v849 = vld [vmem:[%s697 + $0x1ec] sm:$0xf]
        %v850 = vld [vmem:[%s697 + $0x1f0] sm:$0xf]
        %v851 = vld [vmem:[%s697 + $0x1f4] sm:$0xf]
        %v852 = vld [vmem:[%s697 + $0x1f8] sm:$0xf]
        %v853 = vld [vmem:[%s697 + $0x1fc] sm:$0xf]
        %v854 = vld [vmem:[%s1] sm:$0xf]
        %v855 = vld [vmem:[%s1 + $0x4] sm:$0xf]
        %v856 = vld [vmem:[%s1 + $0x8] sm:$0xf]
        %v857 = vld [vmem:[%s1 + $0xc] sm:$0xf]
        %v858 = vld [vmem:[%s1 + $0x10] sm:$0xf]
        %v859 = vld [vmem:[%s1 + $0x14] sm:$0xf]
        %v860 = vld [vmem:[%s1 + $0x18] sm:$0xf]
        %v861 = vld [vmem:[%s1 + $0x1c] sm:$0xf]
        %v862 = vld [vmem:[%s1 + $0x20] sm:$0xf]
        %v863 = vld [vmem:[%s1 + $0x24] sm:$0x3]
        %v992 = vunpack.c.l.b16 %v726
        %v993 = vunpack.c.l.b16 %v727
        %v994 = vunpack.c.l.b16 %v728
        %v995 = vunpack.c.l.b16 %v729
        %v996 = vunpack.c.l.b16 %v730
        %v997 = vunpack.c.l.b16 %v731
        %v998 = vunpack.c.l.b16 %v732
        %v999 = vunpack.c.l.b16 %v733
        %v1000 = vunpack.c.l.b16 %v734
        %v1001 = vunpack.c.l.b16 %v735
        %v1002 = vunpack.c.l.b16 %v736
        %v1003 = vunpack.c.l.b16 %v737
        %v1004 = vunpack.c.l.b16 %v738
        %v1005 = vunpack.c.l.b16 %v739
        %v1006 = vunpack.c.l.b16 %v740
        %v1007 = vunpack.c.l.b16 %v741
        %v1008 = vunpack.c.l.b16 %v742
        %v1009 = vunpack.c.l.b16 %v743
        %v1010 = vunpack.c.l.b16 %v744
        %v1011 = vunpack.c.l.b16 %v745
        %v1012 = vunpack.c.l.b16 %v746
        %v1013 = vunpack.c.l.b16 %v747
        %v1014 = vunpack.c.l.b16 %v748
        %v1015 = vunpack.c.l.b16 %v749
        %v1016 = vunpack.c.l.b16 %v750
        %v1017 = vunpack.c.l.b16 %v751
        %v1018 = vunpack.c.l.b16 %v752
        %v1019 = vunpack.c.l.b16 %v753
        %v1020 = vunpack.c.l.b16 %v754
        %v1021 = vunpack.c.l.b16 %v755
        %v1022 = vunpack.c.l.b16 %v756
        %v1023 = vunpack.c.l.b16 %v757
        %v1024 = vunpack.c.l.b16 %v758
        %v1025 = vunpack.c.l.b16 %v759
        %v1026 = vunpack.c.l.b16 %v760
        %v1027 = vunpack.c.l.b16 %v761
        %v1028 = vunpack.c.l.b16 %v762
        %v1029 = vunpack.c.l.b16 %v763
        %v1030 = vunpack.c.l.b16 %v764
        %v1031 = vunpack.c.l.b16 %v765
        %v1032 = vunpack.c.l.b16 %v766
        %v1033 = vunpack.c.l.b16 %v767
        %v1034 = vunpack.c.l.b16 %v768
        %v1035 = vunpack.c.l.b16 %v769
        %v1036 = vunpack.c.l.b16 %v770
        %v1037 = vunpack.c.l.b16 %v771
        %v1038 = vunpack.c.l.b16 %v772
        %v1039 = vunpack.c.l.b16 %v773
        %v1040 = vunpack.c.l.b16 %v774
        %v1041 = vunpack.c.l.b16 %v775
        %v1042 = vunpack.c.l.b16 %v776
        %v1043 = vunpack.c.l.b16 %v777
        %v1044 = vunpack.c.l.b16 %v778
        %v1045 = vunpack.c.l.b16 %v779
        %v1046 = vunpack.c.l.b16 %v780
        %v1047 = vunpack.c.l.b16 %v781
        %v1048 = vunpack.c.l.b16 %v782
        %v1049 = vunpack.c.l.b16 %v783
        %v1050 = vunpack.c.l.b16 %v784
        %v1051 = vunpack.c.l.b16 %v785
        %v1052 = vunpack.c.l.b16 %v786
        %v1053 = vunpack.c.l.b16 %v787
        %v1054 = vunpack.c.l.b16 %v788
        %v1055 = vunpack.c.l.b16 %v789
        %v1056 = vunpack.c.l.b16 %v790
        %v1057 = vunpack.c.l.b16 %v791
        %v1058 = vunpack.c.l.b16 %v792
        %v1059 = vunpack.c.l.b16 %v793
        %v1060 = vunpack.c.l.b16 %v794
        %v1061 = vunpack.c.l.b16 %v795
        %v1062 = vunpack.c.l.b16 %v796
        %v1063 = vunpack.c.l.b16 %v797
        %v1064 = vunpack.c.l.b16 %v798
        %v1065 = vunpack.c.l.b16 %v799
        %v1066 = vunpack.c.l.b16 %v800
        %v1067 = vunpack.c.l.b16 %v801
        %v1068 = vunpack.c.l.b16 %v802
        %v1069 = vunpack.c.l.b16 %v803
        %v1070 = vunpack.c.l.b16 %v804
        %v1071 = vunpack.c.l.b16 %v805
        %v1072 = vunpack.c.l.b16 %v806
        %v1073 = vunpack.c.l.b16 %v807
        %v1074 = vunpack.c.l.b16 %v808
        %v1075 = vunpack.c.l.b16 %v809
        %v1076 = vunpack.c.l.b16 %v810
        %v1077 = vunpack.c.l.b16 %v811
        %v1078 = vunpack.c.l.b16 %v812
        %v1079 = vunpack.c.l.b16 %v813
        %v1080 = vunpack.c.l.b16 %v814
        %v1081 = vunpack.c.l.b16 %v815
        %v1082 = vunpack.c.l.b16 %v816
        %v1083 = vunpack.c.l.b16 %v817
        %v1084 = vunpack.c.l.b16 %v818
        %v1085 = vunpack.c.l.b16 %v819
        %v1086 = vunpack.c.l.b16 %v820
        %v1087 = vunpack.c.l.b16 %v821
        %v1088 = vunpack.c.l.b16 %v822
        %v1089 = vunpack.c.l.b16 %v823
        %v1090 = vunpack.c.l.b16 %v824
        %v1091 = vunpack.c.l.b16 %v825
        %v1092 = vunpack.c.l.b16 %v826
        %v1093 = vunpack.c.l.b16 %v827
        %v1094 = vunpack.c.l.b16 %v828
        %v1095 = vunpack.c.l.b16 %v829
        %v1096 = vunpack.c.l.b16 %v830
        %v1097 = vunpack.c.l.b16 %v831
        %v1098 = vunpack.c.l.b16 %v832
        %v1099 = vunpack.c.l.b16 %v833
        %v1100 = vunpack.c.l.b16 %v834
        %v1101 = vunpack.c.l.b16 %v835
        %v1102 = vunpack.c.l.b16 %v836
        %v1103 = vunpack.c.l.b16 %v837
        %v1104 = vunpack.c.l.b16 %v838
        %v1105 = vunpack.c.l.b16 %v839
        %v1106 = vunpack.c.l.b16 %v840
        %v1107 = vunpack.c.l.b16 %v841
        %v1108 = vunpack.c.l.b16 %v842
        %v1109 = vunpack.c.l.b16 %v843
        %v1110 = vunpack.c.l.b16 %v844
        %v1111 = vunpack.c.l.b16 %v845
        %v1112 = vunpack.c.l.b16 %v846
        %v1113 = vunpack.c.l.b16 %v847
        %v1114 = vunpack.c.l.b16 %v848
        %v1115 = vunpack.c.l.b16 %v849
        %v1116 = vunpack.c.l.b16 %v850
        %v1117 = vunpack.c.l.b16 %v851
        %v1118 = vunpack.c.l.b16 %v852
        %v1119 = vunpack.c.l.b16 %v853
        %v1120 = vpack.c.b16 %v993, %v992
        %v1121 = vpack.c.b16 %v995, %v994
        %v1122 = vpack.c.b16 %v997, %v996
        %v1123 = vpack.c.b16 %v999, %v998
        %v1124 = vpack.c.b16 %v1001, %v1000
        %v1125 = vpack.c.b16 %v1003, %v1002
        %v1126 = vpack.c.b16 %v1005, %v1004
        %v1127 = vpack.c.b16 %v1007, %v1006
        %v1128 = vpack.c.b16 %v1009, %v1008
        %v1129 = vpack.c.b16 %v1011, %v1010
        %v1130 = vpack.c.b16 %v1013, %v1012
        %v1131 = vpack.c.b16 %v1015, %v1014
        %v1132 = vpack.c.b16 %v1017, %v1016
        %v1133 = vpack.c.b16 %v1019, %v1018
        %v1134 = vpack.c.b16 %v1021, %v1020
        %v1135 = vpack.c.b16 %v1023, %v1022
        %v1136 = vpack.c.b16 %v1025, %v1024
        %v1137 = vpack.c.b16 %v1027, %v1026
        %v1138 = vpack.c.b16 %v1029, %v1028
        %v1139 = vpack.c.b16 %v1031, %v1030
        %v1140 = vpack.c.b16 %v1033, %v1032
        %v1141 = vpack.c.b16 %v1035, %v1034
        %v1142 = vpack.c.b16 %v1037, %v1036
        %v1143 = vpack.c.b16 %v1039, %v1038
        %v1144 = vpack.c.b16 %v1041, %v1040
        %v1145 = vpack.c.b16 %v1043, %v1042
        %v1146 = vpack.c.b16 %v1045, %v1044
        %v1147 = vpack.c.b16 %v1047, %v1046
        %v1148 = vpack.c.b16 %v1049, %v1048
        %v1149 = vpack.c.b16 %v1051, %v1050
        %v1150 = vpack.c.b16 %v1053, %v1052
        %v1151 = vpack.c.b16 %v1055, %v1054
        %v1152 = vpack.c.b16 %v1057, %v1056
        %v1153 = vpack.c.b16 %v1059, %v1058
        %v1154 = vpack.c.b16 %v1061, %v1060
        %v1155 = vpack.c.b16 %v1063, %v1062
        %v1156 = vpack.c.b16 %v1065, %v1064
        %v1157 = vpack.c.b16 %v1067, %v1066
        %v1158 = vpack.c.b16 %v1069, %v1068
        %v1159 = vpack.c.b16 %v1071, %v1070
        %v1160 = vpack.c.b16 %v1073, %v1072
        %v1161 = vpack.c.b16 %v1075, %v1074
        %v1162 = vpack.c.b16 %v1077, %v1076
        %v1163 = vpack.c.b16 %v1079, %v1078
        %v1164 = vpack.c.b16 %v1081, %v1080
        %v1165 = vpack.c.b16 %v1083, %v1082
        %v1166 = vpack.c.b16 %v1085, %v1084
        %v1167 = vpack.c.b16 %v1087, %v1086
        %v1168 = vpack.c.b16 %v1089, %v1088
        %v1169 = vpack.c.b16 %v1091, %v1090
        %v1170 = vpack.c.b16 %v1093, %v1092
        %v1171 = vpack.c.b16 %v1095, %v1094
        %v1172 = vpack.c.b16 %v1097, %v1096
        %v1173 = vpack.c.b16 %v1099, %v1098
        %v1174 = vpack.c.b16 %v1101, %v1100
        %v1175 = vpack.c.b16 %v1103, %v1102
        %v1176 = vpack.c.b16 %v1105, %v1104
        %v1177 = vpack.c.b16 %v1107, %v1106
        %v1178 = vpack.c.b16 %v1109, %v1108
        %v1179 = vpack.c.b16 %v1111, %v1110
        %v1180 = vpack.c.b16 %v1113, %v1112
        %v1181 = vpack.c.b16 %v1115, %v1114
        %v1182 = vpack.c.b16 %v1117, %v1116
        %v1183 = vpack.c.b16 %v1119, %v1118
        %v1194 = vunpack.c.l.b16 %v854
        %v1195 = vunpack.c.l.b16 %v855
        %v1196 = vunpack.c.l.b16 %v856
        %v1197 = vunpack.c.l.b16 %v857
        %v1198 = vunpack.c.l.b16 %v858
        %v1199 = vunpack.c.l.b16 %v859
        %v1200 = vunpack.c.l.b16 %v860
        %v1201 = vunpack.c.l.b16 %v861
        %v1202 = vunpack.c.l.b16 %v862
        %v1203 = vunpack.c.l.b16 %v863
        %v1204 = vpack.c.b16 %v1195, %v1194
        %v1205 = vpack.c.b16 %v1197, %v1196
        %v1206 = vpack.c.b16 %v1199, %v1198
        %v1207 = vpack.c.b16 %v1201, %v1200
        %v1208 = vpack.c.b16 %v1203, %v1202
        %vm1213 = vcmask 613376
        %v1215 = vsel %vm1213, %v1120, 0
        %v1218 = vsel %vm1213, %v1121, 0
        %v1221 = vsel %vm1213, %v1122, 0
        %v1224 = vsel %vm1213, %v1123, 0
        %v1227 = vsel %vm1213, %v1124, 0
        %v1230 = vsel %vm1213, %v1125, 0
        %v1233 = vsel %vm1213, %v1126, 0
        %v1236 = vsel %vm1213, %v1127, 0
        %v1239 = vsel %vm1213, %v1128, 0
        %v1242 = vsel %vm1213, %v1129, 0
        %v1245 = vsel %vm1213, %v1130, 0
        %v1248 = vsel %vm1213, %v1131, 0
        %v1251 = vsel %vm1213, %v1132, 0
        %v1254 = vsel %vm1213, %v1133, 0
        %v1257 = vsel %vm1213, %v1134, 0
        %v1260 = vsel %vm1213, %v1135, 0
        %v1263 = vsel %vm1213, %v1136, 0
        %v1266 = vsel %vm1213, %v1137, 0
        %v1269 = vsel %vm1213, %v1138, 0
        %v1272 = vsel %vm1213, %v1139, 0
        %v1275 = vsel %vm1213, %v1140, 0
        %v1278 = vsel %vm1213, %v1141, 0
        %v1281 = vsel %vm1213, %v1142, 0
        %v1284 = vsel %vm1213, %v1143, 0
        %v1287 = vsel %vm1213, %v1144, 0
        %v1290 = vsel %vm1213, %v1145, 0
        %v1293 = vsel %vm1213, %v1146, 0
        %v1296 = vsel %vm1213, %v1147, 0
        %v1299 = vsel %vm1213, %v1148, 0
        %v1302 = vsel %vm1213, %v1149, 0
        %v1305 = vsel %vm1213, %v1150, 0
        %v1308 = vsel %vm1213, %v1151, 0
        %v1311 = vsel %vm1213, %v1152, 0
        %v1314 = vsel %vm1213, %v1153, 0
        %v1317 = vsel %vm1213, %v1154, 0
        %v1320 = vsel %vm1213, %v1155, 0
        %v1323 = vsel %vm1213, %v1156, 0
        %v1326 = vsel %vm1213, %v1157, 0
        %v1329 = vsel %vm1213, %v1158, 0
        %v1332 = vsel %vm1213, %v1159, 0
        %v1335 = vsel %vm1213, %v1160, 0
        %v1338 = vsel %vm1213, %v1161, 0
        %v1341 = vsel %vm1213, %v1162, 0
        %v1344 = vsel %vm1213, %v1163, 0
        %v1347 = vsel %vm1213, %v1164, 0
        %v1350 = vsel %vm1213, %v1165, 0
        %v1353 = vsel %vm1213, %v1166, 0
        %v1356 = vsel %vm1213, %v1167, 0
        %v1359 = vsel %vm1213, %v1168, 0
        %v1362 = vsel %vm1213, %v1169, 0
        %v1365 = vsel %vm1213, %v1170, 0
        %v1368 = vsel %vm1213, %v1171, 0
        %v1371 = vsel %vm1213, %v1172, 0
        %v1374 = vsel %vm1213, %v1173, 0
        %v1377 = vsel %vm1213, %v1174, 0
        %v1380 = vsel %vm1213, %v1175, 0
        %v1383 = vsel %vm1213, %v1176, 0
        %v1386 = vsel %vm1213, %v1177, 0
        %v1389 = vsel %vm1213, %v1178, 0
        %v1392 = vsel %vm1213, %v1179, 0
        %v1395 = vsel %vm1213, %v1180, 0
        %v1398 = vsel %vm1213, %v1181, 0
        %v1401 = vsel %vm1213, %v1182, 0
        %v1404 = vsel %vm1213, %v1183, 0
        %vm1406 = vcmask 1044480
        %vm1407 = vcmask 1045504
        %v1408 = vsel %vm1406, 4294967295, 65535
        %v1409 = vsel %vm1407, %v1408, 0
        %v1411 = vand.u32 %v1208, %v1409
        %1413 = vmatpush.bf16.msra.mxu0 0
        %1414 = vmatpush.bf16.msra.mxu0 0
        %1415 = vmatpush.bf16.msra.mxu0 0
        %1416 = vmatpush.bf16.msra.mxu0 %v1411
        %1417 = vmatpush.bf16.msra.mxu0 %v1207
        %1418 = vmatpush.bf16.msra.mxu0 %v1206
        %1419 = vmatpush.bf16.msra.mxu0 %v1205
        %1420 = vmatpush.bf16.msra.mxu0 %v1204
        %1421 = vmatmul.bf16.gmra.mxu0 %v1215
        %v1422 = vpop.f32.mrf.mxu0
        %v1423 = vadd.f32 0.0, %v1422
        %v1424 = vpop.f32.mrf.mxu0
        %v1425 = vadd.f32 0.0, %v1424
        %1426 = vmatmul.bf16.gmra.mxu0 %v1218
        %v1427 = vpop.f32.mrf.mxu0
        %v1428 = vadd.f32 0.0, %v1427
        %v1429 = vpop.f32.mrf.mxu0
        %v1430 = vadd.f32 0.0, %v1429
        %1431 = vmatmul.bf16.gmra.mxu0 %v1221
        %v1432 = vpop.f32.mrf.mxu0
        %v1433 = vadd.f32 0.0, %v1432
        %v1434 = vpop.f32.mrf.mxu0
        %v1435 = vadd.f32 0.0, %v1434
        %1436 = vmatmul.bf16.gmra.mxu0 %v1224
        %v1437 = vpop.f32.mrf.mxu0
        %v1438 = vadd.f32 0.0, %v1437
        %v1439 = vpop.f32.mrf.mxu0
        %v1440 = vadd.f32 0.0, %v1439
        %1441 = vmatmul.bf16.gmra.mxu0 %v1227
        %v1442 = vpop.f32.mrf.mxu0
        %v1443 = vadd.f32 0.0, %v1442
        %v1444 = vpop.f32.mrf.mxu0
        %v1445 = vadd.f32 0.0, %v1444
        %1446 = vmatmul.bf16.gmra.mxu0 %v1230
        %v1447 = vpop.f32.mrf.mxu0
        %v1448 = vadd.f32 0.0, %v1447
        %v1449 = vpop.f32.mrf.mxu0
        %v1450 = vadd.f32 0.0, %v1449
        %1451 = vmatmul.bf16.gmra.mxu0 %v1233
        %v1452 = vpop.f32.mrf.mxu0
        %v1453 = vadd.f32 0.0, %v1452
        %v1454 = vpop.f32.mrf.mxu0
        %v1455 = vadd.f32 0.0, %v1454
        %1456 = vmatmul.bf16.gmra.mxu0 %v1236
        %v1457 = vpop.f32.mrf.mxu0
        %v1458 = vadd.f32 0.0, %v1457
        %v1459 = vpop.f32.mrf.mxu0
        %v1460 = vadd.f32 0.0, %v1459
        %1461 = vmatmul.bf16.gmra.mxu0 %v1239
        %v1462 = vpop.f32.mrf.mxu0
        %v1463 = vadd.f32 0.0, %v1462
        %v1464 = vpop.f32.mrf.mxu0
        %v1465 = vadd.f32 0.0, %v1464
        %1466 = vmatmul.bf16.gmra.mxu0 %v1242
        %v1467 = vpop.f32.mrf.mxu0
        %v1468 = vadd.f32 0.0, %v1467
        %v1469 = vpop.f32.mrf.mxu0
        %v1470 = vadd.f32 0.0, %v1469
        %1471 = vmatmul.bf16.gmra.mxu0 %v1245
        %v1472 = vpop.f32.mrf.mxu0
        %v1473 = vadd.f32 0.0, %v1472
        %v1474 = vpop.f32.mrf.mxu0
        %v1475 = vadd.f32 0.0, %v1474
        %1476 = vmatmul.bf16.gmra.mxu0 %v1248
        %v1477 = vpop.f32.mrf.mxu0
        %v1478 = vadd.f32 0.0, %v1477
        %v1479 = vpop.f32.mrf.mxu0
        %v1480 = vadd.f32 0.0, %v1479
        %1481 = vmatmul.bf16.gmra.mxu0 %v1251
        %v1482 = vpop.f32.mrf.mxu0
        %v1483 = vadd.f32 0.0, %v1482
        %v1484 = vpop.f32.mrf.mxu0
        %v1485 = vadd.f32 0.0, %v1484
        %1486 = vmatmul.bf16.gmra.mxu0 %v1254
        %v1487 = vpop.f32.mrf.mxu0
        %v1488 = vadd.f32 0.0, %v1487
        %v1489 = vpop.f32.mrf.mxu0
        %v1490 = vadd.f32 0.0, %v1489
        %1491 = vmatmul.bf16.gmra.mxu0 %v1257
        %v1492 = vpop.f32.mrf.mxu0
        %v1493 = vadd.f32 0.0, %v1492
        %v1494 = vpop.f32.mrf.mxu0
        %v1495 = vadd.f32 0.0, %v1494
        %1496 = vmatmul.bf16.gmra.mxu0 %v1260
        %v1497 = vpop.f32.mrf.mxu0
        %v1498 = vadd.f32 0.0, %v1497
        %v1499 = vpop.f32.mrf.mxu0
        %v1500 = vadd.f32 0.0, %v1499
        %1501 = vmatmul.bf16.gmra.mxu0 %v1263
        %v1502 = vpop.f32.mrf.mxu0
        %v1503 = vadd.f32 0.0, %v1502
        %v1504 = vpop.f32.mrf.mxu0
        %v1505 = vadd.f32 0.0, %v1504
        %1506 = vmatmul.bf16.gmra.mxu0 %v1266
        %v1507 = vpop.f32.mrf.mxu0
        %v1508 = vadd.f32 0.0, %v1507
        %v1509 = vpop.f32.mrf.mxu0
        %v1510 = vadd.f32 0.0, %v1509
        %1511 = vmatmul.bf16.gmra.mxu0 %v1269
        %v1512 = vpop.f32.mrf.mxu0
        %v1513 = vadd.f32 0.0, %v1512
        %v1514 = vpop.f32.mrf.mxu0
        %v1515 = vadd.f32 0.0, %v1514
        %1516 = vmatmul.bf16.gmra.mxu0 %v1272
        %v1517 = vpop.f32.mrf.mxu0
        %v1518 = vadd.f32 0.0, %v1517
        %v1519 = vpop.f32.mrf.mxu0
        %v1520 = vadd.f32 0.0, %v1519
        %1521 = vmatmul.bf16.gmra.mxu0 %v1275
        %v1522 = vpop.f32.mrf.mxu0
        %v1523 = vadd.f32 0.0, %v1522
        %v1524 = vpop.f32.mrf.mxu0
        %v1525 = vadd.f32 0.0, %v1524
        %1526 = vmatmul.bf16.gmra.mxu0 %v1278
        %v1527 = vpop.f32.mrf.mxu0
        %v1528 = vadd.f32 0.0, %v1527
        %v1529 = vpop.f32.mrf.mxu0
        %v1530 = vadd.f32 0.0, %v1529
        %1531 = vmatmul.bf16.gmra.mxu0 %v1281
        %v1532 = vpop.f32.mrf.mxu0
        %v1533 = vadd.f32 0.0, %v1532
        %v1534 = vpop.f32.mrf.mxu0
        %v1535 = vadd.f32 0.0, %v1534
        %1536 = vmatmul.bf16.gmra.mxu0 %v1284
        %v1537 = vpop.f32.mrf.mxu0
        %v1538 = vadd.f32 0.0, %v1537
        %v1539 = vpop.f32.mrf.mxu0
        %v1540 = vadd.f32 0.0, %v1539
        %1541 = vmatmul.bf16.gmra.mxu0 %v1287
        %v1542 = vpop.f32.mrf.mxu0
        %v1543 = vadd.f32 0.0, %v1542
        %v1544 = vpop.f32.mrf.mxu0
        %v1545 = vadd.f32 0.0, %v1544
        %1546 = vmatmul.bf16.gmra.mxu0 %v1290
        %v1547 = vpop.f32.mrf.mxu0
        %v1548 = vadd.f32 0.0, %v1547
        %v1549 = vpop.f32.mrf.mxu0
        %v1550 = vadd.f32 0.0, %v1549
        %1551 = vmatmul.bf16.gmra.mxu0 %v1293
        %v1552 = vpop.f32.mrf.mxu0
        %v1553 = vadd.f32 0.0, %v1552
        %v1554 = vpop.f32.mrf.mxu0
        %v1555 = vadd.f32 0.0, %v1554
        %1556 = vmatmul.bf16.gmra.mxu0 %v1296
        %v1557 = vpop.f32.mrf.mxu0
        %v1558 = vadd.f32 0.0, %v1557
        %v1559 = vpop.f32.mrf.mxu0
        %v1560 = vadd.f32 0.0, %v1559
        %1561 = vmatmul.bf16.gmra.mxu0 %v1299
        %v1562 = vpop.f32.mrf.mxu0
        %v1563 = vadd.f32 0.0, %v1562
        %v1564 = vpop.f32.mrf.mxu0
        %v1565 = vadd.f32 0.0, %v1564
        %1566 = vmatmul.bf16.gmra.mxu0 %v1302
        %v1567 = vpop.f32.mrf.mxu0
        %v1568 = vadd.f32 0.0, %v1567
        %v1569 = vpop.f32.mrf.mxu0
        %v1570 = vadd.f32 0.0, %v1569
        %1571 = vmatmul.bf16.gmra.mxu0 %v1305
        %v1572 = vpop.f32.mrf.mxu0
        %v1573 = vadd.f32 0.0, %v1572
        %v1574 = vpop.f32.mrf.mxu0
        %v1575 = vadd.f32 0.0, %v1574
        %1576 = vmatmul.bf16.gmra.mxu0 %v1308
        %v1577 = vpop.f32.mrf.mxu0
        %v1578 = vadd.f32 0.0, %v1577
        %v1579 = vpop.f32.mrf.mxu0
        %v1580 = vadd.f32 0.0, %v1579
        %1581 = vmatmul.bf16.gmra.mxu0 %v1311
        %v1582 = vpop.f32.mrf.mxu0
        %v1583 = vadd.f32 0.0, %v1582
        %v1584 = vpop.f32.mrf.mxu0
        %v1585 = vadd.f32 0.0, %v1584
        %1586 = vmatmul.bf16.gmra.mxu0 %v1314
        %v1587 = vpop.f32.mrf.mxu0
        %v1588 = vadd.f32 0.0, %v1587
        %v1589 = vpop.f32.mrf.mxu0
        %v1590 = vadd.f32 0.0, %v1589
        %1591 = vmatmul.bf16.gmra.mxu0 %v1317
        %v1592 = vpop.f32.mrf.mxu0
        %v1593 = vadd.f32 0.0, %v1592
        %v1594 = vpop.f32.mrf.mxu0
        %v1595 = vadd.f32 0.0, %v1594
        %1596 = vmatmul.bf16.gmra.mxu0 %v1320
        %v1597 = vpop.f32.mrf.mxu0
        %v1598 = vadd.f32 0.0, %v1597
        %v1599 = vpop.f32.mrf.mxu0
        %v1600 = vadd.f32 0.0, %v1599
        %1601 = vmatmul.bf16.gmra.mxu0 %v1323
        %v1602 = vpop.f32.mrf.mxu0
        %v1603 = vadd.f32 0.0, %v1602
        %v1604 = vpop.f32.mrf.mxu0
        %v1605 = vadd.f32 0.0, %v1604
        %1606 = vmatmul.bf16.gmra.mxu0 %v1326
        %v1607 = vpop.f32.mrf.mxu0
        %v1608 = vadd.f32 0.0, %v1607
        %v1609 = vpop.f32.mrf.mxu0
        %v1610 = vadd.f32 0.0, %v1609
        %1611 = vmatmul.bf16.gmra.mxu0 %v1329
        %v1612 = vpop.f32.mrf.mxu0
        %v1613 = vadd.f32 0.0, %v1612
        %v1614 = vpop.f32.mrf.mxu0
        %v1615 = vadd.f32 0.0, %v1614
        %1616 = vmatmul.bf16.gmra.mxu0 %v1332
        %v1617 = vpop.f32.mrf.mxu0
        %v1618 = vadd.f32 0.0, %v1617
        %v1619 = vpop.f32.mrf.mxu0
        %v1620 = vadd.f32 0.0, %v1619
        %1621 = vmatmul.bf16.gmra.mxu0 %v1335
        %v1622 = vpop.f32.mrf.mxu0
        %v1623 = vadd.f32 0.0, %v1622
        %v1624 = vpop.f32.mrf.mxu0
        %v1625 = vadd.f32 0.0, %v1624
        %1626 = vmatmul.bf16.gmra.mxu0 %v1338
        %v1627 = vpop.f32.mrf.mxu0
        %v1628 = vadd.f32 0.0, %v1627
        %v1629 = vpop.f32.mrf.mxu0
        %v1630 = vadd.f32 0.0, %v1629
        %1631 = vmatmul.bf16.gmra.mxu0 %v1341
        %v1632 = vpop.f32.mrf.mxu0
        %v1633 = vadd.f32 0.0, %v1632
        %v1634 = vpop.f32.mrf.mxu0
        %v1635 = vadd.f32 0.0, %v1634
        %1636 = vmatmul.bf16.gmra.mxu0 %v1344
        %v1637 = vpop.f32.mrf.mxu0
        %v1638 = vadd.f32 0.0, %v1637
        %v1639 = vpop.f32.mrf.mxu0
        %v1640 = vadd.f32 0.0, %v1639
        %1641 = vmatmul.bf16.gmra.mxu0 %v1347
        %v1642 = vpop.f32.mrf.mxu0
        %v1643 = vadd.f32 0.0, %v1642
        %v1644 = vpop.f32.mrf.mxu0
        %v1645 = vadd.f32 0.0, %v1644
        %1646 = vmatmul.bf16.gmra.mxu0 %v1350
        %v1647 = vpop.f32.mrf.mxu0
        %v1648 = vadd.f32 0.0, %v1647
        %v1649 = vpop.f32.mrf.mxu0
        %v1650 = vadd.f32 0.0, %v1649
        %1651 = vmatmul.bf16.gmra.mxu0 %v1353
        %v1652 = vpop.f32.mrf.mxu0
        %v1653 = vadd.f32 0.0, %v1652
        %v1654 = vpop.f32.mrf.mxu0
        %v1655 = vadd.f32 0.0, %v1654
        %1656 = vmatmul.bf16.gmra.mxu0 %v1356
        %v1657 = vpop.f32.mrf.mxu0
        %v1658 = vadd.f32 0.0, %v1657
        %v1659 = vpop.f32.mrf.mxu0
        %v1660 = vadd.f32 0.0, %v1659
        %1661 = vmatmul.bf16.gmra.mxu0 %v1359
        %v1662 = vpop.f32.mrf.mxu0
        %v1663 = vadd.f32 0.0, %v1662
        %v1664 = vpop.f32.mrf.mxu0
        %v1665 = vadd.f32 0.0, %v1664
        %1666 = vmatmul.bf16.gmra.mxu0 %v1362
        %v1667 = vpop.f32.mrf.mxu0
        %v1668 = vadd.f32 0.0, %v1667
        %v1669 = vpop.f32.mrf.mxu0
        %v1670 = vadd.f32 0.0, %v1669
        %1671 = vmatmul.bf16.gmra.mxu0 %v1365
        %v1672 = vpop.f32.mrf.mxu0
        %v1673 = vadd.f32 0.0, %v1672
        %v1674 = vpop.f32.mrf.mxu0
        %v1675 = vadd.f32 0.0, %v1674
        %1676 = vmatmul.bf16.gmra.mxu0 %v1368
        %v1677 = vpop.f32.mrf.mxu0
        %v1678 = vadd.f32 0.0, %v1677
        %v1679 = vpop.f32.mrf.mxu0
        %v1680 = vadd.f32 0.0, %v1679
        %1681 = vmatmul.bf16.gmra.mxu0 %v1371
        %v1682 = vpop.f32.mrf.mxu0
        %v1683 = vadd.f32 0.0, %v1682
        %v1684 = vpop.f32.mrf.mxu0
        %v1685 = vadd.f32 0.0, %v1684
        %1686 = vmatmul.bf16.gmra.mxu0 %v1374
        %v1687 = vpop.f32.mrf.mxu0
        %v1688 = vadd.f32 0.0, %v1687
        %v1689 = vpop.f32.mrf.mxu0
        %v1690 = vadd.f32 0.0, %v1689
        %1691 = vmatmul.bf16.gmra.mxu0 %v1377
        %v1692 = vpop.f32.mrf.mxu0
        %v1693 = vadd.f32 0.0, %v1692
        %v1694 = vpop.f32.mrf.mxu0
        %v1695 = vadd.f32 0.0, %v1694
        %1696 = vmatmul.bf16.gmra.mxu0 %v1380
        %v1697 = vpop.f32.mrf.mxu0
        %v1698 = vadd.f32 0.0, %v1697
        %v1699 = vpop.f32.mrf.mxu0
        %v1700 = vadd.f32 0.0, %v1699
        %1701 = vmatmul.bf16.gmra.mxu0 %v1383
        %v1702 = vpop.f32.mrf.mxu0
        %v1703 = vadd.f32 0.0, %v1702
        %v1704 = vpop.f32.mrf.mxu0
        %v1705 = vadd.f32 0.0, %v1704
        %1706 = vmatmul.bf16.gmra.mxu0 %v1386
        %v1707 = vpop.f32.mrf.mxu0
        %v1708 = vadd.f32 0.0, %v1707
        %v1709 = vpop.f32.mrf.mxu0
        %v1710 = vadd.f32 0.0, %v1709
        %1711 = vmatmul.bf16.gmra.mxu0 %v1389
        %v1712 = vpop.f32.mrf.mxu0
        %v1713 = vadd.f32 0.0, %v1712
        %v1714 = vpop.f32.mrf.mxu0
        %v1715 = vadd.f32 0.0, %v1714
        %1716 = vmatmul.bf16.gmra.mxu0 %v1392
        %v1717 = vpop.f32.mrf.mxu0
        %v1718 = vadd.f32 0.0, %v1717
        %v1719 = vpop.f32.mrf.mxu0
        %v1720 = vadd.f32 0.0, %v1719
        %1721 = vmatmul.bf16.gmra.mxu0 %v1395
        %v1722 = vpop.f32.mrf.mxu0
        %v1723 = vadd.f32 0.0, %v1722
        %v1724 = vpop.f32.mrf.mxu0
        %v1725 = vadd.f32 0.0, %v1724
        %1726 = vmatmul.bf16.gmra.mxu0 %v1398
        %v1727 = vpop.f32.mrf.mxu0
        %v1728 = vadd.f32 0.0, %v1727
        %v1729 = vpop.f32.mrf.mxu0
        %v1730 = vadd.f32 0.0, %v1729
        %1731 = vmatmul.bf16.gmra.mxu0 %v1401
        %v1732 = vpop.f32.mrf.mxu0
        %v1733 = vadd.f32 0.0, %v1732
        %v1734 = vpop.f32.mrf.mxu0
        %v1735 = vadd.f32 0.0, %v1734
        %1736 = vmatmul.bf16.gmra.mxu0 %v1404
        %v1737 = vpop.f32.mrf.mxu0
        %v1738 = vadd.f32 0.0, %v1737
        %v1739 = vpop.f32.mrf.mxu0
        %v1740 = vadd.f32 0.0, %v1739
        %1741 = vdwg.mxu0
        %v1742 = vmax.f32 %v1423, %v1503
        %v1743 = vmax.f32 %v1425, %v1505
        %v1744 = vmax.f32 %v1428, %v1508
        %v1745 = vmax.f32 %v1430, %v1510
        %v1746 = vmax.f32 %v1433, %v1513
        %v1747 = vmax.f32 %v1435, %v1515
        %v1748 = vmax.f32 %v1438, %v1518
        %v1749 = vmax.f32 %v1440, %v1520
        %v1750 = vmax.f32 %v1443, %v1523
        %v1751 = vmax.f32 %v1445, %v1525
        %v1752 = vmax.f32 %v1448, %v1528
        %v1753 = vmax.f32 %v1450, %v1530
        %v1754 = vmax.f32 %v1453, %v1533
        %v1755 = vmax.f32 %v1455, %v1535
        %v1756 = vmax.f32 %v1458, %v1538
        %v1757 = vmax.f32 %v1460, %v1540
        %v1758 = vmax.f32 %v1463, %v1543
        %v1759 = vmax.f32 %v1465, %v1545
        %v1760 = vmax.f32 %v1468, %v1548
        %v1761 = vmax.f32 %v1470, %v1550
        %v1762 = vmax.f32 %v1473, %v1553
        %v1763 = vmax.f32 %v1475, %v1555
        %v1764 = vmax.f32 %v1478, %v1558
        %v1765 = vmax.f32 %v1480, %v1560
        %v1766 = vmax.f32 %v1483, %v1563
        %v1767 = vmax.f32 %v1485, %v1565
        %v1768 = vmax.f32 %v1488, %v1568
        %v1769 = vmax.f32 %v1490, %v1570
        %v1770 = vmax.f32 %v1493, %v1573
        %v1771 = vmax.f32 %v1495, %v1575
        %v1772 = vmax.f32 %v1498, %v1578
        %v1773 = vmax.f32 %v1500, %v1580
        %v1774 = vmax.f32 %v1583, %v1663
        %v1775 = vmax.f32 %v1585, %v1665
        %v1776 = vmax.f32 %v1588, %v1668
        %v1777 = vmax.f32 %v1590, %v1670
        %v1778 = vmax.f32 %v1593, %v1673
        %v1779 = vmax.f32 %v1595, %v1675
        %v1780 = vmax.f32 %v1598, %v1678
        %v1781 = vmax.f32 %v1600, %v1680
        %v1782 = vmax.f32 %v1603, %v1683
        %v1783 = vmax.f32 %v1605, %v1685
        %v1784 = vmax.f32 %v1608, %v1688
        %v1785 = vmax.f32 %v1610, %v1690
        %v1786 = vmax.f32 %v1613, %v1693
        %v1787 = vmax.f32 %v1615, %v1695
        %v1788 = vmax.f32 %v1618, %v1698
        %v1789 = vmax.f32 %v1620, %v1700
        %v1790 = vmax.f32 %v1623, %v1703
        %v1791 = vmax.f32 %v1625, %v1705
        %v1792 = vmax.f32 %v1628, %v1708
        %v1793 = vmax.f32 %v1630, %v1710
        %v1794 = vmax.f32 %v1633, %v1713
        %v1795 = vmax.f32 %v1635, %v1715
        %v1796 = vmax.f32 %v1638, %v1718
        %v1797 = vmax.f32 %v1640, %v1720
        %v1798 = vmax.f32 %v1643, %v1723
        %v1799 = vmax.f32 %v1645, %v1725
        %v1800 = vmax.f32 %v1648, %v1728
        %v1801 = vmax.f32 %v1650, %v1730
        %v1802 = vmax.f32 %v1653, %v1733
        %v1803 = vmax.f32 %v1655, %v1735
        %v1804 = vmax.f32 %v1658, %v1738
        %v1805 = vmax.f32 %v1660, %v1740
        %v1806 = vmax.f32 %v1742, %v1774
        %v1807 = vmax.f32 %v1743, %v1775
        %v1808 = vmax.f32 %v1744, %v1776
        %v1809 = vmax.f32 %v1745, %v1777
        %v1810 = vmax.f32 %v1746, %v1778
        %v1811 = vmax.f32 %v1747, %v1779
        %v1812 = vmax.f32 %v1748, %v1780
        %v1813 = vmax.f32 %v1749, %v1781
        %v1814 = vmax.f32 %v1750, %v1782
        %v1815 = vmax.f32 %v1751, %v1783
        %v1816 = vmax.f32 %v1752, %v1784
        %v1817 = vmax.f32 %v1753, %v1785
        %v1818 = vmax.f32 %v1754, %v1786
        %v1819 = vmax.f32 %v1755, %v1787
        %v1820 = vmax.f32 %v1756, %v1788
        %v1821 = vmax.f32 %v1757, %v1789
        %v1822 = vmax.f32 %v1758, %v1790
        %v1823 = vmax.f32 %v1759, %v1791
        %v1824 = vmax.f32 %v1760, %v1792
        %v1825 = vmax.f32 %v1761, %v1793
        %v1826 = vmax.f32 %v1762, %v1794
        %v1827 = vmax.f32 %v1763, %v1795
        %v1828 = vmax.f32 %v1764, %v1796
        %v1829 = vmax.f32 %v1765, %v1797
        %v1830 = vmax.f32 %v1766, %v1798
        %v1831 = vmax.f32 %v1767, %v1799
        %v1832 = vmax.f32 %v1768, %v1800
        %v1833 = vmax.f32 %v1769, %v1801
        %v1834 = vmax.f32 %v1770, %v1802
        %v1835 = vmax.f32 %v1771, %v1803
        %v1836 = vmax.f32 %v1772, %v1804
        %v1837 = vmax.f32 %v1773, %v1805
        %v1838 = vld [vmem:[%s2] sm:$0x1]
        %v1840 = vperm.slane %v1838, 0
        %v1842 = vadd.f32 %v1806, %v1840
        %v1843 = vadd.f32 %v1807, %v1840
        %v1844 = vadd.f32 %v1808, %v1840
        %v1845 = vadd.f32 %v1809, %v1840
        %v1846 = vadd.f32 %v1810, %v1840
        %v1847 = vadd.f32 %v1811, %v1840
        %v1848 = vadd.f32 %v1812, %v1840
        %v1849 = vadd.f32 %v1813, %v1840
        %v1850 = vadd.f32 %v1814, %v1840
        %v1851 = vadd.f32 %v1815, %v1840
        %v1852 = vadd.f32 %v1816, %v1840
        %v1853 = vadd.f32 %v1817, %v1840
        %v1854 = vadd.f32 %v1818, %v1840
        %v1855 = vadd.f32 %v1819, %v1840
        %v1856 = vadd.f32 %v1820, %v1840
        %v1857 = vadd.f32 %v1821, %v1840
        %v1858 = vadd.f32 %v1822, %v1840
        %v1859 = vadd.f32 %v1823, %v1840
        %v1860 = vadd.f32 %v1824, %v1840
        %v1861 = vadd.f32 %v1825, %v1840
        %v1862 = vadd.f32 %v1826, %v1840
        %v1863 = vadd.f32 %v1827, %v1840
        %v1864 = vadd.f32 %v1828, %v1840
        %v1865 = vadd.f32 %v1829, %v1840
        %v1866 = vadd.f32 %v1830, %v1840
        %v1867 = vadd.f32 %v1831, %v1840
        %v1868 = vadd.f32 %v1832, %v1840
        %v1869 = vadd.f32 %v1833, %v1840
        %v1870 = vadd.f32 %v1834, %v1840
        %v1871 = vadd.f32 %v1835, %v1840
        %v1872 = vadd.f32 %v1836, %v1840
        %v1873 = vadd.f32 %v1837, %v1840
        %v1874 = vpack.c.bf16 %v1842, %v1842
        %v1875 = vpack.c.bf16 %v1843, %v1843
        %v1876 = vpack.c.bf16 %v1844, %v1844
        %v1877 = vpack.c.bf16 %v1845, %v1845
        %v1878 = vpack.c.bf16 %v1846, %v1846
        %v1879 = vpack.c.bf16 %v1847, %v1847
        %v1880 = vpack.c.bf16 %v1848, %v1848
        %v1881 = vpack.c.bf16 %v1849, %v1849
        %v1882 = vpack.c.bf16 %v1850, %v1850
        %v1883 = vpack.c.bf16 %v1851, %v1851
        %v1884 = vpack.c.bf16 %v1852, %v1852
        %v1885 = vpack.c.bf16 %v1853, %v1853
        %v1886 = vpack.c.bf16 %v1854, %v1854
        %v1887 = vpack.c.bf16 %v1855, %v1855
        %v1888 = vpack.c.bf16 %v1856, %v1856
        %v1889 = vpack.c.bf16 %v1857, %v1857
        %v1890 = vpack.c.bf16 %v1858, %v1858
        %v1891 = vpack.c.bf16 %v1859, %v1859
        %v1892 = vpack.c.bf16 %v1860, %v1860
        %v1893 = vpack.c.bf16 %v1861, %v1861
        %v1894 = vpack.c.bf16 %v1862, %v1862
        %v1895 = vpack.c.bf16 %v1863, %v1863
        %v1896 = vpack.c.bf16 %v1864, %v1864
        %v1897 = vpack.c.bf16 %v1865, %v1865
        %v1898 = vpack.c.bf16 %v1866, %v1866
        %v1899 = vpack.c.bf16 %v1867, %v1867
        %v1900 = vpack.c.bf16 %v1868, %v1868
        %v1901 = vpack.c.bf16 %v1869, %v1869
        %v1902 = vpack.c.bf16 %v1870, %v1870
        %v1903 = vpack.c.bf16 %v1871, %v1871
        %v1904 = vpack.c.bf16 %v1872, %v1872
        %v1905 = vpack.c.bf16 %v1873, %v1873
        %vm1906 = vcmask 257024
        %1907 = vst.msk [vmem:[%s723] sm:$0xf] %vm1906, %v1874
        %1908 = vst.msk [vmem:[%s723 + $0x4] sm:$0xf] %vm1906, %v1875
        %1909 = vst.msk [vmem:[%s723 + $0x8] sm:$0xf] %vm1906, %v1876
        %1910 = vst.msk [vmem:[%s723 + $0xc] sm:$0xf] %vm1906, %v1877
        %1911 = vst.msk [vmem:[%s723 + $0x10] sm:$0xf] %vm1906, %v1878
        %1912 = vst.msk [vmem:[%s723 + $0x14] sm:$0xf] %vm1906, %v1879
        %1913 = vst.msk [vmem:[%s723 + $0x18] sm:$0xf] %vm1906, %v1880
        %1914 = vst.msk [vmem:[%s723 + $0x1c] sm:$0xf] %vm1906, %v1881
        %1915 = vst.msk [vmem:[%s723 + $0x20] sm:$0xf] %vm1906, %v1882
        %1916 = vst.msk [vmem:[%s723 + $0x24] sm:$0xf] %vm1906, %v1883
        %1917 = vst.msk [vmem:[%s723 + $0x28] sm:$0xf] %vm1906, %v1884
        %1918 = vst.msk [vmem:[%s723 + $0x2c] sm:$0xf] %vm1906, %v1885
        %1919 = vst.msk [vmem:[%s723 + $0x30] sm:$0xf] %vm1906, %v1886
        %1920 = vst.msk [vmem:[%s723 + $0x34] sm:$0xf] %vm1906, %v1887
        %1921 = vst.msk [vmem:[%s723 + $0x38] sm:$0xf] %vm1906, %v1888
        %1922 = vst.msk [vmem:[%s723 + $0x3c] sm:$0xf] %vm1906, %v1889
        %1923 = vst.msk [vmem:[%s723 + $0x40] sm:$0xf] %vm1906, %v1890
        %1924 = vst.msk [vmem:[%s723 + $0x44] sm:$0xf] %vm1906, %v1891
        %1925 = vst.msk [vmem:[%s723 + $0x48] sm:$0xf] %vm1906, %v1892
        %1926 = vst.msk [vmem:[%s723 + $0x4c] sm:$0xf] %vm1906, %v1893
        %1927 = vst.msk [vmem:[%s723 + $0x50] sm:$0xf] %vm1906, %v1894
        %1928 = vst.msk [vmem:[%s723 + $0x54] sm:$0xf] %vm1906, %v1895
        %1929 = vst.msk [vmem:[%s723 + $0x58] sm:$0xf] %vm1906, %v1896
        %1930 = vst.msk [vmem:[%s723 + $0x5c] sm:$0xf] %vm1906, %v1897
        %1931 = vst.msk [vmem:[%s723 + $0x60] sm:$0xf] %vm1906, %v1898
        %1932 = vst.msk [vmem:[%s723 + $0x64] sm:$0xf] %vm1906, %v1899
        %1933 = vst.msk [vmem:[%s723 + $0x68] sm:$0xf] %vm1906, %v1900
        %1934 = vst.msk [vmem:[%s723 + $0x6c] sm:$0xf] %vm1906, %v1901
        %1935 = vst.msk [vmem:[%s723 + $0x70] sm:$0xf] %vm1906, %v1902
        %1936 = vst.msk [vmem:[%s723 + $0x74] sm:$0xf] %vm1906, %v1903
        %1937 = vst.msk [vmem:[%s723 + $0x78] sm:$0xf] %vm1906, %v1904
        %1938 = vst.msk [vmem:[%s723 + $0x7c] sm:$0xf] %vm1906, %v1905
        %s1939 = smul.u32 32, %s14
        %p1940 = scmp.lt.s32.totalorder %s1939, 63
        %s1941 = scalar_select %p1940, %s1939, 63
        %s1942 = smul.addr %s1941, 4
        %s1943 = scalar_lea.vmem %s3, %s1942
        // Predicated region
        $region74: #{tudui_forward.3} parent=68 // pred_check
          %p1944 = pneg %p100
        $region75: #{tudui_forward.3} parent=68 // pred_check_branch
          %1946 = sbr.rel (%p1944) target = $region77
        $region76: #{tudui_forward.3} parent=68 // pred_region
          %s1947 = smul.u32 32, %s14
        $region77: #{tudui_forward.3} parent=68 // pred_fallthru
          _
      $region69: #{tudui_forward.3} parent=5 // pred_fallthru
        _
      %p1948 = scmp.le.s32.totalorder 2, %s9
      // Predicated region
      $region78: #{tudui_forward.3} parent=5 // pred_check
        %p1949 = pneg %p1948
      $region79: #{tudui_forward.3} parent=5 // pred_check_branch
        %1951 = sbr.rel (%p1949) target = $region81
      $region80: #{tudui_forward.3} parent=5 // pred_region
        %s1952 = ssub.s32 %s9, 2
        // Predicated region
        $region82: #{tudui_forward.3} parent=80 // pred_check
          %p1953 = pneg %p106
        $region83: #{tudui_forward.3} parent=80 // pred_check_branch
          %1955 = sbr.rel (%p1953) target = $region85
        $region84: #{tudui_forward.3} parent=80 // pred_region
          %s1956 = smul.u32 32, %s15
          %p1957 = scmp.lt.s32.totalorder %s1956, 63
          %s1958 = scalar_select %p1957, %s1956, 63
          %s1959 = smul.addr %s1958, 4
          %s1960 = scalar_lea.vmem %s3, %s1959
        $region85: #{tudui_forward.3} parent=80 // pred_fallthru
          _
      $region81: #{tudui_forward.3} parent=5 // pred_fallthru
        _
    $region6: #{tudui_forward.3} parent=1 // loop_footer
      %s13 = sadd.s32 1, %s9
    $region7: #{tudui_forward.3} parent=1 // loop_footer_branch
      %8 = sbr.rel target = $region3
    $region8: #{tudui_forward.3} parent=1 // loop_exit
      _

// kernel: tudui_forward.4
$region0: #{tudui_forward.4}
  #allocation0 [shape = 'u32[]', space=smem, size = 0x4, offset = 0x4, fixed_abs, tag = 'smem constant byte address 0x4 - core index']
  #allocation1 [shape = 'u32[72,128]{1,0:T(1,128)}', space=vmem, size = 0x9000, scoped, tag = 'internal scratch']
  %s0 = inlined_call_operand.vmem [shape: bf16[4,128,800], index: 0, kind: input, shape index: {}]
  %s1 = inlined_call_operand.vmem [shape: bf16[800,32], index: 1, kind: input, shape index: {}]
  %s2 = inlined_call_operand.vmem [shape: f32[1,32], index: 2, kind: input, shape index: {}]
  %s3 = inlined_call_operand.vmem [shape: bf16[128,32], index: 3, kind: output, shape index: {}]
  %s4 = sld [smem:[#allocation0]]
  $region71: #{tudui_forward.4} parent=0
    _
  %s6 = ssub.s32 1, %s4
  %s7 = scalar_select 0, %s6, %s4
  $region1: #{tudui_forward.4} parent=0
    #allocation2 [shape = 'u8[917504]{0}', space=vmem, size = 0xe0000, scoped, tag = 'input window, operand 0']
    loop: start=0, step=1, limit=4
    $region2: #{tudui_forward.4} parent=1 // loop_pre_header
      _
    $region3: #{tudui_forward.4} parent=1 // loop_header
      %s9 = sphi 0, %s13
      %p10 = scmp.ge.s32.totalorder %s9, 4
      %s19 = sphi 0, %s21
      %s22 = sphi 0, %s19
      %s23 = sphi 0, %s22
      %s39 = sphi 0, %s23
      %s43 = sphi 0, %s43
      %s45 = sphi 0, %s43
      %s46 = sphi 0, %s45
      %s60 = sphi 0, %s46
      %s64 = sphi 0, %s64
      %s66 = sphi 0, %s64
      %s67 = sphi 0, %s66
      %s81 = sphi 0, %s67
      %s87 = sphi 0, %s89
      %s90 = sphi 0, %s87
      %s91 = sphi 0, %s90
      %s107 = sphi 0, %s91
    $region4: #{tudui_forward.4} parent=1 // loop_header_branch
      %12 = sbr.rel (%p10) target = $region8
    $region5: #{tudui_forward.4} parent=1 // loop_body
      %s14 = ssub.s32 %s9, 1
      %s15 = ssub.s32 %s9, 2
      %s16 = sadd.s32 %s9, 1
      %s17 = ssub.s32 %s9, %s16
      %p18 = scmp.eq.s32.totalorder %s17, 0
      %s20 = sadd.s32 %s19, 1
      %s21 = scalar_select %p18, %s19, %s20
      %p24 = pneg %p18
      %p25 = scmp.eq.s32.totalorder %s9, 1
      %p26 = por %p24, %p25
      %p27 = scmp.ne.s32.totalorder %s19, %s22
      %p28 = scmp.eq.s32.totalorder %s9, 0
      %p29 = por %p27, %p28
      %p30 = scmp.ne.s32.totalorder %s19, %s22
      %p31 = scmp.eq.s32.totalorder %s14, 1
      %p32 = por %p30, %p31
      %p33 = scmp.ne.s32.totalorder %s22, %s23
      %p34 = scmp.eq.s32.totalorder %s14, 0
      %p35 = por %p33, %p34
      %p36 = scmp.ne.s32.totalorder %s22, %s23
      %p37 = scmp.eq.s32.totalorder %s15, 1
      %p38 = por %p36, %p37
      %p40 = scmp.ne.s32.totalorder %s23, %s39
      %p41 = scmp.eq.s32.totalorder %s15, 0
      %p42 = por %p40, %p41
      %s44 = sadd.s32 %s43, 1
      %p47 = scmp.eq.s32.totalorder %s9, 1
      %p48 = scmp.ne.s32.totalorder %s43, %s45
      %p49 = scmp.eq.s32.totalorder %s9, 0
      %p50 = por %p48, %p49
      %p51 = scmp.ne.s32.totalorder %s43, %s45
      %p52 = scmp.eq.s32.totalorder %s14, 1
      %p53 = por %p51, %p52
      %p54 = scmp.ne.s32.totalorder %s45, %s46
      %p55 = scmp.eq.s32.totalorder %s14, 0
      %p56 = por %p54, %p55
      %p57 = scmp.ne.s32.totalorder %s45, %s46
      %p58 = scmp.eq.s32.totalorder %s15, 1
      %p59 = por %p57, %p58
      %p61 = scmp.ne.s32.totalorder %s46, %s60
      %p62 = scmp.eq.s32.totalorder %s15, 0
      %p63 = por %p61, %p62
      %s65 = sadd.s32 %s64, 1
      %p68 = scmp.eq.s32.totalorder %s9, 1
      %p69 = scmp.ne.s32.totalorder %s64, %s66
      %p70 = scmp.eq.s32.totalorder %s9, 0
      %p71 = por %p69, %p70
      %p72 = scmp.ne.s32.totalorder %s64, %s66
      %p73 = scmp.eq.s32.totalorder %s14, 1
      %p74 = por %p72, %p73
      %p75 = scmp.ne.s32.totalorder %s66, %s67
      %p76 = scmp.eq.s32.totalorder %s14, 0
      %p77 = por %p75, %p76
      %p78 = scmp.ne.s32.totalorder %s66, %s67
      %p79 = scmp.eq.s32.totalorder %s15, 1
      %p80 = por %p78, %p79
      %p82 = scmp.ne.s32.totalorder %s67, %s81
      %p83 = scmp.eq.s32.totalorder %s15, 0
      %p84 = por %p82, %p83
      %s85 = ssub.s32 %s9, %s16
      %p86 = scmp.eq.s32.totalorder %s85, 0
      %s88 = sadd.s32 %s87, 1
      %s89 = scalar_select %p86, %s87, %s88
      %p92 = pneg %p86
      %p93 = scmp.eq.s32.totalorder %s9, 1
      %p94 = por %p92, %p93
      %p95 = scmp.ne.s32.totalorder %s87, %s90
      %p96 = scmp.eq.s32.totalorder %s9, 0
      %p97 = por %p95, %p96
      %p98 = scmp.ne.s32.totalorder %s87, %s90
      %p99 = scmp.eq.s32.totalorder %s14, 1
      %p100 = por %p98, %p99
      %p101 = scmp.ne.s32.totalorder %s90, %s91
      %p102 = scmp.eq.s32.totalorder %s14, 0
      %p103 = por %p101, %p102
      %p104 = scmp.ne.s32.totalorder %s90, %s91
      %p105 = scmp.eq.s32.totalorder %s15, 1
      %p106 = por %p104, %p105
      %p108 = scmp.ne.s32.totalorder %s91, %s107
      %p109 = scmp.eq.s32.totalorder %s15, 0
      %p110 = por %p108, %p109
      %p111 = scmp.le.s32.totalorder 1, %s9
      %p112 = scmp.lt.s32.totalorder %s9, 3
      %p113 = pnand %p111, %p112
      %p114 = pneg %p113
      // Predicated region
      $region9: #{tudui_forward.4} parent=5 // pred_check
        _
      $region10: #{tudui_forward.4} parent=5 // pred_check_branch
        %116 = sbr.rel (%p113) target = $region12
      $region11: #{tudui_forward.4} parent=5 // pred_region
        %s117 = ssub.s32 %s9, 1
        // Predicated region
        $region13: #{tudui_forward.4} parent=11 // pred_check
          %p118 = pneg %p56
        $region14: #{tudui_forward.4} parent=11 // pred_check_branch
          %120 = sbr.rel (%p118) target = $region16
        $region15: #{tudui_forward.4} parent=11 // pred_region
          _
        $region16: #{tudui_forward.4} parent=11 // pred_fallthru
          _
        // Predicated region
        $region17: #{tudui_forward.4} parent=11 // pred_check
          %p121 = pneg %p77
        $region18: #{tudui_forward.4} parent=11 // pred_check_branch
          %123 = sbr.rel (%p121) target = $region20
        $region19: #{tudui_forward.4} parent=11 // pred_region
          _
        $region20: #{tudui_forward.4} parent=11 // pred_fallthru
          _
      $region12: #{tudui_forward.4} parent=5 // pred_fallthru
        _
      %p124 = scmp.lt.s32.totalorder %s9, 2
      // Predicated region
      $region21: #{tudui_forward.4} parent=5 // pred_check
        %p125 = pneg %p124
      $region22: #{tudui_forward.4} parent=5 // pred_check_branch
        %127 = sbr.rel (%p125) target = $region24
      $region23: #{tudui_forward.4} parent=5 // pred_region
        // Predicated region
        $region25: #{tudui_forward.4} parent=23 // pred_check
          %p128 = pneg %p29
        $region26: #{tudui_forward.4} parent=23 // pred_check_branch
          %130 = sbr.rel (%p128) target = $region28
        $region27: #{tudui_forward.4} parent=23 // pred_region
          %s131 = sand.u32 %s19, 1
          %s132 = sand.u32 %s19, 1
          %s133 = smul.addr %s132, 896
          %s134 = scalar_lea.vmem [#allocation2], %s133
          %s135 = smul.u32 8, %s9
          %s136 = smul.addr %s135, 7
          %s137 = smul.addr %s136, 4
          %s138 = scalar_lea.vmem %s0, %s137
          // Predicated region
          $region29: #{tudui_forward.4} parent=27 // pred_check
            _
          $region30: #{tudui_forward.4} parent=27 // pred_check_branch
            %140 = sbr.rel (0) target = $region32
          $region31: #{tudui_forward.4} parent=27 // pred_region
            // Predicated region
            $region33: #{tudui_forward.4} parent=31 // pred_check
              _
            $region34: #{tudui_forward.4} parent=31 // pred_check_branch
              %142 = sbr.rel (0) target = $region36
            $region35: #{tudui_forward.4} parent=31 // pred_region
              %s143 = scalar_lea.vmem %s138, 24
              %s144 = scalar_lea.vmem %s134, 24 [#allocation2]
              loop: start=0, step=1, limit=1
              $region37: #{tudui_forward.4} parent=35 // loop_pre_header
                _
              $region38: #{tudui_forward.4} parent=35 // loop_header
                %s146 = sphi 0, %s150
                %p147 = scmp.ge.s32.totalorder %s146, 1
                %s151 = sphi %s138, %s138
                %s152 = sphi %s134, %s134
              $region39: #{tudui_forward.4} parent=35 // loop_header_branch
                %149 = sbr.rel (%p147) target = $region43
              $region40: #{tudui_forward.4} parent=35 // loop_body
                %v153 = vld [vmem:[%s151] sm:$0xff]
                %154 = vst [vmem:[%s152] sm:$0xff] %v153
                %v155 = vld [vmem:[%s151 + $0x8] sm:$0xff]
                %156 = vst [vmem:[%s152 + $0x8] sm:$0xff] %v155
                %v157 = vld [vmem:[%s151 + $0x10] sm:$0xff]
                %158 = vst [vmem:[%s152 + $0x10] sm:$0xff] %v157
                %v159 = vld [vmem:[%s151 + $0x1c] sm:$0xff]
                %160 = vst [vmem:[%s152 + $0x1c] sm:$0xff] %v159
                %v161 = vld [vmem:[%s151 + $0x24] sm:$0xff]
                %162 = vst [vmem:[%s152 + $0x24] sm:$0xff] %v161
                %v163 = vld [vmem:[%s151 + $0x2c] sm:$0xff]
                %164 = vst [vmem:[%s152 + $0x2c] sm:$0xff] %v163
                %v165 = vld [vmem:[%s151 + $0x38] sm:$0xff]
                %166 = vst [vmem:[%s152 + $0x38] sm:$0xff] %v165
                %v167 = vld [vmem:[%s151 + $0x40] sm:$0xff]
                %168 = vst [vmem:[%s152 + $0x40] sm:$0xff] %v167
                %v169 = vld [vmem:[%s151 + $0x48] sm:$0xff]
                %170 = vst [vmem:[%s152 + $0x48] sm:$0xff] %v169
                %v171 = vld [vmem:[%s151 + $0x54] sm:$0xff]
                %172 = vst [vmem:[%s152 + $0x54] sm:$0xff] %v171
                %v173 = vld [vmem:[%s151 + $0x5c] sm:$0xff]
                %174 = vst [vmem:[%s152 + $0x5c] sm:$0xff] %v173
                %v175 = vld [vmem:[%s151 + $0x64] sm:$0xff]
                %176 = vst [vmem:[%s152 + $0x64] sm:$0xff] %v175
                %v177 = vld [vmem:[%s151 + $0x70] sm:$0xff]
                %178 = vst [vmem:[%s152 + $0x70] sm:$0xff] %v177
                %v179 = vld [vmem:[%s151 + $0x78] sm:$0xff]
                %180 = vst [vmem:[%s152 + $0x78] sm:$0xff] %v179
                %v181 = vld [vmem:[%s151 + $0x80] sm:$0xff]
                %182 = vst [vmem:[%s152 + $0x80] sm:$0xff] %v181
                %v183 = vld [vmem:[%s151 + $0x8c] sm:$0xff]
                %184 = vst [vmem:[%s152 + $0x8c] sm:$0xff] %v183
                %v185 = vld [vmem:[%s151 + $0x94] sm:$0xff]
                %186 = vst [vmem:[%s152 + $0x94] sm:$0xff] %v185
                %v187 = vld [vmem:[%s151 + $0x9c] sm:$0xff]
                %188 = vst [vmem:[%s152 + $0x9c] sm:$0xff] %v187
                %v189 = vld [vmem:[%s151 + $0xa8] sm:$0xff]
                %190 = vst [vmem:[%s152 + $0xa8] sm:$0xff] %v189
                %v191 = vld [vmem:[%s151 + $0xb0] sm:$0xff]
                %192 = vst [vmem:[%s152 + $0xb0] sm:$0xff] %v191
                %v193 = vld [vmem:[%s151 + $0xb8] sm:$0xff]
                %194 = vst [vmem:[%s152 + $0xb8] sm:$0xff] %v193
                %v195 = vld [vmem:[%s151 + $0xc4] sm:$0xff]
                %196 = vst [vmem:[%s152 + $0xc4] sm:$0xff] %v195
                %v197 = vld [vmem:[%s151 + $0xcc] sm:$0xff]
                %198 = vst [vmem:[%s152 + $0xcc] sm:$0xff] %v197
                %v199 = vld [vmem:[%s151 + $0xd4] sm:$0xff]
                %200 = vst [vmem:[%s152 + $0xd4] sm:$0xff] %v199
                %v201 = vld [vmem:[%s151 + $0x1c0] sm:$0xff]
                %202 = vst [vmem:[%s152 + $0xe0] sm:$0xff] %v201
                %v203 = vld [vmem:[%s151 + $0x1c8] sm:$0xff]
                %204 = vst [vmem:[%s152 + $0xe8] sm:$0xff] %v203
                %v205 = vld [vmem:[%s151 + $0x1d0] sm:$0xff]
                %206 = vst [vmem:[%s152 + $0xf0] sm:$0xff] %v205
                %v207 = vld [vmem:[%s151 + $0x1dc] sm:$0xff]
                %208 = vst [vmem:[%s152 + $0xfc] sm:$0xff] %v207
                %v209 = vld [vmem:[%s151 + $0x1e4] sm:$0xff]
                %210 = vst [vmem:[%s152 + $0x104] sm:$0xff] %v209
                %v211 = vld [vmem:[%s151 + $0x1ec] sm:$0xff]
                %212 = vst [vmem:[%s152 + $0x10c] sm:$0xff] %v211
                %v213 = vld [vmem:[%s151 + $0x1f8] sm:$0xff]
                %214 = vst [vmem:[%s152 + $0x118] sm:$0xff] %v213
                %v215 = vld [vmem:[%s151 + $0x200] sm:$0xff]
                %216 = vst [vmem:[%s152 + $0x120] sm:$0xff] %v215
                %v217 = vld [vmem:[%s151 + $0x208] sm:$0xff]
                %218 = vst [vmem:[%s152 + $0x128] sm:$0xff] %v217
                %v219 = vld [vmem:[%s151 + $0x214] sm:$0xff]
                %220 = vst [vmem:[%s152 + $0x134] sm:$0xff] %v219
                %v221 = vld [vmem:[%s151 + $0x21c] sm:$0xff]
                %222 = vst [vmem:[%s152 + $0x13c] sm:$0xff] %v221
                %v223 = vld [vmem:[%s151 + $0x224] sm:$0xff]
                %224 = vst [vmem:[%s152 + $0x144] sm:$0xff] %v223
                %v225 = vld [vmem:[%s151 + $0x230] sm:$0xff]
                %226 = vst [vmem:[%s152 + $0x150] sm:$0xff] %v225
                %v227 = vld [vmem:[%s151 + $0x238] sm:$0xff]
                %228 = vst [vmem:[%s152 + $0x158] sm:$0xff] %v227
                %v229 = vld [vmem:[%s151 + $0x240] sm:$0xff]
                %230 = vst [vmem:[%s152 + $0x160] sm:$0xff] %v229
                %v231 = vld [vmem:[%s151 + $0x24c] sm:$0xff]
                %232 = vst [vmem:[%s152 + $0x16c] sm:$0xff] %v231
                %v233 = vld [vmem:[%s151 + $0x254] sm:$0xff]
                %234 = vst [vmem:[%s152 + $0x174] sm:$0xff] %v233
                %v235 = vld [vmem:[%s151 + $0x25c] sm:$0xff]
                %236 = vst [vmem:[%s152 + $0x17c] sm:$0xff] %v235
                %v237 = vld [vmem:[%s151 + $0x268] sm:$0xff]
                %238 = vst [vmem:[%s152 + $0x188] sm:$0xff] %v237
                %v239 = vld [vmem:[%s151 + $0x270] sm:$0xff]
                %240 = vst [vmem:[%s152 + $0x190] sm:$0xff] %v239
                %v241 = vld [vmem:[%s151 + $0x278] sm:$0xff]
                %242 = vst [vmem:[%s152 + $0x198] sm:$0xff] %v241
                %v243 = vld [vmem:[%s151 + $0x284] sm:$0xff]
                %244 = vst [vmem:[%s152 + $0x1a4] sm:$0xff] %v243
                %v245 = vld [vmem:[%s151 + $0x28c] sm:$0xff]
                %246 = vst [vmem:[%s152 + $0x1ac] sm:$0xff] %v245
                %v247 = vld [vmem:[%s151 + $0x294] sm:$0xff]
                %248 = vst [vmem:[%s152 + $0x1b4] sm:$0xff] %v247
                %v249 = vld [vmem:[%s151 + $0x380] sm:$0xff]
                %250 = vst [vmem:[%s152 + $0x1c0] sm:$0xff] %v249
                %v251 = vld [vmem:[%s151 + $0x388] sm:$0xff]
                %252 = vst [vmem:[%s152 + $0x1c8] sm:$0xff] %v251
                %v253 = vld [vmem:[%s151 + $0x390] sm:$0xff]
                %254 = vst [vmem:[%s152 + $0x1d0] sm:$0xff] %v253
                %v255 = vld [vmem:[%s151 + $0x39c] sm:$0xff]
                %256 = vst [vmem:[%s152 + $0x1dc] sm:$0xff] %v255
                %v257 = vld [vmem:[%s151 + $0x3a4] sm:$0xff]
                %258 = vst [vmem:[%s152 + $0x1e4] sm:$0xff] %v257
                %v259 = vld [vmem:[%s151 + $0x3ac] sm:$0xff]
                %260 = vst [vmem:[%s152 + $0x1ec] sm:$0xff] %v259
                %v261 = vld [vmem:[%s151 + $0x3b8] sm:$0xff]
                %262 = vst [vmem:[%s152 + $0x1f8] sm:$0xff] %v261
                %v263 = vld [vmem:[%s151 + $0x3c0] sm:$0xff]
                %264 = vst [vmem:[%s152 + $0x200] sm:$0xff] %v263
                %v265 = vld [vmem:[%s151 + $0x3c8] sm:$0xff]
                %266 = vst [vmem:[%s152 + $0x208] sm:$0xff] %v265
                %v267 = vld [vmem:[%s151 + $0x3d4] sm:$0xff]
                %268 = vst [vmem:[%s152 + $0x214] sm:$0xff] %v267
                %v269 = vld [vmem:[%s151 + $0x3dc] sm:$0xff]
                %270 = vst [vmem:[%s152 + $0x21c] sm:$0xff] %v269
                %v271 = vld [vmem:[%s151 + $0x3e4] sm:$0xff]
                %272 = vst [vmem:[%s152 + $0x224] sm:$0xff] %v271
                %v273 = vld [vmem:[%s151 + $0x3f0] sm:$0xff]
                %274 = vst [vmem:[%s152 + $0x230] sm:$0xff] %v273
                %v275 = vld [vmem:[%s151 + $0x3f8] sm:$0xff]
                %276 = vst [vmem:[%s152 + $0x238] sm:$0xff] %v275
                %v277 = vld [vmem:[%s151 + $0x400] sm:$0xff]
                %278 = vst [vmem:[%s152 + $0x240] sm:$0xff] %v277
                %v279 = vld [vmem:[%s151 + $0x40c] sm:$0xff]
                %280 = vst [vmem:[%s152 + $0x24c] sm:$0xff] %v279
                %v281 = vld [vmem:[%s151 + $0x414] sm:$0xff]
                %282 = vst [vmem:[%s152 + $0x254] sm:$0xff] %v281
                %v283 = vld [vmem:[%s151 + $0x41c] sm:$0xff]
                %284 = vst [vmem:[%s152 + $0x25c] sm:$0xff] %v283
                %v285 = vld [vmem:[%s151 + $0x428] sm:$0xff]
                %286 = vst [vmem:[%s152 + $0x268] sm:$0xff] %v285
                %v287 = vld [vmem:[%s151 + $0x430] sm:$0xff]
                %288 = vst [vmem:[%s152 + $0x270] sm:$0xff] %v287
                %v289 = vld [vmem:[%s151 + $0x438] sm:$0xff]
                %290 = vst [vmem:[%s152 + $0x278] sm:$0xff] %v289
                %v291 = vld [vmem:[%s151 + $0x444] sm:$0xff]
                %292 = vst [vmem:[%s152 + $0x284] sm:$0xff] %v291
                %v293 = vld [vmem:[%s151 + $0x44c] sm:$0xff]
                %294 = vst [vmem:[%s152 + $0x28c] sm:$0xff] %v293
                %v295 = vld [vmem:[%s151 + $0x454] sm:$0xff]
                %296 = vst [vmem:[%s152 + $0x294] sm:$0xff] %v295
                %v297 = vld [vmem:[%s151 + $0x540] sm:$0xff]
                %298 = vst [vmem:[%s152 + $0x2a0] sm:$0xff] %v297
                %v299 = vld [vmem:[%s151 + $0x548] sm:$0xff]
                %300 = vst [vmem:[%s152 + $0x2a8] sm:$0xff] %v299
                %v301 = vld [vmem:[%s151 + $0x550] sm:$0xff]
                %302 = vst [vmem:[%s152 + $0x2b0] sm:$0xff] %v301
                %v303 = vld [vmem:[%s151 + $0x55c] sm:$0xff]
                %304 = vst [vmem:[%s152 + $0x2bc] sm:$0xff] %v303
                %v305 = vld [vmem:[%s151 + $0x564] sm:$0xff]
                %306 = vst [vmem:[%s152 + $0x2c4] sm:$0xff] %v305
                %v307 = vld [vmem:[%s151 + $0x56c] sm:$0xff]
                %308 = vst [vmem:[%s152 + $0x2cc] sm:$0xff] %v307
                %v309 = vld [vmem:[%s151 + $0x578] sm:$0xff]
                %310 = vst [vmem:[%s152 + $0x2d8] sm:$0xff] %v309
                %v311 = vld [vmem:[%s151 + $0x580] sm:$0xff]
                %312 = vst [vmem:[%s152 + $0x2e0] sm:$0xff] %v311
                %v313 = vld [vmem:[%s151 + $0x588] sm:$0xff]
                %314 = vst [vmem:[%s152 + $0x2e8] sm:$0xff] %v313
                %v315 = vld [vmem:[%s151 + $0x594] sm:$0xff]
                %316 = vst [vmem:[%s152 + $0x2f4] sm:$0xff] %v315
                %v317 = vld [vmem:[%s151 + $0x59c] sm:$0xff]
                %318 = vst [vmem:[%s152 + $0x2fc] sm:$0xff] %v317
                %v319 = vld [vmem:[%s151 + $0x5a4] sm:$0xff]
                %320 = vst [vmem:[%s152 + $0x304] sm:$0xff] %v319
                %v321 = vld [vmem:[%s151 + $0x5b0] sm:$0xff]
                %322 = vst [vmem:[%s152 + $0x310] sm:$0xff] %v321
                %v323 = vld [vmem:[%s151 + $0x5b8] sm:$0xff]
                %324 = vst [vmem:[%s152 + $0x318] sm:$0xff] %v323
                %v325 = vld [vmem:[%s151 + $0x5c0] sm:$0xff]
                %326 = vst [vmem:[%s152 + $0x320] sm:$0xff] %v325
                %v327 = vld [vmem:[%s151 + $0x5cc] sm:$0xff]
                %328 = vst [vmem:[%s152 + $0x32c] sm:$0xff] %v327
                %v329 = vld [vmem:[%s151 + $0x5d4] sm:$0xff]
                %330 = vst [vmem:[%s152 + $0x334] sm:$0xff] %v329
                %v331 = vld [vmem:[%s151 + $0x5dc] sm:$0xff]
                %332 = vst [vmem:[%s152 + $0x33c] sm:$0xff] %v331
                %v333 = vld [vmem:[%s151 + $0x5e8] sm:$0xff]
                %334 = vst [vmem:[%s152 + $0x348] sm:$0xff] %v333
                %v335 = vld [vmem:[%s151 + $0x5f0] sm:$0xff]
                %336 = vst [vmem:[%s152 + $0x350] sm:$0xff] %v335
                %v337 = vld [vmem:[%s151 + $0x5f8] sm:$0xff]
                %338 = vst [vmem:[%s152 + $0x358] sm:$0xff] %v337
                %v339 = vld [vmem:[%s151 + $0x604] sm:$0xff]
                %340 = vst [vmem:[%s152 + $0x364] sm:$0xff] %v339
                %v341 = vld [vmem:[%s151 + $0x60c] sm:$0xff]
                %342 = vst [vmem:[%s152 + $0x36c] sm:$0xff] %v341
                %v343 = vld [vmem:[%s151 + $0x614] sm:$0xff]
                %344 = vst [vmem:[%s152 + $0x374] sm:$0xff] %v343
              $region41: #{tudui_forward.4} parent=35 // loop_footer
                %s150 = sadd.s32 1, %s146
              $region42: #{tudui_forward.4} parent=35 // loop_footer_branch
                %145 = sbr.rel target = $region38
              $region43: #{tudui_forward.4} parent=35 // loop_exit
                _
              %s346 = ssub.s32 16, 1
              loop: start=0, step=1, limit=1
              $region44: #{tudui_forward.4} parent=35 // loop_pre_header
                _
              $region45: #{tudui_forward.4} parent=35 // loop_header
                %s348 = sphi 0, %s352
                %p349 = scmp.ge.s32.totalorder %s348, 1
                %s353 = sphi %s143, %s143
                %s354 = sphi %s144, %s144
              $region46: #{tudui_forward.4} parent=35 // loop_header_branch
                %351 = sbr.rel (%p349) target = $region50
              $region47: #{tudui_forward.4} parent=35 // loop_body
                %v355 = vld [vmem:[%s353] sm:%s346]
                %356 = vst [vmem:[%s354] sm:%s346] %v355
                %v357 = vld [vmem:[%s353 + $0x1c] sm:%s346]
                %358 = vst [vmem:[%s354 + $0x1c] sm:%s346] %v357
                %v359 = vld [vmem:[%s353 + $0x38] sm:%s346]
                %360 = vst [vmem:[%s354 + $0x38] sm:%s346] %v359
                %v361 = vld [vmem:[%s353 + $0x54] sm:%s346]
                %362 = vst [vmem:[%s354 + $0x54] sm:%s346] %v361
                %v363 = vld [vmem:[%s353 + $0x70] sm:%s346]
                %364 = vst [vmem:[%s354 + $0x70] sm:%s346] %v363
                %v365 = vld [vmem:[%s353 + $0x8c] sm:%s346]
                %366 = vst [vmem:[%s354 + $0x8c] sm:%s346] %v365
                %v367 = vld [vmem:[%s353 + $0xa8] sm:%s346]
                %368 = vst [vmem:[%s354 + $0xa8] sm:%s346] %v367
                %v369 = vld [vmem:[%s353 + $0xc4] sm:%s346]
                %370 = vst [vmem:[%s354 + $0xc4] sm:%s346] %v369
                %v371 = vld [vmem:[%s353 + $0x1c0] sm:%s346]
                %372 = vst [vmem:[%s354 + $0xe0] sm:%s346] %v371
                %v373 = vld [vmem:[%s353 + $0x1dc] sm:%s346]
                %374 = vst [vmem:[%s354 + $0xfc] sm:%s346] %v373
                %v375 = vld [vmem:[%s353 + $0x1f8] sm:%s346]
                %376 = vst [vmem:[%s354 + $0x118] sm:%s346] %v375
                %v377 = vld [vmem:[%s353 + $0x214] sm:%s346]
                %378 = vst [vmem:[%s354 + $0x134] sm:%s346] %v377
                %v379 = vld [vmem:[%s353 + $0x230] sm:%s346]
                %380 = vst [vmem:[%s354 + $0x150] sm:%s346] %v379
                %v381 = vld [vmem:[%s353 + $0x24c] sm:%s346]
                %382 = vst [vmem:[%s354 + $0x16c] sm:%s346] %v381
                %v383 = vld [vmem:[%s353 + $0x268] sm:%s346]
                %384 = vst [vmem:[%s354 + $0x188] sm:%s346] %v383
                %v385 = vld [vmem:[%s353 + $0x284] sm:%s346]
                %386 = vst [vmem:[%s354 + $0x1a4] sm:%s346] %v385
                %v387 = vld [vmem:[%s353 + $0x380] sm:%s346]
                %388 = vst [vmem:[%s354 + $0x1c0] sm:%s346] %v387
                %v389 = vld [vmem:[%s353 + $0x39c] sm:%s346]
                %390 = vst [vmem:[%s354 + $0x1dc] sm:%s346] %v389
                %v391 = vld [vmem:[%s353 + $0x3b8] sm:%s346]
                %392 = vst [vmem:[%s354 + $0x1f8] sm:%s346] %v391
                %v393 = vld [vmem:[%s353 + $0x3d4] sm:%s346]
                %394 = vst [vmem:[%s354 + $0x214] sm:%s346] %v393
                %v395 = vld [vmem:[%s353 + $0x3f0] sm:%s346]
                %396 = vst [vmem:[%s354 + $0x230] sm:%s346] %v395
                %v397 = vld [vmem:[%s353 + $0x40c] sm:%s346]
                %398 = vst [vmem:[%s354 + $0x24c] sm:%s346] %v397
                %v399 = vld [vmem:[%s353 + $0x428] sm:%s346]
                %400 = vst [vmem:[%s354 + $0x268] sm:%s346] %v399
                %v401 = vld [vmem:[%s353 + $0x444] sm:%s346]
                %402 = vst [vmem:[%s354 + $0x284] sm:%s346] %v401
                %v403 = vld [vmem:[%s353 + $0x540] sm:%s346]
                %404 = vst [vmem:[%s354 + $0x2a0] sm:%s346] %v403
                %v405 = vld [vmem:[%s353 + $0x55c] sm:%s346]
                %406 = vst [vmem:[%s354 + $0x2bc] sm:%s346] %v405
                %v407 = vld [vmem:[%s353 + $0x578] sm:%s346]
                %408 = vst [vmem:[%s354 + $0x2d8] sm:%s346] %v407
                %v409 = vld [vmem:[%s353 + $0x594] sm:%s346]
                %410 = vst [vmem:[%s354 + $0x2f4] sm:%s346] %v409
                %v411 = vld [vmem:[%s353 + $0x5b0] sm:%s346]
                %412 = vst [vmem:[%s354 + $0x310] sm:%s346] %v411
                %v413 = vld [vmem:[%s353 + $0x5cc] sm:%s346]
                %414 = vst [vmem:[%s354 + $0x32c] sm:%s346] %v413
                %v415 = vld [vmem:[%s353 + $0x5e8] sm:%s346]
                %416 = vst [vmem:[%s354 + $0x348] sm:%s346] %v415
                %v417 = vld [vmem:[%s353 + $0x604] sm:%s346]
                %418 = vst [vmem:[%s354 + $0x364] sm:%s346] %v417
              $region48: #{tudui_forward.4} parent=35 // loop_footer
                %s352 = sadd.s32 1, %s348
              $region49: #{tudui_forward.4} parent=35 // loop_footer_branch
                %347 = sbr.rel target = $region45
              $region50: #{tudui_forward.4} parent=35 // loop_exit
                _
            $region36: #{tudui_forward.4} parent=31 // pred_fallthru
              _
          $region32: #{tudui_forward.4} parent=27 // pred_fallthru
            _
          %419 = vnop
        $region28: #{tudui_forward.4} parent=23 // pred_fallthru
          _
      $region24: #{tudui_forward.4} parent=5 // pred_fallthru
        _
      %p420 = scmp.le.s32.totalorder 1, %s9
      %p421 = scmp.lt.s32.totalorder %s9, 3
      %p422 = pnand %p420, %p421
      %p423 = pneg %p422
      // Predicated region
      $region51: #{tudui_forward.4} parent=5 // pred_check
        _
      $region52: #{tudui_forward.4} parent=5 // pred_check_branch
        %425 = sbr.rel (%p422) target = $region54
      $region53: #{tudui_forward.4} parent=5 // pred_region
        %s426 = ssub.s32 %s9, 1
        %s427 = sand.u32 %s22, 1
        %s428 = sand.u32 %s22, 1
        %s429 = smul.addr %s428, 896
        %s430 = scalar_lea.vmem [#allocation2], %s429
        // Predicated region
        $region55: #{tudui_forward.4} parent=53 // pred_check
          %p431 = pneg %p35
        $region56: #{tudui_forward.4} parent=53 // pred_check_branch
          %433 = sbr.rel (%p431) target = $region58
        $region57: #{tudui_forward.4} parent=53 // pred_region
          _
        $region58: #{tudui_forward.4} parent=53 // pred_fallthru
          _
        %s434 = sand.u32 %s22, 1
        %s435 = sand.u32 %s22, 1
        %s436 = smul.addr %s435, 896
        %s437 = scalar_lea.vmem [#allocation2], %s436
        %p438 = pneg %p35
        %p439 = pneg %p32
        %p440 = pneg %p56
        %p441 = pneg %p53
        %p442 = pneg %p77
        %p443 = pneg %p74
        %p444 = pneg %p103
        %p445 = pneg %p100
        %s446 = smul.u32 8, %s14
        %p447 = scmp.lt.s32.totalorder %s446, 15
        %s448 = scalar_select %p447, %s446, 15
        %s449 = smul.addr %s448, 4
        %s450 = scalar_lea.vmem %s3, %s449
        %s451 = smul.u32 8, %s14
        %s452 = smul.u32 8, %s14
        %p453 = scmp.lt.s32.totalorder %s452, 15
        %s454 = scalar_select %p453, %s452, 15
        %s455 = smul.addr %s454, 4
        %s456 = scalar_lea.vmem %s3, %s455
        %s457 = smul.u32 8, %s14
        %v459 = vld [vmem:[%s430] sm:$0xff]
        %v460 = vld [vmem:[%s430 + $0x8] sm:$0xff]
        %v461 = vld [vmem:[%s430 + $0x10] sm:$0xff]
        %v462 = vld [vmem:[%s430 + $0x18] sm:$0xf]
        %v463 = vld [vmem:[%s430 + $0x1c] sm:$0xff]
        %v464 = vld [vmem:[%s430 + $0x24] sm:$0xff]
        %v465 = vld [vmem:[%s430 + $0x2c] sm:$0xff]
        %v466 = vld [vmem:[%s430 + $0x34] sm:$0xf]
        %v467 = vld [vmem:[%s430 + $0x38] sm:$0xff]
        %v468 = vld [vmem:[%s430 + $0x40] sm:$0xff]
        %v469 = vld [vmem:[%s430 + $0x48] sm:$0xff]
        %v470 = vld [vmem:[%s430 + $0x50] sm:$0xf]
        %v471 = vld [vmem:[%s430 + $0x54] sm:$0xff]
        %v472 = vld [vmem:[%s430 + $0x5c] sm:$0xff]
        %v473 = vld [vmem:[%s430 + $0x64] sm:$0xff]
        %v474 = vld [vmem:[%s430 + $0x6c] sm:$0xf]
        %v475 = vld [vmem:[%s430 + $0x70] sm:$0xff]
        %v476 = vld [vmem:[%s430 + $0x78] sm:$0xff]
        %v477 = vld [vmem:[%s430 + $0x80] sm:$0xff]
        %v478 = vld [vmem:[%s430 + $0x88] sm:$0xf]
        %v479 = vld [vmem:[%s430 + $0x8c] sm:$0xff]
        %v480 = vld [vmem:[%s430 + $0x94] sm:$0xff]
        %v481 = vld [vmem:[%s430 + $0x9c] sm:$0xff]
        %v482 = vld [vmem:[%s430 + $0xa4] sm:$0xf]
        %v483 = vld [vmem:[%s430 + $0xa8] sm:$0xff]
        %v484 = vld [vmem:[%s430 + $0xb0] sm:$0xff]
        %v485 = vld [vmem:[%s430 + $0xb8] sm:$0xff]
        %v486 = vld [vmem:[%s430 + $0xc0] sm:$0xf]
        %v487 = vld [vmem:[%s430 + $0xc4] sm:$0xff]
        %v488 = vld [vmem:[%s430 + $0xcc] sm:$0xff]
        %v489 = vld [vmem:[%s430 + $0xd4] sm:$0xff]
        %v490 = vld [vmem:[%s430 + $0xdc] sm:$0xf]
        %v491 = vld [vmem:[%s430 + $0xe0] sm:$0xff]
        %v492 = vld [vmem:[%s430 + $0xe8] sm:$0xff]
        %v493 = vld [vmem:[%s430 + $0xf0] sm:$0xff]
        %v494 = vld [vmem:[%s430 + $0xf8] sm:$0xf]
        %v495 = vld [vmem:[%s430 + $0xfc] sm:$0xff]
        %v496 = vld [vmem:[%s430 + $0x104] sm:$0xff]
        %v497 = vld [vmem:[%s430 + $0x10c] sm:$0xff]
        %v498 = vld [vmem:[%s430 + $0x114] sm:$0xf]
        %v499 = vld [vmem:[%s430 + $0x118] sm:$0xff]
        %v500 = vld [vmem:[%s430 + $0x120] sm:$0xff]
        %v501 = vld [vmem:[%s430 + $0x128] sm:$0xff]
        %v502 = vld [vmem:[%s430 + $0x130] sm:$0xf]
        %v503 = vld [vmem:[%s430 + $0x134] sm:$0xff]
        %v504 = vld [vmem:[%s430 + $0x13c] sm:$0xff]
        %v505 = vld [vmem:[%s430 + $0x144] sm:$0xff]
        %v506 = vld [vmem:[%s430 + $0x14c] sm:$0xf]
        %v507 = vld [vmem:[%s430 + $0x150] sm:$0xff]
        %v508 = vld [vmem:[%s430 + $0x158] sm:$0xff]
        %v509 = vld [vmem:[%s430 + $0x160] sm:$0xff]
        %v510 = vld [vmem:[%s430 + $0x168] sm:$0xf]
        %v511 = vld [vmem:[%s430 + $0x16c] sm:$0xff]
        %v512 = vld [vmem:[%s430 + $0x174] sm:$0xff]
        %v513 = vld [vmem:[%s430 + $0x17c] sm:$0xff]
        %v514 = vld [vmem:[%s430 + $0x184] sm:$0xf]
        %v515 = vld [vmem:[%s430 + $0x188] sm:$0xff]
        %v516 = vld [vmem:[%s430 + $0x190] sm:$0xff]
        %v517 = vld [vmem:[%s430 + $0x198] sm:$0xff]
        %v518 = vld [vmem:[%s430 + $0x1a0] sm:$0xf]
        %v519 = vld [vmem:[%s430 + $0x1a4] sm:$0xff]
        %v520 = vld [vmem:[%s430 + $0x1ac] sm:$0xff]
        %v521 = vld [vmem:[%s430 + $0x1b4] sm:$0xff]
        %v522 = vld [vmem:[%s430 + $0x1bc] sm:$0xf]
        %v523 = vld [vmem:[%s430 + $0x1c0] sm:$0xff]
        %v524 = vld [vmem:[%s430 + $0x1c8] sm:$0xff]
        %v525 = vld [vmem:[%s430 + $0x1d0] sm:$0xff]
        %v526 = vld [vmem:[%s430 + $0x1d8] sm:$0xf]
        %v527 = vld [vmem:[%s430 + $0x1dc] sm:$0xff]
        %v528 = vld [vmem:[%s430 + $0x1e4] sm:$0xff]
        %v529 = vld [vmem:[%s430 + $0x1ec] sm:$0xff]
        %v530 = vld [vmem:[%s430 + $0x1f4] sm:$0xf]
        %v531 = vld [vmem:[%s430 + $0x1f8] sm:$0xff]
        %v532 = vld [vmem:[%s430 + $0x200] sm:$0xff]
        %v533 = vld [vmem:[%s430 + $0x208] sm:$0xff]
        %v534 = vld [vmem:[%s430 + $0x210] sm:$0xf]
        %v535 = vld [vmem:[%s430 + $0x214] sm:$0xff]
        %v536 = vld [vmem:[%s430 + $0x21c] sm:$0xff]
        %v537 = vld [vmem:[%s430 + $0x224] sm:$0xff]
        %v538 = vld [vmem:[%s430 + $0x22c] sm:$0xf]
        %v539 = vld [vmem:[%s430 + $0x230] sm:$0xff]
        %v540 = vld [vmem:[%s430 + $0x238] sm:$0xff]
        %v541 = vld [vmem:[%s430 + $0x240] sm:$0xff]
        %v542 = vld [vmem:[%s430 + $0x248] sm:$0xf]
        %v543 = vld [vmem:[%s430 + $0x24c] sm:$0xff]
        %v544 = vld [vmem:[%s430 + $0x254] sm:$0xff]
        %v545 = vld [vmem:[%s430 + $0x25c] sm:$0xff]
        %v546 = vld [vmem:[%s430 + $0x264] sm:$0xf]
        %v547 = vld [vmem:[%s430 + $0x268] sm:$0xff]
        %v548 = vld [vmem:[%s430 + $0x270] sm:$0xff]
        %v549 = vld [vmem:[%s430 + $0x278] sm:$0xff]
        %v550 = vld [vmem:[%s430 + $0x280] sm:$0xf]
        %v551 = vld [vmem:[%s430 + $0x284] sm:$0xff]
        %v552 = vld [vmem:[%s430 + $0x28c] sm:$0xff]
        %v553 = vld [vmem:[%s430 + $0x294] sm:$0xff]
        %v554 = vld [vmem:[%s430 + $0x29c] sm:$0xf]
        %v555 = vld [vmem:[%s430 + $0x2a0] sm:$0xff]
        %v556 = vld [vmem:[%s430 + $0x2a8] sm:$0xff]
        %v557 = vld [vmem:[%s430 + $0x2b0] sm:$0xff]
        %v558 = vld [vmem:[%s430 + $0x2b8] sm:$0xf]
        %v559 = vld [vmem:[%s430 + $0x2bc] sm:$0xff]
        %v560 = vld [vmem:[%s430 + $0x2c4] sm:$0xff]
        %v561 = vld [vmem:[%s430 + $0x2cc] sm:$0xff]
        %v562 = vld [vmem:[%s430 + $0x2d4] sm:$0xf]
        %v563 = vld [vmem:[%s430 + $0x2d8] sm:$0xff]
        %v564 = vld [vmem:[%s430 + $0x2e0] sm:$0xff]
        %v565 = vld [vmem:[%s430 + $0x2e8] sm:$0xff]
        %v566 = vld [vmem:[%s430 + $0x2f0] sm:$0xf]
        %v567 = vld [vmem:[%s430 + $0x2f4] sm:$0xff]
        %v568 = vld [vmem:[%s430 + $0x2fc] sm:$0xff]
        %v569 = vld [vmem:[%s430 + $0x304] sm:$0xff]
        %v570 = vld [vmem:[%s430 + $0x30c] sm:$0xf]
        %v571 = vld [vmem:[%s430 + $0x310] sm:$0xff]
        %v572 = vld [vmem:[%s430 + $0x318] sm:$0xff]
        %v573 = vld [vmem:[%s430 + $0x320] sm:$0xff]
        %v574 = vld [vmem:[%s430 + $0x328] sm:$0xf]
        %v575 = vld [vmem:[%s430 + $0x32c] sm:$0xff]
        %v576 = vld [vmem:[%s430 + $0x334] sm:$0xff]
        %v577 = vld [vmem:[%s430 + $0x33c] sm:$0xff]
        %v578 = vld [vmem:[%s430 + $0x344] sm:$0xf]
        %v579 = vld [vmem:[%s430 + $0x348] sm:$0xff]
        %v580 = vld [vmem:[%s430 + $0x350] sm:$0xff]
        %v581 = vld [vmem:[%s430 + $0x358] sm:$0xff]
        %v582 = vld [vmem:[%s430 + $0x360] sm:$0xf]
        %v583 = vld [vmem:[%s430 + $0x364] sm:$0xff]
        %v584 = vld [vmem:[%s430 + $0x36c] sm:$0xff]
        %v585 = vld [vmem:[%s430 + $0x374] sm:$0xff]
        %v586 = vld [vmem:[%s430 + $0x37c] sm:$0xf]
        %v587 = vld [vmem:[%s1] sm:$0xf]
        %v588 = vld [vmem:[%s1 + $0x4] sm:$0xf]
        %v589 = vld [vmem:[%s1 + $0x8] sm:$0xf]
        %v590 = vld [vmem:[%s1 + $0xc] sm:$0xf]
        %v591 = vld [vmem:[%s1 + $0x10] sm:$0xf]
        %v592 = vld [vmem:[%s1 + $0x14] sm:$0xf]
        %v593 = vld [vmem:[%s1 + $0x18] sm:$0xf]
        %v594 = vld [vmem:[%s1 + $0x1c] sm:$0xf]
        %v595 = vld [vmem:[%s1 + $0x20] sm:$0xf]
        %v596 = vld [vmem:[%s1 + $0x24] sm:$0xf]
        %v597 = vld [vmem:[%s1 + $0x28] sm:$0xf]
        %v598 = vld [vmem:[%s1 + $0x2c] sm:$0xf]
        %v599 = vld [vmem:[%s1 + $0x30] sm:$0xf]
        %v600 = vld [vmem:[%s1 + $0x34] sm:$0xf]
        %v601 = vld [vmem:[%s1 + $0x38] sm:$0xf]
        %v602 = vld [vmem:[%s1 + $0x3c] sm:$0xf]
        %v603 = vld [vmem:[%s1 + $0x40] sm:$0xf]
        %v604 = vld [vmem:[%s1 + $0x44] sm:$0xf]
        %v605 = vld [vmem:[%s1 + $0x48] sm:$0xf]
        %v606 = vld [vmem:[%s1 + $0x4c] sm:$0xf]
        %v607 = vld [vmem:[%s1 + $0x50] sm:$0xf]
        %v608 = vld [vmem:[%s1 + $0x54] sm:$0xf]
        %v609 = vld [vmem:[%s1 + $0x58] sm:$0xf]
        %v610 = vld [vmem:[%s1 + $0x5c] sm:$0xf]
        %v611 = vld [vmem:[%s1 + $0x60] sm:$0xf]
        %v612 = vld [vmem:[%s1 + $0x64] sm:$0xf]
        %v613 = vld [vmem:[%s1 + $0x68] sm:$0xf]
        %v614 = vld [vmem:[%s1 + $0x6c] sm:$0xf]
        %v615 = vld [vmem:[%s1 + $0x70] sm:$0xf]
        %v616 = vld [vmem:[%s1 + $0x74] sm:$0xf]
        %v617 = vld [vmem:[%s1 + $0x78] sm:$0xf]
        %v618 = vld [vmem:[%s1 + $0x7c] sm:$0xf]
        %v619 = vld [vmem:[%s1 + $0x80] sm:$0xf]
        %v620 = vld [vmem:[%s1 + $0x84] sm:$0xf]
        %v621 = vld [vmem:[%s1 + $0x88] sm:$0xf]
        %v622 = vld [vmem:[%s1 + $0x8c] sm:$0xf]
        %v623 = vld [vmem:[%s1 + $0x90] sm:$0xf]
        %v624 = vld [vmem:[%s1 + $0x94] sm:$0xf]
        %v625 = vld [vmem:[%s1 + $0x98] sm:$0xf]
        %v626 = vld [vmem:[%s1 + $0x9c] sm:$0xf]
        %v627 = vld [vmem:[%s1 + $0xa0] sm:$0xf]
        %v628 = vld [vmem:[%s1 + $0xa4] sm:$0xf]
        %v629 = vld [vmem:[%s1 + $0xa8] sm:$0xf]
        %v630 = vld [vmem:[%s1 + $0xac] sm:$0xf]
        %v631 = vld [vmem:[%s1 + $0xb0] sm:$0xf]
        %v632 = vld [vmem:[%s1 + $0xb4] sm:$0xf]
        %v633 = vld [vmem:[%s1 + $0xb8] sm:$0xf]
        %v634 = vld [vmem:[%s1 + $0xbc] sm:$0xf]
        %v635 = vld [vmem:[%s1 + $0xc0] sm:$0xf]
        %v636 = vld [vmem:[%s1 + $0xc4] sm:$0xf]
        %v637 = vld [vmem:[%s1 + $0xc8] sm:$0xf]
        %v638 = vld [vmem:[%s1 + $0xcc] sm:$0xf]
        %v639 = vld [vmem:[%s1 + $0xd0] sm:$0xf]
        %v640 = vld [vmem:[%s1 + $0xd4] sm:$0xf]
        %v641 = vld [vmem:[%s1 + $0xd8] sm:$0xf]
        %v642 = vld [vmem:[%s1 + $0xdc] sm:$0xf]
        %v643 = vld [vmem:[%s1 + $0xe0] sm:$0xf]
        %v644 = vld [vmem:[%s1 + $0xe4] sm:$0xf]
        %v645 = vld [vmem:[%s1 + $0xe8] sm:$0xf]
        %v646 = vld [vmem:[%s1 + $0xec] sm:$0xf]
        %v647 = vld [vmem:[%s1 + $0xf0] sm:$0xf]
        %v648 = vld [vmem:[%s1 + $0xf4] sm:$0xf]
        %v649 = vld [vmem:[%s1 + $0xf8] sm:$0xf]
        %v650 = vld [vmem:[%s1 + $0xfc] sm:$0xf]
        %v651 = vld [vmem:[%s1 + $0x100] sm:$0xf]
        %v652 = vld [vmem:[%s1 + $0x104] sm:$0xf]
        %v653 = vld [vmem:[%s1 + $0x108] sm:$0xf]
        %v654 = vld [vmem:[%s1 + $0x10c] sm:$0xf]
        %v655 = vld [vmem:[%s1 + $0x110] sm:$0xf]
        %v656 = vld [vmem:[%s1 + $0x114] sm:$0xf]
        %v657 = vld [vmem:[%s1 + $0x118] sm:$0xf]
        %v658 = vld [vmem:[%s1 + $0x11c] sm:$0xf]
        %v659 = vld [vmem:[%s1 + $0x120] sm:$0xf]
        %v660 = vld [vmem:[%s1 + $0x124] sm:$0xf]
        %v661 = vld [vmem:[%s1 + $0x128] sm:$0xf]
        %v662 = vld [vmem:[%s1 + $0x12c] sm:$0xf]
        %v663 = vld [vmem:[%s1 + $0x130] sm:$0xf]
        %v664 = vld [vmem:[%s1 + $0x134] sm:$0xf]
        %v665 = vld [vmem:[%s1 + $0x138] sm:$0xf]
        %v666 = vld [vmem:[%s1 + $0x13c] sm:$0xf]
        %v667 = vld [vmem:[%s1 + $0x140] sm:$0xf]
        %v668 = vld [vmem:[%s1 + $0x144] sm:$0xf]
        %v669 = vld [vmem:[%s1 + $0x148] sm:$0xf]
        %v670 = vld [vmem:[%s1 + $0x14c] sm:$0xf]
        %v671 = vld [vmem:[%s1 + $0x150] sm:$0xf]
        %v672 = vld [vmem:[%s1 + $0x154] sm:$0xf]
        %v673 = vld [vmem:[%s1 + $0x158] sm:$0xf]
        %v674 = vld [vmem:[%s1 + $0x15c] sm:$0xf]
        %v675 = vld [vmem:[%s1 + $0x160] sm:$0xf]
        %v676 = vld [vmem:[%s1 + $0x164] sm:$0xf]
        %v677 = vld [vmem:[%s1 + $0x168] sm:$0xf]
        %v678 = vld [vmem:[%s1 + $0x16c] sm:$0xf]
        %v679 = vld [vmem:[%s1 + $0x170] sm:$0xf]
        %v680 = vld [vmem:[%s1 + $0x174] sm:$0xf]
        %v681 = vld [vmem:[%s1 + $0x178] sm:$0xf]
        %v682 = vld [vmem:[%s1 + $0x17c] sm:$0xf]
        %v683 = vld [vmem:[%s1 + $0x180] sm:$0xf]
        %v684 = vld [vmem:[%s1 + $0x184] sm:$0xf]
        %v685 = vld [vmem:[%s1 + $0x188] sm:$0xf]
        %v686 = vld [vmem:[%s1 + $0x18c] sm:$0xf]
        %v815 = vunpack.c.l.b16 %v459
        %v816 = vunpack.c.h.b16 %v459
        %v817 = vunpack.c.l.b16 %v460
        %v818 = vunpack.c.h.b16 %v460
        %v819 = vunpack.c.l.b16 %v461
        %v820 = vunpack.c.h.b16 %v461
        %v821 = vunpack.c.l.b16 %v462
        %v822 = vunpack.c.l.b16 %v463
        %v823 = vunpack.c.h.b16 %v463
        %v824 = vunpack.c.l.b16 %v464
        %v825 = vunpack.c.h.b16 %v464
        %v826 = vunpack.c.l.b16 %v465
        %v827 = vunpack.c.h.b16 %v465
        %v828 = vunpack.c.l.b16 %v466
        %v829 = vunpack.c.l.b16 %v467
        %v830 = vunpack.c.h.b16 %v467
        %v831 = vunpack.c.l.b16 %v468
        %v832 = vunpack.c.h.b16 %v468
        %v833 = vunpack.c.l.b16 %v469
        %v834 = vunpack.c.h.b16 %v469
        %v835 = vunpack.c.l.b16 %v470
        %v836 = vunpack.c.l.b16 %v471
        %v837 = vunpack.c.h.b16 %v471
        %v838 = vunpack.c.l.b16 %v472
        %v839 = vunpack.c.h.b16 %v472
        %v840 = vunpack.c.l.b16 %v473
        %v841 = vunpack.c.h.b16 %v473
        %v842 = vunpack.c.l.b16 %v474
        %v843 = vunpack.c.l.b16 %v475
        %v844 = vunpack.c.h.b16 %v475
        %v845 = vunpack.c.l.b16 %v476
        %v846 = vunpack.c.h.b16 %v476
        %v847 = vunpack.c.l.b16 %v477
        %v848 = vunpack.c.h.b16 %v477
        %v849 = vunpack.c.l.b16 %v478
        %v850 = vunpack.c.l.b16 %v479
        %v851 = vunpack.c.h.b16 %v479
        %v852 = vunpack.c.l.b16 %v480
        %v853 = vunpack.c.h.b16 %v480
        %v854 = vunpack.c.l.b16 %v481
        %v855 = vunpack.c.h.b16 %v481
        %v856 = vunpack.c.l.b16 %v482
        %v857 = vunpack.c.l.b16 %v483
        %v858 = vunpack.c.h.b16 %v483
        %v859 = vunpack.c.l.b16 %v484
        %v860 = vunpack.c.h.b16 %v484
        %v861 = vunpack.c.l.b16 %v485
        %v862 = vunpack.c.h.b16 %v485
        %v863 = vunpack.c.l.b16 %v486
        %v864 = vunpack.c.l.b16 %v487
        %v865 = vunpack.c.h.b16 %v487
        %v866 = vunpack.c.l.b16 %v488
        %v867 = vunpack.c.h.b16 %v488
        %v868 = vunpack.c.l.b16 %v489
        %v869 = vunpack.c.h.b16 %v489
        %v870 = vunpack.c.l.b16 %v490
        %v871 = vunpack.c.l.b16 %v491
        %v872 = vunpack.c.h.b16 %v491
        %v873 = vunpack.c.l.b16 %v492
        %v874 = vunpack.c.h.b16 %v492
        %v875 = vunpack.c.l.b16 %v493
        %v876 = vunpack.c.h.b16 %v493
        %v877 = vunpack.c.l.b16 %v494
        %v878 = vunpack.c.l.b16 %v495
        %v879 = vunpack.c.h.b16 %v495
        %v880 = vunpack.c.l.b16 %v496
        %v881 = vunpack.c.h.b16 %v496
        %v882 = vunpack.c.l.b16 %v497
        %v883 = vunpack.c.h.b16 %v497
        %v884 = vunpack.c.l.b16 %v498
        %v885 = vunpack.c.l.b16 %v499
        %v886 = vunpack.c.h.b16 %v499
        %v887 = vunpack.c.l.b16 %v500
        %v888 = vunpack.c.h.b16 %v500
        %v889 = vunpack.c.l.b16 %v501
        %v890 = vunpack.c.h.b16 %v501
        %v891 = vunpack.c.l.b16 %v502
        %v892 = vunpack.c.l.b16 %v503
        %v893 = vunpack.c.h.b16 %v503
        %v894 = vunpack.c.l.b16 %v504
        %v895 = vunpack.c.h.b16 %v504
        %v896 = vunpack.c.l.b16 %v505
        %v897 = vunpack.c.h.b16 %v505
        %v898 = vunpack.c.l.b16 %v506
        %v899 = vunpack.c.l.b16 %v507
        %v900 = vunpack.c.h.b16 %v507
        %v901 = vunpack.c.l.b16 %v508
        %v902 = vunpack.c.h.b16 %v508
        %v903 = vunpack.c.l.b16 %v509
        %v904 = vunpack.c.h.b16 %v509
        %v905 = vunpack.c.l.b16 %v510
        %v906 = vunpack.c.l.b16 %v511
        %v907 = vunpack.c.h.b16 %v511
        %v908 = vunpack.c.l.b16 %v512
        %v909 = vunpack.c.h.b16 %v512
        %v910 = vunpack.c.l.b16 %v513
        %v911 = vunpack.c.h.b16 %v513
        %v912 = vunpack.c.l.b16 %v514
        %v913 = vunpack.c.l.b16 %v515
        %v914 = vunpack.c.h.b16 %v515
        %v915 = vunpack.c.l.b16 %v516
        %v916 = vunpack.c.h.b16 %v516
        %v917 = vunpack.c.l.b16 %v517
        %v918 = vunpack.c.h.b16 %v517
        %v919 = vunpack.c.l.b16 %v518
        %v920 = vunpack.c.l.b16 %v519
        %v921 = vunpack.c.h.b16 %v519
        %v922 = vunpack.c.l.b16 %v520
        %v923 = vunpack.c.h.b16 %v520
        %v924 = vunpack.c.l.b16 %v521
        %v925 = vunpack.c.h.b16 %v521
        %v926 = vunpack.c.l.b16 %v522
        %v927 = vunpack.c.l.b16 %v523
        %v928 = vunpack.c.h.b16 %v523
        %v929 = vunpack.c.l.b16 %v524
        %v930 = vunpack.c.h.b16 %v524
        %v931 = vunpack.c.l.b16 %v525
        %v932 = vunpack.c.h.b16 %v525
        %v933 = vunpack.c.l.b16 %v526
        %v934 = vunpack.c.l.b16 %v527
        %v935 = vunpack.c.h.b16 %v527
        %v936 = vunpack.c.l.b16 %v528
        %v937 = vunpack.c.h.b16 %v528
        %v938 = vunpack.c.l.b16 %v529
        %v939 = vunpack.c.h.b16 %v529
        %v940 = vunpack.c.l.b16 %v530
        %v941 = vunpack.c.l.b16 %v531
        %v942 = vunpack.c.h.b16 %v531
        %v943 = vunpack.c.l.b16 %v532
        %v944 = vunpack.c.h.b16 %v532
        %v945 = vunpack.c.l.b16 %v533
        %v946 = vunpack.c.h.b16 %v533
        %v947 = vunpack.c.l.b16 %v534
        %v948 = vunpack.c.l.b16 %v535
        %v949 = vunpack.c.h.b16 %v535
        %v950 = vunpack.c.l.b16 %v536
        %v951 = vunpack.c.h.b16 %v536
        %v952 = vunpack.c.l.b16 %v537
        %v953 = vunpack.c.h.b16 %v537
        %v954 = vunpack.c.l.b16 %v538
        %v955 = vunpack.c.l.b16 %v539
        %v956 = vunpack.c.h.b16 %v539
        %v957 = vunpack.c.l.b16 %v540
        %v958 = vunpack.c.h.b16 %v540
        %v959 = vunpack.c.l.b16 %v541
        %v960 = vunpack.c.h.b16 %v541
        %v961 = vunpack.c.l.b16 %v542
        %v962 = vunpack.c.l.b16 %v543
        %v963 = vunpack.c.h.b16 %v543
        %v964 = vunpack.c.l.b16 %v544
        %v965 = vunpack.c.h.b16 %v544
        %v966 = vunpack.c.l.b16 %v545
        %v967 = vunpack.c.h.b16 %v545
        %v968 = vunpack.c.l.b16 %v546
        %v969 = vunpack.c.l.b16 %v547
        %v970 = vunpack.c.h.b16 %v547
        %v971 = vunpack.c.l.b16 %v548
        %v972 = vunpack.c.h.b16 %v548
        %v973 = vunpack.c.l.b16 %v549
        %v974 = vunpack.c.h.b16 %v549
        %v975 = vunpack.c.l.b16 %v550
        %v976 = vunpack.c.l.b16 %v551
        %v977 = vunpack.c.h.b16 %v551
        %v978 = vunpack.c.l.b16 %v552
        %v979 = vunpack.c.h.b16 %v552
        %v980 = vunpack.c.l.b16 %v553
        %v981 = vunpack.c.h.b16 %v553
        %v982 = vunpack.c.l.b16 %v554
        %v983 = vunpack.c.l.b16 %v555
        %v984 = vunpack.c.h.b16 %v555
        %v985 = vunpack.c.l.b16 %v556
        %v986 = vunpack.c.h.b16 %v556
        %v987 = vunpack.c.l.b16 %v557
        %v988 = vunpack.c.h.b16 %v557
        %v989 = vunpack.c.l.b16 %v558
        %v990 = vunpack.c.l.b16 %v559
        %v991 = vunpack.c.h.b16 %v559
        %v992 = vunpack.c.l.b16 %v560
        %v993 = vunpack.c.h.b16 %v560
        %v994 = vunpack.c.l.b16 %v561
        %v995 = vunpack.c.h.b16 %v561
        %v996 = vunpack.c.l.b16 %v562
        %v997 = vunpack.c.l.b16 %v563
        %v998 = vunpack.c.h.b16 %v563
        %v999 = vunpack.c.l.b16 %v564
        %v1000 = vunpack.c.h.b16 %v564
        %v1001 = vunpack.c.l.b16 %v565
        %v1002 = vunpack.c.h.b16 %v565
        %v1003 = vunpack.c.l.b16 %v566
        %v1004 = vunpack.c.l.b16 %v567
        %v1005 = vunpack.c.h.b16 %v567
        %v1006 = vunpack.c.l.b16 %v568
        %v1007 = vunpack.c.h.b16 %v568
        %v1008 = vunpack.c.l.b16 %v569
        %v1009 = vunpack.c.h.b16 %v569
        %v1010 = vunpack.c.l.b16 %v570
        %v1011 = vunpack.c.l.b16 %v571
        %v1012 = vunpack.c.h.b16 %v571
        %v1013 = vunpack.c.l.b16 %v572
        %v1014 = vunpack.c.h.b16 %v572
        %v1015 = vunpack.c.l.b16 %v573
        %v1016 = vunpack.c.h.b16 %v573
        %v1017 = vunpack.c.l.b16 %v574
        %v1018 = vunpack.c.l.b16 %v575
        %v1019 = vunpack.c.h.b16 %v575
        %v1020 = vunpack.c.l.b16 %v576
        %v1021 = vunpack.c.h.b16 %v576
        %v1022 = vunpack.c.l.b16 %v577
        %v1023 = vunpack.c.h.b16 %v577
        %v1024 = vunpack.c.l.b16 %v578
        %v1025 = vunpack.c.l.b16 %v579
        %v1026 = vunpack.c.h.b16 %v579
        %v1027 = vunpack.c.l.b16 %v580
        %v1028 = vunpack.c.h.b16 %v580
        %v1029 = vunpack.c.l.b16 %v581
        %v1030 = vunpack.c.h.b16 %v581
        %v1031 = vunpack.c.l.b16 %v582
        %v1032 = vunpack.c.l.b16 %v583
        %v1033 = vunpack.c.h.b16 %v583
        %v1034 = vunpack.c.l.b16 %v584
        %v1035 = vunpack.c.h.b16 %v584
        %v1036 = vunpack.c.l.b16 %v585
        %v1037 = vunpack.c.h.b16 %v585
        %v1038 = vunpack.c.l.b16 %v586
        %v1039 = vpack.c.b16 %v822, %v815
        %v1040 = vpack.c.b16 %v823, %v816
        %v1041 = vpack.c.b16 %v824, %v817
        %v1042 = vpack.c.b16 %v825, %v818
        %v1043 = vpack.c.b16 %v826, %v819
        %v1044 = vpack.c.b16 %v827, %v820
        %v1045 = vpack.c.b16 %v828, %v821
        %v1046 = vpack.c.b16 %v836, %v829
        %v1047 = vpack.c.b16 %v837, %v830
        %v1048 = vpack.c.b16 %v838, %v831
        %v1049 = vpack.c.b16 %v839, %v832
        %v1050 = vpack.c.b16 %v840, %v833
        %v1051 = vpack.c.b16 %v841, %v834
        %v1052 = vpack.c.b16 %v842, %v835
        %v1053 = vpack.c.b16 %v850, %v843
        %v1054 = vpack.c.b16 %v851, %v844
        %v1055 = vpack.c.b16 %v852, %v845
        %v1056 = vpack.c.b16 %v853, %v846
        %v1057 = vpack.c.b16 %v854, %v847
        %v1058 = vpack.c.b16 %v855, %v848
        %v1059 = vpack.c.b16 %v856, %v849
        %v1060 = vpack.c.b16 %v864, %v857
        %v1061 = vpack.c.b16 %v865, %v858
        %v1062 = vpack.c.b16 %v866, %v859
        %v1063 = vpack.c.b16 %v867, %v860
        %v1064 = vpack.c.b16 %v868, %v861
        %v1065 = vpack.c.b16 %v869, %v862
        %v1066 = vpack.c.b16 %v870, %v863
        %v1067 = vpack.c.b16 %v878, %v871
        %v1068 = vpack.c.b16 %v879, %v872
        %v1069 = vpack.c.b16 %v880, %v873
        %v1070 = vpack.c.b16 %v881, %v874
        %v1071 = vpack.c.b16 %v882, %v875
        %v1072 = vpack.c.b16 %v883, %v876
        %v1073 = vpack.c.b16 %v884, %v877
        %v1074 = vpack.c.b16 %v892, %v885
        %v1075 = vpack.c.b16 %v893, %v886
        %v1076 = vpack.c.b16 %v894, %v887
        %v1077 = vpack.c.b16 %v895, %v888
        %v1078 = vpack.c.b16 %v896, %v889
        %v1079 = vpack.c.b16 %v897, %v890
        %v1080 = vpack.c.b16 %v898, %v891
        %v1081 = vpack.c.b16 %v906, %v899
        %v1082 = vpack.c.b16 %v907, %v900
        %v1083 = vpack.c.b16 %v908, %v901
        %v1084 = vpack.c.b16 %v909, %v902
        %v1085 = vpack.c.b16 %v910, %v903
        %v1086 = vpack.c.b16 %v911, %v904
        %v1087 = vpack.c.b16 %v912, %v905
        %v1088 = vpack.c.b16 %v920, %v913
        %v1089 = vpack.c.b16 %v921, %v914
        %v1090 = vpack.c.b16 %v922, %v915
        %v1091 = vpack.c.b16 %v923, %v916
        %v1092 = vpack.c.b16 %v924, %v917
        %v1093 = vpack.c.b16 %v925, %v918
        %v1094 = vpack.c.b16 %v926, %v919
        %v1095 = vpack.c.b16 %v934, %v927
        %v1096 = vpack.c.b16 %v935, %v928
        %v1097 = vpack.c.b16 %v936, %v929
        %v1098 = vpack.c.b16 %v937, %v930
        %v1099 = vpack.c.b16 %v938, %v931
        %v1100 = vpack.c.b16 %v939, %v932
        %v1101 = vpack.c.b16 %v940, %v933
        %v1102 = vpack.c.b16 %v948, %v941
        %v1103 = vpack.c.b16 %v949, %v942
        %v1104 = vpack.c.b16 %v950, %v943
        %v1105 = vpack.c.b16 %v951, %v944
        %v1106 = vpack.c.b16 %v952, %v945
        %v1107 = vpack.c.b16 %v953, %v946
        %v1108 = vpack.c.b16 %v954, %v947
        %v1109 = vpack.c.b16 %v962, %v955
        %v1110 = vpack.c.b16 %v963, %v956
        %v1111 = vpack.c.b16 %v964, %v957
        %v1112 = vpack.c.b16 %v965, %v958
        %v1113 = vpack.c.b16 %v966, %v959
        %v1114 = vpack.c.b16 %v967, %v960
        %v1115 = vpack.c.b16 %v968, %v961
        %v1116 = vpack.c.b16 %v976, %v969
        %v1117 = vpack.c.b16 %v977, %v970
        %v1118 = vpack.c.b16 %v978, %v971
        %v1119 = vpack.c.b16 %v979, %v972
        %v1120 = vpack.c.b16 %v980, %v973
        %v1121 = vpack.c.b16 %v981, %v974
        %v1122 = vpack.c.b16 %v982, %v975
        %v1123 = vpack.c.b16 %v990, %v983
        %v1124 = vpack.c.b16 %v991, %v984
        %v1125 = vpack.c.b16 %v992, %v985
        %v1126 = vpack.c.b16 %v993, %v986
        %v1127 = vpack.c.b16 %v994, %v987
        %v1128 = vpack.c.b16 %v995, %v988
        %v1129 = vpack.c.b16 %v996, %v989
        %v1130 = vpack.c.b16 %v1004, %v997
        %v1131 = vpack.c.b16 %v1005, %v998
        %v1132 = vpack.c.b16 %v1006, %v999
        %v1133 = vpack.c.b16 %v1007, %v1000
        %v1134 = vpack.c.b16 %v1008, %v1001
        %v1135 = vpack.c.b16 %v1009, %v1002
        %v1136 = vpack.c.b16 %v1010, %v1003
        %v1137 = vpack.c.b16 %v1018, %v1011
        %v1138 = vpack.c.b16 %v1019, %v1012
        %v1139 = vpack.c.b16 %v1020, %v1013
        %v1140 = vpack.c.b16 %v1021, %v1014
        %v1141 = vpack.c.b16 %v1022, %v1015
        %v1142 = vpack.c.b16 %v1023, %v1016
        %v1143 = vpack.c.b16 %v1024, %v1017
        %v1144 = vpack.c.b16 %v1032, %v1025
        %v1145 = vpack.c.b16 %v1033, %v1026
        %v1146 = vpack.c.b16 %v1034, %v1027
        %v1147 = vpack.c.b16 %v1035, %v1028
        %v1148 = vpack.c.b16 %v1036, %v1029
        %v1149 = vpack.c.b16 %v1037, %v1030
        %v1150 = vpack.c.b16 %v1038, %v1031
        %v1347 = vunpack.c.l.b16 %v587
        %v1348 = vunpack.c.l.b16 %v588
        %v1349 = vunpack.c.l.b16 %v589
        %v1350 = vunpack.c.l.b16 %v590
        %v1351 = vunpack.c.l.b16 %v591
        %v1352 = vunpack.c.l.b16 %v592
        %v1353 = vunpack.c.l.b16 %v593
        %v1354 = vunpack.c.l.b16 %v594
        %v1355 = vunpack.c.l.b16 %v595
        %v1356 = vunpack.c.l.b16 %v596
        %v1357 = vunpack.c.l.b16 %v597
        %v1358 = vunpack.c.l.b16 %v598
        %v1359 = vunpack.c.l.b16 %v599
        %v1360 = vunpack.c.l.b16 %v600
        %v1361 = vunpack.c.l.b16 %v601
        %v1362 = vunpack.c.l.b16 %v602
        %v1363 = vunpack.c.l.b16 %v603
        %v1364 = vunpack.c.l.b16 %v604
        %v1365 = vunpack.c.l.b16 %v605
        %v1366 = vunpack.c.l.b16 %v606
        %v1367 = vunpack.c.l.b16 %v607
        %v1368 = vunpack.c.l.b16 %v608
        %v1369 = vunpack.c.l.b16 %v609
        %v1370 = vunpack.c.l.b16 %v610
        %v1371 = vunpack.c.l.b16 %v611
        %v1372 = vunpack.c.l.b16 %v612
        %v1373 = vunpack.c.l.b16 %v613
        %v1374 = vunpack.c.l.b16 %v614
        %v1375 = vunpack.c.l.b16 %v615
        %v1376 = vunpack.c.l.b16 %v616
        %v1377 = vunpack.c.l.b16 %v617
        %v1378 = vunpack.c.l.b16 %v618
        %v1379 = vunpack.c.l.b16 %v619
        %v1380 = vunpack.c.l.b16 %v620
        %v1381 = vunpack.c.l.b16 %v621
        %v1382 = vunpack.c.l.b16 %v622
        %v1383 = vunpack.c.l.b16 %v623
        %v1384 = vunpack.c.l.b16 %v624
        %v1385 = vunpack.c.l.b16 %v625
        %v1386 = vunpack.c.l.b16 %v626
        %v1387 = vunpack.c.l.b16 %v627
        %v1388 = vunpack.c.l.b16 %v628
        %v1389 = vunpack.c.l.b16 %v629
        %v1390 = vunpack.c.l.b16 %v630
        %v1391 = vunpack.c.l.b16 %v631
        %v1392 = vunpack.c.l.b16 %v632
        %v1393 = vunpack.c.l.b16 %v633
        %v1394 = vunpack.c.l.b16 %v634
        %v1395 = vunpack.c.l.b16 %v635
        %v1396 = vunpack.c.l.b16 %v636
        %v1397 = vunpack.c.l.b16 %v637
        %v1398 = vunpack.c.l.b16 %v638
        %v1399 = vunpack.c.l.b16 %v639
        %v1400 = vunpack.c.l.b16 %v640
        %v1401 = vunpack.c.l.b16 %v641
        %v1402 = vunpack.c.l.b16 %v642
        %v1403 = vunpack.c.l.b16 %v643
        %v1404 = vunpack.c.l.b16 %v644
        %v1405 = vunpack.c.l.b16 %v645
        %v1406 = vunpack.c.l.b16 %v646
        %v1407 = vunpack.c.l.b16 %v647
        %v1408 = vunpack.c.l.b16 %v648
        %v1409 = vunpack.c.l.b16 %v649
        %v1410 = vunpack.c.l.b16 %v650
        %v1411 = vunpack.c.l.b16 %v651
        %v1412 = vunpack.c.l.b16 %v652
        %v1413 = vunpack.c.l.b16 %v653
        %v1414 = vunpack.c.l.b16 %v654
        %v1415 = vunpack.c.l.b16 %v655
        %v1416 = vunpack.c.l.b16 %v656
        %v1417 = vunpack.c.l.b16 %v657
        %v1418 = vunpack.c.l.b16 %v658
        %v1419 = vunpack.c.l.b16 %v659
        %v1420 = vunpack.c.l.b16 %v660
        %v1421 = vunpack.c.l.b16 %v661
        %v1422 = vunpack.c.l.b16 %v662
        %v1423 = vunpack.c.l.b16 %v663
        %v1424 = vunpack.c.l.b16 %v664
        %v1425 = vunpack.c.l.b16 %v665
        %v1426 = vunpack.c.l.b16 %v666
        %v1427 = vunpack.c.l.b16 %v667
        %v1428 = vunpack.c.l.b16 %v668
        %v1429 = vunpack.c.l.b16 %v669
        %v1430 = vunpack.c.l.b16 %v670
        %v1431 = vunpack.c.l.b16 %v671
        %v1432 = vunpack.c.l.b16 %v672
        %v1433 = vunpack.c.l.b16 %v673
        %v1434 = vunpack.c.l.b16 %v674
        %v1435 = vunpack.c.l.b16 %v675
        %v1436 = vunpack.c.l.b16 %v676
        %v1437 = vunpack.c.l.b16 %v677
        %v1438 = vunpack.c.l.b16 %v678
        %v1439 = vunpack.c.l.b16 %v679
        %v1440 = vunpack.c.l.b16 %v680
        %v1441 = vunpack.c.l.b16 %v681
        %v1442 = vunpack.c.l.b16 %v682
        %v1443 = vunpack.c.l.b16 %v683
        %v1444 = vunpack.c.l.b16 %v684
        %v1445 = vunpack.c.l.b16 %v685
        %v1446 = vunpack.c.l.b16 %v686
        %v1447 = vpack.c.b16 %v1348, %v1347
        %v1448 = vpack.c.b16 %v1350, %v1349
        %v1449 = vpack.c.b16 %v1352, %v1351
        %v1450 = vpack.c.b16 %v1354, %v1353
        %v1451 = vpack.c.b16 %v1356, %v1355
        %v1452 = vpack.c.b16 %v1358, %v1357
        %v1453 = vpack.c.b16 %v1360, %v1359
        %v1454 = vpack.c.b16 %v1362, %v1361
        %v1455 = vpack.c.b16 %v1364, %v1363
        %v1456 = vpack.c.b16 %v1366, %v1365
        %v1457 = vpack.c.b16 %v1368, %v1367
        %v1458 = vpack.c.b16 %v1370, %v1369
        %v1459 = vpack.c.b16 %v1372, %v1371
        %v1460 = vpack.c.b16 %v1374, %v1373
        %v1461 = vpack.c.b16 %v1376, %v1375
        %v1462 = vpack.c.b16 %v1378, %v1377
        %v1463 = vpack.c.b16 %v1380, %v1379
        %v1464 = vpack.c.b16 %v1382, %v1381
        %v1465 = vpack.c.b16 %v1384, %v1383
        %v1466 = vpack.c.b16 %v1386, %v1385
        %v1467 = vpack.c.b16 %v1388, %v1387
        %v1468 = vpack.c.b16 %v1390, %v1389
        %v1469 = vpack.c.b16 %v1392, %v1391
        %v1470 = vpack.c.b16 %v1394, %v1393
        %v1471 = vpack.c.b16 %v1396, %v1395
        %v1472 = vpack.c.b16 %v1398, %v1397
        %v1473 = vpack.c.b16 %v1400, %v1399
        %v1474 = vpack.c.b16 %v1402, %v1401
        %v1475 = vpack.c.b16 %v1404, %v1403
        %v1476 = vpack.c.b16 %v1406, %v1405
        %v1477 = vpack.c.b16 %v1408, %v1407
        %v1478 = vpack.c.b16 %v1410, %v1409
        %v1479 = vpack.c.b16 %v1412, %v1411
        %v1480 = vpack.c.b16 %v1414, %v1413
        %v1481 = vpack.c.b16 %v1416, %v1415
        %v1482 = vpack.c.b16 %v1418, %v1417
        %v1483 = vpack.c.b16 %v1420, %v1419
        %v1484 = vpack.c.b16 %v1422, %v1421
        %v1485 = vpack.c.b16 %v1424, %v1423
        %v1486 = vpack.c.b16 %v1426, %v1425
        %v1487 = vpack.c.b16 %v1428, %v1427
        %v1488 = vpack.c.b16 %v1430, %v1429
        %v1489 = vpack.c.b16 %v1432, %v1431
        %v1490 = vpack.c.b16 %v1434, %v1433
        %v1491 = vpack.c.b16 %v1436, %v1435
        %v1492 = vpack.c.b16 %v1438, %v1437
        %v1493 = vpack.c.b16 %v1440, %v1439
        %v1494 = vpack.c.b16 %v1442, %v1441
        %v1495 = vpack.c.b16 %v1444, %v1443
        %v1496 = vpack.c.b16 %v1446, %v1445
        %vm1547 = vcmask 261120
        %v1549 = vsel %vm1547, %v1045, 0
        %v1552 = vsel %vm1547, %v1052, 0
        %v1555 = vsel %vm1547, %v1059, 0
        %v1558 = vsel %vm1547, %v1066, 0
        %v1561 = vsel %vm1547, %v1073, 0
        %v1564 = vsel %vm1547, %v1080, 0
        %v1567 = vsel %vm1547, %v1087, 0
        %v1570 = vsel %vm1547, %v1094, 0
        %v1573 = vsel %vm1547, %v1101, 0
        %v1576 = vsel %vm1547, %v1108, 0
        %v1579 = vsel %vm1547, %v1115, 0
        %v1582 = vsel %vm1547, %v1122, 0
        %v1585 = vsel %vm1547, %v1129, 0
        %v1588 = vsel %vm1547, %v1136, 0
        %v1591 = vsel %vm1547, %v1143, 0
        %v1594 = vsel %vm1547, %v1150, 0
        %1596 = vmatpush.bf16.msra.mxu0 %v1454
        %1597 = vmatpush.bf16.msra.mxu0 %v1453
        %1598 = vmatpush.bf16.msra.mxu0 %v1452
        %1599 = vmatpush.bf16.msra.mxu0 %v1451
        %1600 = vmatpush.bf16.msra.mxu0 %v1450
        %1601 = vmatpush.bf16.msra.mxu0 %v1449
        %1602 = vmatpush.bf16.msra.mxu0 %v1448
        %1603 = vmatpush.bf16.msra.mxu0 %v1447
        %1604 = vmatmul.bf16.gmra.mxu0 %v1039
        %v1605 = vpop.f32.mrf.mxu0
        %v1606 = vadd.f32 0.0, %v1605
        %v1607 = vpop.f32.mrf.mxu0
        %v1608 = vadd.f32 0.0, %v1607
        %1609 = vmatmul.bf16.gmra.mxu0 %v1046
        %v1610 = vpop.f32.mrf.mxu0
        %v1611 = vadd.f32 0.0, %v1610
        %v1612 = vpop.f32.mrf.mxu0
        %v1613 = vadd.f32 0.0, %v1612
        %1614 = vmatmul.bf16.gmra.mxu0 %v1053
        %v1615 = vpop.f32.mrf.mxu0
        %v1616 = vadd.f32 0.0, %v1615
        %v1617 = vpop.f32.mrf.mxu0
        %v1618 = vadd.f32 0.0, %v1617
        %1619 = vmatmul.bf16.gmra.mxu0 %v1060
        %v1620 = vpop.f32.mrf.mxu0
        %v1621 = vadd.f32 0.0, %v1620
        %v1622 = vpop.f32.mrf.mxu0
        %v1623 = vadd.f32 0.0, %v1622
        %1624 = vmatmul.bf16.gmra.mxu0 %v1067
        %v1625 = vpop.f32.mrf.mxu0
        %v1626 = vadd.f32 0.0, %v1625
        %v1627 = vpop.f32.mrf.mxu0
        %v1628 = vadd.f32 0.0, %v1627
        %1629 = vmatmul.bf16.gmra.mxu0 %v1074
        %v1630 = vpop.f32.mrf.mxu0
        %v1631 = vadd.f32 0.0, %v1630
        %v1632 = vpop.f32.mrf.mxu0
        %v1633 = vadd.f32 0.0, %v1632
        %1634 = vmatmul.bf16.gmra.mxu0 %v1081
        %v1635 = vpop.f32.mrf.mxu0
        %v1636 = vadd.f32 0.0, %v1635
        %v1637 = vpop.f32.mrf.mxu0
        %v1638 = vadd.f32 0.0, %v1637
        %1639 = vmatmul.bf16.gmra.mxu0 %v1088
        %v1640 = vpop.f32.mrf.mxu0
        %v1641 = vadd.f32 0.0, %v1640
        %v1642 = vpop.f32.mrf.mxu0
        %v1643 = vadd.f32 0.0, %v1642
        %1644 = vmatmul.bf16.gmra.mxu0 %v1095
        %v1645 = vpop.f32.mrf.mxu0
        %v1646 = vadd.f32 0.0, %v1645
        %v1647 = vpop.f32.mrf.mxu0
        %v1648 = vadd.f32 0.0, %v1647
        %1649 = vmatmul.bf16.gmra.mxu0 %v1102
        %v1650 = vpop.f32.mrf.mxu0
        %v1651 = vadd.f32 0.0, %v1650
        %v1652 = vpop.f32.mrf.mxu0
        %v1653 = vadd.f32 0.0, %v1652
        %1654 = vmatmul.bf16.gmra.mxu0 %v1109
        %v1655 = vpop.f32.mrf.mxu0
        %v1656 = vadd.f32 0.0, %v1655
        %v1657 = vpop.f32.mrf.mxu0
        %v1658 = vadd.f32 0.0, %v1657
        %1659 = vmatmul.bf16.gmra.mxu0 %v1116
        %v1660 = vpop.f32.mrf.mxu0
        %v1661 = vadd.f32 0.0, %v1660
        %v1662 = vpop.f32.mrf.mxu0
        %v1663 = vadd.f32 0.0, %v1662
        %1664 = vmatmul.bf16.gmra.mxu0 %v1123
        %v1665 = vpop.f32.mrf.mxu0
        %v1666 = vadd.f32 0.0, %v1665
        %v1667 = vpop.f32.mrf.mxu0
        %v1668 = vadd.f32 0.0, %v1667
        %1669 = vmatmul.bf16.gmra.mxu0 %v1130
        %v1670 = vpop.f32.mrf.mxu0
        %v1671 = vadd.f32 0.0, %v1670
        %v1672 = vpop.f32.mrf.mxu0
        %v1673 = vadd.f32 0.0, %v1672
        %1674 = vmatmul.bf16.gmra.mxu0 %v1137
        %v1675 = vpop.f32.mrf.mxu0
        %v1676 = vadd.f32 0.0, %v1675
        %v1677 = vpop.f32.mrf.mxu0
        %v1678 = vadd.f32 0.0, %v1677
        %1679 = vmatmul.bf16.gmra.mxu0 %v1144
        %v1680 = vpop.f32.mrf.mxu0
        %v1681 = vadd.f32 0.0, %v1680
        %v1682 = vpop.f32.mrf.mxu0
        %v1683 = vadd.f32 0.0, %v1682
        %1684 = vdwg.mxu0
        %1685 = vmatpush.bf16.msra.mxu0 %v1462
        %1686 = vmatpush.bf16.msra.mxu0 %v1461
        %1687 = vmatpush.bf16.msra.mxu0 %v1460
        %1688 = vmatpush.bf16.msra.mxu0 %v1459
        %1689 = vmatpush.bf16.msra.mxu0 %v1458
        %1690 = vmatpush.bf16.msra.mxu0 %v1457
        %1691 = vmatpush.bf16.msra.mxu0 %v1456
        %1692 = vmatpush.bf16.msra.mxu0 %v1455
        %1693 = vmatmul.bf16.gmra.mxu0 %v1040
        %v1694 = vpop.f32.mrf.mxu0
        %v1695 = vadd.f32 %v1606, %v1694
        %v1696 = vpop.f32.mrf.mxu0
        %v1697 = vadd.f32 %v1608, %v1696
        %1698 = vmatmul.bf16.gmra.mxu0 %v1047
        %v1699 = vpop.f32.mrf.mxu0
        %v1700 = vadd.f32 %v1611, %v1699
        %v1701 = vpop.f32.mrf.mxu0
        %v1702 = vadd.f32 %v1613, %v1701
        %1703 = vmatmul.bf16.gmra.mxu0 %v1054
        %v1704 = vpop.f32.mrf.mxu0
        %v1705 = vadd.f32 %v1616, %v1704
        %v1706 = vpop.f32.mrf.mxu0
        %v1707 = vadd.f32 %v1618, %v1706
        %1708 = vmatmul.bf16.gmra.mxu0 %v1061
        %v1709 = vpop.f32.mrf.mxu0
        %v1710 = vadd.f32 %v1621, %v1709
        %v1711 = vpop.f32.mrf.mxu0
        %v1712 = vadd.f32 %v1623, %v1711
        %1713 = vmatmul.bf16.gmra.mxu0 %v1068
        %v1714 = vpop.f32.mrf.mxu0
        %v1715 = vadd.f32 %v1626, %v1714
        %v1716 = vpop.f32.mrf.mxu0
        %v1717 = vadd.f32 %v1628, %v1716
        %1718 = vmatmul.bf16.gmra.mxu0 %v1075
        %v1719 = vpop.f32.mrf.mxu0
        %v1720 = vadd.f32 %v1631, %v1719
        %v1721 = vpop.f32.mrf.mxu0
        %v1722 = vadd.f32 %v1633, %v1721
        %1723 = vmatmul.bf16.gmra.mxu0 %v1082
        %v1724 = vpop.f32.mrf.mxu0
        %v1725 = vadd.f32 %v1636, %v1724
        %v1726 = vpop.f32.mrf.mxu0
        %v1727 = vadd.f32 %v1638, %v1726
        %1728 = vmatmul.bf16.gmra.mxu0 %v1089
        %v1729 = vpop.f32.mrf.mxu0
        %v1730 = vadd.f32 %v1641, %v1729
        %v1731 = vpop.f32.mrf.mxu0
        %v1732 = vadd.f32 %v1643, %v1731
        %1733 = vmatmul.bf16.gmra.mxu0 %v1096
        %v1734 = vpop.f32.mrf.mxu0
        %v1735 = vadd.f32 %v1646, %v1734
        %v1736 = vpop.f32.mrf.mxu0
        %v1737 = vadd.f32 %v1648, %v1736
        %1738 = vmatmul.bf16.gmra.mxu0 %v1103
        %v1739 = vpop.f32.mrf.mxu0
        %v1740 = vadd.f32 %v1651, %v1739
        %v1741 = vpop.f32.mrf.mxu0
        %v1742 = vadd.f32 %v1653, %v1741
        %1743 = vmatmul.bf16.gmra.mxu0 %v1110
        %v1744 = vpop.f32.mrf.mxu0
        %v1745 = vadd.f32 %v1656, %v1744
        %v1746 = vpop.f32.mrf.mxu0
        %v1747 = vadd.f32 %v1658, %v1746
        %1748 = vmatmul.bf16.gmra.mxu0 %v1117
        %v1749 = vpop.f32.mrf.mxu0
        %v1750 = vadd.f32 %v1661, %v1749
        %v1751 = vpop.f32.mrf.mxu0
        %v1752 = vadd.f32 %v1663, %v1751
        %1753 = vmatmul.bf16.gmra.mxu0 %v1124
        %v1754 = vpop.f32.mrf.mxu0
        %v1755 = vadd.f32 %v1666, %v1754
        %v1756 = vpop.f32.mrf.mxu0
        %v1757 = vadd.f32 %v1668, %v1756
        %1758 = vmatmul.bf16.gmra.mxu0 %v1131
        %v1759 = vpop.f32.mrf.mxu0
        %v1760 = vadd.f32 %v1671, %v1759
        %v1761 = vpop.f32.mrf.mxu0
        %v1762 = vadd.f32 %v1673, %v1761
        %1763 = vmatmul.bf16.gmra.mxu0 %v1138
        %v1764 = vpop.f32.mrf.mxu0
        %v1765 = vadd.f32 %v1676, %v1764
        %v1766 = vpop.f32.mrf.mxu0
        %v1767 = vadd.f32 %v1678, %v1766
        %1768 = vmatmul.bf16.gmra.mxu0 %v1145
        %v1769 = vpop.f32.mrf.mxu0
        %v1770 = vadd.f32 %v1681, %v1769
        %v1771 = vpop.f32.mrf.mxu0
        %v1772 = vadd.f32 %v1683, %v1771
        %1773 = vdwg.mxu0
        %1774 = vmatpush.bf16.msra.mxu0 %v1470
        %1775 = vmatpush.bf16.msra.mxu0 %v1469
        %1776 = vmatpush.bf16.msra.mxu0 %v1468
        %1777 = vmatpush.bf16.msra.mxu0 %v1467
        %1778 = vmatpush.bf16.msra.mxu0 %v1466
        %1779 = vmatpush.bf16.msra.mxu0 %v1465
        %1780 = vmatpush.bf16.msra.mxu0 %v1464
        %1781 = vmatpush.bf16.msra.mxu0 %v1463
        %1782 = vmatmul.bf16.gmra.mxu0 %v1041
        %v1783 = vpop.f32.mrf.mxu0
        %v1784 = vadd.f32 %v1695, %v1783
        %v1785 = vpop.f32.mrf.mxu0
        %v1786 = vadd.f32 %v1697, %v1785
        %1787 = vmatmul.bf16.gmra.mxu0 %v1048
        %v1788 = vpop.f32.mrf.mxu0
        %v1789 = vadd.f32 %v1700, %v1788
        %v1790 = vpop.f32.mrf.mxu0
        %v1791 = vadd.f32 %v1702, %v1790
        %1792 = vmatmul.bf16.gmra.mxu0 %v1055
        %v1793 = vpop.f32.mrf.mxu0
        %v1794 = vadd.f32 %v1705, %v1793
        %v1795 = vpop.f32.mrf.mxu0
        %v1796 = vadd.f32 %v1707, %v1795
        %1797 = vmatmul.bf16.gmra.mxu0 %v1062
        %v1798 = vpop.f32.mrf.mxu0
        %v1799 = vadd.f32 %v1710, %v1798
        %v1800 = vpop.f32.mrf.mxu0
        %v1801 = vadd.f32 %v1712, %v1800
        %1802 = vmatmul.bf16.gmra.mxu0 %v1069
        %v1803 = vpop.f32.mrf.mxu0
        %v1804 = vadd.f32 %v1715, %v1803
        %v1805 = vpop.f32.mrf.mxu0
        %v1806 = vadd.f32 %v1717, %v1805
        %1807 = vmatmul.bf16.gmra.mxu0 %v1076
        %v1808 = vpop.f32.mrf.mxu0
        %v1809 = vadd.f32 %v1720, %v1808
        %v1810 = vpop.f32.mrf.mxu0
        %v1811 = vadd.f32 %v1722, %v1810
        %1812 = vmatmul.bf16.gmra.mxu0 %v1083
        %v1813 = vpop.f32.mrf.mxu0
        %v1814 = vadd.f32 %v1725, %v1813
        %v1815 = vpop.f32.mrf.mxu0
        %v1816 = vadd.f32 %v1727, %v1815
        %1817 = vmatmul.bf16.gmra.mxu0 %v1090
        %v1818 = vpop.f32.mrf.mxu0
        %v1819 = vadd.f32 %v1730, %v1818
        %v1820 = vpop.f32.mrf.mxu0
        %v1821 = vadd.f32 %v1732, %v1820
        %1822 = vmatmul.bf16.gmra.mxu0 %v1097
        %v1823 = vpop.f32.mrf.mxu0
        %v1824 = vadd.f32 %v1735, %v1823
        %v1825 = vpop.f32.mrf.mxu0
        %v1826 = vadd.f32 %v1737, %v1825
        %1827 = vmatmul.bf16.gmra.mxu0 %v1104
        %v1828 = vpop.f32.mrf.mxu0
        %v1829 = vadd.f32 %v1740, %v1828
        %v1830 = vpop.f32.mrf.mxu0
        %v1831 = vadd.f32 %v1742, %v1830
        %1832 = vmatmul.bf16.gmra.mxu0 %v1111
        %v1833 = vpop.f32.mrf.mxu0
        %v1834 = vadd.f32 %v1745, %v1833
        %v1835 = vpop.f32.mrf.mxu0
        %v1836 = vadd.f32 %v1747, %v1835
        %1837 = vmatmul.bf16.gmra.mxu0 %v1118
        %v1838 = vpop.f32.mrf.mxu0
        %v1839 = vadd.f32 %v1750, %v1838
        %v1840 = vpop.f32.mrf.mxu0
        %v1841 = vadd.f32 %v1752, %v1840
        %1842 = vmatmul.bf16.gmra.mxu0 %v1125
        %v1843 = vpop.f32.mrf.mxu0
        %v1844 = vadd.f32 %v1755, %v1843
        %v1845 = vpop.f32.mrf.mxu0
        %v1846 = vadd.f32 %v1757, %v1845
        %1847 = vmatmul.bf16.gmra.mxu0 %v1132
        %v1848 = vpop.f32.mrf.mxu0
        %v1849 = vadd.f32 %v1760, %v1848
        %v1850 = vpop.f32.mrf.mxu0
        %v1851 = vadd.f32 %v1762, %v1850
        %1852 = vmatmul.bf16.gmra.mxu0 %v1139
        %v1853 = vpop.f32.mrf.mxu0
        %v1854 = vadd.f32 %v1765, %v1853
        %v1855 = vpop.f32.mrf.mxu0
        %v1856 = vadd.f32 %v1767, %v1855
        %1857 = vmatmul.bf16.gmra.mxu0 %v1146
        %v1858 = vpop.f32.mrf.mxu0
        %v1859 = vadd.f32 %v1770, %v1858
        %v1860 = vpop.f32.mrf.mxu0
        %v1861 = vadd.f32 %v1772, %v1860
        %1862 = vdwg.mxu0
        %1863 = vmatpush.bf16.msra.mxu0 %v1478
        %1864 = vmatpush.bf16.msra.mxu0 %v1477
        %1865 = vmatpush.bf16.msra.mxu0 %v1476
        %1866 = vmatpush.bf16.msra.mxu0 %v1475
        %1867 = vmatpush.bf16.msra.mxu0 %v1474
        %1868 = vmatpush.bf16.msra.mxu0 %v1473
        %1869 = vmatpush.bf16.msra.mxu0 %v1472
        %1870 = vmatpush.bf16.msra.mxu0 %v1471
        %1871 = vmatmul.bf16.gmra.mxu0 %v1042
        %v1872 = vpop.f32.mrf.mxu0
        %v1873 = vadd.f32 %v1784, %v1872
        %v1874 = vpop.f32.mrf.mxu0
        %v1875 = vadd.f32 %v1786, %v1874
        %1876 = vmatmul.bf16.gmra.mxu0 %v1049
        %v1877 = vpop.f32.mrf.mxu0
        %v1878 = vadd.f32 %v1789, %v1877
        %v1879 = vpop.f32.mrf.mxu0
        %v1880 = vadd.f32 %v1791, %v1879
        %1881 = vmatmul.bf16.gmra.mxu0 %v1056
        %v1882 = vpop.f32.mrf.mxu0
        %v1883 = vadd.f32 %v1794, %v1882
        %v1884 = vpop.f32.mrf.mxu0
        %v1885 = vadd.f32 %v1796, %v1884
        %1886 = vmatmul.bf16.gmra.mxu0 %v1063
        %v1887 = vpop.f32.mrf.mxu0
        %v1888 = vadd.f32 %v1799, %v1887
        %v1889 = vpop.f32.mrf.mxu0
        %v1890 = vadd.f32 %v1801, %v1889
        %1891 = vmatmul.bf16.gmra.mxu0 %v1070
        %v1892 = vpop.f32.mrf.mxu0
        %v1893 = vadd.f32 %v1804, %v1892
        %v1894 = vpop.f32.mrf.mxu0
        %v1895 = vadd.f32 %v1806, %v1894
        %1896 = vmatmul.bf16.gmra.mxu0 %v1077
        %v1897 = vpop.f32.mrf.mxu0
        %v1898 = vadd.f32 %v1809, %v1897
        %v1899 = vpop.f32.mrf.mxu0
        %v1900 = vadd.f32 %v1811, %v1899
        %1901 = vmatmul.bf16.gmra.mxu0 %v1084
        %v1902 = vpop.f32.mrf.mxu0
        %v1903 = vadd.f32 %v1814, %v1902
        %v1904 = vpop.f32.mrf.mxu0
        %v1905 = vadd.f32 %v1816, %v1904
        %1906 = vmatmul.bf16.gmra.mxu0 %v1091
        %v1907 = vpop.f32.mrf.mxu0
        %v1908 = vadd.f32 %v1819, %v1907
        %v1909 = vpop.f32.mrf.mxu0
        %v1910 = vadd.f32 %v1821, %v1909
        %1911 = vmatmul.bf16.gmra.mxu0 %v1098
        %v1912 = vpop.f32.mrf.mxu0
        %v1913 = vadd.f32 %v1824, %v1912
        %v1914 = vpop.f32.mrf.mxu0
        %v1915 = vadd.f32 %v1826, %v1914
        %1916 = vmatmul.bf16.gmra.mxu0 %v1105
        %v1917 = vpop.f32.mrf.mxu0
        %v1918 = vadd.f32 %v1829, %v1917
        %v1919 = vpop.f32.mrf.mxu0
        %v1920 = vadd.f32 %v1831, %v1919
        %1921 = vmatmul.bf16.gmra.mxu0 %v1112
        %v1922 = vpop.f32.mrf.mxu0
        %v1923 = vadd.f32 %v1834, %v1922
        %v1924 = vpop.f32.mrf.mxu0
        %v1925 = vadd.f32 %v1836, %v1924
        %1926 = vmatmul.bf16.gmra.mxu0 %v1119
        %v1927 = vpop.f32.mrf.mxu0
        %v1928 = vadd.f32 %v1839, %v1927
        %v1929 = vpop.f32.mrf.mxu0
        %v1930 = vadd.f32 %v1841, %v1929
        %1931 = vmatmul.bf16.gmra.mxu0 %v1126
        %v1932 = vpop.f32.mrf.mxu0
        %v1933 = vadd.f32 %v1844, %v1932
        %v1934 = vpop.f32.mrf.mxu0
        %v1935 = vadd.f32 %v1846, %v1934
        %1936 = vmatmul.bf16.gmra.mxu0 %v1133
        %v1937 = vpop.f32.mrf.mxu0
        %v1938 = vadd.f32 %v1849, %v1937
        %v1939 = vpop.f32.mrf.mxu0
        %v1940 = vadd.f32 %v1851, %v1939
        %1941 = vmatmul.bf16.gmra.mxu0 %v1140
        %v1942 = vpop.f32.mrf.mxu0
        %v1943 = vadd.f32 %v1854, %v1942
        %v1944 = vpop.f32.mrf.mxu0
        %v1945 = vadd.f32 %v1856, %v1944
        %1946 = vmatmul.bf16.gmra.mxu0 %v1147
        %v1947 = vpop.f32.mrf.mxu0
        %v1948 = vadd.f32 %v1859, %v1947
        %v1949 = vpop.f32.mrf.mxu0
        %v1950 = vadd.f32 %v1861, %v1949
        %1951 = vdwg.mxu0
        %1952 = vmatpush.bf16.msra.mxu0 %v1486
        %1953 = vmatpush.bf16.msra.mxu0 %v1485
        %1954 = vmatpush.bf16.msra.mxu0 %v1484
        %1955 = vmatpush.bf16.msra.mxu0 %v1483
        %1956 = vmatpush.bf16.msra.mxu0 %v1482
        %1957 = vmatpush.bf16.msra.mxu0 %v1481
        %1958 = vmatpush.bf16.msra.mxu0 %v1480
        %1959 = vmatpush.bf16.msra.mxu0 %v1479
        %1960 = vmatmul.bf16.gmra.mxu0 %v1043
        %v1961 = vpop.f32.mrf.mxu0
        %v1962 = vadd.f32 %v1873, %v1961
        %v1963 = vpop.f32.mrf.mxu0
        %v1964 = vadd.f32 %v1875, %v1963
        %1965 = vmatmul.bf16.gmra.mxu0 %v1050
        %v1966 = vpop.f32.mrf.mxu0
        %v1967 = vadd.f32 %v1878, %v1966
        %v1968 = vpop.f32.mrf.mxu0
        %v1969 = vadd.f32 %v1880, %v1968
        %1970 = vmatmul.bf16.gmra.mxu0 %v1057
        %v1971 = vpop.f32.mrf.mxu0
        %v1972 = vadd.f32 %v1883, %v1971
        %v1973 = vpop.f32.mrf.mxu0
        %v1974 = vadd.f32 %v1885, %v1973
        %1975 = vmatmul.bf16.gmra.mxu0 %v1064
        %v1976 = vpop.f32.mrf.mxu0
        %v1977 = vadd.f32 %v1888, %v1976
        %v1978 = vpop.f32.mrf.mxu0
        %v1979 = vadd.f32 %v1890, %v1978
        %1980 = vmatmul.bf16.gmra.mxu0 %v1071
        %v1981 = vpop.f32.mrf.mxu0
        %v1982 = vadd.f32 %v1893, %v1981
        %v1983 = vpop.f32.mrf.mxu0
        %v1984 = vadd.f32 %v1895, %v1983
        %1985 = vmatmul.bf16.gmra.mxu0 %v1078
        %v1986 = vpop.f32.mrf.mxu0
        %v1987 = vadd.f32 %v1898, %v1986
        %v1988 = vpop.f32.mrf.mxu0
        %v1989 = vadd.f32 %v1900, %v1988
        %1990 = vmatmul.bf16.gmra.mxu0 %v1085
        %v1991 = vpop.f32.mrf.mxu0
        %v1992 = vadd.f32 %v1903, %v1991
        %v1993 = vpop.f32.mrf.mxu0
        %v1994 = vadd.f32 %v1905, %v1993
        %1995 = vmatmul.bf16.gmra.mxu0 %v1092
        %v1996 = vpop.f32.mrf.mxu0
        %v1997 = vadd.f32 %v1908, %v1996
        %v1998 = vpop.f32.mrf.mxu0
        %v1999 = vadd.f32 %v1910, %v1998
        %2000 = vmatmul.bf16.gmra.mxu0 %v1099
        %v2001 = vpop.f32.mrf.mxu0
        %v2002 = vadd.f32 %v1913, %v2001
        %v2003 = vpop.f32.mrf.mxu0
        %v2004 = vadd.f32 %v1915, %v2003
        %2005 = vmatmul.bf16.gmra.mxu0 %v1106
        %v2006 = vpop.f32.mrf.mxu0
        %v2007 = vadd.f32 %v1918, %v2006
        %v2008 = vpop.f32.mrf.mxu0
        %v2009 = vadd.f32 %v1920, %v2008
        %2010 = vmatmul.bf16.gmra.mxu0 %v1113
        %v2011 = vpop.f32.mrf.mxu0
        %v2012 = vadd.f32 %v1923, %v2011
        %v2013 = vpop.f32.mrf.mxu0
        %v2014 = vadd.f32 %v1925, %v2013
        %2015 = vmatmul.bf16.gmra.mxu0 %v1120
        %v2016 = vpop.f32.mrf.mxu0
        %v2017 = vadd.f32 %v1928, %v2016
        %v2018 = vpop.f32.mrf.mxu0
        %v2019 = vadd.f32 %v1930, %v2018
        %2020 = vmatmul.bf16.gmra.mxu0 %v1127
        %v2021 = vpop.f32.mrf.mxu0
        %v2022 = vadd.f32 %v1933, %v2021
        %v2023 = vpop.f32.mrf.mxu0
        %v2024 = vadd.f32 %v1935, %v2023
        %2025 = vmatmul.bf16.gmra.mxu0 %v1134
        %v2026 = vpop.f32.mrf.mxu0
        %v2027 = vadd.f32 %v1938, %v2026
        %v2028 = vpop.f32.mrf.mxu0
        %v2029 = vadd.f32 %v1940, %v2028
        %2030 = vmatmul.bf16.gmra.mxu0 %v1141
        %v2031 = vpop.f32.mrf.mxu0
        %v2032 = vadd.f32 %v1943, %v2031
        %v2033 = vpop.f32.mrf.mxu0
        %v2034 = vadd.f32 %v1945, %v2033
        %2035 = vmatmul.bf16.gmra.mxu0 %v1148
        %v2036 = vpop.f32.mrf.mxu0
        %v2037 = vadd.f32 %v1948, %v2036
        %v2038 = vpop.f32.mrf.mxu0
        %v2039 = vadd.f32 %v1950, %v2038
        %2040 = vdwg.mxu0
        %2041 = vmatpush.bf16.msra.mxu0 %v1494
        %2042 = vmatpush.bf16.msra.mxu0 %v1493
        %2043 = vmatpush.bf16.msra.mxu0 %v1492
        %2044 = vmatpush.bf16.msra.mxu0 %v1491
        %2045 = vmatpush.bf16.msra.mxu0 %v1490
        %2046 = vmatpush.bf16.msra.mxu0 %v1489
        %2047 = vmatpush.bf16.msra.mxu0 %v1488
        %2048 = vmatpush.bf16.msra.mxu0 %v1487
        %2049 = vmatmul.bf16.gmra.mxu0 %v1044
        %v2050 = vpop.f32.mrf.mxu0
        %v2051 = vadd.f32 %v1962, %v2050
        %v2052 = vpop.f32.mrf.mxu0
        %v2053 = vadd.f32 %v1964, %v2052
        %2054 = vmatmul.bf16.gmra.mxu0 %v1051
        %v2055 = vpop.f32.mrf.mxu0
        %v2056 = vadd.f32 %v1967, %v2055
        %v2057 = vpop.f32.mrf.mxu0
        %v2058 = vadd.f32 %v1969, %v2057
        %2059 = vmatmul.bf16.gmra.mxu0 %v1058
        %v2060 = vpop.f32.mrf.mxu0
        %v2061 = vadd.f32 %v1972, %v2060
        %v2062 = vpop.f32.mrf.mxu0
        %v2063 = vadd.f32 %v1974, %v2062
        %2064 = vmatmul.bf16.gmra.mxu0 %v1065
        %v2065 = vpop.f32.mrf.mxu0
        %v2066 = vadd.f32 %v1977, %v2065
        %v2067 = vpop.f32.mrf.mxu0
        %v2068 = vadd.f32 %v1979, %v2067
        %2069 = vmatmul.bf16.gmra.mxu0 %v1072
        %v2070 = vpop.f32.mrf.mxu0
        %v2071 = vadd.f32 %v1982, %v2070
        %v2072 = vpop.f32.mrf.mxu0
        %v2073 = vadd.f32 %v1984, %v2072
        %2074 = vmatmul.bf16.gmra.mxu0 %v1079
        %v2075 = vpop.f32.mrf.mxu0
        %v2076 = vadd.f32 %v1987, %v2075
        %v2077 = vpop.f32.mrf.mxu0
        %v2078 = vadd.f32 %v1989, %v2077
        %2079 = vmatmul.bf16.gmra.mxu0 %v1086
        %v2080 = vpop.f32.mrf.mxu0
        %v2081 = vadd.f32 %v1992, %v2080
        %v2082 = vpop.f32.mrf.mxu0
        %v2083 = vadd.f32 %v1994, %v2082
        %2084 = vmatmul.bf16.gmra.mxu0 %v1093
        %v2085 = vpop.f32.mrf.mxu0
        %v2086 = vadd.f32 %v1997, %v2085
        %v2087 = vpop.f32.mrf.mxu0
        %v2088 = vadd.f32 %v1999, %v2087
        %2089 = vmatmul.bf16.gmra.mxu0 %v1100
        %v2090 = vpop.f32.mrf.mxu0
        %v2091 = vadd.f32 %v2002, %v2090
        %v2092 = vpop.f32.mrf.mxu0
        %v2093 = vadd.f32 %v2004, %v2092
        %2094 = vmatmul.bf16.gmra.mxu0 %v1107
        %v2095 = vpop.f32.mrf.mxu0
        %v2096 = vadd.f32 %v2007, %v2095
        %v2097 = vpop.f32.mrf.mxu0
        %v2098 = vadd.f32 %v2009, %v2097
        %2099 = vmatmul.bf16.gmra.mxu0 %v1114
        %v2100 = vpop.f32.mrf.mxu0
        %v2101 = vadd.f32 %v2012, %v2100
        %v2102 = vpop.f32.mrf.mxu0
        %v2103 = vadd.f32 %v2014, %v2102
        %2104 = vmatmul.bf16.gmra.mxu0 %v1121
        %v2105 = vpop.f32.mrf.mxu0
        %v2106 = vadd.f32 %v2017, %v2105
        %v2107 = vpop.f32.mrf.mxu0
        %v2108 = vadd.f32 %v2019, %v2107
        %2109 = vmatmul.bf16.gmra.mxu0 %v1128
        %v2110 = vpop.f32.mrf.mxu0
        %v2111 = vadd.f32 %v2022, %v2110
        %v2112 = vpop.f32.mrf.mxu0
        %v2113 = vadd.f32 %v2024, %v2112
        %2114 = vmatmul.bf16.gmra.mxu0 %v1135
        %v2115 = vpop.f32.mrf.mxu0
        %v2116 = vadd.f32 %v2027, %v2115
        %v2117 = vpop.f32.mrf.mxu0
        %v2118 = vadd.f32 %v2029, %v2117
        %2119 = vmatmul.bf16.gmra.mxu0 %v1142
        %v2120 = vpop.f32.mrf.mxu0
        %v2121 = vadd.f32 %v2032, %v2120
        %v2122 = vpop.f32.mrf.mxu0
        %v2123 = vadd.f32 %v2034, %v2122
        %2124 = vmatmul.bf16.gmra.mxu0 %v1149
        %v2125 = vpop.f32.mrf.mxu0
        %v2126 = vadd.f32 %v2037, %v2125
        %v2127 = vpop.f32.mrf.mxu0
        %v2128 = vadd.f32 %v2039, %v2127
        %2129 = vdwg.mxu0
        %2130 = vmatpush.bf16.msra.mxu0 0
        %2131 = vmatpush.bf16.msra.mxu0 0
        %2132 = vmatpush.bf16.msra.mxu0 0
        %2133 = vmatpush.bf16.msra.mxu0 0
        %2134 = vmatpush.bf16.msra.mxu0 0
        %2135 = vmatpush.bf16.msra.mxu0 0
        %2136 = vmatpush.bf16.msra.mxu0 %v1496
        %2137 = vmatpush.bf16.msra.mxu0 %v1495
        %2138 = vmatmul.bf16.gmra.mxu0 %v1549
        %v2139 = vpop.f32.mrf.mxu0
        %v2140 = vadd.f32 %v2051, %v2139
        %v2141 = vpop.f32.mrf.mxu0
        %v2142 = vadd.f32 %v2053, %v2141
        %2143 = vmatmul.bf16.gmra.mxu0 %v1552
        %v2144 = vpop.f32.mrf.mxu0
        %v2145 = vadd.f32 %v2056, %v2144
        %v2146 = vpop.f32.mrf.mxu0
        %v2147 = vadd.f32 %v2058, %v2146
        %2148 = vmatmul.bf16.gmra.mxu0 %v1555
        %v2149 = vpop.f32.mrf.mxu0
        %v2150 = vadd.f32 %v2061, %v2149
        %v2151 = vpop.f32.mrf.mxu0
        %v2152 = vadd.f32 %v2063, %v2151
        %2153 = vmatmul.bf16.gmra.mxu0 %v1558
        %v2154 = vpop.f32.mrf.mxu0
        %v2155 = vadd.f32 %v2066, %v2154
        %v2156 = vpop.f32.mrf.mxu0
        %v2157 = vadd.f32 %v2068, %v2156
        %2158 = vmatmul.bf16.gmra.mxu0 %v1561
        %v2159 = vpop.f32.mrf.mxu0
        %v2160 = vadd.f32 %v2071, %v2159
        %v2161 = vpop.f32.mrf.mxu0
        %v2162 = vadd.f32 %v2073, %v2161
        %2163 = vmatmul.bf16.gmra.mxu0 %v1564
        %v2164 = vpop.f32.mrf.mxu0
        %v2165 = vadd.f32 %v2076, %v2164
        %v2166 = vpop.f32.mrf.mxu0
        %v2167 = vadd.f32 %v2078, %v2166
        %2168 = vmatmul.bf16.gmra.mxu0 %v1567
        %v2169 = vpop.f32.mrf.mxu0
        %v2170 = vadd.f32 %v2081, %v2169
        %v2171 = vpop.f32.mrf.mxu0
        %v2172 = vadd.f32 %v2083, %v2171
        %2173 = vmatmul.bf16.gmra.mxu0 %v1570
        %v2174 = vpop.f32.mrf.mxu0
        %v2175 = vadd.f32 %v2086, %v2174
        %v2176 = vpop.f32.mrf.mxu0
        %v2177 = vadd.f32 %v2088, %v2176
        %2178 = vmatmul.bf16.gmra.mxu0 %v1573
        %v2179 = vpop.f32.mrf.mxu0
        %v2180 = vadd.f32 %v2091, %v2179
        %v2181 = vpop.f32.mrf.mxu0
        %v2182 = vadd.f32 %v2093, %v2181
        %2183 = vmatmul.bf16.gmra.mxu0 %v1576
        %v2184 = vpop.f32.mrf.mxu0
        %v2185 = vadd.f32 %v2096, %v2184
        %v2186 = vpop.f32.mrf.mxu0
        %v2187 = vadd.f32 %v2098, %v2186
        %2188 = vmatmul.bf16.gmra.mxu0 %v1579
        %v2189 = vpop.f32.mrf.mxu0
        %v2190 = vadd.f32 %v2101, %v2189
        %v2191 = vpop.f32.mrf.mxu0
        %v2192 = vadd.f32 %v2103, %v2191
        %2193 = vmatmul.bf16.gmra.mxu0 %v1582
        %v2194 = vpop.f32.mrf.mxu0
        %v2195 = vadd.f32 %v2106, %v2194
        %v2196 = vpop.f32.mrf.mxu0
        %v2197 = vadd.f32 %v2108, %v2196
        %2198 = vmatmul.bf16.gmra.mxu0 %v1585
        %v2199 = vpop.f32.mrf.mxu0
        %v2200 = vadd.f32 %v2111, %v2199
        %v2201 = vpop.f32.mrf.mxu0
        %v2202 = vadd.f32 %v2113, %v2201
        %2203 = vmatmul.bf16.gmra.mxu0 %v1588
        %v2204 = vpop.f32.mrf.mxu0
        %v2205 = vadd.f32 %v2116, %v2204
        %v2206 = vpop.f32.mrf.mxu0
        %v2207 = vadd.f32 %v2118, %v2206
        %2208 = vmatmul.bf16.gmra.mxu0 %v1591
        %v2209 = vpop.f32.mrf.mxu0
        %v2210 = vadd.f32 %v2121, %v2209
        %v2211 = vpop.f32.mrf.mxu0
        %v2212 = vadd.f32 %v2123, %v2211
        %2213 = vmatmul.bf16.gmra.mxu0 %v1594
        %v2214 = vpop.f32.mrf.mxu0
        %v2215 = vadd.f32 %v2126, %v2214
        %v2216 = vpop.f32.mrf.mxu0
        %v2217 = vadd.f32 %v2128, %v2216
        %2218 = vdwg.mxu0
        %v2219 = vmax.f32 %v2140, %v2160
        %v2220 = vmax.f32 %v2142, %v2162
        %v2221 = vmax.f32 %v2145, %v2165
        %v2222 = vmax.f32 %v2147, %v2167
        %v2223 = vmax.f32 %v2150, %v2170
        %v2224 = vmax.f32 %v2152, %v2172
        %v2225 = vmax.f32 %v2155, %v2175
        %v2226 = vmax.f32 %v2157, %v2177
        %v2227 = vmax.f32 %v2180, %v2200
        %v2228 = vmax.f32 %v2182, %v2202
        %v2229 = vmax.f32 %v2185, %v2205
        %v2230 = vmax.f32 %v2187, %v2207
        %v2231 = vmax.f32 %v2190, %v2210
        %v2232 = vmax.f32 %v2192, %v2212
        %v2233 = vmax.f32 %v2195, %v2215
        %v2234 = vmax.f32 %v2197, %v2217
        %v2235 = vmax.f32 %v2219, %v2227
        %v2236 = vmax.f32 %v2220, %v2228
        %v2237 = vmax.f32 %v2221, %v2229
        %v2238 = vmax.f32 %v2222, %v2230
        %v2239 = vmax.f32 %v2223, %v2231
        %v2240 = vmax.f32 %v2224, %v2232
        %v2241 = vmax.f32 %v2225, %v2233
        %v2242 = vmax.f32 %v2226, %v2234
        %v2243 = vld [vmem:[%s2] sm:$0x1]
        %v2245 = vperm.slane %v2243, 0
        %v2247 = vadd.f32 %v2235, %v2245
        %v2248 = vadd.f32 %v2236, %v2245
        %v2249 = vadd.f32 %v2237, %v2245
        %v2250 = vadd.f32 %v2238, %v2245
        %v2251 = vadd.f32 %v2239, %v2245
        %v2252 = vadd.f32 %v2240, %v2245
        %v2253 = vadd.f32 %v2241, %v2245
        %v2254 = vadd.f32 %v2242, %v2245
        %v2255 = vpack.c.bf16 %v2247, %v2247
        %v2256 = vpack.c.bf16 %v2248, %v2248
        %v2257 = vpack.c.bf16 %v2249, %v2249
        %v2258 = vpack.c.bf16 %v2250, %v2250
        %v2259 = vpack.c.bf16 %v2251, %v2251
        %v2260 = vpack.c.bf16 %v2252, %v2252
        %v2261 = vpack.c.bf16 %v2253, %v2253
        %v2262 = vpack.c.bf16 %v2254, %v2254
        %vm2263 = vcmask 257024
        %2264 = vst.msk [vmem:[%s456] sm:$0xf] %vm2263, %v2255
        %2265 = vst.msk [vmem:[%s456 + $0x4] sm:$0xf] %vm2263, %v2256
        %2266 = vst.msk [vmem:[%s456 + $0x8] sm:$0xf] %vm2263, %v2257
        %2267 = vst.msk [vmem:[%s456 + $0xc] sm:$0xf] %vm2263, %v2258
        %2268 = vst.msk [vmem:[%s456 + $0x10] sm:$0xf] %vm2263, %v2259
        %2269 = vst.msk [vmem:[%s456 + $0x14] sm:$0xf] %vm2263, %v2260
        %2270 = vst.msk [vmem:[%s456 + $0x18] sm:$0xf] %vm2263, %v2261
        %2271 = vst.msk [vmem:[%s456 + $0x1c] sm:$0xf] %vm2263, %v2262
        %s2272 = smul.u32 8, %s14
        %p2273 = scmp.lt.s32.totalorder %s2272, 15
        %s2274 = scalar_select %p2273, %s2272, 15
        %s2275 = smul.addr %s2274, 4
        %s2276 = scalar_lea.vmem %s3, %s2275
        // Predicated region
        $region59: #{tudui_forward.4} parent=53 // pred_check
          %p2277 = pneg %p100
        $region60: #{tudui_forward.4} parent=53 // pred_check_branch
          %2279 = sbr.rel (%p2277) target = $region62
        $region61: #{tudui_forward.4} parent=53 // pred_region
          %s2280 = smul.u32 8, %s14
        $region62: #{tudui_forward.4} parent=53 // pred_fallthru
          _
      $region54: #{tudui_forward.4} parent=5 // pred_fallthru
        _
      %p2281 = scmp.le.s32.totalorder 2, %s9
      // Predicated region
      $region63: #{tudui_forward.4} parent=5 // pred_check
        %p2282 = pneg %p2281
      $region64: #{tudui_forward.4} parent=5 // pred_check_branch
        %2284 = sbr.rel (%p2282) target = $region66
      $region65: #{tudui_forward.4} parent=5 // pred_region
        %s2285 = ssub.s32 %s9, 2
        // Predicated region
        $region67: #{tudui_forward.4} parent=65 // pred_check
          %p2286 = pneg %p106
        $region68: #{tudui_forward.4} parent=65 // pred_check_branch
          %2288 = sbr.rel (%p2286) target = $region70
        $region69: #{tudui_forward.4} parent=65 // pred_region
          %s2289 = smul.u32 8, %s15
          %p2290 = scmp.lt.s32.totalorder %s2289, 15
          %s2291 = scalar_select %p2290, %s2289, 15
          %s2292 = smul.addr %s2291, 4
          %s2293 = scalar_lea.vmem %s3, %s2292
        $region70: #{tudui_forward.4} parent=65 // pred_fallthru
          _
      $region66: #{tudui_forward.4} parent=5 // pred_fallthru
        _
    $region6: #{tudui_forward.4} parent=1 // loop_footer
      %s13 = sadd.s32 1, %s9
    $region7: #{tudui_forward.4} parent=1 // loop_footer_branch
      %8 = sbr.rel target = $region3
    $region8: #{tudui_forward.4} parent=1 // loop_exit
      _

// kernel: tudui_forward.5
$region0: #{tudui_forward.5}
  #allocation0 [shape = 'u32[]', space=smem, size = 0x4, offset = 0x4, fixed_abs, tag = 'smem constant byte address 0x4 - core index']
  #allocation1 [shape = 'u32[72,128]{1,0:T(1,128)}', space=vmem, size = 0x9000, scoped, tag = 'internal scratch']
  %s0 = inlined_call_operand.vmem [shape: bf16[4,16,8,800], index: 0, kind: input, shape index: {}]
  %s1 = inlined_call_operand.vmem [shape: bf16[800,128], index: 1, kind: input, shape index: {}]
  %s2 = inlined_call_operand.vmem [shape: f32[1,128], index: 2, kind: input, shape index: {}]
  %s3 = inlined_call_operand.vmem [shape: bf16[2048,128], index: 3, kind: input, shape index: {}]
  %s4 = inlined_call_operand.vmem [shape: f32[1,128], index: 4, kind: input, shape index: {}]
  %s5 = inlined_call_operand.vmem [shape: bf16[128,128], index: 5, kind: input, shape index: {}]
  %s6 = inlined_call_operand.vmem [shape: f32[1,128], index: 6, kind: input, shape index: {}]
  %s7 = inlined_call_operand.vmem [shape: f32[8,128], index: 7, kind: output, shape index: {}]
  %s8 = sld [smem:[#allocation0]]
  $region38: #{tudui_forward.5} parent=0
    _
  %s10 = ssub.s32 1, %s8
  %s11 = scalar_select 0, %s10, %s8
  // Predicated region
  $region2: #{tudui_forward.5} parent=0 // pred_check
    _
  $region3: #{tudui_forward.5} parent=0 // pred_check_branch
    %13 = sbr.rel (0) target = $region5
  $region4: #{tudui_forward.5} parent=0 // pred_region
    _
  $region5: #{tudui_forward.5} parent=0 // pred_fallthru
    _
  // Predicated region
  $region6: #{tudui_forward.5} parent=0 // pred_check
    _
  $region7: #{tudui_forward.5} parent=0 // pred_check_branch
    %15 = sbr.rel (0) target = $region9
  $region8: #{tudui_forward.5} parent=0 // pred_region
    _
  $region9: #{tudui_forward.5} parent=0 // pred_fallthru
    _
  // Predicated region
  $region10: #{tudui_forward.5} parent=0 // pred_check
    _
  $region11: #{tudui_forward.5} parent=0 // pred_check_branch
    %17 = sbr.rel (0) target = $region13
  $region12: #{tudui_forward.5} parent=0 // pred_region
    _
  $region13: #{tudui_forward.5} parent=0 // pred_fallthru
    _
  // Predicated region
  $region14: #{tudui_forward.5} parent=0 // pred_check
    _
  $region15: #{tudui_forward.5} parent=0 // pred_check_branch
    %19 = sbr.rel (0) target = $region17
  $region16: #{tudui_forward.5} parent=0 // pred_region
    _
  $region17: #{tudui_forward.5} parent=0 // pred_fallthru
    _
  // Predicated region
  $region18: #{tudui_forward.5} parent=0 // pred_check
    _
  $region19: #{tudui_forward.5} parent=0 // pred_check_branch
    %21 = sbr.rel (0) target = $region21
  $region20: #{tudui_forward.5} parent=0 // pred_region
    _
  $region21: #{tudui_forward.5} parent=0 // pred_fallthru
    _
  // Predicated region
  $region22: #{tudui_forward.5} parent=0 // pred_check
    _
  $region23: #{tudui_forward.5} parent=0 // pred_check_branch
    %23 = sbr.rel (0) target = $region25
  $region24: #{tudui_forward.5} parent=0 // pred_region
    _
  $region25: #{tudui_forward.5} parent=0 // pred_fallthru
    _
  // Predicated region
  $region26: #{tudui_forward.5} parent=0 // pred_check
    _
  $region27: #{tudui_forward.5} parent=0 // pred_check_branch
    %25 = sbr.rel (0) target = $region29
  $region28: #{tudui_forward.5} parent=0 // pred_region
    _
  $region29: #{tudui_forward.5} parent=0 // pred_fallthru
    _
  %v27 = vld [vmem:[%s0] sm:$0xff]
  %v28 = vld [vmem:[%s0 + $0x8] sm:$0xff]
  %v29 = vld [vmem:[%s0 + $0x10] sm:$0xff]
  %v30 = vld [vmem:[%s0 + $0x18] sm:$0xf]
  %v31 = vld [vmem:[%s0 + $0x1c] sm:$0xff]
  %v32 = vld [vmem:[%s0 + $0x24] sm:$0xff]
  %v33 = vld [vmem:[%s0 + $0x2c] sm:$0xff]
  %v34 = vld [vmem:[%s0 + $0x34] sm:$0xf]
  %v35 = vld [vmem:[%s0 + $0x38] sm:$0xff]
  %v36 = vld [vmem:[%s0 + $0x40] sm:$0xff]
  %v37 = vld [vmem:[%s0 + $0x48] sm:$0xff]
  %v38 = vld [vmem:[%s0 + $0x50] sm:$0xf]
  %v39 = vld [vmem:[%s0 + $0x54] sm:$0xff]
  %v40 = vld [vmem:[%s0 + $0x5c] sm:$0xff]
  %v41 = vld [vmem:[%s0 + $0x64] sm:$0xff]
  %v42 = vld [vmem:[%s0 + $0x6c] sm:$0xf]
  %v43 = vld [vmem:[%s0 + $0x70] sm:$0xff]
  %v44 = vld [vmem:[%s0 + $0x78] sm:$0xff]
  %v45 = vld [vmem:[%s0 + $0x80] sm:$0xff]
  %v46 = vld [vmem:[%s0 + $0x88] sm:$0xf]
  %v47 = vld [vmem:[%s0 + $0x8c] sm:$0xff]
  %v48 = vld [vmem:[%s0 + $0x94] sm:$0xff]
  %v49 = vld [vmem:[%s0 + $0x9c] sm:$0xff]
  %v50 = vld [vmem:[%s0 + $0xa4] sm:$0xf]
  %v51 = vld [vmem:[%s0 + $0xa8] sm:$0xff]
  %v52 = vld [vmem:[%s0 + $0xb0] sm:$0xff]
  %v53 = vld [vmem:[%s0 + $0xb8] sm:$0xff]
  %v54 = vld [vmem:[%s0 + $0xc0] sm:$0xf]
  %v55 = vld [vmem:[%s0 + $0xc4] sm:$0xff]
  %v56 = vld [vmem:[%s0 + $0xcc] sm:$0xff]
  %v57 = vld [vmem:[%s0 + $0xd4] sm:$0xff]
  %v58 = vld [vmem:[%s0 + $0xdc] sm:$0xf]
  %v59 = vld [vmem:[%s0 + $0xe0] sm:$0xff]
  %v60 = vld [vmem:[%s0 + $0xe8] sm:$0xff]
  %v61 = vld [vmem:[%s0 + $0xf0] sm:$0xff]
  %v62 = vld [vmem:[%s0 + $0xf8] sm:$0xf]
  %v63 = vld [vmem:[%s0 + $0xfc] sm:$0xff]
  %v64 = vld [vmem:[%s0 + $0x104] sm:$0xff]
  %v65 = vld [vmem:[%s0 + $0x10c] sm:$0xff]
  %v66 = vld [vmem:[%s0 + $0x114] sm:$0xf]
  %v67 = vld [vmem:[%s0 + $0x118] sm:$0xff]
  %v68 = vld [vmem:[%s0 + $0x120] sm:$0xff]
  %v69 = vld [vmem:[%s0 + $0x128] sm:$0xff]
  %v70 = vld [vmem:[%s0 + $0x130] sm:$0xf]
  %v71 = vld [vmem:[%s0 + $0x134] sm:$0xff]
  %v72 = vld [vmem:[%s0 + $0x13c] sm:$0xff]
  %v73 = vld [vmem:[%s0 + $0x144] sm:$0xff]
  %v74 = vld [vmem:[%s0 + $0x14c] sm:$0xf]
  %v75 = vld [vmem:[%s0 + $0x150] sm:$0xff]
  %v76 = vld [vmem:[%s0 + $0x158] sm:$0xff]
  %v77 = vld [vmem:[%s0 + $0x160] sm:$0xff]
  %v78 = vld [vmem:[%s0 + $0x168] sm:$0xf]
  %v79 = vld [vmem:[%s0 + $0x16c] sm:$0xff]
  %v80 = vld [vmem:[%s0 + $0x174] sm:$0xff]
  %v81 = vld [vmem:[%s0 + $0x17c] sm:$0xff]
  %v82 = vld [vmem:[%s0 + $0x184] sm:$0xf]
  %v83 = vld [vmem:[%s0 + $0x188] sm:$0xff]
  %v84 = vld [vmem:[%s0 + $0x190] sm:$0xff]
  %v85 = vld [vmem:[%s0 + $0x198] sm:$0xff]
  %v86 = vld [vmem:[%s0 + $0x1a0] sm:$0xf]
  %v87 = vld [vmem:[%s0 + $0x1a4] sm:$0xff]
  %v88 = vld [vmem:[%s0 + $0x1ac] sm:$0xff]
  %v89 = vld [vmem:[%s0 + $0x1b4] sm:$0xff]
  %v90 = vld [vmem:[%s0 + $0x1bc] sm:$0xf]
  %v91 = vld [vmem:[%s0 + $0x1c0] sm:$0xff]
  %v92 = vld [vmem:[%s0 + $0x1c8] sm:$0xff]
  %v93 = vld [vmem:[%s0 + $0x1d0] sm:$0xff]
  %v94 = vld [vmem:[%s0 + $0x1d8] sm:$0xf]
  %v95 = vld [vmem:[%s0 + $0x1dc] sm:$0xff]
  %v96 = vld [vmem:[%s0 + $0x1e4] sm:$0xff]
  %v97 = vld [vmem:[%s0 + $0x1ec] sm:$0xff]
  %v98 = vld [vmem:[%s0 + $0x1f4] sm:$0xf]
  %v99 = vld [vmem:[%s0 + $0x1f8] sm:$0xff]
  %v100 = vld [vmem:[%s0 + $0x200] sm:$0xff]
  %v101 = vld [vmem:[%s0 + $0x208] sm:$0xff]
  %v102 = vld [vmem:[%s0 + $0x210] sm:$0xf]
  %v103 = vld [vmem:[%s0 + $0x214] sm:$0xff]
  %v104 = vld [vmem:[%s0 + $0x21c] sm:$0xff]
  %v105 = vld [vmem:[%s0 + $0x224] sm:$0xff]
  %v106 = vld [vmem:[%s0 + $0x22c] sm:$0xf]
  %v107 = vld [vmem:[%s0 + $0x230] sm:$0xff]
  %v108 = vld [vmem:[%s0 + $0x238] sm:$0xff]
  %v109 = vld [vmem:[%s0 + $0x240] sm:$0xff]
  %v110 = vld [vmem:[%s0 + $0x248] sm:$0xf]
  %v111 = vld [vmem:[%s0 + $0x24c] sm:$0xff]
  %v112 = vld [vmem:[%s0 + $0x254] sm:$0xff]
  %v113 = vld [vmem:[%s0 + $0x25c] sm:$0xff]
  %v114 = vld [vmem:[%s0 + $0x264] sm:$0xf]
  %v115 = vld [vmem:[%s0 + $0x268] sm:$0xff]
  %v116 = vld [vmem:[%s0 + $0x270] sm:$0xff]
  %v117 = vld [vmem:[%s0 + $0x278] sm:$0xff]
  %v118 = vld [vmem:[%s0 + $0x280] sm:$0xf]
  %v119 = vld [vmem:[%s0 + $0x284] sm:$0xff]
  %v120 = vld [vmem:[%s0 + $0x28c] sm:$0xff]
  %v121 = vld [vmem:[%s0 + $0x294] sm:$0xff]
  %v122 = vld [vmem:[%s0 + $0x29c] sm:$0xf]
  %v123 = vld [vmem:[%s0 + $0x2a0] sm:$0xff]
  %v124 = vld [vmem:[%s0 + $0x2a8] sm:$0xff]
  %v125 = vld [vmem:[%s0 + $0x2b0] sm:$0xff]
  %v126 = vld [vmem:[%s0 + $0x2b8] sm:$0xf]
  %v127 = vld [vmem:[%s0 + $0x2bc] sm:$0xff]
  %v128 = vld [vmem:[%s0 + $0x2c4] sm:$0xff]
  %v129 = vld [vmem:[%s0 + $0x2cc] sm:$0xff]
  %v130 = vld [vmem:[%s0 + $0x2d4] sm:$0xf]
  %v131 = vld [vmem:[%s0 + $0x2d8] sm:$0xff]
  %v132 = vld [vmem:[%s0 + $0x2e0] sm:$0xff]
  %v133 = vld [vmem:[%s0 + $0x2e8] sm:$0xff]
  %v134 = vld [vmem:[%s0 + $0x2f0] sm:$0xf]
  %v135 = vld [vmem:[%s0 + $0x2f4] sm:$0xff]
  %v136 = vld [vmem:[%s0 + $0x2fc] sm:$0xff]
  %v137 = vld [vmem:[%s0 + $0x304] sm:$0xff]
  %v138 = vld [vmem:[%s0 + $0x30c] sm:$0xf]
  %v139 = vld [vmem:[%s0 + $0x310] sm:$0xff]
  %v140 = vld [vmem:[%s0 + $0x318] sm:$0xff]
  %v141 = vld [vmem:[%s0 + $0x320] sm:$0xff]
  %v142 = vld [vmem:[%s0 + $0x328] sm:$0xf]
  %v143 = vld [vmem:[%s0 + $0x32c] sm:$0xff]
  %v144 = vld [vmem:[%s0 + $0x334] sm:$0xff]
  %v145 = vld [vmem:[%s0 + $0x33c] sm:$0xff]
  %v146 = vld [vmem:[%s0 + $0x344] sm:$0xf]
  %v147 = vld [vmem:[%s0 + $0x348] sm:$0xff]
  %v148 = vld [vmem:[%s0 + $0x350] sm:$0xff]
  %v149 = vld [vmem:[%s0 + $0x358] sm:$0xff]
  %v150 = vld [vmem:[%s0 + $0x360] sm:$0xf]
  %v151 = vld [vmem:[%s0 + $0x364] sm:$0xff]
  %v152 = vld [vmem:[%s0 + $0x36c] sm:$0xff]
  %v153 = vld [vmem:[%s0 + $0x374] sm:$0xff]
  %v154 = vld [vmem:[%s0 + $0x37c] sm:$0xf]
  %v155 = vld [vmem:[%s0 + $0x380] sm:$0xff]
  %v156 = vld [vmem:[%s0 + $0x388] sm:$0xff]
  %v157 = vld [vmem:[%s0 + $0x390] sm:$0xff]
  %v158 = vld [vmem:[%s0 + $0x398] sm:$0xf]
  %v159 = vld [vmem:[%s0 + $0x39c] sm:$0xff]
  %v160 = vld [vmem:[%s0 + $0x3a4] sm:$0xff]
  %v161 = vld [vmem:[%s0 + $0x3ac] sm:$0xff]
  %v162 = vld [vmem:[%s0 + $0x3b4] sm:$0xf]
  %v163 = vld [vmem:[%s0 + $0x3b8] sm:$0xff]
  %v164 = vld [vmem:[%s0 + $0x3c0] sm:$0xff]
  %v165 = vld [vmem:[%s0 + $0x3c8] sm:$0xff]
  %v166 = vld [vmem:[%s0 + $0x3d0] sm:$0xf]
  %v167 = vld [vmem:[%s0 + $0x3d4] sm:$0xff]
  %v168 = vld [vmem:[%s0 + $0x3dc] sm:$0xff]
  %v169 = vld [vmem:[%s0 + $0x3e4] sm:$0xff]
  %v170 = vld [vmem:[%s0 + $0x3ec] sm:$0xf]
  %v171 = vld [vmem:[%s0 + $0x3f0] sm:$0xff]
  %v172 = vld [vmem:[%s0 + $0x3f8] sm:$0xff]
  %v173 = vld [vmem:[%s0 + $0x400] sm:$0xff]
  %v174 = vld [vmem:[%s0 + $0x408] sm:$0xf]
  %v175 = vld [vmem:[%s0 + $0x40c] sm:$0xff]
  %v176 = vld [vmem:[%s0 + $0x414] sm:$0xff]
  %v177 = vld [vmem:[%s0 + $0x41c] sm:$0xff]
  %v178 = vld [vmem:[%s0 + $0x424] sm:$0xf]
  %v179 = vld [vmem:[%s0 + $0x428] sm:$0xff]
  %v180 = vld [vmem:[%s0 + $0x430] sm:$0xff]
  %v181 = vld [vmem:[%s0 + $0x438] sm:$0xff]
  %v182 = vld [vmem:[%s0 + $0x440] sm:$0xf]
  %v183 = vld [vmem:[%s0 + $0x444] sm:$0xff]
  %v184 = vld [vmem:[%s0 + $0x44c] sm:$0xff]
  %v185 = vld [vmem:[%s0 + $0x454] sm:$0xff]
  %v186 = vld [vmem:[%s0 + $0x45c] sm:$0xf]
  %v187 = vld [vmem:[%s0 + $0x460] sm:$0xff]
  %v188 = vld [vmem:[%s0 + $0x468] sm:$0xff]
  %v189 = vld [vmem:[%s0 + $0x470] sm:$0xff]
  %v190 = vld [vmem:[%s0 + $0x478] sm:$0xf]
  %v191 = vld [vmem:[%s0 + $0x47c] sm:$0xff]
  %v192 = vld [vmem:[%s0 + $0x484] sm:$0xff]
  %v193 = vld [vmem:[%s0 + $0x48c] sm:$0xff]
  %v194 = vld [vmem:[%s0 + $0x494] sm:$0xf]
  %v195 = vld [vmem:[%s0 + $0x498] sm:$0xff]
  %v196 = vld [vmem:[%s0 + $0x4a0] sm:$0xff]
  %v197 = vld [vmem:[%s0 + $0x4a8] sm:$0xff]
  %v198 = vld [vmem:[%s0 + $0x4b0] sm:$0xf]
  %v199 = vld [vmem:[%s0 + $0x4b4] sm:$0xff]
  %v200 = vld [vmem:[%s0 + $0x4bc] sm:$0xff]
  %v201 = vld [vmem:[%s0 + $0x4c4] sm:$0xff]
  %v202 = vld [vmem:[%s0 + $0x4cc] sm:$0xf]
  %v203 = vld [vmem:[%s0 + $0x4d0] sm:$0xff]
  %v204 = vld [vmem:[%s0 + $0x4d8] sm:$0xff]
  %v205 = vld [vmem:[%s0 + $0x4e0] sm:$0xff]
  %v206 = vld [vmem:[%s0 + $0x4e8] sm:$0xf]
  %v207 = vld [vmem:[%s0 + $0x4ec] sm:$0xff]
  %v208 = vld [vmem:[%s0 + $0x4f4] sm:$0xff]
  %v209 = vld [vmem:[%s0 + $0x4fc] sm:$0xff]
  %v210 = vld [vmem:[%s0 + $0x504] sm:$0xf]
  %v211 = vld [vmem:[%s0 + $0x508] sm:$0xff]
  %v212 = vld [vmem:[%s0 + $0x510] sm:$0xff]
  %v213 = vld [vmem:[%s0 + $0x518] sm:$0xff]
  %v214 = vld [vmem:[%s0 + $0x520] sm:$0xf]
  %v215 = vld [vmem:[%s0 + $0x524] sm:$0xff]
  %v216 = vld [vmem:[%s0 + $0x52c] sm:$0xff]
  %v217 = vld [vmem:[%s0 + $0x534] sm:$0xff]
  %v218 = vld [vmem:[%s0 + $0x53c] sm:$0xf]
  %v219 = vld [vmem:[%s0 + $0x540] sm:$0xff]
  %v220 = vld [vmem:[%s0 + $0x548] sm:$0xff]
  %v221 = vld [vmem:[%s0 + $0x550] sm:$0xff]
  %v222 = vld [vmem:[%s0 + $0x558] sm:$0xf]
  %v223 = vld [vmem:[%s0 + $0x55c] sm:$0xff]
  %v224 = vld [vmem:[%s0 + $0x564] sm:$0xff]
  %v225 = vld [vmem:[%s0 + $0x56c] sm:$0xff]
  %v226 = vld [vmem:[%s0 + $0x574] sm:$0xf]
  %v227 = vld [vmem:[%s0 + $0x578] sm:$0xff]
  %v228 = vld [vmem:[%s0 + $0x580] sm:$0xff]
  %v229 = vld [vmem:[%s0 + $0x588] sm:$0xff]
  %v230 = vld [vmem:[%s0 + $0x590] sm:$0xf]
  %v231 = vld [vmem:[%s0 + $0x594] sm:$0xff]
  %v232 = vld [vmem:[%s0 + $0x59c] sm:$0xff]
  %v233 = vld [vmem:[%s0 + $0x5a4] sm:$0xff]
  %v234 = vld [vmem:[%s0 + $0x5ac] sm:$0xf]
  %v235 = vld [vmem:[%s0 + $0x5b0] sm:$0xff]
  %v236 = vld [vmem:[%s0 + $0x5b8] sm:$0xff]
  %v237 = vld [vmem:[%s0 + $0x5c0] sm:$0xff]
  %v238 = vld [vmem:[%s0 + $0x5c8] sm:$0xf]
  %v239 = vld [vmem:[%s0 + $0x5cc] sm:$0xff]
  %v240 = vld [vmem:[%s0 + $0x5d4] sm:$0xff]
  %v241 = vld [vmem:[%s0 + $0x5dc] sm:$0xff]
  %v242 = vld [vmem:[%s0 + $0x5e4] sm:$0xf]
  %v243 = vld [vmem:[%s0 + $0x5e8] sm:$0xff]
  %v244 = vld [vmem:[%s0 + $0x5f0] sm:$0xff]
  %v245 = vld [vmem:[%s0 + $0x5f8] sm:$0xff]
  %v246 = vld [vmem:[%s0 + $0x600] sm:$0xf]
  %v247 = vld [vmem:[%s0 + $0x604] sm:$0xff]
  %v248 = vld [vmem:[%s0 + $0x60c] sm:$0xff]
  %v249 = vld [vmem:[%s0 + $0x614] sm:$0xff]
  %v250 = vld [vmem:[%s0 + $0x61c] sm:$0xf]
  %v251 = vld [vmem:[%s0 + $0x620] sm:$0xff]
  %v252 = vld [vmem:[%s0 + $0x628] sm:$0xff]
  %v253 = vld [vmem:[%s0 + $0x630] sm:$0xff]
  %v254 = vld [vmem:[%s0 + $0x638] sm:$0xf]
  %v255 = vld [vmem:[%s0 + $0x63c] sm:$0xff]
  %v256 = vld [vmem:[%s0 + $0x644] sm:$0xff]
  %v257 = vld [vmem:[%s0 + $0x64c] sm:$0xff]
  %v258 = vld [vmem:[%s0 + $0x654] sm:$0xf]
  %v259 = vld [vmem:[%s0 + $0x658] sm:$0xff]
  %v260 = vld [vmem:[%s0 + $0x660] sm:$0xff]
  %v261 = vld [vmem:[%s0 + $0x668] sm:$0xff]
  %v262 = vld [vmem:[%s0 + $0x670] sm:$0xf]
  %v263 = vld [vmem:[%s0 + $0x674] sm:$0xff]
  %v264 = vld [vmem:[%s0 + $0x67c] sm:$0xff]
  %v265 = vld [vmem:[%s0 + $0x684] sm:$0xff]
  %v266 = vld [vmem:[%s0 + $0x68c] sm:$0xf]
  %v267 = vld [vmem:[%s0 + $0x690] sm:$0xff]
  %v268 = vld [vmem:[%s0 + $0x698] sm:$0xff]
  %v269 = vld [vmem:[%s0 + $0x6a0] sm:$0xff]
  %v270 = vld [vmem:[%s0 + $0x6a8] sm:$0xf]
  %v271 = vld [vmem:[%s0 + $0x6ac] sm:$0xff]
  %v272 = vld [vmem:[%s0 + $0x6b4] sm:$0xff]
  %v273 = vld [vmem:[%s0 + $0x6bc] sm:$0xff]
  %v274 = vld [vmem:[%s0 + $0x6c4] sm:$0xf]
  %v275 = vld [vmem:[%s0 + $0x6c8] sm:$0xff]
  %v276 = vld [vmem:[%s0 + $0x6d0] sm:$0xff]
  %v277 = vld [vmem:[%s0 + $0x6d8] sm:$0xff]
  %v278 = vld [vmem:[%s0 + $0x6e0] sm:$0xf]
  %v279 = vld [vmem:[%s0 + $0x6e4] sm:$0xff]
  %v280 = vld [vmem:[%s0 + $0x6ec] sm:$0xff]
  %v281 = vld [vmem:[%s0 + $0x6f4] sm:$0xff]
  %v282 = vld [vmem:[%s0 + $0x6fc] sm:$0xf]
  %v283 = vld [vmem:[%s1] sm:$0xf]
  %v284 = vld [vmem:[%s1 + $0x4] sm:$0xf]
  %v285 = vld [vmem:[%s1 + $0x8] sm:$0xf]
  %v286 = vld [vmem:[%s1 + $0xc] sm:$0xf]
  %v287 = vld [vmem:[%s1 + $0x10] sm:$0xf]
  %v288 = vld [vmem:[%s1 + $0x14] sm:$0xf]
  %v289 = vld [vmem:[%s1 + $0x18] sm:$0xf]
  %v290 = vld [vmem:[%s1 + $0x1c] sm:$0xf]
  %v291 = vld [vmem:[%s1 + $0x20] sm:$0xf]
  %v292 = vld [vmem:[%s1 + $0x24] sm:$0xf]
  %v293 = vld [vmem:[%s1 + $0x28] sm:$0xf]
  %v294 = vld [vmem:[%s1 + $0x2c] sm:$0xf]
  %v295 = vld [vmem:[%s1 + $0x30] sm:$0xf]
  %v296 = vld [vmem:[%s1 + $0x34] sm:$0xf]
  %v297 = vld [vmem:[%s1 + $0x38] sm:$0xf]
  %v298 = vld [vmem:[%s1 + $0x3c] sm:$0xf]
  %v299 = vld [vmem:[%s1 + $0x40] sm:$0xf]
  %v300 = vld [vmem:[%s1 + $0x44] sm:$0xf]
  %v301 = vld [vmem:[%s1 + $0x48] sm:$0xf]
  %v302 = vld [vmem:[%s1 + $0x4c] sm:$0xf]
  %v303 = vld [vmem:[%s1 + $0x50] sm:$0xf]
  %v304 = vld [vmem:[%s1 + $0x54] sm:$0xf]
  %v305 = vld [vmem:[%s1 + $0x58] sm:$0xf]
  %v306 = vld [vmem:[%s1 + $0x5c] sm:$0xf]
  %v307 = vld [vmem:[%s1 + $0x60] sm:$0xf]
  %v308 = vld [vmem:[%s1 + $0x64] sm:$0xf]
  %v309 = vld [vmem:[%s1 + $0x68] sm:$0xf]
  %v310 = vld [vmem:[%s1 + $0x6c] sm:$0xf]
  %v311 = vld [vmem:[%s1 + $0x70] sm:$0xf]
  %v312 = vld [vmem:[%s1 + $0x74] sm:$0xf]
  %v313 = vld [vmem:[%s1 + $0x78] sm:$0xf]
  %v314 = vld [vmem:[%s1 + $0x7c] sm:$0xf]
  %v315 = vld [vmem:[%s1 + $0x80] sm:$0xf]
  %v316 = vld [vmem:[%s1 + $0x84] sm:$0xf]
  %v317 = vld [vmem:[%s1 + $0x88] sm:$0xf]
  %v318 = vld [vmem:[%s1 + $0x8c] sm:$0xf]
  %v319 = vld [vmem:[%s1 + $0x90] sm:$0xf]
  %v320 = vld [vmem:[%s1 + $0x94] sm:$0xf]
  %v321 = vld [vmem:[%s1 + $0x98] sm:$0xf]
  %v322 = vld [vmem:[%s1 + $0x9c] sm:$0xf]
  %v323 = vld [vmem:[%s1 + $0xa0] sm:$0xf]
  %v324 = vld [vmem:[%s1 + $0xa4] sm:$0xf]
  %v325 = vld [vmem:[%s1 + $0xa8] sm:$0xf]
  %v326 = vld [vmem:[%s1 + $0xac] sm:$0xf]
  %v327 = vld [vmem:[%s1 + $0xb0] sm:$0xf]
  %v328 = vld [vmem:[%s1 + $0xb4] sm:$0xf]
  %v329 = vld [vmem:[%s1 + $0xb8] sm:$0xf]
  %v330 = vld [vmem:[%s1 + $0xbc] sm:$0xf]
  %v331 = vld [vmem:[%s1 + $0xc0] sm:$0xf]
  %v332 = vld [vmem:[%s1 + $0xc4] sm:$0xf]
  %v333 = vld [vmem:[%s1 + $0xc8] sm:$0xf]
  %v334 = vld [vmem:[%s1 + $0xcc] sm:$0xf]
  %v335 = vld [vmem:[%s1 + $0xd0] sm:$0xf]
  %v336 = vld [vmem:[%s1 + $0xd4] sm:$0xf]
  %v337 = vld [vmem:[%s1 + $0xd8] sm:$0xf]
  %v338 = vld [vmem:[%s1 + $0xdc] sm:$0xf]
  %v339 = vld [vmem:[%s1 + $0xe0] sm:$0xf]
  %v340 = vld [vmem:[%s1 + $0xe4] sm:$0xf]
  %v341 = vld [vmem:[%s1 + $0xe8] sm:$0xf]
  %v342 = vld [vmem:[%s1 + $0xec] sm:$0xf]
  %v343 = vld [vmem:[%s1 + $0xf0] sm:$0xf]
  %v344 = vld [vmem:[%s1 + $0xf4] sm:$0xf]
  %v345 = vld [vmem:[%s1 + $0xf8] sm:$0xf]
  %v346 = vld [vmem:[%s1 + $0xfc] sm:$0xf]
  %v347 = vld [vmem:[%s1 + $0x100] sm:$0xf]
  %v348 = vld [vmem:[%s1 + $0x104] sm:$0xf]
  %v349 = vld [vmem:[%s1 + $0x108] sm:$0xf]
  %v350 = vld [vmem:[%s1 + $0x10c] sm:$0xf]
  %v351 = vld [vmem:[%s1 + $0x110] sm:$0xf]
  %v352 = vld [vmem:[%s1 + $0x114] sm:$0xf]
  %v353 = vld [vmem:[%s1 + $0x118] sm:$0xf]
  %v354 = vld [vmem:[%s1 + $0x11c] sm:$0xf]
  %v355 = vld [vmem:[%s1 + $0x120] sm:$0xf]
  %v356 = vld [vmem:[%s1 + $0x124] sm:$0xf]
  %v357 = vld [vmem:[%s1 + $0x128] sm:$0xf]
  %v358 = vld [vmem:[%s1 + $0x12c] sm:$0xf]
  %v359 = vld [vmem:[%s1 + $0x130] sm:$0xf]
  %v360 = vld [vmem:[%s1 + $0x134] sm:$0xf]
  %v361 = vld [vmem:[%s1 + $0x138] sm:$0xf]
  %v362 = vld [vmem:[%s1 + $0x13c] sm:$0xf]
  %v363 = vld [vmem:[%s1 + $0x140] sm:$0xf]
  %v364 = vld [vmem:[%s1 + $0x144] sm:$0xf]
  %v365 = vld [vmem:[%s1 + $0x148] sm:$0xf]
  %v366 = vld [vmem:[%s1 + $0x14c] sm:$0xf]
  %v367 = vld [vmem:[%s1 + $0x150] sm:$0xf]
  %v368 = vld [vmem:[%s1 + $0x154] sm:$0xf]
  %v369 = vld [vmem:[%s1 + $0x158] sm:$0xf]
  %v370 = vld [vmem:[%s1 + $0x15c] sm:$0xf]
  %v371 = vld [vmem:[%s1 + $0x160] sm:$0xf]
  %v372 = vld [vmem:[%s1 + $0x164] sm:$0xf]
  %v373 = vld [vmem:[%s1 + $0x168] sm:$0xf]
  %v374 = vld [vmem:[%s1 + $0x16c] sm:$0xf]
  %v375 = vld [vmem:[%s1 + $0x170] sm:$0xf]
  %v376 = vld [vmem:[%s1 + $0x174] sm:$0xf]
  %v377 = vld [vmem:[%s1 + $0x178] sm:$0xf]
  %v378 = vld [vmem:[%s1 + $0x17c] sm:$0xf]
  %v379 = vld [vmem:[%s1 + $0x180] sm:$0xf]
  %v380 = vld [vmem:[%s1 + $0x184] sm:$0xf]
  %v381 = vld [vmem:[%s1 + $0x188] sm:$0xf]
  %v382 = vld [vmem:[%s1 + $0x18c] sm:$0xf]
  %v639 = vunpack.c.l.b16 %v27
  %v640 = vunpack.c.h.b16 %v27
  %v641 = vunpack.c.l.b16 %v28
  %v642 = vunpack.c.h.b16 %v28
  %v643 = vunpack.c.l.b16 %v29
  %v644 = vunpack.c.h.b16 %v29
  %v645 = vunpack.c.l.b16 %v30
  %v646 = vunpack.c.l.b16 %v31
  %v647 = vunpack.c.h.b16 %v31
  %v648 = vunpack.c.l.b16 %v32
  %v649 = vunpack.c.h.b16 %v32
  %v650 = vunpack.c.l.b16 %v33
  %v651 = vunpack.c.h.b16 %v33
  %v652 = vunpack.c.l.b16 %v34
  %v653 = vunpack.c.l.b16 %v35
  %v654 = vunpack.c.h.b16 %v35
  %v655 = vunpack.c.l.b16 %v36
  %v656 = vunpack.c.h.b16 %v36
  %v657 = vunpack.c.l.b16 %v37
  %v658 = vunpack.c.h.b16 %v37
  %v659 = vunpack.c.l.b16 %v38
  %v660 = vunpack.c.l.b16 %v39
  %v661 = vunpack.c.h.b16 %v39
  %v662 = vunpack.c.l.b16 %v40
  %v663 = vunpack.c.h.b16 %v40
  %v664 = vunpack.c.l.b16 %v41
  %v665 = vunpack.c.h.b16 %v41
  %v666 = vunpack.c.l.b16 %v42
  %v667 = vunpack.c.l.b16 %v43
  %v668 = vunpack.c.h.b16 %v43
  %v669 = vunpack.c.l.b16 %v44
  %v670 = vunpack.c.h.b16 %v44
  %v671 = vunpack.c.l.b16 %v45
  %v672 = vunpack.c.h.b16 %v45
  %v673 = vunpack.c.l.b16 %v46
  %v674 = vunpack.c.l.b16 %v47
  %v675 = vunpack.c.h.b16 %v47
  %v676 = vunpack.c.l.b16 %v48
  %v677 = vunpack.c.h.b16 %v48
  %v678 = vunpack.c.l.b16 %v49
  %v679 = vunpack.c.h.b16 %v49
  %v680 = vunpack.c.l.b16 %v50
  %v681 = vunpack.c.l.b16 %v51
  %v682 = vunpack.c.h.b16 %v51
  %v683 = vunpack.c.l.b16 %v52
  %v684 = vunpack.c.h.b16 %v52
  %v685 = vunpack.c.l.b16 %v53
  %v686 = vunpack.c.h.b16 %v53
  %v687 = vunpack.c.l.b16 %v54
  %v688 = vunpack.c.l.b16 %v55
  %v689 = vunpack.c.h.b16 %v55
  %v690 = vunpack.c.l.b16 %v56
  %v691 = vunpack.c.h.b16 %v56
  %v692 = vunpack.c.l.b16 %v57
  %v693 = vunpack.c.h.b16 %v57
  %v694 = vunpack.c.l.b16 %v58
  %v695 = vunpack.c.l.b16 %v59
  %v696 = vunpack.c.h.b16 %v59
  %v697 = vunpack.c.l.b16 %v60
  %v698 = vunpack.c.h.b16 %v60
  %v699 = vunpack.c.l.b16 %v61
  %v700 = vunpack.c.h.b16 %v61
  %v701 = vunpack.c.l.b16 %v62
  %v702 = vunpack.c.l.b16 %v63
  %v703 = vunpack.c.h.b16 %v63
  %v704 = vunpack.c.l.b16 %v64
  %v705 = vunpack.c.h.b16 %v64
  %v706 = vunpack.c.l.b16 %v65
  %v707 = vunpack.c.h.b16 %v65
  %v708 = vunpack.c.l.b16 %v66
  %v709 = vunpack.c.l.b16 %v67
  %v710 = vunpack.c.h.b16 %v67
  %v711 = vunpack.c.l.b16 %v68
  %v712 = vunpack.c.h.b16 %v68
  %v713 = vunpack.c.l.b16 %v69
  %v714 = vunpack.c.h.b16 %v69
  %v715 = vunpack.c.l.b16 %v70
  %v716 = vunpack.c.l.b16 %v71
  %v717 = vunpack.c.h.b16 %v71
  %v718 = vunpack.c.l.b16 %v72
  %v719 = vunpack.c.h.b16 %v72
  %v720 = vunpack.c.l.b16 %v73
  %v721 = vunpack.c.h.b16 %v73
  %v722 = vunpack.c.l.b16 %v74
  %v723 = vunpack.c.l.b16 %v75
  %v724 = vunpack.c.h.b16 %v75
  %v725 = vunpack.c.l.b16 %v76
  %v726 = vunpack.c.h.b16 %v76
  %v727 = vunpack.c.l.b16 %v77
  %v728 = vunpack.c.h.b16 %v77
  %v729 = vunpack.c.l.b16 %v78
  %v730 = vunpack.c.l.b16 %v79
  %v731 = vunpack.c.h.b16 %v79
  %v732 = vunpack.c.l.b16 %v80
  %v733 = vunpack.c.h.b16 %v80
  %v734 = vunpack.c.l.b16 %v81
  %v735 = vunpack.c.h.b16 %v81
  %v736 = vunpack.c.l.b16 %v82
  %v737 = vunpack.c.l.b16 %v83
  %v738 = vunpack.c.h.b16 %v83
  %v739 = vunpack.c.l.b16 %v84
  %v740 = vunpack.c.h.b16 %v84
  %v741 = vunpack.c.l.b16 %v85
  %v742 = vunpack.c.h.b16 %v85
  %v743 = vunpack.c.l.b16 %v86
  %v744 = vunpack.c.l.b16 %v87
  %v745 = vunpack.c.h.b16 %v87
  %v746 = vunpack.c.l.b16 %v88
  %v747 = vunpack.c.h.b16 %v88
  %v748 = vunpack.c.l.b16 %v89
  %v749 = vunpack.c.h.b16 %v89
  %v750 = vunpack.c.l.b16 %v90
  %v751 = vunpack.c.l.b16 %v91
  %v752 = vunpack.c.h.b16 %v91
  %v753 = vunpack.c.l.b16 %v92
  %v754 = vunpack.c.h.b16 %v92
  %v755 = vunpack.c.l.b16 %v93
  %v756 = vunpack.c.h.b16 %v93
  %v757 = vunpack.c.l.b16 %v94
  %v758 = vunpack.c.l.b16 %v95
  %v759 = vunpack.c.h.b16 %v95
  %v760 = vunpack.c.l.b16 %v96
  %v761 = vunpack.c.h.b16 %v96
  %v762 = vunpack.c.l.b16 %v97
  %v763 = vunpack.c.h.b16 %v97
  %v764 = vunpack.c.l.b16 %v98
  %v765 = vunpack.c.l.b16 %v99
  %v766 = vunpack.c.h.b16 %v99
  %v767 = vunpack.c.l.b16 %v100
  %v768 = vunpack.c.h.b16 %v100
  %v769 = vunpack.c.l.b16 %v101
  %v770 = vunpack.c.h.b16 %v101
  %v771 = vunpack.c.l.b16 %v102
  %v772 = vunpack.c.l.b16 %v103
  %v773 = vunpack.c.h.b16 %v103
  %v774 = vunpack.c.l.b16 %v104
  %v775 = vunpack.c.h.b16 %v104
  %v776 = vunpack.c.l.b16 %v105
  %v777 = vunpack.c.h.b16 %v105
  %v778 = vunpack.c.l.b16 %v106
  %v779 = vunpack.c.l.b16 %v107
  %v780 = vunpack.c.h.b16 %v107
  %v781 = vunpack.c.l.b16 %v108
  %v782 = vunpack.c.h.b16 %v108
  %v783 = vunpack.c.l.b16 %v109
  %v784 = vunpack.c.h.b16 %v109
  %v785 = vunpack.c.l.b16 %v110
  %v786 = vunpack.c.l.b16 %v111
  %v787 = vunpack.c.h.b16 %v111
  %v788 = vunpack.c.l.b16 %v112
  %v789 = vunpack.c.h.b16 %v112
  %v790 = vunpack.c.l.b16 %v113
  %v791 = vunpack.c.h.b16 %v113
  %v792 = vunpack.c.l.b16 %v114
  %v793 = vunpack.c.l.b16 %v115
  %v794 = vunpack.c.h.b16 %v115
  %v795 = vunpack.c.l.b16 %v116
  %v796 = vunpack.c.h.b16 %v116
  %v797 = vunpack.c.l.b16 %v117
  %v798 = vunpack.c.h.b16 %v117
  %v799 = vunpack.c.l.b16 %v118
  %v800 = vunpack.c.l.b16 %v119
  %v801 = vunpack.c.h.b16 %v119
  %v802 = vunpack.c.l.b16 %v120
  %v803 = vunpack.c.h.b16 %v120
  %v804 = vunpack.c.l.b16 %v121
  %v805 = vunpack.c.h.b16 %v121
  %v806 = vunpack.c.l.b16 %v122
  %v807 = vunpack.c.l.b16 %v123
  %v808 = vunpack.c.h.b16 %v123
  %v809 = vunpack.c.l.b16 %v124
  %v810 = vunpack.c.h.b16 %v124
  %v811 = vunpack.c.l.b16 %v125
  %v812 = vunpack.c.h.b16 %v125
  %v813 = vunpack.c.l.b16 %v126
  %v814 = vunpack.c.l.b16 %v127
  %v815 = vunpack.c.h.b16 %v127
  %v816 = vunpack.c.l.b16 %v128
  %v817 = vunpack.c.h.b16 %v128
  %v818 = vunpack.c.l.b16 %v129
  %v819 = vunpack.c.h.b16 %v129
  %v820 = vunpack.c.l.b16 %v130
  %v821 = vunpack.c.l.b16 %v131
  %v822 = vunpack.c.h.b16 %v131
  %v823 = vunpack.c.l.b16 %v132
  %v824 = vunpack.c.h.b16 %v132
  %v825 = vunpack.c.l.b16 %v133
  %v826 = vunpack.c.h.b16 %v133
  %v827 = vunpack.c.l.b16 %v134
  %v828 = vunpack.c.l.b16 %v135
  %v829 = vunpack.c.h.b16 %v135
  %v830 = vunpack.c.l.b16 %v136
  %v831 = vunpack.c.h.b16 %v136
  %v832 = vunpack.c.l.b16 %v137
  %v833 = vunpack.c.h.b16 %v137
  %v834 = vunpack.c.l.b16 %v138
  %v835 = vunpack.c.l.b16 %v139
  %v836 = vunpack.c.h.b16 %v139
  %v837 = vunpack.c.l.b16 %v140
  %v838 = vunpack.c.h.b16 %v140
  %v839 = vunpack.c.l.b16 %v141
  %v840 = vunpack.c.h.b16 %v141
  %v841 = vunpack.c.l.b16 %v142
  %v842 = vunpack.c.l.b16 %v143
  %v843 = vunpack.c.h.b16 %v143
  %v844 = vunpack.c.l.b16 %v144
  %v845 = vunpack.c.h.b16 %v144
  %v846 = vunpack.c.l.b16 %v145
  %v847 = vunpack.c.h.b16 %v145
  %v848 = vunpack.c.l.b16 %v146
  %v849 = vunpack.c.l.b16 %v147
  %v850 = vunpack.c.h.b16 %v147
  %v851 = vunpack.c.l.b16 %v148
  %v852 = vunpack.c.h.b16 %v148
  %v853 = vunpack.c.l.b16 %v149
  %v854 = vunpack.c.h.b16 %v149
  %v855 = vunpack.c.l.b16 %v150
  %v856 = vunpack.c.l.b16 %v151
  %v857 = vunpack.c.h.b16 %v151
  %v858 = vunpack.c.l.b16 %v152
  %v859 = vunpack.c.h.b16 %v152
  %v860 = vunpack.c.l.b16 %v153
  %v861 = vunpack.c.h.b16 %v153
  %v862 = vunpack.c.l.b16 %v154
  %v863 = vunpack.c.l.b16 %v155
  %v864 = vunpack.c.h.b16 %v155
  %v865 = vunpack.c.l.b16 %v156
  %v866 = vunpack.c.h.b16 %v156
  %v867 = vunpack.c.l.b16 %v157
  %v868 = vunpack.c.h.b16 %v157
  %v869 = vunpack.c.l.b16 %v158
  %v870 = vunpack.c.l.b16 %v159
  %v871 = vunpack.c.h.b16 %v159
  %v872 = vunpack.c.l.b16 %v160
  %v873 = vunpack.c.h.b16 %v160
  %v874 = vunpack.c.l.b16 %v161
  %v875 = vunpack.c.h.b16 %v161
  %v876 = vunpack.c.l.b16 %v162
  %v877 = vunpack.c.l.b16 %v163
  %v878 = vunpack.c.h.b16 %v163
  %v879 = vunpack.c.l.b16 %v164
  %v880 = vunpack.c.h.b16 %v164
  %v881 = vunpack.c.l.b16 %v165
  %v882 = vunpack.c.h.b16 %v165
  %v883 = vunpack.c.l.b16 %v166
  %v884 = vunpack.c.l.b16 %v167
  %v885 = vunpack.c.h.b16 %v167
  %v886 = vunpack.c.l.b16 %v168
  %v887 = vunpack.c.h.b16 %v168
  %v888 = vunpack.c.l.b16 %v169
  %v889 = vunpack.c.h.b16 %v169
  %v890 = vunpack.c.l.b16 %v170
  %v891 = vunpack.c.l.b16 %v171
  %v892 = vunpack.c.h.b16 %v171
  %v893 = vunpack.c.l.b16 %v172
  %v894 = vunpack.c.h.b16 %v172
  %v895 = vunpack.c.l.b16 %v173
  %v896 = vunpack.c.h.b16 %v173
  %v897 = vunpack.c.l.b16 %v174
  %v898 = vunpack.c.l.b16 %v175
  %v899 = vunpack.c.h.b16 %v175
  %v900 = vunpack.c.l.b16 %v176
  %v901 = vunpack.c.h.b16 %v176
  %v902 = vunpack.c.l.b16 %v177
  %v903 = vunpack.c.h.b16 %v177
  %v904 = vunpack.c.l.b16 %v178
  %v905 = vunpack.c.l.b16 %v179
  %v906 = vunpack.c.h.b16 %v179
  %v907 = vunpack.c.l.b16 %v180
  %v908 = vunpack.c.h.b16 %v180
  %v909 = vunpack.c.l.b16 %v181
  %v910 = vunpack.c.h.b16 %v181
  %v911 = vunpack.c.l.b16 %v182
  %v912 = vunpack.c.l.b16 %v183
  %v913 = vunpack.c.h.b16 %v183
  %v914 = vunpack.c.l.b16 %v184
  %v915 = vunpack.c.h.b16 %v184
  %v916 = vunpack.c.l.b16 %v185
  %v917 = vunpack.c.h.b16 %v185
  %v918 = vunpack.c.l.b16 %v186
  %v919 = vunpack.c.l.b16 %v187
  %v920 = vunpack.c.h.b16 %v187
  %v921 = vunpack.c.l.b16 %v188
  %v922 = vunpack.c.h.b16 %v188
  %v923 = vunpack.c.l.b16 %v189
  %v924 = vunpack.c.h.b16 %v189
  %v925 = vunpack.c.l.b16 %v190
  %v926 = vunpack.c.l.b16 %v191
  %v927 = vunpack.c.h.b16 %v191
  %v928 = vunpack.c.l.b16 %v192
  %v929 = vunpack.c.h.b16 %v192
  %v930 = vunpack.c.l.b16 %v193
  %v931 = vunpack.c.h.b16 %v193
  %v932 = vunpack.c.l.b16 %v194
  %v933 = vunpack.c.l.b16 %v195
  %v934 = vunpack.c.h.b16 %v195
  %v935 = vunpack.c.l.b16 %v196
  %v936 = vunpack.c.h.b16 %v196
  %v937 = vunpack.c.l.b16 %v197
  %v938 = vunpack.c.h.b16 %v197
  %v939 = vunpack.c.l.b16 %v198
  %v940 = vunpack.c.l.b16 %v199
  %v941 = vunpack.c.h.b16 %v199
  %v942 = vunpack.c.l.b16 %v200
  %v943 = vunpack.c.h.b16 %v200
  %v944 = vunpack.c.l.b16 %v201
  %v945 = vunpack.c.h.b16 %v201
  %v946 = vunpack.c.l.b16 %v202
  %v947 = vunpack.c.l.b16 %v203
  %v948 = vunpack.c.h.b16 %v203
  %v949 = vunpack.c.l.b16 %v204
  %v950 = vunpack.c.h.b16 %v204
  %v951 = vunpack.c.l.b16 %v205
  %v952 = vunpack.c.h.b16 %v205
  %v953 = vunpack.c.l.b16 %v206
  %v954 = vunpack.c.l.b16 %v207
  %v955 = vunpack.c.h.b16 %v207
  %v956 = vunpack.c.l.b16 %v208
  %v957 = vunpack.c.h.b16 %v208
  %v958 = vunpack.c.l.b16 %v209
  %v959 = vunpack.c.h.b16 %v209
  %v960 = vunpack.c.l.b16 %v210
  %v961 = vunpack.c.l.b16 %v211
  %v962 = vunpack.c.h.b16 %v211
  %v963 = vunpack.c.l.b16 %v212
  %v964 = vunpack.c.h.b16 %v212
  %v965 = vunpack.c.l.b16 %v213
  %v966 = vunpack.c.h.b16 %v213
  %v967 = vunpack.c.l.b16 %v214
  %v968 = vunpack.c.l.b16 %v215
  %v969 = vunpack.c.h.b16 %v215
  %v970 = vunpack.c.l.b16 %v216
  %v971 = vunpack.c.h.b16 %v216
  %v972 = vunpack.c.l.b16 %v217
  %v973 = vunpack.c.h.b16 %v217
  %v974 = vunpack.c.l.b16 %v218
  %v975 = vunpack.c.l.b16 %v219
  %v976 = vunpack.c.h.b16 %v219
  %v977 = vunpack.c.l.b16 %v220
  %v978 = vunpack.c.h.b16 %v220
  %v979 = vunpack.c.l.b16 %v221
  %v980 = vunpack.c.h.b16 %v221
  %v981 = vunpack.c.l.b16 %v222
  %v982 = vunpack.c.l.b16 %v223
  %v983 = vunpack.c.h.b16 %v223
  %v984 = vunpack.c.l.b16 %v224
  %v985 = vunpack.c.h.b16 %v224
  %v986 = vunpack.c.l.b16 %v225
  %v987 = vunpack.c.h.b16 %v225
  %v988 = vunpack.c.l.b16 %v226
  %v989 = vunpack.c.l.b16 %v227
  %v990 = vunpack.c.h.b16 %v227
  %v991 = vunpack.c.l.b16 %v228
  %v992 = vunpack.c.h.b16 %v228
  %v993 = vunpack.c.l.b16 %v229
  %v994 = vunpack.c.h.b16 %v229
  %v995 = vunpack.c.l.b16 %v230
  %v996 = vunpack.c.l.b16 %v231
  %v997 = vunpack.c.h.b16 %v231
  %v998 = vunpack.c.l.b16 %v232
  %v999 = vunpack.c.h.b16 %v232
  %v1000 = vunpack.c.l.b16 %v233
  %v1001 = vunpack.c.h.b16 %v233
  %v1002 = vunpack.c.l.b16 %v234
  %v1003 = vunpack.c.l.b16 %v235
  %v1004 = vunpack.c.h.b16 %v235
  %v1005 = vunpack.c.l.b16 %v236
  %v1006 = vunpack.c.h.b16 %v236
  %v1007 = vunpack.c.l.b16 %v237
  %v1008 = vunpack.c.h.b16 %v237
  %v1009 = vunpack.c.l.b16 %v238
  %v1010 = vunpack.c.l.b16 %v239
  %v1011 = vunpack.c.h.b16 %v239
  %v1012 = vunpack.c.l.b16 %v240
  %v1013 = vunpack.c.h.b16 %v240
  %v1014 = vunpack.c.l.b16 %v241
  %v1015 = vunpack.c.h.b16 %v241
  %v1016 = vunpack.c.l.b16 %v242
  %v1017 = vunpack.c.l.b16 %v243
  %v1018 = vunpack.c.h.b16 %v243
  %v1019 = vunpack.c.l.b16 %v244
  %v1020 = vunpack.c.h.b16 %v244
  %v1021 = vunpack.c.l.b16 %v245
  %v1022 = vunpack.c.h.b16 %v245
  %v1023 = vunpack.c.l.b16 %v246
  %v1024 = vunpack.c.l.b16 %v247
  %v1025 = vunpack.c.h.b16 %v247
  %v1026 = vunpack.c.l.b16 %v248
  %v1027 = vunpack.c.h.b16 %v248
  %v1028 = vunpack.c.l.b16 %v249
  %v1029 = vunpack.c.h.b16 %v249
  %v1030 = vunpack.c.l.b16 %v250
  %v1031 = vunpack.c.l.b16 %v251
  %v1032 = vunpack.c.h.b16 %v251
  %v1033 = vunpack.c.l.b16 %v252
  %v1034 = vunpack.c.h.b16 %v252
  %v1035 = vunpack.c.l.b16 %v253
  %v1036 = vunpack.c.h.b16 %v253
  %v1037 = vunpack.c.l.b16 %v254
  %v1038 = vunpack.c.l.b16 %v255
  %v1039 = vunpack.c.h.b16 %v255
  %v1040 = vunpack.c.l.b16 %v256
  %v1041 = vunpack.c.h.b16 %v256
  %v1042 = vunpack.c.l.b16 %v257
  %v1043 = vunpack.c.h.b16 %v257
  %v1044 = vunpack.c.l.b16 %v258
  %v1045 = vunpack.c.l.b16 %v259
  %v1046 = vunpack.c.h.b16 %v259
  %v1047 = vunpack.c.l.b16 %v260
  %v1048 = vunpack.c.h.b16 %v260
  %v1049 = vunpack.c.l.b16 %v261
  %v1050 = vunpack.c.h.b16 %v261
  %v1051 = vunpack.c.l.b16 %v262
  %v1052 = vunpack.c.l.b16 %v263
  %v1053 = vunpack.c.h.b16 %v263
  %v1054 = vunpack.c.l.b16 %v264
  %v1055 = vunpack.c.h.b16 %v264
  %v1056 = vunpack.c.l.b16 %v265
  %v1057 = vunpack.c.h.b16 %v265
  %v1058 = vunpack.c.l.b16 %v266
  %v1059 = vunpack.c.l.b16 %v267
  %v1060 = vunpack.c.h.b16 %v267
  %v1061 = vunpack.c.l.b16 %v268
  %v1062 = vunpack.c.h.b16 %v268
  %v1063 = vunpack.c.l.b16 %v269
  %v1064 = vunpack.c.h.b16 %v269
  %v1065 = vunpack.c.l.b16 %v270
  %v1066 = vunpack.c.l.b16 %v271
  %v1067 = vunpack.c.h.b16 %v271
  %v1068 = vunpack.c.l.b16 %v272
  %v1069 = vunpack.c.h.b16 %v272
  %v1070 = vunpack.c.l.b16 %v273
  %v1071 = vunpack.c.h.b16 %v273
  %v1072 = vunpack.c.l.b16 %v274
  %v1073 = vunpack.c.l.b16 %v275
  %v1074 = vunpack.c.h.b16 %v275
  %v1075 = vunpack.c.l.b16 %v276
  %v1076 = vunpack.c.h.b16 %v276
  %v1077 = vunpack.c.l.b16 %v277
  %v1078 = vunpack.c.h.b16 %v277
  %v1079 = vunpack.c.l.b16 %v278
  %v1080 = vunpack.c.l.b16 %v279
  %v1081 = vunpack.c.h.b16 %v279
  %v1082 = vunpack.c.l.b16 %v280
  %v1083 = vunpack.c.h.b16 %v280
  %v1084 = vunpack.c.l.b16 %v281
  %v1085 = vunpack.c.h.b16 %v281
  %v1086 = vunpack.c.l.b16 %v282
  %v1087 = vpack.c.b16 %v646, %v639
  %v1088 = vpack.c.b16 %v647, %v640
  %v1089 = vpack.c.b16 %v648, %v641
  %v1090 = vpack.c.b16 %v649, %v642
  %v1091 = vpack.c.b16 %v650, %v643
  %v1092 = vpack.c.b16 %v651, %v644
  %v1093 = vpack.c.b16 %v652, %v645
  %v1094 = vpack.c.b16 %v660, %v653
  %v1095 = vpack.c.b16 %v661, %v654
  %v1096 = vpack.c.b16 %v662, %v655
  %v1097 = vpack.c.b16 %v663, %v656
  %v1098 = vpack.c.b16 %v664, %v657
  %v1099 = vpack.c.b16 %v665, %v658
  %v1100 = vpack.c.b16 %v666, %v659
  %v1101 = vpack.c.b16 %v674, %v667
  %v1102 = vpack.c.b16 %v675, %v668
  %v1103 = vpack.c.b16 %v676, %v669
  %v1104 = vpack.c.b16 %v677, %v670
  %v1105 = vpack.c.b16 %v678, %v671
  %v1106 = vpack.c.b16 %v679, %v672
  %v1107 = vpack.c.b16 %v680, %v673
  %v1108 = vpack.c.b16 %v688, %v681
  %v1109 = vpack.c.b16 %v689, %v682
  %v1110 = vpack.c.b16 %v690, %v683
  %v1111 = vpack.c.b16 %v691, %v684
  %v1112 = vpack.c.b16 %v692, %v685
  %v1113 = vpack.c.b16 %v693, %v686
  %v1114 = vpack.c.b16 %v694, %v687
  %v1115 = vpack.c.b16 %v702, %v695
  %v1116 = vpack.c.b16 %v703, %v696
  %v1117 = vpack.c.b16 %v704, %v697
  %v1118 = vpack.c.b16 %v705, %v698
  %v1119 = vpack.c.b16 %v706, %v699
  %v1120 = vpack.c.b16 %v707, %v700
  %v1121 = vpack.c.b16 %v708, %v701
  %v1122 = vpack.c.b16 %v716, %v709
  %v1123 = vpack.c.b16 %v717, %v710
  %v1124 = vpack.c.b16 %v718, %v711
  %v1125 = vpack.c.b16 %v719, %v712
  %v1126 = vpack.c.b16 %v720, %v713
  %v1127 = vpack.c.b16 %v721, %v714
  %v1128 = vpack.c.b16 %v722, %v715
  %v1129 = vpack.c.b16 %v730, %v723
  %v1130 = vpack.c.b16 %v731, %v724
  %v1131 = vpack.c.b16 %v732, %v725
  %v1132 = vpack.c.b16 %v733, %v726
  %v1133 = vpack.c.b16 %v734, %v727
  %v1134 = vpack.c.b16 %v735, %v728
  %v1135 = vpack.c.b16 %v736, %v729
  %v1136 = vpack.c.b16 %v744, %v737
  %v1137 = vpack.c.b16 %v745, %v738
  %v1138 = vpack.c.b16 %v746, %v739
  %v1139 = vpack.c.b16 %v747, %v740
  %v1140 = vpack.c.b16 %v748, %v741
  %v1141 = vpack.c.b16 %v749, %v742
  %v1142 = vpack.c.b16 %v750, %v743
  %v1143 = vpack.c.b16 %v758, %v751
  %v1144 = vpack.c.b16 %v759, %v752
  %v1145 = vpack.c.b16 %v760, %v753
  %v1146 = vpack.c.b16 %v761, %v754
  %v1147 = vpack.c.b16 %v762, %v755
  %v1148 = vpack.c.b16 %v763, %v756
  %v1149 = vpack.c.b16 %v764, %v757
  %v1150 = vpack.c.b16 %v772, %v765
  %v1151 = vpack.c.b16 %v773, %v766
  %v1152 = vpack.c.b16 %v774, %v767
  %v1153 = vpack.c.b16 %v775, %v768
  %v1154 = vpack.c.b16 %v776, %v769
  %v1155 = vpack.c.b16 %v777, %v770
  %v1156 = vpack.c.b16 %v778, %v771
  %v1157 = vpack.c.b16 %v786, %v779
  %v1158 = vpack.c.b16 %v787, %v780
  %v1159 = vpack.c.b16 %v788, %v781
  %v1160 = vpack.c.b16 %v789, %v782
  %v1161 = vpack.c.b16 %v790, %v783
  %v1162 = vpack.c.b16 %v791, %v784
  %v1163 = vpack.c.b16 %v792, %v785
  %v1164 = vpack.c.b16 %v800, %v793
  %v1165 = vpack.c.b16 %v801, %v794
  %v1166 = vpack.c.b16 %v802, %v795
  %v1167 = vpack.c.b16 %v803, %v796
  %v1168 = vpack.c.b16 %v804, %v797
  %v1169 = vpack.c.b16 %v805, %v798
  %v1170 = vpack.c.b16 %v806, %v799
  %v1171 = vpack.c.b16 %v814, %v807
  %v1172 = vpack.c.b16 %v815, %v808
  %v1173 = vpack.c.b16 %v816, %v809
  %v1174 = vpack.c.b16 %v817, %v810
  %v1175 = vpack.c.b16 %v818, %v811
  %v1176 = vpack.c.b16 %v819, %v812
  %v1177 = vpack.c.b16 %v820, %v813
  %v1178 = vpack.c.b16 %v828, %v821
  %v1179 = vpack.c.b16 %v829, %v822
  %v1180 = vpack.c.b16 %v830, %v823
  %v1181 = vpack.c.b16 %v831, %v824
  %v1182 = vpack.c.b16 %v832, %v825
  %v1183 = vpack.c.b16 %v833, %v826
  %v1184 = vpack.c.b16 %v834, %v827
  %v1185 = vpack.c.b16 %v842, %v835
  %v1186 = vpack.c.b16 %v843, %v836
  %v1187 = vpack.c.b16 %v844, %v837
  %v1188 = vpack.c.b16 %v845, %v838
  %v1189 = vpack.c.b16 %v846, %v839
  %v1190 = vpack.c.b16 %v847, %v840
  %v1191 = vpack.c.b16 %v848, %v841
  %v1192 = vpack.c.b16 %v856, %v849
  %v1193 = vpack.c.b16 %v857, %v850
  %v1194 = vpack.c.b16 %v858, %v851
  %v1195 = vpack.c.b16 %v859, %v852
  %v1196 = vpack.c.b16 %v860, %v853
  %v1197 = vpack.c.b16 %v861, %v854
  %v1198 = vpack.c.b16 %v862, %v855
  %v1199 = vpack.c.b16 %v870, %v863
  %v1200 = vpack.c.b16 %v871, %v864
  %v1201 = vpack.c.b16 %v872, %v865
  %v1202 = vpack.c.b16 %v873, %v866
  %v1203 = vpack.c.b16 %v874, %v867
  %v1204 = vpack.c.b16 %v875, %v868
  %v1205 = vpack.c.b16 %v876, %v869
  %v1206 = vpack.c.b16 %v884, %v877
  %v1207 = vpack.c.b16 %v885, %v878
  %v1208 = vpack.c.b16 %v886, %v879
  %v1209 = vpack.c.b16 %v887, %v880
  %v1210 = vpack.c.b16 %v888, %v881
  %v1211 = vpack.c.b16 %v889, %v882
  %v1212 = vpack.c.b16 %v890, %v883
  %v1213 = vpack.c.b16 %v898, %v891
  %v1214 = vpack.c.b16 %v899, %v892
  %v1215 = vpack.c.b16 %v900, %v893
  %v1216 = vpack.c.b16 %v901, %v894
  %v1217 = vpack.c.b16 %v902, %v895
  %v1218 = vpack.c.b16 %v903, %v896
  %v1219 = vpack.c.b16 %v904, %v897
  %v1220 = vpack.c.b16 %v912, %v905
  %v1221 = vpack.c.b16 %v913, %v906
  %v1222 = vpack.c.b16 %v914, %v907
  %v1223 = vpack.c.b16 %v915, %v908
  %v1224 = vpack.c.b16 %v916, %v909
  %v1225 = vpack.c.b16 %v917, %v910
  %v1226 = vpack.c.b16 %v918, %v911
  %v1227 = vpack.c.b16 %v926, %v919
  %v1228 = vpack.c.b16 %v927, %v920
  %v1229 = vpack.c.b16 %v928, %v921
  %v1230 = vpack.c.b16 %v929, %v922
  %v1231 = vpack.c.b16 %v930, %v923
  %v1232 = vpack.c.b16 %v931, %v924
  %v1233 = vpack.c.b16 %v932, %v925
  %v1234 = vpack.c.b16 %v940, %v933
  %v1235 = vpack.c.b16 %v941, %v934
  %v1236 = vpack.c.b16 %v942, %v935
  %v1237 = vpack.c.b16 %v943, %v936
  %v1238 = vpack.c.b16 %v944, %v937
  %v1239 = vpack.c.b16 %v945, %v938
  %v1240 = vpack.c.b16 %v946, %v939
  %v1241 = vpack.c.b16 %v954, %v947
  %v1242 = vpack.c.b16 %v955, %v948
  %v1243 = vpack.c.b16 %v956, %v949
  %v1244 = vpack.c.b16 %v957, %v950
  %v1245 = vpack.c.b16 %v958, %v951
  %v1246 = vpack.c.b16 %v959, %v952
  %v1247 = vpack.c.b16 %v960, %v953
  %v1248 = vpack.c.b16 %v968, %v961
  %v1249 = vpack.c.b16 %v969, %v962
  %v1250 = vpack.c.b16 %v970, %v963
  %v1251 = vpack.c.b16 %v971, %v964
  %v1252 = vpack.c.b16 %v972, %v965
  %v1253 = vpack.c.b16 %v973, %v966
  %v1254 = vpack.c.b16 %v974, %v967
  %v1255 = vpack.c.b16 %v982, %v975
  %v1256 = vpack.c.b16 %v983, %v976
  %v1257 = vpack.c.b16 %v984, %v977
  %v1258 = vpack.c.b16 %v985, %v978
  %v1259 = vpack.c.b16 %v986, %v979
  %v1260 = vpack.c.b16 %v987, %v980
  %v1261 = vpack.c.b16 %v988, %v981
  %v1262 = vpack.c.b16 %v996, %v989
  %v1263 = vpack.c.b16 %v997, %v990
  %v1264 = vpack.c.b16 %v998, %v991
  %v1265 = vpack.c.b16 %v999, %v992
  %v1266 = vpack.c.b16 %v1000, %v993
  %v1267 = vpack.c.b16 %v1001, %v994
  %v1268 = vpack.c.b16 %v1002, %v995
  %v1269 = vpack.c.b16 %v1010, %v1003
  %v1270 = vpack.c.b16 %v1011, %v1004
  %v1271 = vpack.c.b16 %v1012, %v1005
  %v1272 = vpack.c.b16 %v1013, %v1006
  %v1273 = vpack.c.b16 %v1014, %v1007
  %v1274 = vpack.c.b16 %v1015, %v1008
  %v1275 = vpack.c.b16 %v1016, %v1009
  %v1276 = vpack.c.b16 %v1024, %v1017
  %v1277 = vpack.c.b16 %v1025, %v1018
  %v1278 = vpack.c.b16 %v1026, %v1019
  %v1279 = vpack.c.b16 %v1027, %v1020
  %v1280 = vpack.c.b16 %v1028, %v1021
  %v1281 = vpack.c.b16 %v1029, %v1022
  %v1282 = vpack.c.b16 %v1030, %v1023
  %v1283 = vpack.c.b16 %v1038, %v1031
  %v1284 = vpack.c.b16 %v1039, %v1032
  %v1285 = vpack.c.b16 %v1040, %v1033
  %v1286 = vpack.c.b16 %v1041, %v1034
  %v1287 = vpack.c.b16 %v1042, %v1035
  %v1288 = vpack.c.b16 %v1043, %v1036
  %v1289 = vpack.c.b16 %v1044, %v1037
  %v1290 = vpack.c.b16 %v1052, %v1045
  %v1291 = vpack.c.b16 %v1053, %v1046
  %v1292 = vpack.c.b16 %v1054, %v1047
  %v1293 = vpack.c.b16 %v1055, %v1048
  %v1294 = vpack.c.b16 %v1056, %v1049
  %v1295 = vpack.c.b16 %v1057, %v1050
  %v1296 = vpack.c.b16 %v1058, %v1051
  %v1297 = vpack.c.b16 %v1066, %v1059
  %v1298 = vpack.c.b16 %v1067, %v1060
  %v1299 = vpack.c.b16 %v1068, %v1061
  %v1300 = vpack.c.b16 %v1069, %v1062
  %v1301 = vpack.c.b16 %v1070, %v1063
  %v1302 = vpack.c.b16 %v1071, %v1064
  %v1303 = vpack.c.b16 %v1072, %v1065
  %v1304 = vpack.c.b16 %v1080, %v1073
  %v1305 = vpack.c.b16 %v1081, %v1074
  %v1306 = vpack.c.b16 %v1082, %v1075
  %v1307 = vpack.c.b16 %v1083, %v1076
  %v1308 = vpack.c.b16 %v1084, %v1077
  %v1309 = vpack.c.b16 %v1085, %v1078
  %v1310 = vpack.c.b16 %v1086, %v1079
  %v1603 = vunpack.c.l.b16 %v283
  %v1604 = vunpack.c.l.b16 %v284
  %v1605 = vunpack.c.l.b16 %v285
  %v1606 = vunpack.c.l.b16 %v286
  %v1607 = vunpack.c.l.b16 %v287
  %v1608 = vunpack.c.l.b16 %v288
  %v1609 = vunpack.c.l.b16 %v289
  %v1610 = vunpack.c.l.b16 %v290
  %v1611 = vunpack.c.l.b16 %v291
  %v1612 = vunpack.c.l.b16 %v292
  %v1613 = vunpack.c.l.b16 %v293
  %v1614 = vunpack.c.l.b16 %v294
  %v1615 = vunpack.c.l.b16 %v295
  %v1616 = vunpack.c.l.b16 %v296
  %v1617 = vunpack.c.l.b16 %v297
  %v1618 = vunpack.c.l.b16 %v298
  %v1619 = vunpack.c.l.b16 %v299
  %v1620 = vunpack.c.l.b16 %v300
  %v1621 = vunpack.c.l.b16 %v301
  %v1622 = vunpack.c.l.b16 %v302
  %v1623 = vunpack.c.l.b16 %v303
  %v1624 = vunpack.c.l.b16 %v304
  %v1625 = vunpack.c.l.b16 %v305
  %v1626 = vunpack.c.l.b16 %v306
  %v1627 = vunpack.c.l.b16 %v307
  %v1628 = vunpack.c.l.b16 %v308
  %v1629 = vunpack.c.l.b16 %v309
  %v1630 = vunpack.c.l.b16 %v310
  %v1631 = vunpack.c.l.b16 %v311
  %v1632 = vunpack.c.l.b16 %v312
  %v1633 = vunpack.c.l.b16 %v313
  %v1634 = vunpack.c.l.b16 %v314
  %v1635 = vunpack.c.l.b16 %v315
  %v1636 = vunpack.c.l.b16 %v316
  %v1637 = vunpack.c.l.b16 %v317
  %v1638 = vunpack.c.l.b16 %v318
  %v1639 = vunpack.c.l.b16 %v319
  %v1640 = vunpack.c.l.b16 %v320
  %v1641 = vunpack.c.l.b16 %v321
  %v1642 = vunpack.c.l.b16 %v322
  %v1643 = vunpack.c.l.b16 %v323
  %v1644 = vunpack.c.l.b16 %v324
  %v1645 = vunpack.c.l.b16 %v325
  %v1646 = vunpack.c.l.b16 %v326
  %v1647 = vunpack.c.l.b16 %v327
  %v1648 = vunpack.c.l.b16 %v328
  %v1649 = vunpack.c.l.b16 %v329
  %v1650 = vunpack.c.l.b16 %v330
  %v1651 = vunpack.c.l.b16 %v331
  %v1652 = vunpack.c.l.b16 %v332
  %v1653 = vunpack.c.l.b16 %v333
  %v1654 = vunpack.c.l.b16 %v334
  %v1655 = vunpack.c.l.b16 %v335
  %v1656 = vunpack.c.l.b16 %v336
  %v1657 = vunpack.c.l.b16 %v337
  %v1658 = vunpack.c.l.b16 %v338
  %v1659 = vunpack.c.l.b16 %v339
  %v1660 = vunpack.c.l.b16 %v340
  %v1661 = vunpack.c.l.b16 %v341
  %v1662 = vunpack.c.l.b16 %v342
  %v1663 = vunpack.c.l.b16 %v343
  %v1664 = vunpack.c.l.b16 %v344
  %v1665 = vunpack.c.l.b16 %v345
  %v1666 = vunpack.c.l.b16 %v346
  %v1667 = vunpack.c.l.b16 %v347
  %v1668 = vunpack.c.l.b16 %v348
  %v1669 = vunpack.c.l.b16 %v349
  %v1670 = vunpack.c.l.b16 %v350
  %v1671 = vunpack.c.l.b16 %v351
  %v1672 = vunpack.c.l.b16 %v352
  %v1673 = vunpack.c.l.b16 %v353
  %v1674 = vunpack.c.l.b16 %v354
  %v1675 = vunpack.c.l.b16 %v355
  %v1676 = vunpack.c.l.b16 %v356
  %v1677 = vunpack.c.l.b16 %v357
  %v1678 = vunpack.c.l.b16 %v358
  %v1679 = vunpack.c.l.b16 %v359
  %v1680 = vunpack.c.l.b16 %v360
  %v1681 = vunpack.c.l.b16 %v361
  %v1682 = vunpack.c.l.b16 %v362
  %v1683 = vunpack.c.l.b16 %v363
  %v1684 = vunpack.c.l.b16 %v364
  %v1685 = vunpack.c.l.b16 %v365
  %v1686 = vunpack.c.l.b16 %v366
  %v1687 = vunpack.c.l.b16 %v367
  %v1688 = vunpack.c.l.b16 %v368
  %v1689 = vunpack.c.l.b16 %v369
  %v1690 = vunpack.c.l.b16 %v370
  %v1691 = vunpack.c.l.b16 %v371
  %v1692 = vunpack.c.l.b16 %v372
  %v1693 = vunpack.c.l.b16 %v373
  %v1694 = vunpack.c.l.b16 %v374
  %v1695 = vunpack.c.l.b16 %v375
  %v1696 = vunpack.c.l.b16 %v376
  %v1697 = vunpack.c.l.b16 %v377
  %v1698 = vunpack.c.l.b16 %v378
  %v1699 = vunpack.c.l.b16 %v379
  %v1700 = vunpack.c.l.b16 %v380
  %v1701 = vunpack.c.l.b16 %v381
  %v1702 = vunpack.c.l.b16 %v382
  %v1703 = vpack.c.b16 %v1604, %v1603
  %v1704 = vpack.c.b16 %v1606, %v1605
  %v1705 = vpack.c.b16 %v1608, %v1607
  %v1706 = vpack.c.b16 %v1610, %v1609
  %v1707 = vpack.c.b16 %v1612, %v1611
  %v1708 = vpack.c.b16 %v1614, %v1613
  %v1709 = vpack.c.b16 %v1616, %v1615
  %v1710 = vpack.c.b16 %v1618, %v1617
  %v1711 = vpack.c.b16 %v1620, %v1619
  %v1712 = vpack.c.b16 %v1622, %v1621
  %v1713 = vpack.c.b16 %v1624, %v1623
  %v1714 = vpack.c.b16 %v1626, %v1625
  %v1715 = vpack.c.b16 %v1628, %v1627
  %v1716 = vpack.c.b16 %v1630, %v1629
  %v1717 = vpack.c.b16 %v1632, %v1631
  %v1718 = vpack.c.b16 %v1634, %v1633
  %v1719 = vpack.c.b16 %v1636, %v1635
  %v1720 = vpack.c.b16 %v1638, %v1637
  %v1721 = vpack.c.b16 %v1640, %v1639
  %v1722 = vpack.c.b16 %v1642, %v1641
  %v1723 = vpack.c.b16 %v1644, %v1643
  %v1724 = vpack.c.b16 %v1646, %v1645
  %v1725 = vpack.c.b16 %v1648, %v1647
  %v1726 = vpack.c.b16 %v1650, %v1649
  %v1727 = vpack.c.b16 %v1652, %v1651
  %v1728 = vpack.c.b16 %v1654, %v1653
  %v1729 = vpack.c.b16 %v1656, %v1655
  %v1730 = vpack.c.b16 %v1658, %v1657
  %v1731 = vpack.c.b16 %v1660, %v1659
  %v1732 = vpack.c.b16 %v1662, %v1661
  %v1733 = vpack.c.b16 %v1664, %v1663
  %v1734 = vpack.c.b16 %v1666, %v1665
  %v1735 = vpack.c.b16 %v1668, %v1667
  %v1736 = vpack.c.b16 %v1670, %v1669
  %v1737 = vpack.c.b16 %v1672, %v1671
  %v1738 = vpack.c.b16 %v1674, %v1673
  %v1739 = vpack.c.b16 %v1676, %v1675
  %v1740 = vpack.c.b16 %v1678, %v1677
  %v1741 = vpack.c.b16 %v1680, %v1679
  %v1742 = vpack.c.b16 %v1682, %v1681
  %v1743 = vpack.c.b16 %v1684, %v1683
  %v1744 = vpack.c.b16 %v1686, %v1685
  %v1745 = vpack.c.b16 %v1688, %v1687
  %v1746 = vpack.c.b16 %v1690, %v1689
  %v1747 = vpack.c.b16 %v1692, %v1691
  %v1748 = vpack.c.b16 %v1694, %v1693
  %v1749 = vpack.c.b16 %v1696, %v1695
  %v1750 = vpack.c.b16 %v1698, %v1697
  %v1751 = vpack.c.b16 %v1700, %v1699
  %v1752 = vpack.c.b16 %v1702, %v1701
  %vm1803 = vcmask 261120
  %v1805 = vsel %vm1803, %v1093, 0
  %v1808 = vsel %vm1803, %v1100, 0
  %v1811 = vsel %vm1803, %v1107, 0
  %v1814 = vsel %vm1803, %v1114, 0
  %v1817 = vsel %vm1803, %v1121, 0
  %v1820 = vsel %vm1803, %v1128, 0
  %v1823 = vsel %vm1803, %v1135, 0
  %v1826 = vsel %vm1803, %v1142, 0
  %v1829 = vsel %vm1803, %v1149, 0
  %v1832 = vsel %vm1803, %v1156, 0
  %v1835 = vsel %vm1803, %v1163, 0
  %v1838 = vsel %vm1803, %v1170, 0
  %v1841 = vsel %vm1803, %v1177, 0
  %v1844 = vsel %vm1803, %v1184, 0
  %v1847 = vsel %vm1803, %v1191, 0
  %v1850 = vsel %vm1803, %v1198, 0
  %v1853 = vsel %vm1803, %v1205, 0
  %v1856 = vsel %vm1803, %v1212, 0
  %v1859 = vsel %vm1803, %v1219, 0
  %v1862 = vsel %vm1803, %v1226, 0
  %v1865 = vsel %vm1803, %v1233, 0
  %v1868 = vsel %vm1803, %v1240, 0
  %v1871 = vsel %vm1803, %v1247, 0
  %v1874 = vsel %vm1803, %v1254, 0
  %v1877 = vsel %vm1803, %v1261, 0
  %v1880 = vsel %vm1803, %v1268, 0
  %v1883 = vsel %vm1803, %v1275, 0
  %v1886 = vsel %vm1803, %v1282, 0
  %v1889 = vsel %vm1803, %v1289, 0
  %v1892 = vsel %vm1803, %v1296, 0
  %v1895 = vsel %vm1803, %v1303, 0
  %v1898 = vsel %vm1803, %v1310, 0
  %1900 = vmatpush.bf16.msra.mxu0 %v1710
  %1901 = vmatpush.bf16.msra.mxu0 %v1709
  %1902 = vmatpush.bf16.msra.mxu0 %v1708
  %1903 = vmatpush.bf16.msra.mxu0 %v1707
  %1904 = vmatpush.bf16.msra.mxu0 %v1706
  %1905 = vmatpush.bf16.msra.mxu0 %v1705
  %1906 = vmatpush.bf16.msra.mxu0 %v1704
  %1907 = vmatpush.bf16.msra.mxu0 %v1703
  %1908 = vmatmul.bf16.gmra.mxu0 %v1087
  %v1909 = vpop.f32.mrf.mxu0
  %v1910 = vadd.f32 0.0, %v1909
  %v1911 = vpop.f32.mrf.mxu0
  %v1912 = vadd.f32 0.0, %v1911
  %1913 = vmatmul.bf16.gmra.mxu0 %v1094
  %v1914 = vpop.f32.mrf.mxu0
  %v1915 = vadd.f32 0.0, %v1914
  %v1916 = vpop.f32.mrf.mxu0
  %v1917 = vadd.f32 0.0, %v1916
  %1918 = vmatmul.bf16.gmra.mxu0 %v1101
  %v1919 = vpop.f32.mrf.mxu0
  %v1920 = vadd.f32 0.0, %v1919
  %v1921 = vpop.f32.mrf.mxu0
  %v1922 = vadd.f32 0.0, %v1921
  %1923 = vmatmul.bf16.gmra.mxu0 %v1108
  %v1924 = vpop.f32.mrf.mxu0
  %v1925 = vadd.f32 0.0, %v1924
  %v1926 = vpop.f32.mrf.mxu0
  %v1927 = vadd.f32 0.0, %v1926
  %1928 = vmatmul.bf16.gmra.mxu0 %v1115
  %v1929 = vpop.f32.mrf.mxu0
  %v1930 = vadd.f32 0.0, %v1929
  %v1931 = vpop.f32.mrf.mxu0
  %v1932 = vadd.f32 0.0, %v1931
  %1933 = vmatmul.bf16.gmra.mxu0 %v1122
  %v1934 = vpop.f32.mrf.mxu0
  %v1935 = vadd.f32 0.0, %v1934
  %v1936 = vpop.f32.mrf.mxu0
  %v1937 = vadd.f32 0.0, %v1936
  %1938 = vmatmul.bf16.gmra.mxu0 %v1129
  %v1939 = vpop.f32.mrf.mxu0
  %v1940 = vadd.f32 0.0, %v1939
  %v1941 = vpop.f32.mrf.mxu0
  %v1942 = vadd.f32 0.0, %v1941
  %1943 = vmatmul.bf16.gmra.mxu0 %v1136
  %v1944 = vpop.f32.mrf.mxu0
  %v1945 = vadd.f32 0.0, %v1944
  %v1946 = vpop.f32.mrf.mxu0
  %v1947 = vadd.f32 0.0, %v1946
  %1948 = vmatmul.bf16.gmra.mxu0 %v1143
  %v1949 = vpop.f32.mrf.mxu0
  %v1950 = vadd.f32 0.0, %v1949
  %v1951 = vpop.f32.mrf.mxu0
  %v1952 = vadd.f32 0.0, %v1951
  %1953 = vmatmul.bf16.gmra.mxu0 %v1150
  %v1954 = vpop.f32.mrf.mxu0
  %v1955 = vadd.f32 0.0, %v1954
  %v1956 = vpop.f32.mrf.mxu0
  %v1957 = vadd.f32 0.0, %v1956
  %1958 = vmatmul.bf16.gmra.mxu0 %v1157
  %v1959 = vpop.f32.mrf.mxu0
  %v1960 = vadd.f32 0.0, %v1959
  %v1961 = vpop.f32.mrf.mxu0
  %v1962 = vadd.f32 0.0, %v1961
  %1963 = vmatmul.bf16.gmra.mxu0 %v1164
  %v1964 = vpop.f32.mrf.mxu0
  %v1965 = vadd.f32 0.0, %v1964
  %v1966 = vpop.f32.mrf.mxu0
  %v1967 = vadd.f32 0.0, %v1966
  %1968 = vmatmul.bf16.gmra.mxu0 %v1171
  %v1969 = vpop.f32.mrf.mxu0
  %v1970 = vadd.f32 0.0, %v1969
  %v1971 = vpop.f32.mrf.mxu0
  %v1972 = vadd.f32 0.0, %v1971
  %1973 = vmatmul.bf16.gmra.mxu0 %v1178
  %v1974 = vpop.f32.mrf.mxu0
  %v1975 = vadd.f32 0.0, %v1974
  %v1976 = vpop.f32.mrf.mxu0
  %v1977 = vadd.f32 0.0, %v1976
  %1978 = vmatmul.bf16.gmra.mxu0 %v1185
  %v1979 = vpop.f32.mrf.mxu0
  %v1980 = vadd.f32 0.0, %v1979
  %v1981 = vpop.f32.mrf.mxu0
  %v1982 = vadd.f32 0.0, %v1981
  %1983 = vmatmul.bf16.gmra.mxu0 %v1192
  %v1984 = vpop.f32.mrf.mxu0
  %v1985 = vadd.f32 0.0, %v1984
  %v1986 = vpop.f32.mrf.mxu0
  %v1987 = vadd.f32 0.0, %v1986
  %1988 = vmatmul.bf16.gmra.mxu0 %v1199
  %v1989 = vpop.f32.mrf.mxu0
  %v1990 = vadd.f32 0.0, %v1989
  %v1991 = vpop.f32.mrf.mxu0
  %v1992 = vadd.f32 0.0, %v1991
  %1993 = vmatmul.bf16.gmra.mxu0 %v1206
  %v1994 = vpop.f32.mrf.mxu0
  %v1995 = vadd.f32 0.0, %v1994
  %v1996 = vpop.f32.mrf.mxu0
  %v1997 = vadd.f32 0.0, %v1996
  %1998 = vmatmul.bf16.gmra.mxu0 %v1213
  %v1999 = vpop.f32.mrf.mxu0
  %v2000 = vadd.f32 0.0, %v1999
  %v2001 = vpop.f32.mrf.mxu0
  %v2002 = vadd.f32 0.0, %v2001
  %2003 = vmatmul.bf16.gmra.mxu0 %v1220
  %v2004 = vpop.f32.mrf.mxu0
  %v2005 = vadd.f32 0.0, %v2004
  %v2006 = vpop.f32.mrf.mxu0
  %v2007 = vadd.f32 0.0, %v2006
  %2008 = vmatmul.bf16.gmra.mxu0 %v1227
  %v2009 = vpop.f32.mrf.mxu0
  %v2010 = vadd.f32 0.0, %v2009
  %v2011 = vpop.f32.mrf.mxu0
  %v2012 = vadd.f32 0.0, %v2011
  %2013 = vmatmul.bf16.gmra.mxu0 %v1234
  %v2014 = vpop.f32.mrf.mxu0
  %v2015 = vadd.f32 0.0, %v2014
  %v2016 = vpop.f32.mrf.mxu0
  %v2017 = vadd.f32 0.0, %v2016
  %2018 = vmatmul.bf16.gmra.mxu0 %v1241
  %v2019 = vpop.f32.mrf.mxu0
  %v2020 = vadd.f32 0.0, %v2019
  %v2021 = vpop.f32.mrf.mxu0
  %v2022 = vadd.f32 0.0, %v2021
  %2023 = vmatmul.bf16.gmra.mxu0 %v1248
  %v2024 = vpop.f32.mrf.mxu0
  %v2025 = vadd.f32 0.0, %v2024
  %v2026 = vpop.f32.mrf.mxu0
  %v2027 = vadd.f32 0.0, %v2026
  %2028 = vmatmul.bf16.gmra.mxu0 %v1255
  %v2029 = vpop.f32.mrf.mxu0
  %v2030 = vadd.f32 0.0, %v2029
  %v2031 = vpop.f32.mrf.mxu0
  %v2032 = vadd.f32 0.0, %v2031
  %2033 = vmatmul.bf16.gmra.mxu0 %v1262
  %v2034 = vpop.f32.mrf.mxu0
  %v2035 = vadd.f32 0.0, %v2034
  %v2036 = vpop.f32.mrf.mxu0
  %v2037 = vadd.f32 0.0, %v2036
  %2038 = vmatmul.bf16.gmra.mxu0 %v1269
  %v2039 = vpop.f32.mrf.mxu0
  %v2040 = vadd.f32 0.0, %v2039
  %v2041 = vpop.f32.mrf.mxu0
  %v2042 = vadd.f32 0.0, %v2041
  %2043 = vmatmul.bf16.gmra.mxu0 %v1276
  %v2044 = vpop.f32.mrf.mxu0
  %v2045 = vadd.f32 0.0, %v2044
  %v2046 = vpop.f32.mrf.mxu0
  %v2047 = vadd.f32 0.0, %v2046
  %2048 = vmatmul.bf16.gmra.mxu0 %v1283
  %v2049 = vpop.f32.mrf.mxu0
  %v2050 = vadd.f32 0.0, %v2049
  %v2051 = vpop.f32.mrf.mxu0
  %v2052 = vadd.f32 0.0, %v2051
  %2053 = vmatmul.bf16.gmra.mxu0 %v1290
  %v2054 = vpop.f32.mrf.mxu0
  %v2055 = vadd.f32 0.0, %v2054
  %v2056 = vpop.f32.mrf.mxu0
  %v2057 = vadd.f32 0.0, %v2056
  %2058 = vmatmul.bf16.gmra.mxu0 %v1297
  %v2059 = vpop.f32.mrf.mxu0
  %v2060 = vadd.f32 0.0, %v2059
  %v2061 = vpop.f32.mrf.mxu0
  %v2062 = vadd.f32 0.0, %v2061
  %2063 = vmatmul.bf16.gmra.mxu0 %v1304
  %v2064 = vpop.f32.mrf.mxu0
  %v2065 = vadd.f32 0.0, %v2064
  %v2066 = vpop.f32.mrf.mxu0
  %v2067 = vadd.f32 0.0, %v2066
  %2068 = vdwg.mxu0
  %2069 = vmatpush.bf16.msra.mxu0 %v1718
  %2070 = vmatpush.bf16.msra.mxu0 %v1717
  %2071 = vmatpush.bf16.msra.mxu0 %v1716
  %2072 = vmatpush.bf16.msra.mxu0 %v1715
  %2073 = vmatpush.bf16.msra.mxu0 %v1714
  %2074 = vmatpush.bf16.msra.mxu0 %v1713
  %2075 = vmatpush.bf16.msra.mxu0 %v1712
  %2076 = vmatpush.bf16.msra.mxu0 %v1711
  %2077 = vmatmul.bf16.gmra.mxu0 %v1088
  %v2078 = vpop.f32.mrf.mxu0
  %v2079 = vadd.f32 %v1910, %v2078
  %v2080 = vpop.f32.mrf.mxu0
  %v2081 = vadd.f32 %v1912, %v2080
  %2082 = vmatmul.bf16.gmra.mxu0 %v1095
  %v2083 = vpop.f32.mrf.mxu0
  %v2084 = vadd.f32 %v1915, %v2083
  %v2085 = vpop.f32.mrf.mxu0
  %v2086 = vadd.f32 %v1917, %v2085
  %2087 = vmatmul.bf16.gmra.mxu0 %v1102
  %v2088 = vpop.f32.mrf.mxu0
  %v2089 = vadd.f32 %v1920, %v2088
  %v2090 = vpop.f32.mrf.mxu0
  %v2091 = vadd.f32 %v1922, %v2090
  %2092 = vmatmul.bf16.gmra.mxu0 %v1109
  %v2093 = vpop.f32.mrf.mxu0
  %v2094 = vadd.f32 %v1925, %v2093
  %v2095 = vpop.f32.mrf.mxu0
  %v2096 = vadd.f32 %v1927, %v2095
  %2097 = vmatmul.bf16.gmra.mxu0 %v1116
  %v2098 = vpop.f32.mrf.mxu0
  %v2099 = vadd.f32 %v1930, %v2098
  %v2100 = vpop.f32.mrf.mxu0
  %v2101 = vadd.f32 %v1932, %v2100
  %2102 = vmatmul.bf16.gmra.mxu0 %v1123
  %v2103 = vpop.f32.mrf.mxu0
  %v2104 = vadd.f32 %v1935, %v2103
  %v2105 = vpop.f32.mrf.mxu0
  %v2106 = vadd.f32 %v1937, %v2105
  %2107 = vmatmul.bf16.gmra.mxu0 %v1130
  %v2108 = vpop.f32.mrf.mxu0
  %v2109 = vadd.f32 %v1940, %v2108
  %v2110 = vpop.f32.mrf.mxu0
  %v2111 = vadd.f32 %v1942, %v2110
  %2112 = vmatmul.bf16.gmra.mxu0 %v1137
  %v2113 = vpop.f32.mrf.mxu0
  %v2114 = vadd.f32 %v1945, %v2113
  %v2115 = vpop.f32.mrf.mxu0
  %v2116 = vadd.f32 %v1947, %v2115
  %2117 = vmatmul.bf16.gmra.mxu0 %v1144
  %v2118 = vpop.f32.mrf.mxu0
  %v2119 = vadd.f32 %v1950, %v2118
  %v2120 = vpop.f32.mrf.mxu0
  %v2121 = vadd.f32 %v1952, %v2120
  %2122 = vmatmul.bf16.gmra.mxu0 %v1151
  %v2123 = vpop.f32.mrf.mxu0
  %v2124 = vadd.f32 %v1955, %v2123
  %v2125 = vpop.f32.mrf.mxu0
  %v2126 = vadd.f32 %v1957, %v2125
  %2127 = vmatmul.bf16.gmra.mxu0 %v1158
  %v2128 = vpop.f32.mrf.mxu0
  %v2129 = vadd.f32 %v1960, %v2128
  %v2130 = vpop.f32.mrf.mxu0
  %v2131 = vadd.f32 %v1962, %v2130
  %2132 = vmatmul.bf16.gmra.mxu0 %v1165
  %v2133 = vpop.f32.mrf.mxu0
  %v2134 = vadd.f32 %v1965, %v2133
  %v2135 = vpop.f32.mrf.mxu0
  %v2136 = vadd.f32 %v1967, %v2135
  %2137 = vmatmul.bf16.gmra.mxu0 %v1172
  %v2138 = vpop.f32.mrf.mxu0
  %v2139 = vadd.f32 %v1970, %v2138
  %v2140 = vpop.f32.mrf.mxu0
  %v2141 = vadd.f32 %v1972, %v2140
  %2142 = vmatmul.bf16.gmra.mxu0 %v1179
  %v2143 = vpop.f32.mrf.mxu0
  %v2144 = vadd.f32 %v1975, %v2143
  %v2145 = vpop.f32.mrf.mxu0
  %v2146 = vadd.f32 %v1977, %v2145
  %2147 = vmatmul.bf16.gmra.mxu0 %v1186
  %v2148 = vpop.f32.mrf.mxu0
  %v2149 = vadd.f32 %v1980, %v2148
  %v2150 = vpop.f32.mrf.mxu0
  %v2151 = vadd.f32 %v1982, %v2150
  %2152 = vmatmul.bf16.gmra.mxu0 %v1193
  %v2153 = vpop.f32.mrf.mxu0
  %v2154 = vadd.f32 %v1985, %v2153
  %v2155 = vpop.f32.mrf.mxu0
  %v2156 = vadd.f32 %v1987, %v2155
  %2157 = vmatmul.bf16.gmra.mxu0 %v1200
  %v2158 = vpop.f32.mrf.mxu0
  %v2159 = vadd.f32 %v1990, %v2158
  %v2160 = vpop.f32.mrf.mxu0
  %v2161 = vadd.f32 %v1992, %v2160
  %2162 = vmatmul.bf16.gmra.mxu0 %v1207
  %v2163 = vpop.f32.mrf.mxu0
  %v2164 = vadd.f32 %v1995, %v2163
  %v2165 = vpop.f32.mrf.mxu0
  %v2166 = vadd.f32 %v1997, %v2165
  %2167 = vmatmul.bf16.gmra.mxu0 %v1214
  %v2168 = vpop.f32.mrf.mxu0
  %v2169 = vadd.f32 %v2000, %v2168
  %v2170 = vpop.f32.mrf.mxu0
  %v2171 = vadd.f32 %v2002, %v2170
  %2172 = vmatmul.bf16.gmra.mxu0 %v1221
  %v2173 = vpop.f32.mrf.mxu0
  %v2174 = vadd.f32 %v2005, %v2173
  %v2175 = vpop.f32.mrf.mxu0
  %v2176 = vadd.f32 %v2007, %v2175
  %2177 = vmatmul.bf16.gmra.mxu0 %v1228
  %v2178 = vpop.f32.mrf.mxu0
  %v2179 = vadd.f32 %v2010, %v2178
  %v2180 = vpop.f32.mrf.mxu0
  %v2181 = vadd.f32 %v2012, %v2180
  %2182 = vmatmul.bf16.gmra.mxu0 %v1235
  %v2183 = vpop.f32.mrf.mxu0
  %v2184 = vadd.f32 %v2015, %v2183
  %v2185 = vpop.f32.mrf.mxu0
  %v2186 = vadd.f32 %v2017, %v2185
  %2187 = vmatmul.bf16.gmra.mxu0 %v1242
  %v2188 = vpop.f32.mrf.mxu0
  %v2189 = vadd.f32 %v2020, %v2188
  %v2190 = vpop.f32.mrf.mxu0
  %v2191 = vadd.f32 %v2022, %v2190
  %2192 = vmatmul.bf16.gmra.mxu0 %v1249
  %v2193 = vpop.f32.mrf.mxu0
  %v2194 = vadd.f32 %v2025, %v2193
  %v2195 = vpop.f32.mrf.mxu0
  %v2196 = vadd.f32 %v2027, %v2195
  %2197 = vmatmul.bf16.gmra.mxu0 %v1256
  %v2198 = vpop.f32.mrf.mxu0
  %v2199 = vadd.f32 %v2030, %v2198
  %v2200 = vpop.f32.mrf.mxu0
  %v2201 = vadd.f32 %v2032, %v2200
  %2202 = vmatmul.bf16.gmra.mxu0 %v1263
  %v2203 = vpop.f32.mrf.mxu0
  %v2204 = vadd.f32 %v2035, %v2203
  %v2205 = vpop.f32.mrf.mxu0
  %v2206 = vadd.f32 %v2037, %v2205
  %2207 = vmatmul.bf16.gmra.mxu0 %v1270
  %v2208 = vpop.f32.mrf.mxu0
  %v2209 = vadd.f32 %v2040, %v2208
  %v2210 = vpop.f32.mrf.mxu0
  %v2211 = vadd.f32 %v2042, %v2210
  %2212 = vmatmul.bf16.gmra.mxu0 %v1277
  %v2213 = vpop.f32.mrf.mxu0
  %v2214 = vadd.f32 %v2045, %v2213
  %v2215 = vpop.f32.mrf.mxu0
  %v2216 = vadd.f32 %v2047, %v2215
  %2217 = vmatmul.bf16.gmra.mxu0 %v1284
  %v2218 = vpop.f32.mrf.mxu0
  %v2219 = vadd.f32 %v2050, %v2218
  %v2220 = vpop.f32.mrf.mxu0
  %v2221 = vadd.f32 %v2052, %v2220
  %2222 = vmatmul.bf16.gmra.mxu0 %v1291
  %v2223 = vpop.f32.mrf.mxu0
  %v2224 = vadd.f32 %v2055, %v2223
  %v2225 = vpop.f32.mrf.mxu0
  %v2226 = vadd.f32 %v2057, %v2225
  %2227 = vmatmul.bf16.gmra.mxu0 %v1298
  %v2228 = vpop.f32.mrf.mxu0
  %v2229 = vadd.f32 %v2060, %v2228
  %v2230 = vpop.f32.mrf.mxu0
  %v2231 = vadd.f32 %v2062, %v2230
  %2232 = vmatmul.bf16.gmra.mxu0 %v1305
  %v2233 = vpop.f32.mrf.mxu0
  %v2234 = vadd.f32 %v2065, %v2233
  %v2235 = vpop.f32.mrf.mxu0
  %v2236 = vadd.f32 %v2067, %v2235
  %2237 = vdwg.mxu0
  %2238 = vmatpush.bf16.msra.mxu0 %v1726
  %2239 = vmatpush.bf16.msra.mxu0 %v1725
  %2240 = vmatpush.bf16.msra.mxu0 %v1724
  %2241 = vmatpush.bf16.msra.mxu0 %v1723
  %2242 = vmatpush.bf16.msra.mxu0 %v1722
  %2243 = vmatpush.bf16.msra.mxu0 %v1721
  %2244 = vmatpush.bf16.msra.mxu0 %v1720
  %2245 = vmatpush.bf16.msra.mxu0 %v1719
  %2246 = vmatmul.bf16.gmra.mxu0 %v1089
  %v2247 = vpop.f32.mrf.mxu0
  %v2248 = vadd.f32 %v2079, %v2247
  %v2249 = vpop.f32.mrf.mxu0
  %v2250 = vadd.f32 %v2081, %v2249
  %2251 = vmatmul.bf16.gmra.mxu0 %v1096
  %v2252 = vpop.f32.mrf.mxu0
  %v2253 = vadd.f32 %v2084, %v2252
  %v2254 = vpop.f32.mrf.mxu0
  %v2255 = vadd.f32 %v2086, %v2254
  %2256 = vmatmul.bf16.gmra.mxu0 %v1103
  %v2257 = vpop.f32.mrf.mxu0
  %v2258 = vadd.f32 %v2089, %v2257
  %v2259 = vpop.f32.mrf.mxu0
  %v2260 = vadd.f32 %v2091, %v2259
  %2261 = vmatmul.bf16.gmra.mxu0 %v1110
  %v2262 = vpop.f32.mrf.mxu0
  %v2263 = vadd.f32 %v2094, %v2262
  %v2264 = vpop.f32.mrf.mxu0
  %v2265 = vadd.f32 %v2096, %v2264
  %2266 = vmatmul.bf16.gmra.mxu0 %v1117
  %v2267 = vpop.f32.mrf.mxu0
  %v2268 = vadd.f32 %v2099, %v2267
  %v2269 = vpop.f32.mrf.mxu0
  %v2270 = vadd.f32 %v2101, %v2269
  %2271 = vmatmul.bf16.gmra.mxu0 %v1124
  %v2272 = vpop.f32.mrf.mxu0
  %v2273 = vadd.f32 %v2104, %v2272
  %v2274 = vpop.f32.mrf.mxu0
  %v2275 = vadd.f32 %v2106, %v2274
  %2276 = vmatmul.bf16.gmra.mxu0 %v1131
  %v2277 = vpop.f32.mrf.mxu0
  %v2278 = vadd.f32 %v2109, %v2277
  %v2279 = vpop.f32.mrf.mxu0
  %v2280 = vadd.f32 %v2111, %v2279
  %2281 = vmatmul.bf16.gmra.mxu0 %v1138
  %v2282 = vpop.f32.mrf.mxu0
  %v2283 = vadd.f32 %v2114, %v2282
  %v2284 = vpop.f32.mrf.mxu0
  %v2285 = vadd.f32 %v2116, %v2284
  %2286 = vmatmul.bf16.gmra.mxu0 %v1145
  %v2287 = vpop.f32.mrf.mxu0
  %v2288 = vadd.f32 %v2119, %v2287
  %v2289 = vpop.f32.mrf.mxu0
  %v2290 = vadd.f32 %v2121, %v2289
  %2291 = vmatmul.bf16.gmra.mxu0 %v1152
  %v2292 = vpop.f32.mrf.mxu0
  %v2293 = vadd.f32 %v2124, %v2292
  %v2294 = vpop.f32.mrf.mxu0
  %v2295 = vadd.f32 %v2126, %v2294
  %2296 = vmatmul.bf16.gmra.mxu0 %v1159
  %v2297 = vpop.f32.mrf.mxu0
  %v2298 = vadd.f32 %v2129, %v2297
  %v2299 = vpop.f32.mrf.mxu0
  %v2300 = vadd.f32 %v2131, %v2299
  %2301 = vmatmul.bf16.gmra.mxu0 %v1166
  %v2302 = vpop.f32.mrf.mxu0
  %v2303 = vadd.f32 %v2134, %v2302
  %v2304 = vpop.f32.mrf.mxu0
  %v2305 = vadd.f32 %v2136, %v2304
  %2306 = vmatmul.bf16.gmra.mxu0 %v1173
  %v2307 = vpop.f32.mrf.mxu0
  %v2308 = vadd.f32 %v2139, %v2307
  %v2309 = vpop.f32.mrf.mxu0
  %v2310 = vadd.f32 %v2141, %v2309
  %2311 = vmatmul.bf16.gmra.mxu0 %v1180
  %v2312 = vpop.f32.mrf.mxu0
  %v2313 = vadd.f32 %v2144, %v2312
  %v2314 = vpop.f32.mrf.mxu0
  %v2315 = vadd.f32 %v2146, %v2314
  %2316 = vmatmul.bf16.gmra.mxu0 %v1187
  %v2317 = vpop.f32.mrf.mxu0
  %v2318 = vadd.f32 %v2149, %v2317
  %v2319 = vpop.f32.mrf.mxu0
  %v2320 = vadd.f32 %v2151, %v2319
  %2321 = vmatmul.bf16.gmra.mxu0 %v1194
  %v2322 = vpop.f32.mrf.mxu0
  %v2323 = vadd.f32 %v2154, %v2322
  %v2324 = vpop.f32.mrf.mxu0
  %v2325 = vadd.f32 %v2156, %v2324
  %2326 = vmatmul.bf16.gmra.mxu0 %v1201
  %v2327 = vpop.f32.mrf.mxu0
  %v2328 = vadd.f32 %v2159, %v2327
  %v2329 = vpop.f32.mrf.mxu0
  %v2330 = vadd.f32 %v2161, %v2329
  %2331 = vmatmul.bf16.gmra.mxu0 %v1208
  %v2332 = vpop.f32.mrf.mxu0
  %v2333 = vadd.f32 %v2164, %v2332
  %v2334 = vpop.f32.mrf.mxu0
  %v2335 = vadd.f32 %v2166, %v2334
  %2336 = vmatmul.bf16.gmra.mxu0 %v1215
  %v2337 = vpop.f32.mrf.mxu0
  %v2338 = vadd.f32 %v2169, %v2337
  %v2339 = vpop.f32.mrf.mxu0
  %v2340 = vadd.f32 %v2171, %v2339
  %2341 = vmatmul.bf16.gmra.mxu0 %v1222
  %v2342 = vpop.f32.mrf.mxu0
  %v2343 = vadd.f32 %v2174, %v2342
  %v2344 = vpop.f32.mrf.mxu0
  %v2345 = vadd.f32 %v2176, %v2344
  %2346 = vmatmul.bf16.gmra.mxu0 %v1229
  %v2347 = vpop.f32.mrf.mxu0
  %v2348 = vadd.f32 %v2179, %v2347
  %v2349 = vpop.f32.mrf.mxu0
  %v2350 = vadd.f32 %v2181, %v2349
  %2351 = vmatmul.bf16.gmra.mxu0 %v1236
  %v2352 = vpop.f32.mrf.mxu0
  %v2353 = vadd.f32 %v2184, %v2352
  %v2354 = vpop.f32.mrf.mxu0
  %v2355 = vadd.f32 %v2186, %v2354
  %2356 = vmatmul.bf16.gmra.mxu0 %v1243
  %v2357 = vpop.f32.mrf.mxu0
  %v2358 = vadd.f32 %v2189, %v2357
  %v2359 = vpop.f32.mrf.mxu0
  %v2360 = vadd.f32 %v2191, %v2359
  %2361 = vmatmul.bf16.gmra.mxu0 %v1250
  %v2362 = vpop.f32.mrf.mxu0
  %v2363 = vadd.f32 %v2194, %v2362
  %v2364 = vpop.f32.mrf.mxu0
  %v2365 = vadd.f32 %v2196, %v2364
  %2366 = vmatmul.bf16.gmra.mxu0 %v1257
  %v2367 = vpop.f32.mrf.mxu0
  %v2368 = vadd.f32 %v2199, %v2367
  %v2369 = vpop.f32.mrf.mxu0
  %v2370 = vadd.f32 %v2201, %v2369
  %2371 = vmatmul.bf16.gmra.mxu0 %v1264
  %v2372 = vpop.f32.mrf.mxu0
  %v2373 = vadd.f32 %v2204, %v2372
  %v2374 = vpop.f32.mrf.mxu0
  %v2375 = vadd.f32 %v2206, %v2374
  %2376 = vmatmul.bf16.gmra.mxu0 %v1271
  %v2377 = vpop.f32.mrf.mxu0
  %v2378 = vadd.f32 %v2209, %v2377
  %v2379 = vpop.f32.mrf.mxu0
  %v2380 = vadd.f32 %v2211, %v2379
  %2381 = vmatmul.bf16.gmra.mxu0 %v1278
  %v2382 = vpop.f32.mrf.mxu0
  %v2383 = vadd.f32 %v2214, %v2382
  %v2384 = vpop.f32.mrf.mxu0
  %v2385 = vadd.f32 %v2216, %v2384
  %2386 = vmatmul.bf16.gmra.mxu0 %v1285
  %v2387 = vpop.f32.mrf.mxu0
  %v2388 = vadd.f32 %v2219, %v2387
  %v2389 = vpop.f32.mrf.mxu0
  %v2390 = vadd.f32 %v2221, %v2389
  %2391 = vmatmul.bf16.gmra.mxu0 %v1292
  %v2392 = vpop.f32.mrf.mxu0
  %v2393 = vadd.f32 %v2224, %v2392
  %v2394 = vpop.f32.mrf.mxu0
  %v2395 = vadd.f32 %v2226, %v2394
  %2396 = vmatmul.bf16.gmra.mxu0 %v1299
  %v2397 = vpop.f32.mrf.mxu0
  %v2398 = vadd.f32 %v2229, %v2397
  %v2399 = vpop.f32.mrf.mxu0
  %v2400 = vadd.f32 %v2231, %v2399
  %2401 = vmatmul.bf16.gmra.mxu0 %v1306
  %v2402 = vpop.f32.mrf.mxu0
  %v2403 = vadd.f32 %v2234, %v2402
  %v2404 = vpop.f32.mrf.mxu0
  %v2405 = vadd.f32 %v2236, %v2404
  %2406 = vdwg.mxu0
  %2407 = vmatpush.bf16.msra.mxu0 %v1734
  %2408 = vmatpush.bf16.msra.mxu0 %v1733
  %2409 = vmatpush.bf16.msra.mxu0 %v1732
  %2410 = vmatpush.bf16.msra.mxu0 %v1731
  %2411 = vmatpush.bf16.msra.mxu0 %v1730
  %2412 = vmatpush.bf16.msra.mxu0 %v1729
  %2413 = vmatpush.bf16.msra.mxu0 %v1728
  %2414 = vmatpush.bf16.msra.mxu0 %v1727
  %2415 = vmatmul.bf16.gmra.mxu0 %v1090
  %v2416 = vpop.f32.mrf.mxu0
  %v2417 = vadd.f32 %v2248, %v2416
  %v2418 = vpop.f32.mrf.mxu0
  %v2419 = vadd.f32 %v2250, %v2418
  %2420 = vmatmul.bf16.gmra.mxu0 %v1097
  %v2421 = vpop.f32.mrf.mxu0
  %v2422 = vadd.f32 %v2253, %v2421
  %v2423 = vpop.f32.mrf.mxu0
  %v2424 = vadd.f32 %v2255, %v2423
  %2425 = vmatmul.bf16.gmra.mxu0 %v1104
  %v2426 = vpop.f32.mrf.mxu0
  %v2427 = vadd.f32 %v2258, %v2426
  %v2428 = vpop.f32.mrf.mxu0
  %v2429 = vadd.f32 %v2260, %v2428
  %2430 = vmatmul.bf16.gmra.mxu0 %v1111
  %v2431 = vpop.f32.mrf.mxu0
  %v2432 = vadd.f32 %v2263, %v2431
  %v2433 = vpop.f32.mrf.mxu0
  %v2434 = vadd.f32 %v2265, %v2433
  %2435 = vmatmul.bf16.gmra.mxu0 %v1118
  %v2436 = vpop.f32.mrf.mxu0
  %v2437 = vadd.f32 %v2268, %v2436
  %v2438 = vpop.f32.mrf.mxu0
  %v2439 = vadd.f32 %v2270, %v2438
  %2440 = vmatmul.bf16.gmra.mxu0 %v1125
  %v2441 = vpop.f32.mrf.mxu0
  %v2442 = vadd.f32 %v2273, %v2441
  %v2443 = vpop.f32.mrf.mxu0
  %v2444 = vadd.f32 %v2275, %v2443
  %2445 = vmatmul.bf16.gmra.mxu0 %v1132
  %v2446 = vpop.f32.mrf.mxu0
  %v2447 = vadd.f32 %v2278, %v2446
  %v2448 = vpop.f32.mrf.mxu0
  %v2449 = vadd.f32 %v2280, %v2448
  %2450 = vmatmul.bf16.gmra.mxu0 %v1139
  %v2451 = vpop.f32.mrf.mxu0
  %v2452 = vadd.f32 %v2283, %v2451
  %v2453 = vpop.f32.mrf.mxu0
  %v2454 = vadd.f32 %v2285, %v2453
  %2455 = vmatmul.bf16.gmra.mxu0 %v1146
  %v2456 = vpop.f32.mrf.mxu0
  %v2457 = vadd.f32 %v2288, %v2456
  %v2458 = vpop.f32.mrf.mxu0
  %v2459 = vadd.f32 %v2290, %v2458
  %2460 = vmatmul.bf16.gmra.mxu0 %v1153
  %v2461 = vpop.f32.mrf.mxu0
  %v2462 = vadd.f32 %v2293, %v2461
  %v2463 = vpop.f32.mrf.mxu0
  %v2464 = vadd.f32 %v2295, %v2463
  %2465 = vmatmul.bf16.gmra.mxu0 %v1160
  %v2466 = vpop.f32.mrf.mxu0
  %v2467 = vadd.f32 %v2298, %v2466
  %v2468 = vpop.f32.mrf.mxu0
  %v2469 = vadd.f32 %v2300, %v2468
  %2470 = vmatmul.bf16.gmra.mxu0 %v1167
  %v2471 = vpop.f32.mrf.mxu0
  %v2472 = vadd.f32 %v2303, %v2471
  %v2473 = vpop.f32.mrf.mxu0
  %v2474 = vadd.f32 %v2305, %v2473
  %2475 = vmatmul.bf16.gmra.mxu0 %v1174
  %v2476 = vpop.f32.mrf.mxu0
  %v2477 = vadd.f32 %v2308, %v2476
  %v2478 = vpop.f32.mrf.mxu0
  %v2479 = vadd.f32 %v2310, %v2478
  %2480 = vmatmul.bf16.gmra.mxu0 %v1181
  %v2481 = vpop.f32.mrf.mxu0
  %v2482 = vadd.f32 %v2313, %v2481
  %v2483 = vpop.f32.mrf.mxu0
  %v2484 = vadd.f32 %v2315, %v2483
  %2485 = vmatmul.bf16.gmra.mxu0 %v1188
  %v2486 = vpop.f32.mrf.mxu0
  %v2487 = vadd.f32 %v2318, %v2486
  %v2488 = vpop.f32.mrf.mxu0
  %v2489 = vadd.f32 %v2320, %v2488
  %2490 = vmatmul.bf16.gmra.mxu0 %v1195
  %v2491 = vpop.f32.mrf.mxu0
  %v2492 = vadd.f32 %v2323, %v2491
  %v2493 = vpop.f32.mrf.mxu0
  %v2494 = vadd.f32 %v2325, %v2493
  %2495 = vmatmul.bf16.gmra.mxu0 %v1202
  %v2496 = vpop.f32.mrf.mxu0
  %v2497 = vadd.f32 %v2328, %v2496
  %v2498 = vpop.f32.mrf.mxu0
  %v2499 = vadd.f32 %v2330, %v2498
  %2500 = vmatmul.bf16.gmra.mxu0 %v1209
  %v2501 = vpop.f32.mrf.mxu0
  %v2502 = vadd.f32 %v2333, %v2501
  %v2503 = vpop.f32.mrf.mxu0
  %v2504 = vadd.f32 %v2335, %v2503
  %2505 = vmatmul.bf16.gmra.mxu0 %v1216
  %v2506 = vpop.f32.mrf.mxu0
  %v2507 = vadd.f32 %v2338, %v2506
  %v2508 = vpop.f32.mrf.mxu0
  %v2509 = vadd.f32 %v2340, %v2508
  %2510 = vmatmul.bf16.gmra.mxu0 %v1223
  %v2511 = vpop.f32.mrf.mxu0
  %v2512 = vadd.f32 %v2343, %v2511
  %v2513 = vpop.f32.mrf.mxu0
  %v2514 = vadd.f32 %v2345, %v2513
  %2515 = vmatmul.bf16.gmra.mxu0 %v1230
  %v2516 = vpop.f32.mrf.mxu0
  %v2517 = vadd.f32 %v2348, %v2516
  %v2518 = vpop.f32.mrf.mxu0
  %v2519 = vadd.f32 %v2350, %v2518
  %2520 = vmatmul.bf16.gmra.mxu0 %v1237
  %v2521 = vpop.f32.mrf.mxu0
  %v2522 = vadd.f32 %v2353, %v2521
  %v2523 = vpop.f32.mrf.mxu0
  %v2524 = vadd.f32 %v2355, %v2523
  %2525 = vmatmul.bf16.gmra.mxu0 %v1244
  %v2526 = vpop.f32.mrf.mxu0
  %v2527 = vadd.f32 %v2358, %v2526
  %v2528 = vpop.f32.mrf.mxu0
  %v2529 = vadd.f32 %v2360, %v2528
  %2530 = vmatmul.bf16.gmra.mxu0 %v1251
  %v2531 = vpop.f32.mrf.mxu0
  %v2532 = vadd.f32 %v2363, %v2531
  %v2533 = vpop.f32.mrf.mxu0
  %v2534 = vadd.f32 %v2365, %v2533
  %2535 = vmatmul.bf16.gmra.mxu0 %v1258
  %v2536 = vpop.f32.mrf.mxu0
  %v2537 = vadd.f32 %v2368, %v2536
  %v2538 = vpop.f32.mrf.mxu0
  %v2539 = vadd.f32 %v2370, %v2538
  %2540 = vmatmul.bf16.gmra.mxu0 %v1265
  %v2541 = vpop.f32.mrf.mxu0
  %v2542 = vadd.f32 %v2373, %v2541
  %v2543 = vpop.f32.mrf.mxu0
  %v2544 = vadd.f32 %v2375, %v2543
  %2545 = vmatmul.bf16.gmra.mxu0 %v1272
  %v2546 = vpop.f32.mrf.mxu0
  %v2547 = vadd.f32 %v2378, %v2546
  %v2548 = vpop.f32.mrf.mxu0
  %v2549 = vadd.f32 %v2380, %v2548
  %2550 = vmatmul.bf16.gmra.mxu0 %v1279
  %v2551 = vpop.f32.mrf.mxu0
  %v2552 = vadd.f32 %v2383, %v2551
  %v2553 = vpop.f32.mrf.mxu0
  %v2554 = vadd.f32 %v2385, %v2553
  %2555 = vmatmul.bf16.gmra.mxu0 %v1286
  %v2556 = vpop.f32.mrf.mxu0
  %v2557 = vadd.f32 %v2388, %v2556
  %v2558 = vpop.f32.mrf.mxu0
  %v2559 = vadd.f32 %v2390, %v2558
  %2560 = vmatmul.bf16.gmra.mxu0 %v1293
  %v2561 = vpop.f32.mrf.mxu0
  %v2562 = vadd.f32 %v2393, %v2561
  %v2563 = vpop.f32.mrf.mxu0
  %v2564 = vadd.f32 %v2395, %v2563
  %2565 = vmatmul.bf16.gmra.mxu0 %v1300
  %v2566 = vpop.f32.mrf.mxu0
  %v2567 = vadd.f32 %v2398, %v2566
  %v2568 = vpop.f32.mrf.mxu0
  %v2569 = vadd.f32 %v2400, %v2568
  %2570 = vmatmul.bf16.gmra.mxu0 %v1307
  %v2571 = vpop.f32.mrf.mxu0
  %v2572 = vadd.f32 %v2403, %v2571
  %v2573 = vpop.f32.mrf.mxu0
  %v2574 = vadd.f32 %v2405, %v2573
  %2575 = vdwg.mxu0
  %2576 = vmatpush.bf16.msra.mxu0 %v1742
  %2577 = vmatpush.bf16.msra.mxu0 %v1741
  %2578 = vmatpush.bf16.msra.mxu0 %v1740
  %2579 = vmatpush.bf16.msra.mxu0 %v1739
  %2580 = vmatpush.bf16.msra.mxu0 %v1738
  %2581 = vmatpush.bf16.msra.mxu0 %v1737
  %2582 = vmatpush.bf16.msra.mxu0 %v1736
  %2583 = vmatpush.bf16.msra.mxu0 %v1735
  %2584 = vmatmul.bf16.gmra.mxu0 %v1091
  %v2585 = vpop.f32.mrf.mxu0
  %v2586 = vadd.f32 %v2417, %v2585
  %v2587 = vpop.f32.mrf.mxu0
  %v2588 = vadd.f32 %v2419, %v2587
  %2589 = vmatmul.bf16.gmra.mxu0 %v1098
  %v2590 = vpop.f32.mrf.mxu0
  %v2591 = vadd.f32 %v2422, %v2590
  %v2592 = vpop.f32.mrf.mxu0
  %v2593 = vadd.f32 %v2424, %v2592
  %2594 = vmatmul.bf16.gmra.mxu0 %v1105
  %v2595 = vpop.f32.mrf.mxu0
  %v2596 = vadd.f32 %v2427, %v2595
  %v2597 = vpop.f32.mrf.mxu0
  %v2598 = vadd.f32 %v2429, %v2597
  %2599 = vmatmul.bf16.gmra.mxu0 %v1112
  %v2600 = vpop.f32.mrf.mxu0
  %v2601 = vadd.f32 %v2432, %v2600
  %v2602 = vpop.f32.mrf.mxu0
  %v2603 = vadd.f32 %v2434, %v2602
  %2604 = vmatmul.bf16.gmra.mxu0 %v1119
  %v2605 = vpop.f32.mrf.mxu0
  %v2606 = vadd.f32 %v2437, %v2605
  %v2607 = vpop.f32.mrf.mxu0
  %v2608 = vadd.f32 %v2439, %v2607
  %2609 = vmatmul.bf16.gmra.mxu0 %v1126
  %v2610 = vpop.f32.mrf.mxu0
  %v2611 = vadd.f32 %v2442, %v2610
  %v2612 = vpop.f32.mrf.mxu0
  %v2613 = vadd.f32 %v2444, %v2612
  %2614 = vmatmul.bf16.gmra.mxu0 %v1133
  %v2615 = vpop.f32.mrf.mxu0
  %v2616 = vadd.f32 %v2447, %v2615
  %v2617 = vpop.f32.mrf.mxu0
  %v2618 = vadd.f32 %v2449, %v2617
  %2619 = vmatmul.bf16.gmra.mxu0 %v1140
  %v2620 = vpop.f32.mrf.mxu0
  %v2621 = vadd.f32 %v2452, %v2620
  %v2622 = vpop.f32.mrf.mxu0
  %v2623 = vadd.f32 %v2454, %v2622
  %2624 = vmatmul.bf16.gmra.mxu0 %v1147
  %v2625 = vpop.f32.mrf.mxu0
  %v2626 = vadd.f32 %v2457, %v2625
  %v2627 = vpop.f32.mrf.mxu0
  %v2628 = vadd.f32 %v2459, %v2627
  %2629 = vmatmul.bf16.gmra.mxu0 %v1154
  %v2630 = vpop.f32.mrf.mxu0
  %v2631 = vadd.f32 %v2462, %v2630
  %v2632 = vpop.f32.mrf.mxu0
  %v2633 = vadd.f32 %v2464, %v2632
  %2634 = vmatmul.bf16.gmra.mxu0 %v1161
  %v2635 = vpop.f32.mrf.mxu0
  %v2636 = vadd.f32 %v2467, %v2635
  %v2637 = vpop.f32.mrf.mxu0
  %v2638 = vadd.f32 %v2469, %v2637
  %2639 = vmatmul.bf16.gmra.mxu0 %v1168
  %v2640 = vpop.f32.mrf.mxu0
  %v2641 = vadd.f32 %v2472, %v2640
  %v2642 = vpop.f32.mrf.mxu0
  %v2643 = vadd.f32 %v2474, %v2642
  %2644 = vmatmul.bf16.gmra.mxu0 %v1175
  %v2645 = vpop.f32.mrf.mxu0
  %v2646 = vadd.f32 %v2477, %v2645
  %v2647 = vpop.f32.mrf.mxu0
  %v2648 = vadd.f32 %v2479, %v2647
  %2649 = vmatmul.bf16.gmra.mxu0 %v1182
  %v2650 = vpop.f32.mrf.mxu0
  %v2651 = vadd.f32 %v2482, %v2650
  %v2652 = vpop.f32.mrf.mxu0
  %v2653 = vadd.f32 %v2484, %v2652
  %2654 = vmatmul.bf16.gmra.mxu0 %v1189
  %v2655 = vpop.f32.mrf.mxu0
  %v2656 = vadd.f32 %v2487, %v2655
  %v2657 = vpop.f32.mrf.mxu0
  %v2658 = vadd.f32 %v2489, %v2657
  %2659 = vmatmul.bf16.gmra.mxu0 %v1196
  %v2660 = vpop.f32.mrf.mxu0
  %v2661 = vadd.f32 %v2492, %v2660
  %v2662 = vpop.f32.mrf.mxu0
  %v2663 = vadd.f32 %v2494, %v2662
  %2664 = vmatmul.bf16.gmra.mxu0 %v1203
  %v2665 = vpop.f32.mrf.mxu0
  %v2666 = vadd.f32 %v2497, %v2665
  %v2667 = vpop.f32.mrf.mxu0
  %v2668 = vadd.f32 %v2499, %v2667
  %2669 = vmatmul.bf16.gmra.mxu0 %v1210
  %v2670 = vpop.f32.mrf.mxu0
  %v2671 = vadd.f32 %v2502, %v2670
  %v2672 = vpop.f32.mrf.mxu0
  %v2673 = vadd.f32 %v2504, %v2672
  %2674 = vmatmul.bf16.gmra.mxu0 %v1217
  %v2675 = vpop.f32.mrf.mxu0
  %v2676 = vadd.f32 %v2507, %v2675
  %v2677 = vpop.f32.mrf.mxu0
  %v2678 = vadd.f32 %v2509, %v2677
  %2679 = vmatmul.bf16.gmra.mxu0 %v1224
  %v2680 = vpop.f32.mrf.mxu0
  %v2681 = vadd.f32 %v2512, %v2680
  %v2682 = vpop.f32.mrf.mxu0
  %v2683 = vadd.f32 %v2514, %v2682
  %2684 = vmatmul.bf16.gmra.mxu0 %v1231
  %v2685 = vpop.f32.mrf.mxu0
  %v2686 = vadd.f32 %v2517, %v2685
  %v2687 = vpop.f32.mrf.mxu0
  %v2688 = vadd.f32 %v2519, %v2687
  %2689 = vmatmul.bf16.gmra.mxu0 %v1238
  %v2690 = vpop.f32.mrf.mxu0
  %v2691 = vadd.f32 %v2522, %v2690
  %v2692 = vpop.f32.mrf.mxu0
  %v2693 = vadd.f32 %v2524, %v2692
  %2694 = vmatmul.bf16.gmra.mxu0 %v1245
  %v2695 = vpop.f32.mrf.mxu0
  %v2696 = vadd.f32 %v2527, %v2695
  %v2697 = vpop.f32.mrf.mxu0
  %v2698 = vadd.f32 %v2529, %v2697
  %2699 = vmatmul.bf16.gmra.mxu0 %v1252
  %v2700 = vpop.f32.mrf.mxu0
  %v2701 = vadd.f32 %v2532, %v2700
  %v2702 = vpop.f32.mrf.mxu0
  %v2703 = vadd.f32 %v2534, %v2702
  %2704 = vmatmul.bf16.gmra.mxu0 %v1259
  %v2705 = vpop.f32.mrf.mxu0
  %v2706 = vadd.f32 %v2537, %v2705
  %v2707 = vpop.f32.mrf.mxu0
  %v2708 = vadd.f32 %v2539, %v2707
  %2709 = vmatmul.bf16.gmra.mxu0 %v1266
  %v2710 = vpop.f32.mrf.mxu0
  %v2711 = vadd.f32 %v2542, %v2710
  %v2712 = vpop.f32.mrf.mxu0
  %v2713 = vadd.f32 %v2544, %v2712
  %2714 = vmatmul.bf16.gmra.mxu0 %v1273
  %v2715 = vpop.f32.mrf.mxu0
  %v2716 = vadd.f32 %v2547, %v2715
  %v2717 = vpop.f32.mrf.mxu0
  %v2718 = vadd.f32 %v2549, %v2717
  %2719 = vmatmul.bf16.gmra.mxu0 %v1280
  %v2720 = vpop.f32.mrf.mxu0
  %v2721 = vadd.f32 %v2552, %v2720
  %v2722 = vpop.f32.mrf.mxu0
  %v2723 = vadd.f32 %v2554, %v2722
  %2724 = vmatmul.bf16.gmra.mxu0 %v1287
  %v2725 = vpop.f32.mrf.mxu0
  %v2726 = vadd.f32 %v2557, %v2725
  %v2727 = vpop.f32.mrf.mxu0
  %v2728 = vadd.f32 %v2559, %v2727
  %2729 = vmatmul.bf16.gmra.mxu0 %v1294
  %v2730 = vpop.f32.mrf.mxu0
  %v2731 = vadd.f32 %v2562, %v2730
  %v2732 = vpop.f32.mrf.mxu0
  %v2733 = vadd.f32 %v2564, %v2732
  %2734 = vmatmul.bf16.gmra.mxu0 %v1301
  %v2735 = vpop.f32.mrf.mxu0
  %v2736 = vadd.f32 %v2567, %v2735
  %v2737 = vpop.f32.mrf.mxu0
  %v2738 = vadd.f32 %v2569, %v2737
  %2739 = vmatmul.bf16.gmra.mxu0 %v1308
  %v2740 = vpop.f32.mrf.mxu0
  %v2741 = vadd.f32 %v2572, %v2740
  %v2742 = vpop.f32.mrf.mxu0
  %v2743 = vadd.f32 %v2574, %v2742
  %2744 = vdwg.mxu0
  %2745 = vmatpush.bf16.msra.mxu0 %v1750
  %2746 = vmatpush.bf16.msra.mxu0 %v1749
  %2747 = vmatpush.bf16.msra.mxu0 %v1748
  %2748 = vmatpush.bf16.msra.mxu0 %v1747
  %2749 = vmatpush.bf16.msra.mxu0 %v1746
  %2750 = vmatpush.bf16.msra.mxu0 %v1745
  %2751 = vmatpush.bf16.msra.mxu0 %v1744
  %2752 = vmatpush.bf16.msra.mxu0 %v1743
  %2753 = vmatmul.bf16.gmra.mxu0 %v1092
  %v2754 = vpop.f32.mrf.mxu0
  %v2755 = vadd.f32 %v2586, %v2754
  %v2756 = vpop.f32.mrf.mxu0
  %v2757 = vadd.f32 %v2588, %v2756
  %2758 = vmatmul.bf16.gmra.mxu0 %v1099
  %v2759 = vpop.f32.mrf.mxu0
  %v2760 = vadd.f32 %v2591, %v2759
  %v2761 = vpop.f32.mrf.mxu0
  %v2762 = vadd.f32 %v2593, %v2761
  %2763 = vmatmul.bf16.gmra.mxu0 %v1106
  %v2764 = vpop.f32.mrf.mxu0
  %v2765 = vadd.f32 %v2596, %v2764
  %v2766 = vpop.f32.mrf.mxu0
  %v2767 = vadd.f32 %v2598, %v2766
  %2768 = vmatmul.bf16.gmra.mxu0 %v1113
  %v2769 = vpop.f32.mrf.mxu0
  %v2770 = vadd.f32 %v2601, %v2769
  %v2771 = vpop.f32.mrf.mxu0
  %v2772 = vadd.f32 %v2603, %v2771
  %2773 = vmatmul.bf16.gmra.mxu0 %v1120
  %v2774 = vpop.f32.mrf.mxu0
  %v2775 = vadd.f32 %v2606, %v2774
  %v2776 = vpop.f32.mrf.mxu0
  %v2777 = vadd.f32 %v2608, %v2776
  %2778 = vmatmul.bf16.gmra.mxu0 %v1127
  %v2779 = vpop.f32.mrf.mxu0
  %v2780 = vadd.f32 %v2611, %v2779
  %v2781 = vpop.f32.mrf.mxu0
  %v2782 = vadd.f32 %v2613, %v2781
  %2783 = vmatmul.bf16.gmra.mxu0 %v1134
  %v2784 = vpop.f32.mrf.mxu0
  %v2785 = vadd.f32 %v2616, %v2784
  %v2786 = vpop.f32.mrf.mxu0
  %v2787 = vadd.f32 %v2618, %v2786
  %2788 = vmatmul.bf16.gmra.mxu0 %v1141
  %v2789 = vpop.f32.mrf.mxu0
  %v2790 = vadd.f32 %v2621, %v2789
  %v2791 = vpop.f32.mrf.mxu0
  %v2792 = vadd.f32 %v2623, %v2791
  %2793 = vmatmul.bf16.gmra.mxu0 %v1148
  %v2794 = vpop.f32.mrf.mxu0
  %v2795 = vadd.f32 %v2626, %v2794
  %v2796 = vpop.f32.mrf.mxu0
  %v2797 = vadd.f32 %v2628, %v2796
  %2798 = vmatmul.bf16.gmra.mxu0 %v1155
  %v2799 = vpop.f32.mrf.mxu0
  %v2800 = vadd.f32 %v2631, %v2799
  %v2801 = vpop.f32.mrf.mxu0
  %v2802 = vadd.f32 %v2633, %v2801
  %2803 = vmatmul.bf16.gmra.mxu0 %v1162
  %v2804 = vpop.f32.mrf.mxu0
  %v2805 = vadd.f32 %v2636, %v2804
  %v2806 = vpop.f32.mrf.mxu0
  %v2807 = vadd.f32 %v2638, %v2806
  %2808 = vmatmul.bf16.gmra.mxu0 %v1169
  %v2809 = vpop.f32.mrf.mxu0
  %v2810 = vadd.f32 %v2641, %v2809
  %v2811 = vpop.f32.mrf.mxu0
  %v2812 = vadd.f32 %v2643, %v2811
  %2813 = vmatmul.bf16.gmra.mxu0 %v1176
  %v2814 = vpop.f32.mrf.mxu0
  %v2815 = vadd.f32 %v2646, %v2814
  %v2816 = vpop.f32.mrf.mxu0
  %v2817 = vadd.f32 %v2648, %v2816
  %2818 = vmatmul.bf16.gmra.mxu0 %v1183
  %v2819 = vpop.f32.mrf.mxu0
  %v2820 = vadd.f32 %v2651, %v2819
  %v2821 = vpop.f32.mrf.mxu0
  %v2822 = vadd.f32 %v2653, %v2821
  %2823 = vmatmul.bf16.gmra.mxu0 %v1190
  %v2824 = vpop.f32.mrf.mxu0
  %v2825 = vadd.f32 %v2656, %v2824
  %v2826 = vpop.f32.mrf.mxu0
  %v2827 = vadd.f32 %v2658, %v2826
  %2828 = vmatmul.bf16.gmra.mxu0 %v1197
  %v2829 = vpop.f32.mrf.mxu0
  %v2830 = vadd.f32 %v2661, %v2829
  %v2831 = vpop.f32.mrf.mxu0
  %v2832 = vadd.f32 %v2663, %v2831
  %2833 = vmatmul.bf16.gmra.mxu0 %v1204
  %v2834 = vpop.f32.mrf.mxu0
  %v2835 = vadd.f32 %v2666, %v2834
  %v2836 = vpop.f32.mrf.mxu0
  %v2837 = vadd.f32 %v2668, %v2836
  %2838 = vmatmul.bf16.gmra.mxu0 %v1211
  %v2839 = vpop.f32.mrf.mxu0
  %v2840 = vadd.f32 %v2671, %v2839
  %v2841 = vpop.f32.mrf.mxu0
  %v2842 = vadd.f32 %v2673, %v2841
  %2843 = vmatmul.bf16.gmra.mxu0 %v1218
  %v2844 = vpop.f32.mrf.mxu0
  %v2845 = vadd.f32 %v2676, %v2844
  %v2846 = vpop.f32.mrf.mxu0
  %v2847 = vadd.f32 %v2678, %v2846
  %2848 = vmatmul.bf16.gmra.mxu0 %v1225
  %v2849 = vpop.f32.mrf.mxu0
  %v2850 = vadd.f32 %v2681, %v2849
  %v2851 = vpop.f32.mrf.mxu0
  %v2852 = vadd.f32 %v2683, %v2851
  %2853 = vmatmul.bf16.gmra.mxu0 %v1232
  %v2854 = vpop.f32.mrf.mxu0
  %v2855 = vadd.f32 %v2686, %v2854
  %v2856 = vpop.f32.mrf.mxu0
  %v2857 = vadd.f32 %v2688, %v2856
  %2858 = vmatmul.bf16.gmra.mxu0 %v1239
  %v2859 = vpop.f32.mrf.mxu0
  %v2860 = vadd.f32 %v2691, %v2859
  %v2861 = vpop.f32.mrf.mxu0
  %v2862 = vadd.f32 %v2693, %v2861
  %2863 = vmatmul.bf16.gmra.mxu0 %v1246
  %v2864 = vpop.f32.mrf.mxu0
  %v2865 = vadd.f32 %v2696, %v2864
  %v2866 = vpop.f32.mrf.mxu0
  %v2867 = vadd.f32 %v2698, %v2866
  %2868 = vmatmul.bf16.gmra.mxu0 %v1253
  %v2869 = vpop.f32.mrf.mxu0
  %v2870 = vadd.f32 %v2701, %v2869
  %v2871 = vpop.f32.mrf.mxu0
  %v2872 = vadd.f32 %v2703, %v2871
  %2873 = vmatmul.bf16.gmra.mxu0 %v1260
  %v2874 = vpop.f32.mrf.mxu0
  %v2875 = vadd.f32 %v2706, %v2874
  %v2876 = vpop.f32.mrf.mxu0
  %v2877 = vadd.f32 %v2708, %v2876
  %2878 = vmatmul.bf16.gmra.mxu0 %v1267
  %v2879 = vpop.f32.mrf.mxu0
  %v2880 = vadd.f32 %v2711, %v2879
  %v2881 = vpop.f32.mrf.mxu0
  %v2882 = vadd.f32 %v2713, %v2881
  %2883 = vmatmul.bf16.gmra.mxu0 %v1274
  %v2884 = vpop.f32.mrf.mxu0
  %v2885 = vadd.f32 %v2716, %v2884
  %v2886 = vpop.f32.mrf.mxu0
  %v2887 = vadd.f32 %v2718, %v2886
  %2888 = vmatmul.bf16.gmra.mxu0 %v1281
  %v2889 = vpop.f32.mrf.mxu0
  %v2890 = vadd.f32 %v2721, %v2889
  %v2891 = vpop.f32.mrf.mxu0
  %v2892 = vadd.f32 %v2723, %v2891
  %2893 = vmatmul.bf16.gmra.mxu0 %v1288
  %v2894 = vpop.f32.mrf.mxu0
  %v2895 = vadd.f32 %v2726, %v2894
  %v2896 = vpop.f32.mrf.mxu0
  %v2897 = vadd.f32 %v2728, %v2896
  %2898 = vmatmul.bf16.gmra.mxu0 %v1295
  %v2899 = vpop.f32.mrf.mxu0
  %v2900 = vadd.f32 %v2731, %v2899
  %v2901 = vpop.f32.mrf.mxu0
  %v2902 = vadd.f32 %v2733, %v2901
  %2903 = vmatmul.bf16.gmra.mxu0 %v1302
  %v2904 = vpop.f32.mrf.mxu0
  %v2905 = vadd.f32 %v2736, %v2904
  %v2906 = vpop.f32.mrf.mxu0
  %v2907 = vadd.f32 %v2738, %v2906
  %2908 = vmatmul.bf16.gmra.mxu0 %v1309
  %v2909 = vpop.f32.mrf.mxu0
  %v2910 = vadd.f32 %v2741, %v2909
  %v2911 = vpop.f32.mrf.mxu0
  %v2912 = vadd.f32 %v2743, %v2911
  %2913 = vdwg.mxu0
  %2914 = vmatpush.bf16.msra.mxu0 0
  %2915 = vmatpush.bf16.msra.mxu0 0
  %2916 = vmatpush.bf16.msra.mxu0 0
  %2917 = vmatpush.bf16.msra.mxu0 0
  %2918 = vmatpush.bf16.msra.mxu0 0
  %2919 = vmatpush.bf16.msra.mxu0 0
  %2920 = vmatpush.bf16.msra.mxu0 %v1752
  %2921 = vmatpush.bf16.msra.mxu0 %v1751
  %2922 = vmatmul.bf16.gmra.mxu0 %v1805
  %v2923 = vpop.f32.mrf.mxu0
  %v2924 = vadd.f32 %v2755, %v2923
  %v2925 = vpop.f32.mrf.mxu0
  %v2926 = vadd.f32 %v2757, %v2925
  %2927 = vmatmul.bf16.gmra.mxu0 %v1808
  %v2928 = vpop.f32.mrf.mxu0
  %v2929 = vadd.f32 %v2760, %v2928
  %v2930 = vpop.f32.mrf.mxu0
  %v2931 = vadd.f32 %v2762, %v2930
  %2932 = vmatmul.bf16.gmra.mxu0 %v1811
  %v2933 = vpop.f32.mrf.mxu0
  %v2934 = vadd.f32 %v2765, %v2933
  %v2935 = vpop.f32.mrf.mxu0
  %v2936 = vadd.f32 %v2767, %v2935
  %2937 = vmatmul.bf16.gmra.mxu0 %v1814
  %v2938 = vpop.f32.mrf.mxu0
  %v2939 = vadd.f32 %v2770, %v2938
  %v2940 = vpop.f32.mrf.mxu0
  %v2941 = vadd.f32 %v2772, %v2940
  %2942 = vmatmul.bf16.gmra.mxu0 %v1817
  %v2943 = vpop.f32.mrf.mxu0
  %v2944 = vadd.f32 %v2775, %v2943
  %v2945 = vpop.f32.mrf.mxu0
  %v2946 = vadd.f32 %v2777, %v2945
  %2947 = vmatmul.bf16.gmra.mxu0 %v1820
  %v2948 = vpop.f32.mrf.mxu0
  %v2949 = vadd.f32 %v2780, %v2948
  %v2950 = vpop.f32.mrf.mxu0
  %v2951 = vadd.f32 %v2782, %v2950
  %2952 = vmatmul.bf16.gmra.mxu0 %v1823
  %v2953 = vpop.f32.mrf.mxu0
  %v2954 = vadd.f32 %v2785, %v2953
  %v2955 = vpop.f32.mrf.mxu0
  %v2956 = vadd.f32 %v2787, %v2955
  %2957 = vmatmul.bf16.gmra.mxu0 %v1826
  %v2958 = vpop.f32.mrf.mxu0
  %v2959 = vadd.f32 %v2790, %v2958
  %v2960 = vpop.f32.mrf.mxu0
  %v2961 = vadd.f32 %v2792, %v2960
  %2962 = vmatmul.bf16.gmra.mxu0 %v1829
  %v2963 = vpop.f32.mrf.mxu0
  %v2964 = vadd.f32 %v2795, %v2963
  %v2965 = vpop.f32.mrf.mxu0
  %v2966 = vadd.f32 %v2797, %v2965
  %2967 = vmatmul.bf16.gmra.mxu0 %v1832
  %v2968 = vpop.f32.mrf.mxu0
  %v2969 = vadd.f32 %v2800, %v2968
  %v2970 = vpop.f32.mrf.mxu0
  %v2971 = vadd.f32 %v2802, %v2970
  %2972 = vmatmul.bf16.gmra.mxu0 %v1835
  %v2973 = vpop.f32.mrf.mxu0
  %v2974 = vadd.f32 %v2805, %v2973
  %v2975 = vpop.f32.mrf.mxu0
  %v2976 = vadd.f32 %v2807, %v2975
  %2977 = vmatmul.bf16.gmra.mxu0 %v1838
  %v2978 = vpop.f32.mrf.mxu0
  %v2979 = vadd.f32 %v2810, %v2978
  %v2980 = vpop.f32.mrf.mxu0
  %v2981 = vadd.f32 %v2812, %v2980
  %2982 = vmatmul.bf16.gmra.mxu0 %v1841
  %v2983 = vpop.f32.mrf.mxu0
  %v2984 = vadd.f32 %v2815, %v2983
  %v2985 = vpop.f32.mrf.mxu0
  %v2986 = vadd.f32 %v2817, %v2985
  %2987 = vmatmul.bf16.gmra.mxu0 %v1844
  %v2988 = vpop.f32.mrf.mxu0
  %v2989 = vadd.f32 %v2820, %v2988
  %v2990 = vpop.f32.mrf.mxu0
  %v2991 = vadd.f32 %v2822, %v2990
  %2992 = vmatmul.bf16.gmra.mxu0 %v1847
  %v2993 = vpop.f32.mrf.mxu0
  %v2994 = vadd.f32 %v2825, %v2993
  %v2995 = vpop.f32.mrf.mxu0
  %v2996 = vadd.f32 %v2827, %v2995
  %2997 = vmatmul.bf16.gmra.mxu0 %v1850
  %v2998 = vpop.f32.mrf.mxu0
  %v2999 = vadd.f32 %v2830, %v2998
  %v3000 = vpop.f32.mrf.mxu0
  %v3001 = vadd.f32 %v2832, %v3000
  %3002 = vmatmul.bf16.gmra.mxu0 %v1853
  %v3003 = vpop.f32.mrf.mxu0
  %v3004 = vadd.f32 %v2835, %v3003
  %v3005 = vpop.f32.mrf.mxu0
  %v3006 = vadd.f32 %v2837, %v3005
  %3007 = vmatmul.bf16.gmra.mxu0 %v1856
  %v3008 = vpop.f32.mrf.mxu0
  %v3009 = vadd.f32 %v2840, %v3008
  %v3010 = vpop.f32.mrf.mxu0
  %v3011 = vadd.f32 %v2842, %v3010
  %3012 = vmatmul.bf16.gmra.mxu0 %v1859
  %v3013 = vpop.f32.mrf.mxu0
  %v3014 = vadd.f32 %v2845, %v3013
  %v3015 = vpop.f32.mrf.mxu0
  %v3016 = vadd.f32 %v2847, %v3015
  %3017 = vmatmul.bf16.gmra.mxu0 %v1862
  %v3018 = vpop.f32.mrf.mxu0
  %v3019 = vadd.f32 %v2850, %v3018
  %v3020 = vpop.f32.mrf.mxu0
  %v3021 = vadd.f32 %v2852, %v3020
  %3022 = vmatmul.bf16.gmra.mxu0 %v1865
  %v3023 = vpop.f32.mrf.mxu0
  %v3024 = vadd.f32 %v2855, %v3023
  %v3025 = vpop.f32.mrf.mxu0
  %v3026 = vadd.f32 %v2857, %v3025
  %3027 = vmatmul.bf16.gmra.mxu0 %v1868
  %v3028 = vpop.f32.mrf.mxu0
  %v3029 = vadd.f32 %v2860, %v3028
  %v3030 = vpop.f32.mrf.mxu0
  %v3031 = vadd.f32 %v2862, %v3030
  %3032 = vmatmul.bf16.gmra.mxu0 %v1871
  %v3033 = vpop.f32.mrf.mxu0
  %v3034 = vadd.f32 %v2865, %v3033
  %v3035 = vpop.f32.mrf.mxu0
  %v3036 = vadd.f32 %v2867, %v3035
  %3037 = vmatmul.bf16.gmra.mxu0 %v1874
  %v3038 = vpop.f32.mrf.mxu0
  %v3039 = vadd.f32 %v2870, %v3038
  %v3040 = vpop.f32.mrf.mxu0
  %v3041 = vadd.f32 %v2872, %v3040
  %3042 = vmatmul.bf16.gmra.mxu0 %v1877
  %v3043 = vpop.f32.mrf.mxu0
  %v3044 = vadd.f32 %v2875, %v3043
  %v3045 = vpop.f32.mrf.mxu0
  %v3046 = vadd.f32 %v2877, %v3045
  %3047 = vmatmul.bf16.gmra.mxu0 %v1880
  %v3048 = vpop.f32.mrf.mxu0
  %v3049 = vadd.f32 %v2880, %v3048
  %v3050 = vpop.f32.mrf.mxu0
  %v3051 = vadd.f32 %v2882, %v3050
  %3052 = vmatmul.bf16.gmra.mxu0 %v1883
  %v3053 = vpop.f32.mrf.mxu0
  %v3054 = vadd.f32 %v2885, %v3053
  %v3055 = vpop.f32.mrf.mxu0
  %v3056 = vadd.f32 %v2887, %v3055
  %3057 = vmatmul.bf16.gmra.mxu0 %v1886
  %v3058 = vpop.f32.mrf.mxu0
  %v3059 = vadd.f32 %v2890, %v3058
  %v3060 = vpop.f32.mrf.mxu0
  %v3061 = vadd.f32 %v2892, %v3060
  %3062 = vmatmul.bf16.gmra.mxu0 %v1889
  %v3063 = vpop.f32.mrf.mxu0
  %v3064 = vadd.f32 %v2895, %v3063
  %v3065 = vpop.f32.mrf.mxu0
  %v3066 = vadd.f32 %v2897, %v3065
  %3067 = vmatmul.bf16.gmra.mxu0 %v1892
  %v3068 = vpop.f32.mrf.mxu0
  %v3069 = vadd.f32 %v2900, %v3068
  %v3070 = vpop.f32.mrf.mxu0
  %v3071 = vadd.f32 %v2902, %v3070
  %3072 = vmatmul.bf16.gmra.mxu0 %v1895
  %v3073 = vpop.f32.mrf.mxu0
  %v3074 = vadd.f32 %v2905, %v3073
  %v3075 = vpop.f32.mrf.mxu0
  %v3076 = vadd.f32 %v2907, %v3075
  %3077 = vmatmul.bf16.gmra.mxu0 %v1898
  %v3078 = vpop.f32.mrf.mxu0
  %v3079 = vadd.f32 %v2910, %v3078
  %v3080 = vpop.f32.mrf.mxu0
  %v3081 = vadd.f32 %v2912, %v3080
  %3082 = vdwg.mxu0
  %v3083 = vmax.f32 %v2924, %v2964
  %v3084 = vmax.f32 %v2926, %v2966
  %v3085 = vmax.f32 %v2929, %v2969
  %v3086 = vmax.f32 %v2931, %v2971
  %v3087 = vmax.f32 %v2934, %v2974
  %v3088 = vmax.f32 %v2936, %v2976
  %v3089 = vmax.f32 %v2939, %v2979
  %v3090 = vmax.f32 %v2941, %v2981
  %v3091 = vmax.f32 %v2944, %v2984
  %v3092 = vmax.f32 %v2946, %v2986
  %v3093 = vmax.f32 %v2949, %v2989
  %v3094 = vmax.f32 %v2951, %v2991
  %v3095 = vmax.f32 %v2954, %v2994
  %v3096 = vmax.f32 %v2956, %v2996
  %v3097 = vmax.f32 %v2959, %v2999
  %v3098 = vmax.f32 %v2961, %v3001
  %v3099 = vmax.f32 %v3004, %v3044
  %v3100 = vmax.f32 %v3006, %v3046
  %v3101 = vmax.f32 %v3009, %v3049
  %v3102 = vmax.f32 %v3011, %v3051
  %v3103 = vmax.f32 %v3014, %v3054
  %v3104 = vmax.f32 %v3016, %v3056
  %v3105 = vmax.f32 %v3019, %v3059
  %v3106 = vmax.f32 %v3021, %v3061
  %v3107 = vmax.f32 %v3024, %v3064
  %v3108 = vmax.f32 %v3026, %v3066
  %v3109 = vmax.f32 %v3029, %v3069
  %v3110 = vmax.f32 %v3031, %v3071
  %v3111 = vmax.f32 %v3034, %v3074
  %v3112 = vmax.f32 %v3036, %v3076
  %v3113 = vmax.f32 %v3039, %v3079
  %v3114 = vmax.f32 %v3041, %v3081
  %v3115 = vmax.f32 %v3083, %v3099
  %v3116 = vmax.f32 %v3084, %v3100
  %v3117 = vmax.f32 %v3085, %v3101
  %v3118 = vmax.f32 %v3086, %v3102
  %v3119 = vmax.f32 %v3087, %v3103
  %v3120 = vmax.f32 %v3088, %v3104
  %v3121 = vmax.f32 %v3089, %v3105
  %v3122 = vmax.f32 %v3090, %v3106
  %v3123 = vmax.f32 %v3091, %v3107
  %v3124 = vmax.f32 %v3092, %v3108
  %v3125 = vmax.f32 %v3093, %v3109
  %v3126 = vmax.f32 %v3094, %v3110
  %v3127 = vmax.f32 %v3095, %v3111
  %v3128 = vmax.f32 %v3096, %v3112
  %v3129 = vmax.f32 %v3097, %v3113
  %v3130 = vmax.f32 %v3098, %v3114
  %v3131 = vld [vmem:[%s2] sm:$0x1]
  %v3133 = vperm.slane %v3131, 0
  %v3135 = vadd.f32 %v3115, %v3133
  %v3136 = vadd.f32 %v3116, %v3133
  %v3137 = vadd.f32 %v3117, %v3133
  %v3138 = vadd.f32 %v3118, %v3133
  %v3139 = vadd.f32 %v3119, %v3133
  %v3140 = vadd.f32 %v3120, %v3133
  %v3141 = vadd.f32 %v3121, %v3133
  %v3142 = vadd.f32 %v3122, %v3133
  %v3143 = vadd.f32 %v3123, %v3133
  %v3144 = vadd.f32 %v3124, %v3133
  %v3145 = vadd.f32 %v3125, %v3133
  %v3146 = vadd.f32 %v3126, %v3133
  %v3147 = vadd.f32 %v3127, %v3133
  %v3148 = vadd.f32 %v3128, %v3133
  %v3149 = vadd.f32 %v3129, %v3133
  %v3150 = vadd.f32 %v3130, %v3133
  %v3151 = vpack.c.bf16 %v3135, %v3135
  %v3152 = vpack.c.bf16 %v3136, %v3136
  %v3153 = vpack.c.bf16 %v3137, %v3137
  %v3154 = vpack.c.bf16 %v3138, %v3138
  %v3155 = vpack.c.bf16 %v3139, %v3139
  %v3156 = vpack.c.bf16 %v3140, %v3140
  %v3157 = vpack.c.bf16 %v3141, %v3141
  %v3158 = vpack.c.bf16 %v3142, %v3142
  %v3159 = vpack.c.bf16 %v3143, %v3143
  %v3160 = vpack.c.bf16 %v3144, %v3144
  %v3161 = vpack.c.bf16 %v3145, %v3145
  %v3162 = vpack.c.bf16 %v3146, %v3146
  %v3163 = vpack.c.bf16 %v3147, %v3147
  %v3164 = vpack.c.bf16 %v3148, %v3148
  %v3165 = vpack.c.bf16 %v3149, %v3149
  %v3166 = vpack.c.bf16 %v3150, %v3150
  %v3167 = vld [vmem:[%s3] sm:$0xf]
  %v3168 = vld [vmem:[%s3 + $0x4] sm:$0xf]
  %v3169 = vld [vmem:[%s3 + $0x8] sm:$0xf]
  %v3170 = vld [vmem:[%s3 + $0xc] sm:$0xf]
  %v3171 = vld [vmem:[%s3 + $0x10] sm:$0xf]
  %v3172 = vld [vmem:[%s3 + $0x14] sm:$0xf]
  %v3173 = vld [vmem:[%s3 + $0x18] sm:$0xf]
  %v3174 = vld [vmem:[%s3 + $0x1c] sm:$0xf]
  %v3175 = vld [vmem:[%s3 + $0x20] sm:$0xf]
  %v3176 = vld [vmem:[%s3 + $0x24] sm:$0xf]
  %v3177 = vld [vmem:[%s3 + $0x28] sm:$0xf]
  %v3178 = vld [vmem:[%s3 + $0x2c] sm:$0xf]
  %v3179 = vld [vmem:[%s3 + $0x30] sm:$0xf]
  %v3180 = vld [vmem:[%s3 + $0x34] sm:$0xf]
  %v3181 = vld [vmem:[%s3 + $0x38] sm:$0xf]
  %v3182 = vld [vmem:[%s3 + $0x3c] sm:$0xf]
  %v3183 = vld [vmem:[%s3 + $0x40] sm:$0xf]
  %v3184 = vld [vmem:[%s3 + $0x44] sm:$0xf]
  %v3185 = vld [vmem:[%s3 + $0x48] sm:$0xf]
  %v3186 = vld [vmem:[%s3 + $0x4c] sm:$0xf]
  %v3187 = vld [vmem:[%s3 + $0x50] sm:$0xf]
  %v3188 = vld [vmem:[%s3 + $0x54] sm:$0xf]
  %v3189 = vld [vmem:[%s3 + $0x58] sm:$0xf]
  %v3190 = vld [vmem:[%s3 + $0x5c] sm:$0xf]
  %v3191 = vld [vmem:[%s3 + $0x60] sm:$0xf]
  %v3192 = vld [vmem:[%s3 + $0x64] sm:$0xf]
  %v3193 = vld [vmem:[%s3 + $0x68] sm:$0xf]
  %v3194 = vld [vmem:[%s3 + $0x6c] sm:$0xf]
  %v3195 = vld [vmem:[%s3 + $0x70] sm:$0xf]
  %v3196 = vld [vmem:[%s3 + $0x74] sm:$0xf]
  %v3197 = vld [vmem:[%s3 + $0x78] sm:$0xf]
  %v3198 = vld [vmem:[%s3 + $0x7c] sm:$0xf]
  %v3199 = vld [vmem:[%s3 + $0x80] sm:$0xf]
  %v3200 = vld [vmem:[%s3 + $0x84] sm:$0xf]
  %v3201 = vld [vmem:[%s3 + $0x88] sm:$0xf]
  %v3202 = vld [vmem:[%s3 + $0x8c] sm:$0xf]
  %v3203 = vld [vmem:[%s3 + $0x90] sm:$0xf]
  %v3204 = vld [vmem:[%s3 + $0x94] sm:$0xf]
  %v3205 = vld [vmem:[%s3 + $0x98] sm:$0xf]
  %v3206 = vld [vmem:[%s3 + $0x9c] sm:$0xf]
  %v3207 = vld [vmem:[%s3 + $0xa0] sm:$0xf]
  %v3208 = vld [vmem:[%s3 + $0xa4] sm:$0xf]
  %v3209 = vld [vmem:[%s3 + $0xa8] sm:$0xf]
  %v3210 = vld [vmem:[%s3 + $0xac] sm:$0xf]
  %v3211 = vld [vmem:[%s3 + $0xb0] sm:$0xf]
  %v3212 = vld [vmem:[%s3 + $0xb4] sm:$0xf]
  %v3213 = vld [vmem:[%s3 + $0xb8] sm:$0xf]
  %v3214 = vld [vmem:[%s3 + $0xbc] sm:$0xf]
  %v3215 = vld [vmem:[%s3 + $0xc0] sm:$0xf]
  %v3216 = vld [vmem:[%s3 + $0xc4] sm:$0xf]
  %v3217 = vld [vmem:[%s3 + $0xc8] sm:$0xf]
  %v3218 = vld [vmem:[%s3 + $0xcc] sm:$0xf]
  %v3219 = vld [vmem:[%s3 + $0xd0] sm:$0xf]
  %v3220 = vld [vmem:[%s3 + $0xd4] sm:$0xf]
  %v3221 = vld [vmem:[%s3 + $0xd8] sm:$0xf]
  %v3222 = vld [vmem:[%s3 + $0xdc] sm:$0xf]
  %v3223 = vld [vmem:[%s3 + $0xe0] sm:$0xf]
  %v3224 = vld [vmem:[%s3 + $0xe4] sm:$0xf]
  %v3225 = vld [vmem:[%s3 + $0xe8] sm:$0xf]
  %v3226 = vld [vmem:[%s3 + $0xec] sm:$0xf]
  %v3227 = vld [vmem:[%s3 + $0xf0] sm:$0xf]
  %v3228 = vld [vmem:[%s3 + $0xf4] sm:$0xf]
  %v3229 = vld [vmem:[%s3 + $0xf8] sm:$0xf]
  %v3230 = vld [vmem:[%s3 + $0xfc] sm:$0xf]
  %v3231 = vld [vmem:[%s3 + $0x100] sm:$0xf]
  %v3232 = vld [vmem:[%s3 + $0x104] sm:$0xf]
  %v3233 = vld [vmem:[%s3 + $0x108] sm:$0xf]
  %v3234 = vld [vmem:[%s3 + $0x10c] sm:$0xf]
  %v3235 = vld [vmem:[%s3 + $0x110] sm:$0xf]
  %v3236 = vld [vmem:[%s3 + $0x114] sm:$0xf]
  %v3237 = vld [vmem:[%s3 + $0x118] sm:$0xf]
  %v3238 = vld [vmem:[%s3 + $0x11c] sm:$0xf]
  %v3239 = vld [vmem:[%s3 + $0x120] sm:$0xf]
  %v3240 = vld [vmem:[%s3 + $0x124] sm:$0xf]
  %v3241 = vld [vmem:[%s3 + $0x128] sm:$0xf]
  %v3242 = vld [vmem:[%s3 + $0x12c] sm:$0xf]
  %v3243 = vld [vmem:[%s3 + $0x130] sm:$0xf]
  %v3244 = vld [vmem:[%s3 + $0x134] sm:$0xf]
  %v3245 = vld [vmem:[%s3 + $0x138] sm:$0xf]
  %v3246 = vld [vmem:[%s3 + $0x13c] sm:$0xf]
  %v3247 = vld [vmem:[%s3 + $0x140] sm:$0xf]
  %v3248 = vld [vmem:[%s3 + $0x144] sm:$0xf]
  %v3249 = vld [vmem:[%s3 + $0x148] sm:$0xf]
  %v3250 = vld [vmem:[%s3 + $0x14c] sm:$0xf]
  %v3251 = vld [vmem:[%s3 + $0x150] sm:$0xf]
  %v3252 = vld [vmem:[%s3 + $0x154] sm:$0xf]
  %v3253 = vld [vmem:[%s3 + $0x158] sm:$0xf]
  %v3254 = vld [vmem:[%s3 + $0x15c] sm:$0xf]
  %v3255 = vld [vmem:[%s3 + $0x160] sm:$0xf]
  %v3256 = vld [vmem:[%s3 + $0x164] sm:$0xf]
  %v3257 = vld [vmem:[%s3 + $0x168] sm:$0xf]
  %v3258 = vld [vmem:[%s3 + $0x16c] sm:$0xf]
  %v3259 = vld [vmem:[%s3 + $0x170] sm:$0xf]
  %v3260 = vld [vmem:[%s3 + $0x174] sm:$0xf]
  %v3261 = vld [vmem:[%s3 + $0x178] sm:$0xf]
  %v3262 = vld [vmem:[%s3 + $0x17c] sm:$0xf]
  %v3263 = vld [vmem:[%s3 + $0x180] sm:$0xf]
  %v3264 = vld [vmem:[%s3 + $0x184] sm:$0xf]
  %v3265 = vld [vmem:[%s3 + $0x188] sm:$0xf]
  %v3266 = vld [vmem:[%s3 + $0x18c] sm:$0xf]
  %v3267 = vld [vmem:[%s3 + $0x190] sm:$0xf]
  %v3268 = vld [vmem:[%s3 + $0x194] sm:$0xf]
  %v3269 = vld [vmem:[%s3 + $0x198] sm:$0xf]
  %v3270 = vld [vmem:[%s3 + $0x19c] sm:$0xf]
  %v3271 = vld [vmem:[%s3 + $0x1a0] sm:$0xf]
  %v3272 = vld [vmem:[%s3 + $0x1a4] sm:$0xf]
  %v3273 = vld [vmem:[%s3 + $0x1a8] sm:$0xf]
  %v3274 = vld [vmem:[%s3 + $0x1ac] sm:$0xf]
  %v3275 = vld [vmem:[%s3 + $0x1b0] sm:$0xf]
  %v3276 = vld [vmem:[%s3 + $0x1b4] sm:$0xf]
  %v3277 = vld [vmem:[%s3 + $0x1b8] sm:$0xf]
  %v3278 = vld [vmem:[%s3 + $0x1bc] sm:$0xf]
  %v3279 = vld [vmem:[%s3 + $0x1c0] sm:$0xf]
  %v3280 = vld [vmem:[%s3 + $0x1c4] sm:$0xf]
  %v3281 = vld [vmem:[%s3 + $0x1c8] sm:$0xf]
  %v3282 = vld [vmem:[%s3 + $0x1cc] sm:$0xf]
  %v3283 = vld [vmem:[%s3 + $0x1d0] sm:$0xf]
  %v3284 = vld [vmem:[%s3 + $0x1d4] sm:$0xf]
  %v3285 = vld [vmem:[%s3 + $0x1d8] sm:$0xf]
  %v3286 = vld [vmem:[%s3 + $0x1dc] sm:$0xf]
  %v3287 = vld [vmem:[%s3 + $0x1e0] sm:$0xf]
  %v3288 = vld [vmem:[%s3 + $0x1e4] sm:$0xf]
  %v3289 = vld [vmem:[%s3 + $0x1e8] sm:$0xf]
  %v3290 = vld [vmem:[%s3 + $0x1ec] sm:$0xf]
  %v3291 = vld [vmem:[%s3 + $0x1f0] sm:$0xf]
  %v3292 = vld [vmem:[%s3 + $0x1f4] sm:$0xf]
  %v3293 = vld [vmem:[%s3 + $0x1f8] sm:$0xf]
  %v3294 = vld [vmem:[%s3 + $0x1fc] sm:$0xf]
  %v3295 = vld [vmem:[%s3 + $0x200] sm:$0xf]
  %v3296 = vld [vmem:[%s3 + $0x204] sm:$0xf]
  %v3297 = vld [vmem:[%s3 + $0x208] sm:$0xf]
  %v3298 = vld [vmem:[%s3 + $0x20c] sm:$0xf]
  %v3299 = vld [vmem:[%s3 + $0x210] sm:$0xf]
  %v3300 = vld [vmem:[%s3 + $0x214] sm:$0xf]
  %v3301 = vld [vmem:[%s3 + $0x218] sm:$0xf]
  %v3302 = vld [vmem:[%s3 + $0x21c] sm:$0xf]
  %v3303 = vld [vmem:[%s3 + $0x220] sm:$0xf]
  %v3304 = vld [vmem:[%s3 + $0x224] sm:$0xf]
  %v3305 = vld [vmem:[%s3 + $0x228] sm:$0xf]
  %v3306 = vld [vmem:[%s3 + $0x22c] sm:$0xf]
  %v3307 = vld [vmem:[%s3 + $0x230] sm:$0xf]
  %v3308 = vld [vmem:[%s3 + $0x234] sm:$0xf]
  %v3309 = vld [vmem:[%s3 + $0x238] sm:$0xf]
  %v3310 = vld [vmem:[%s3 + $0x23c] sm:$0xf]
  %v3311 = vld [vmem:[%s3 + $0x240] sm:$0xf]
  %v3312 = vld [vmem:[%s3 + $0x244] sm:$0xf]
  %v3313 = vld [vmem:[%s3 + $0x248] sm:$0xf]
  %v3314 = vld [vmem:[%s3 + $0x24c] sm:$0xf]
  %v3315 = vld [vmem:[%s3 + $0x250] sm:$0xf]
  %v3316 = vld [vmem:[%s3 + $0x254] sm:$0xf]
  %v3317 = vld [vmem:[%s3 + $0x258] sm:$0xf]
  %v3318 = vld [vmem:[%s3 + $0x25c] sm:$0xf]
  %v3319 = vld [vmem:[%s3 + $0x260] sm:$0xf]
  %v3320 = vld [vmem:[%s3 + $0x264] sm:$0xf]
  %v3321 = vld [vmem:[%s3 + $0x268] sm:$0xf]
  %v3322 = vld [vmem:[%s3 + $0x26c] sm:$0xf]
  %v3323 = vld [vmem:[%s3 + $0x270] sm:$0xf]
  %v3324 = vld [vmem:[%s3 + $0x274] sm:$0xf]
  %v3325 = vld [vmem:[%s3 + $0x278] sm:$0xf]
  %v3326 = vld [vmem:[%s3 + $0x27c] sm:$0xf]
  %v3327 = vld [vmem:[%s3 + $0x280] sm:$0xf]
  %v3328 = vld [vmem:[%s3 + $0x284] sm:$0xf]
  %v3329 = vld [vmem:[%s3 + $0x288] sm:$0xf]
  %v3330 = vld [vmem:[%s3 + $0x28c] sm:$0xf]
  %v3331 = vld [vmem:[%s3 + $0x290] sm:$0xf]
  %v3332 = vld [vmem:[%s3 + $0x294] sm:$0xf]
  %v3333 = vld [vmem:[%s3 + $0x298] sm:$0xf]
  %v3334 = vld [vmem:[%s3 + $0x29c] sm:$0xf]
  %v3335 = vld [vmem:[%s3 + $0x2a0] sm:$0xf]
  %v3336 = vld [vmem:[%s3 + $0x2a4] sm:$0xf]
  %v3337 = vld [vmem:[%s3 + $0x2a8] sm:$0xf]
  %v3338 = vld [vmem:[%s3 + $0x2ac] sm:$0xf]
  %v3339 = vld [vmem:[%s3 + $0x2b0] sm:$0xf]
  %v3340 = vld [vmem:[%s3 + $0x2b4] sm:$0xf]
  %v3341 = vld [vmem:[%s3 + $0x2b8] sm:$0xf]
  %v3342 = vld [vmem:[%s3 + $0x2bc] sm:$0xf]
  %v3343 = vld [vmem:[%s3 + $0x2c0] sm:$0xf]
  %v3344 = vld [vmem:[%s3 + $0x2c4] sm:$0xf]
  %v3345 = vld [vmem:[%s3 + $0x2c8] sm:$0xf]
  %v3346 = vld [vmem:[%s3 + $0x2cc] sm:$0xf]
  %v3347 = vld [vmem:[%s3 + $0x2d0] sm:$0xf]
  %v3348 = vld [vmem:[%s3 + $0x2d4] sm:$0xf]
  %v3349 = vld [vmem:[%s3 + $0x2d8] sm:$0xf]
  %v3350 = vld [vmem:[%s3 + $0x2dc] sm:$0xf]
  %v3351 = vld [vmem:[%s3 + $0x2e0] sm:$0xf]
  %v3352 = vld [vmem:[%s3 + $0x2e4] sm:$0xf]
  %v3353 = vld [vmem:[%s3 + $0x2e8] sm:$0xf]
  %v3354 = vld [vmem:[%s3 + $0x2ec] sm:$0xf]
  %v3355 = vld [vmem:[%s3 + $0x2f0] sm:$0xf]
  %v3356 = vld [vmem:[%s3 + $0x2f4] sm:$0xf]
  %v3357 = vld [vmem:[%s3 + $0x2f8] sm:$0xf]
  %v3358 = vld [vmem:[%s3 + $0x2fc] sm:$0xf]
  %v3359 = vld [vmem:[%s3 + $0x300] sm:$0xf]
  %v3360 = vld [vmem:[%s3 + $0x304] sm:$0xf]
  %v3361 = vld [vmem:[%s3 + $0x308] sm:$0xf]
  %v3362 = vld [vmem:[%s3 + $0x30c] sm:$0xf]
  %v3363 = vld [vmem:[%s3 + $0x310] sm:$0xf]
  %v3364 = vld [vmem:[%s3 + $0x314] sm:$0xf]
  %v3365 = vld [vmem:[%s3 + $0x318] sm:$0xf]
  %v3366 = vld [vmem:[%s3 + $0x31c] sm:$0xf]
  %v3367 = vld [vmem:[%s3 + $0x320] sm:$0xf]
  %v3368 = vld [vmem:[%s3 + $0x324] sm:$0xf]
  %v3369 = vld [vmem:[%s3 + $0x328] sm:$0xf]
  %v3370 = vld [vmem:[%s3 + $0x32c] sm:$0xf]
  %v3371 = vld [vmem:[%s3 + $0x330] sm:$0xf]
  %v3372 = vld [vmem:[%s3 + $0x334] sm:$0xf]
  %v3373 = vld [vmem:[%s3 + $0x338] sm:$0xf]
  %v3374 = vld [vmem:[%s3 + $0x33c] sm:$0xf]
  %v3375 = vld [vmem:[%s3 + $0x340] sm:$0xf]
  %v3376 = vld [vmem:[%s3 + $0x344] sm:$0xf]
  %v3377 = vld [vmem:[%s3 + $0x348] sm:$0xf]
  %v3378 = vld [vmem:[%s3 + $0x34c] sm:$0xf]
  %v3379 = vld [vmem:[%s3 + $0x350] sm:$0xf]
  %v3380 = vld [vmem:[%s3 + $0x354] sm:$0xf]
  %v3381 = vld [vmem:[%s3 + $0x358] sm:$0xf]
  %v3382 = vld [vmem:[%s3 + $0x35c] sm:$0xf]
  %v3383 = vld [vmem:[%s3 + $0x360] sm:$0xf]
  %v3384 = vld [vmem:[%s3 + $0x364] sm:$0xf]
  %v3385 = vld [vmem:[%s3 + $0x368] sm:$0xf]
  %v3386 = vld [vmem:[%s3 + $0x36c] sm:$0xf]
  %v3387 = vld [vmem:[%s3 + $0x370] sm:$0xf]
  %v3388 = vld [vmem:[%s3 + $0x374] sm:$0xf]
  %v3389 = vld [vmem:[%s3 + $0x378] sm:$0xf]
  %v3390 = vld [vmem:[%s3 + $0x37c] sm:$0xf]
  %v3391 = vld [vmem:[%s3 + $0x380] sm:$0xf]
  %v3392 = vld [vmem:[%s3 + $0x384] sm:$0xf]
  %v3393 = vld [vmem:[%s3 + $0x388] sm:$0xf]
  %v3394 = vld [vmem:[%s3 + $0x38c] sm:$0xf]
  %v3395 = vld [vmem:[%s3 + $0x390] sm:$0xf]
  %v3396 = vld [vmem:[%s3 + $0x394] sm:$0xf]
  %v3397 = vld [vmem:[%s3 + $0x398] sm:$0xf]
  %v3398 = vld [vmem:[%s3 + $0x39c] sm:$0xf]
  %v3399 = vld [vmem:[%s3 + $0x3a0] sm:$0xf]
  %v3400 = vld [vmem:[%s3 + $0x3a4] sm:$0xf]
  %v3401 = vld [vmem:[%s3 + $0x3a8] sm:$0xf]
  %v3402 = vld [vmem:[%s3 + $0x3ac] sm:$0xf]
  %v3403 = vld [vmem:[%s3 + $0x3b0] sm:$0xf]
  %v3404 = vld [vmem:[%s3 + $0x3b4] sm:$0xf]
  %v3405 = vld [vmem:[%s3 + $0x3b8] sm:$0xf]
  %v3406 = vld [vmem:[%s3 + $0x3bc] sm:$0xf]
  %v3407 = vld [vmem:[%s3 + $0x3c0] sm:$0xf]
  %v3408 = vld [vmem:[%s3 + $0x3c4] sm:$0xf]
  %v3409 = vld [vmem:[%s3 + $0x3c8] sm:$0xf]
  %v3410 = vld [vmem:[%s3 + $0x3cc] sm:$0xf]
  %v3411 = vld [vmem:[%s3 + $0x3d0] sm:$0xf]
  %v3412 = vld [vmem:[%s3 + $0x3d4] sm:$0xf]
  %v3413 = vld [vmem:[%s3 + $0x3d8] sm:$0xf]
  %v3414 = vld [vmem:[%s3 + $0x3dc] sm:$0xf]
  %v3415 = vld [vmem:[%s3 + $0x3e0] sm:$0xf]
  %v3416 = vld [vmem:[%s3 + $0x3e4] sm:$0xf]
  %v3417 = vld [vmem:[%s3 + $0x3e8] sm:$0xf]
  %v3418 = vld [vmem:[%s3 + $0x3ec] sm:$0xf]
  %v3419 = vld [vmem:[%s3 + $0x3f0] sm:$0xf]
  %v3420 = vld [vmem:[%s3 + $0x3f4] sm:$0xf]
  %v3421 = vld [vmem:[%s3 + $0x3f8] sm:$0xf]
  %v3422 = vld [vmem:[%s3 + $0x3fc] sm:$0xf]
  %v3423 = vld [vmem:[%s4] sm:$0x1]
  %v3425 = vperm.slane %v3423, 0
  %v3683 = vunpack.c.l.b16 %v3167
  %v3684 = vunpack.c.l.b16 %v3168
  %v3685 = vunpack.c.l.b16 %v3169
  %v3686 = vunpack.c.l.b16 %v3170
  %v3687 = vunpack.c.l.b16 %v3171
  %v3688 = vunpack.c.l.b16 %v3172
  %v3689 = vunpack.c.l.b16 %v3173
  %v3690 = vunpack.c.l.b16 %v3174
  %v3691 = vunpack.c.l.b16 %v3175
  %v3692 = vunpack.c.l.b16 %v3176
  %v3693 = vunpack.c.l.b16 %v3177
  %v3694 = vunpack.c.l.b16 %v3178
  %v3695 = vunpack.c.l.b16 %v3179
  %v3696 = vunpack.c.l.b16 %v3180
  %v3697 = vunpack.c.l.b16 %v3181
  %v3698 = vunpack.c.l.b16 %v3182
  %v3699 = vunpack.c.l.b16 %v3183
  %v3700 = vunpack.c.l.b16 %v3184
  %v3701 = vunpack.c.l.b16 %v3185
  %v3702 = vunpack.c.l.b16 %v3186
  %v3703 = vunpack.c.l.b16 %v3187
  %v3704 = vunpack.c.l.b16 %v3188
  %v3705 = vunpack.c.l.b16 %v3189
  %v3706 = vunpack.c.l.b16 %v3190
  %v3707 = vunpack.c.l.b16 %v3191
  %v3708 = vunpack.c.l.b16 %v3192
  %v3709 = vunpack.c.l.b16 %v3193
  %v3710 = vunpack.c.l.b16 %v3194
  %v3711 = vunpack.c.l.b16 %v3195
  %v3712 = vunpack.c.l.b16 %v3196
  %v3713 = vunpack.c.l.b16 %v3197
  %v3714 = vunpack.c.l.b16 %v3198
  %v3715 = vunpack.c.l.b16 %v3199
  %v3716 = vunpack.c.l.b16 %v3200
  %v3717 = vunpack.c.l.b16 %v3201
  %v3718 = vunpack.c.l.b16 %v3202
  %v3719 = vunpack.c.l.b16 %v3203
  %v3720 = vunpack.c.l.b16 %v3204
  %v3721 = vunpack.c.l.b16 %v3205
  %v3722 = vunpack.c.l.b16 %v3206
  %v3723 = vunpack.c.l.b16 %v3207
  %v3724 = vunpack.c.l.b16 %v3208
  %v3725 = vunpack.c.l.b16 %v3209
  %v3726 = vunpack.c.l.b16 %v3210
  %v3727 = vunpack.c.l.b16 %v3211
  %v3728 = vunpack.c.l.b16 %v3212
  %v3729 = vunpack.c.l.b16 %v3213
  %v3730 = vunpack.c.l.b16 %v3214
  %v3731 = vunpack.c.l.b16 %v3215
  %v3732 = vunpack.c.l.b16 %v3216
  %v3733 = vunpack.c.l.b16 %v3217
  %v3734 = vunpack.c.l.b16 %v3218
  %v3735 = vunpack.c.l.b16 %v3219
  %v3736 = vunpack.c.l.b16 %v3220
  %v3737 = vunpack.c.l.b16 %v3221
  %v3738 = vunpack.c.l.b16 %v3222
  %v3739 = vunpack.c.l.b16 %v3223
  %v3740 = vunpack.c.l.b16 %v3224
  %v3741 = vunpack.c.l.b16 %v3225
  %v3742 = vunpack.c.l.b16 %v3226
  %v3743 = vunpack.c.l.b16 %v3227
  %v3744 = vunpack.c.l.b16 %v3228
  %v3745 = vunpack.c.l.b16 %v3229
  %v3746 = vunpack.c.l.b16 %v3230
  %v3747 = vunpack.c.l.b16 %v3231
  %v3748 = vunpack.c.l.b16 %v3232
  %v3749 = vunpack.c.l.b16 %v3233
  %v3750 = vunpack.c.l.b16 %v3234
  %v3751 = vunpack.c.l.b16 %v3235
  %v3752 = vunpack.c.l.b16 %v3236
  %v3753 = vunpack.c.l.b16 %v3237
  %v3754 = vunpack.c.l.b16 %v3238
  %v3755 = vunpack.c.l.b16 %v3239
  %v3756 = vunpack.c.l.b16 %v3240
  %v3757 = vunpack.c.l.b16 %v3241
  %v3758 = vunpack.c.l.b16 %v3242
  %v3759 = vunpack.c.l.b16 %v3243
  %v3760 = vunpack.c.l.b16 %v3244
  %v3761 = vunpack.c.l.b16 %v3245
  %v3762 = vunpack.c.l.b16 %v3246
  %v3763 = vunpack.c.l.b16 %v3247
  %v3764 = vunpack.c.l.b16 %v3248
  %v3765 = vunpack.c.l.b16 %v3249
  %v3766 = vunpack.c.l.b16 %v3250
  %v3767 = vunpack.c.l.b16 %v3251
  %v3768 = vunpack.c.l.b16 %v3252
  %v3769 = vunpack.c.l.b16 %v3253
  %v3770 = vunpack.c.l.b16 %v3254
  %v3771 = vunpack.c.l.b16 %v3255
  %v3772 = vunpack.c.l.b16 %v3256
  %v3773 = vunpack.c.l.b16 %v3257
  %v3774 = vunpack.c.l.b16 %v3258
  %v3775 = vunpack.c.l.b16 %v3259
  %v3776 = vunpack.c.l.b16 %v3260
  %v3777 = vunpack.c.l.b16 %v3261
  %v3778 = vunpack.c.l.b16 %v3262
  %v3779 = vunpack.c.l.b16 %v3263
  %v3780 = vunpack.c.l.b16 %v3264
  %v3781 = vunpack.c.l.b16 %v3265
  %v3782 = vunpack.c.l.b16 %v3266
  %v3783 = vunpack.c.l.b16 %v3267
  %v3784 = vunpack.c.l.b16 %v3268
  %v3785 = vunpack.c.l.b16 %v3269
  %v3786 = vunpack.c.l.b16 %v3270
  %v3787 = vunpack.c.l.b16 %v3271
  %v3788 = vunpack.c.l.b16 %v3272
  %v3789 = vunpack.c.l.b16 %v3273
  %v3790 = vunpack.c.l.b16 %v3274
  %v3791 = vunpack.c.l.b16 %v3275
  %v3792 = vunpack.c.l.b16 %v3276
  %v3793 = vunpack.c.l.b16 %v3277
  %v3794 = vunpack.c.l.b16 %v3278
  %v3795 = vunpack.c.l.b16 %v3279
  %v3796 = vunpack.c.l.b16 %v3280
  %v3797 = vunpack.c.l.b16 %v3281
  %v3798 = vunpack.c.l.b16 %v3282
  %v3799 = vunpack.c.l.b16 %v3283
  %v3800 = vunpack.c.l.b16 %v3284
  %v3801 = vunpack.c.l.b16 %v3285
  %v3802 = vunpack.c.l.b16 %v3286
  %v3803 = vunpack.c.l.b16 %v3287
  %v3804 = vunpack.c.l.b16 %v3288
  %v3805 = vunpack.c.l.b16 %v3289
  %v3806 = vunpack.c.l.b16 %v3290
  %v3807 = vunpack.c.l.b16 %v3291
  %v3808 = vunpack.c.l.b16 %v3292
  %v3809 = vunpack.c.l.b16 %v3293
  %v3810 = vunpack.c.l.b16 %v3294
  %v3811 = vunpack.c.l.b16 %v3295
  %v3812 = vunpack.c.l.b16 %v3296
  %v3813 = vunpack.c.l.b16 %v3297
  %v3814 = vunpack.c.l.b16 %v3298
  %v3815 = vunpack.c.l.b16 %v3299
  %v3816 = vunpack.c.l.b16 %v3300
  %v3817 = vunpack.c.l.b16 %v3301
  %v3818 = vunpack.c.l.b16 %v3302
  %v3819 = vunpack.c.l.b16 %v3303
  %v3820 = vunpack.c.l.b16 %v3304
  %v3821 = vunpack.c.l.b16 %v3305
  %v3822 = vunpack.c.l.b16 %v3306
  %v3823 = vunpack.c.l.b16 %v3307
  %v3824 = vunpack.c.l.b16 %v3308
  %v3825 = vunpack.c.l.b16 %v3309
  %v3826 = vunpack.c.l.b16 %v3310
  %v3827 = vunpack.c.l.b16 %v3311
  %v3828 = vunpack.c.l.b16 %v3312
  %v3829 = vunpack.c.l.b16 %v3313
  %v3830 = vunpack.c.l.b16 %v3314
  %v3831 = vunpack.c.l.b16 %v3315
  %v3832 = vunpack.c.l.b16 %v3316
  %v3833 = vunpack.c.l.b16 %v3317
  %v3834 = vunpack.c.l.b16 %v3318
  %v3835 = vunpack.c.l.b16 %v3319
  %v3836 = vunpack.c.l.b16 %v3320
  %v3837 = vunpack.c.l.b16 %v3321
  %v3838 = vunpack.c.l.b16 %v3322
  %v3839 = vunpack.c.l.b16 %v3323
  %v3840 = vunpack.c.l.b16 %v3324
  %v3841 = vunpack.c.l.b16 %v3325
  %v3842 = vunpack.c.l.b16 %v3326
  %v3843 = vunpack.c.l.b16 %v3327
  %v3844 = vunpack.c.l.b16 %v3328
  %v3845 = vunpack.c.l.b16 %v3329
  %v3846 = vunpack.c.l.b16 %v3330
  %v3847 = vunpack.c.l.b16 %v3331
  %v3848 = vunpack.c.l.b16 %v3332
  %v3849 = vunpack.c.l.b16 %v3333
  %v3850 = vunpack.c.l.b16 %v3334
  %v3851 = vunpack.c.l.b16 %v3335
  %v3852 = vunpack.c.l.b16 %v3336
  %v3853 = vunpack.c.l.b16 %v3337
  %v3854 = vunpack.c.l.b16 %v3338
  %v3855 = vunpack.c.l.b16 %v3339
  %v3856 = vunpack.c.l.b16 %v3340
  %v3857 = vunpack.c.l.b16 %v3341
  %v3858 = vunpack.c.l.b16 %v3342
  %v3859 = vunpack.c.l.b16 %v3343
  %v3860 = vunpack.c.l.b16 %v3344
  %v3861 = vunpack.c.l.b16 %v3345
  %v3862 = vunpack.c.l.b16 %v3346
  %v3863 = vunpack.c.l.b16 %v3347
  %v3864 = vunpack.c.l.b16 %v3348
  %v3865 = vunpack.c.l.b16 %v3349
  %v3866 = vunpack.c.l.b16 %v3350
  %v3867 = vunpack.c.l.b16 %v3351
  %v3868 = vunpack.c.l.b16 %v3352
  %v3869 = vunpack.c.l.b16 %v3353
  %v3870 = vunpack.c.l.b16 %v3354
  %v3871 = vunpack.c.l.b16 %v3355
  %v3872 = vunpack.c.l.b16 %v3356
  %v3873 = vunpack.c.l.b16 %v3357
  %v3874 = vunpack.c.l.b16 %v3358
  %v3875 = vunpack.c.l.b16 %v3359
  %v3876 = vunpack.c.l.b16 %v3360
  %v3877 = vunpack.c.l.b16 %v3361
  %v3878 = vunpack.c.l.b16 %v3362
  %v3879 = vunpack.c.l.b16 %v3363
  %v3880 = vunpack.c.l.b16 %v3364
  %v3881 = vunpack.c.l.b16 %v3365
  %v3882 = vunpack.c.l.b16 %v3366
  %v3883 = vunpack.c.l.b16 %v3367
  %v3884 = vunpack.c.l.b16 %v3368
  %v3885 = vunpack.c.l.b16 %v3369
  %v3886 = vunpack.c.l.b16 %v3370
  %v3887 = vunpack.c.l.b16 %v3371
  %v3888 = vunpack.c.l.b16 %v3372
  %v3889 = vunpack.c.l.b16 %v3373
  %v3890 = vunpack.c.l.b16 %v3374
  %v3891 = vunpack.c.l.b16 %v3375
  %v3892 = vunpack.c.l.b16 %v3376
  %v3893 = vunpack.c.l.b16 %v3377
  %v3894 = vunpack.c.l.b16 %v3378
  %v3895 = vunpack.c.l.b16 %v3379
  %v3896 = vunpack.c.l.b16 %v3380
  %v3897 = vunpack.c.l.b16 %v3381
  %v3898 = vunpack.c.l.b16 %v3382
  %v3899 = vunpack.c.l.b16 %v3383
  %v3900 = vunpack.c.l.b16 %v3384
  %v3901 = vunpack.c.l.b16 %v3385
  %v3902 = vunpack.c.l.b16 %v3386
  %v3903 = vunpack.c.l.b16 %v3387
  %v3904 = vunpack.c.l.b16 %v3388
  %v3905 = vunpack.c.l.b16 %v3389
  %v3906 = vunpack.c.l.b16 %v3390
  %v3907 = vunpack.c.l.b16 %v3391
  %v3908 = vunpack.c.l.b16 %v3392
  %v3909 = vunpack.c.l.b16 %v3393
  %v3910 = vunpack.c.l.b16 %v3394
  %v3911 = vunpack.c.l.b16 %v3395
  %v3912 = vunpack.c.l.b16 %v3396
  %v3913 = vunpack.c.l.b16 %v3397
  %v3914 = vunpack.c.l.b16 %v3398
  %v3915 = vunpack.c.l.b16 %v3399
  %v3916 = vunpack.c.l.b16 %v3400
  %v3917 = vunpack.c.l.b16 %v3401
  %v3918 = vunpack.c.l.b16 %v3402
  %v3919 = vunpack.c.l.b16 %v3403
  %v3920 = vunpack.c.l.b16 %v3404
  %v3921 = vunpack.c.l.b16 %v3405
  %v3922 = vunpack.c.l.b16 %v3406
  %v3923 = vunpack.c.l.b16 %v3407
  %v3924 = vunpack.c.l.b16 %v3408
  %v3925 = vunpack.c.l.b16 %v3409
  %v3926 = vunpack.c.l.b16 %v3410
  %v3927 = vunpack.c.l.b16 %v3411
  %v3928 = vunpack.c.l.b16 %v3412
  %v3929 = vunpack.c.l.b16 %v3413
  %v3930 = vunpack.c.l.b16 %v3414
  %v3931 = vunpack.c.l.b16 %v3415
  %v3932 = vunpack.c.l.b16 %v3416
  %v3933 = vunpack.c.l.b16 %v3417
  %v3934 = vunpack.c.l.b16 %v3418
  %v3935 = vunpack.c.l.b16 %v3419
  %v3936 = vunpack.c.l.b16 %v3420
  %v3937 = vunpack.c.l.b16 %v3421
  %v3938 = vunpack.c.l.b16 %v3422
  %v3939 = vpack.c.b16 %v3684, %v3683
  %v3940 = vpack.c.b16 %v3686, %v3685
  %v3941 = vpack.c.b16 %v3688, %v3687
  %v3942 = vpack.c.b16 %v3690, %v3689
  %v3943 = vpack.c.b16 %v3692, %v3691
  %v3944 = vpack.c.b16 %v3694, %v3693
  %v3945 = vpack.c.b16 %v3696, %v3695
  %v3946 = vpack.c.b16 %v3698, %v3697
  %v3947 = vpack.c.b16 %v3700, %v3699
  %v3948 = vpack.c.b16 %v3702, %v3701
  %v3949 = vpack.c.b16 %v3704, %v3703
  %v3950 = vpack.c.b16 %v3706, %v3705
  %v3951 = vpack.c.b16 %v3708, %v3707
  %v3952 = vpack.c.b16 %v3710, %v3709
  %v3953 = vpack.c.b16 %v3712, %v3711
  %v3954 = vpack.c.b16 %v3714, %v3713
  %v3955 = vpack.c.b16 %v3716, %v3715
  %v3956 = vpack.c.b16 %v3718, %v3717
  %v3957 = vpack.c.b16 %v3720, %v3719
  %v3958 = vpack.c.b16 %v3722, %v3721
  %v3959 = vpack.c.b16 %v3724, %v3723
  %v3960 = vpack.c.b16 %v3726, %v3725
  %v3961 = vpack.c.b16 %v3728, %v3727
  %v3962 = vpack.c.b16 %v3730, %v3729
  %v3963 = vpack.c.b16 %v3732, %v3731
  %v3964 = vpack.c.b16 %v3734, %v3733
  %v3965 = vpack.c.b16 %v3736, %v3735
  %v3966 = vpack.c.b16 %v3738, %v3737
  %v3967 = vpack.c.b16 %v3740, %v3739
  %v3968 = vpack.c.b16 %v3742, %v3741
  %v3969 = vpack.c.b16 %v3744, %v3743
  %v3970 = vpack.c.b16 %v3746, %v3745
  %v3971 = vpack.c.b16 %v3748, %v3747
  %v3972 = vpack.c.b16 %v3750, %v3749
  %v3973 = vpack.c.b16 %v3752, %v3751
  %v3974 = vpack.c.b16 %v3754, %v3753
  %v3975 = vpack.c.b16 %v3756, %v3755
  %v3976 = vpack.c.b16 %v3758, %v3757
  %v3977 = vpack.c.b16 %v3760, %v3759
  %v3978 = vpack.c.b16 %v3762, %v3761
  %v3979 = vpack.c.b16 %v3764, %v3763
  %v3980 = vpack.c.b16 %v3766, %v3765
  %v3981 = vpack.c.b16 %v3768, %v3767
  %v3982 = vpack.c.b16 %v3770, %v3769
  %v3983 = vpack.c.b16 %v3772, %v3771
  %v3984 = vpack.c.b16 %v3774, %v3773
  %v3985 = vpack.c.b16 %v3776, %v3775
  %v3986 = vpack.c.b16 %v3778, %v3777
  %v3987 = vpack.c.b16 %v3780, %v3779
  %v3988 = vpack.c.b16 %v3782, %v3781
  %v3989 = vpack.c.b16 %v3784, %v3783
  %v3990 = vpack.c.b16 %v3786, %v3785
  %v3991 = vpack.c.b16 %v3788, %v3787
  %v3992 = vpack.c.b16 %v3790, %v3789
  %v3993 = vpack.c.b16 %v3792, %v3791
  %v3994 = vpack.c.b16 %v3794, %v3793
  %v3995 = vpack.c.b16 %v3796, %v3795
  %v3996 = vpack.c.b16 %v3798, %v3797
  %v3997 = vpack.c.b16 %v3800, %v3799
  %v3998 = vpack.c.b16 %v3802, %v3801
  %v3999 = vpack.c.b16 %v3804, %v3803
  %v4000 = vpack.c.b16 %v3806, %v3805
  %v4001 = vpack.c.b16 %v3808, %v3807
  %v4002 = vpack.c.b16 %v3810, %v3809
  %v4003 = vpack.c.b16 %v3812, %v3811
  %v4004 = vpack.c.b16 %v3814, %v3813
  %v4005 = vpack.c.b16 %v3816, %v3815
  %v4006 = vpack.c.b16 %v3818, %v3817
  %v4007 = vpack.c.b16 %v3820, %v3819
  %v4008 = vpack.c.b16 %v3822, %v3821
  %v4009 = vpack.c.b16 %v3824, %v3823
  %v4010 = vpack.c.b16 %v3826, %v3825
  %v4011 = vpack.c.b16 %v3828, %v3827
  %v4012 = vpack.c.b16 %v3830, %v3829
  %v4013 = vpack.c.b16 %v3832, %v3831
  %v4014 = vpack.c.b16 %v3834, %v3833
  %v4015 = vpack.c.b16 %v3836, %v3835
  %v4016 = vpack.c.b16 %v3838, %v3837
  %v4017 = vpack.c.b16 %v3840, %v3839
  %v4018 = vpack.c.b16 %v3842, %v3841
  %v4019 = vpack.c.b16 %v3844, %v3843
  %v4020 = vpack.c.b16 %v3846, %v3845
  %v4021 = vpack.c.b16 %v3848, %v3847
  %v4022 = vpack.c.b16 %v3850, %v3849
  %v4023 = vpack.c.b16 %v3852, %v3851
  %v4024 = vpack.c.b16 %v3854, %v3853
  %v4025 = vpack.c.b16 %v3856, %v3855
  %v4026 = vpack.c.b16 %v3858, %v3857
  %v4027 = vpack.c.b16 %v3860, %v3859
  %v4028 = vpack.c.b16 %v3862, %v3861
  %v4029 = vpack.c.b16 %v3864, %v3863
  %v4030 = vpack.c.b16 %v3866, %v3865
  %v4031 = vpack.c.b16 %v3868, %v3867
  %v4032 = vpack.c.b16 %v3870, %v3869
  %v4033 = vpack.c.b16 %v3872, %v3871
  %v4034 = vpack.c.b16 %v3874, %v3873
  %v4035 = vpack.c.b16 %v3876, %v3875
  %v4036 = vpack.c.b16 %v3878, %v3877
  %v4037 = vpack.c.b16 %v3880, %v3879
  %v4038 = vpack.c.b16 %v3882, %v3881
  %v4039 = vpack.c.b16 %v3884, %v3883
  %v4040 = vpack.c.b16 %v3886, %v3885
  %v4041 = vpack.c.b16 %v3888, %v3887
  %v4042 = vpack.c.b16 %v3890, %v3889
  %v4043 = vpack.c.b16 %v3892, %v3891
  %v4044 = vpack.c.b16 %v3894, %v3893
  %v4045 = vpack.c.b16 %v3896, %v3895
  %v4046 = vpack.c.b16 %v3898, %v3897
  %v4047 = vpack.c.b16 %v3900, %v3899
  %v4048 = vpack.c.b16 %v3902, %v3901
  %v4049 = vpack.c.b16 %v3904, %v3903
  %v4050 = vpack.c.b16 %v3906, %v3905
  %v4051 = vpack.c.b16 %v3908, %v3907
  %v4052 = vpack.c.b16 %v3910, %v3909
  %v4053 = vpack.c.b16 %v3912, %v3911
  %v4054 = vpack.c.b16 %v3914, %v3913
  %v4055 = vpack.c.b16 %v3916, %v3915
  %v4056 = vpack.c.b16 %v3918, %v3917
  %v4057 = vpack.c.b16 %v3920, %v3919
  %v4058 = vpack.c.b16 %v3922, %v3921
  %v4059 = vpack.c.b16 %v3924, %v3923
  %v4060 = vpack.c.b16 %v3926, %v3925
  %v4061 = vpack.c.b16 %v3928, %v3927
  %v4062 = vpack.c.b16 %v3930, %v3929
  %v4063 = vpack.c.b16 %v3932, %v3931
  %v4064 = vpack.c.b16 %v3934, %v3933
  %v4065 = vpack.c.b16 %v3936, %v3935
  %v4066 = vpack.c.b16 %v3938, %v3937
  %4195 = vmatpush.bf16.msra.mxu0 %v3946
  %4196 = vmatpush.bf16.msra.mxu0 %v3945
  %4197 = vmatpush.bf16.msra.mxu0 %v3944
  %4198 = vmatpush.bf16.msra.mxu0 %v3943
  %4199 = vmatpush.bf16.msra.mxu0 %v3942
  %4200 = vmatpush.bf16.msra.mxu0 %v3941
  %4201 = vmatpush.bf16.msra.mxu0 %v3940
  %4202 = vmatpush.bf16.msra.mxu0 %v3939
  %4203 = vmatmul.bf16.gmra.mxu0 %v3151
  %v4204 = vpop.f32.mrf.mxu0
  %v4205 = vadd.f32 %v3425, %v4204
  %v4206 = vpop.f32.mrf.mxu0
  %4207 = vdwg.mxu0
  %4208 = vmatpush.bf16.msra.mxu0 %v3954
  %4209 = vmatpush.bf16.msra.mxu0 %v3953
  %4210 = vmatpush.bf16.msra.mxu0 %v3952
  %4211 = vmatpush.bf16.msra.mxu0 %v3951
  %4212 = vmatpush.bf16.msra.mxu0 %v3950
  %4213 = vmatpush.bf16.msra.mxu0 %v3949
  %4214 = vmatpush.bf16.msra.mxu0 %v3948
  %4215 = vmatpush.bf16.msra.mxu0 %v3947
  %4216 = vmatmul.bf16.gmra.mxu0 %v3152
  %v4217 = vpop.f32.mrf.mxu0
  %v4218 = vadd.f32 %v4205, %v4217
  %v4219 = vpop.f32.mrf.mxu0
  %4220 = vdwg.mxu0
  %4221 = vmatpush.bf16.msra.mxu0 %v3962
  %4222 = vmatpush.bf16.msra.mxu0 %v3961
  %4223 = vmatpush.bf16.msra.mxu0 %v3960
  %4224 = vmatpush.bf16.msra.mxu0 %v3959
  %4225 = vmatpush.bf16.msra.mxu0 %v3958
  %4226 = vmatpush.bf16.msra.mxu0 %v3957
  %4227 = vmatpush.bf16.msra.mxu0 %v3956
  %4228 = vmatpush.bf16.msra.mxu0 %v3955
  %4229 = vmatmul.bf16.gmra.mxu0 %v3153
  %v4230 = vpop.f32.mrf.mxu0
  %v4231 = vadd.f32 %v4218, %v4230
  %v4232 = vpop.f32.mrf.mxu0
  %4233 = vdwg.mxu0
  %4234 = vmatpush.bf16.msra.mxu0 %v3970
  %4235 = vmatpush.bf16.msra.mxu0 %v3969
  %4236 = vmatpush.bf16.msra.mxu0 %v3968
  %4237 = vmatpush.bf16.msra.mxu0 %v3967
  %4238 = vmatpush.bf16.msra.mxu0 %v3966
  %4239 = vmatpush.bf16.msra.mxu0 %v3965
  %4240 = vmatpush.bf16.msra.mxu0 %v3964
  %4241 = vmatpush.bf16.msra.mxu0 %v3963
  %4242 = vmatmul.bf16.gmra.mxu0 %v3154
  %v4243 = vpop.f32.mrf.mxu0
  %v4244 = vadd.f32 %v4231, %v4243
  %v4245 = vpop.f32.mrf.mxu0
  %4246 = vdwg.mxu0
  %4247 = vmatpush.bf16.msra.mxu0 %v3978
  %4248 = vmatpush.bf16.msra.mxu0 %v3977
  %4249 = vmatpush.bf16.msra.mxu0 %v3976
  %4250 = vmatpush.bf16.msra.mxu0 %v3975
  %4251 = vmatpush.bf16.msra.mxu0 %v3974
  %4252 = vmatpush.bf16.msra.mxu0 %v3973
  %4253 = vmatpush.bf16.msra.mxu0 %v3972
  %4254 = vmatpush.bf16.msra.mxu0 %v3971
  %4255 = vmatmul.bf16.gmra.mxu0 %v3155
  %v4256 = vpop.f32.mrf.mxu0
  %v4257 = vadd.f32 %v4244, %v4256
  %v4258 = vpop.f32.mrf.mxu0
  %4259 = vdwg.mxu0
  %4260 = vmatpush.bf16.msra.mxu0 %v3986
  %4261 = vmatpush.bf16.msra.mxu0 %v3985
  %4262 = vmatpush.bf16.msra.mxu0 %v3984
  %4263 = vmatpush.bf16.msra.mxu0 %v3983
  %4264 = vmatpush.bf16.msra.mxu0 %v3982
  %4265 = vmatpush.bf16.msra.mxu0 %v3981
  %4266 = vmatpush.bf16.msra.mxu0 %v3980
  %4267 = vmatpush.bf16.msra.mxu0 %v3979
  %4268 = vmatmul.bf16.gmra.mxu0 %v3156
  %v4269 = vpop.f32.mrf.mxu0
  %v4270 = vadd.f32 %v4257, %v4269
  %v4271 = vpop.f32.mrf.mxu0
  %4272 = vdwg.mxu0
  %4273 = vmatpush.bf16.msra.mxu0 %v3994
  %4274 = vmatpush.bf16.msra.mxu0 %v3993
  %4275 = vmatpush.bf16.msra.mxu0 %v3992
  %4276 = vmatpush.bf16.msra.mxu0 %v3991
  %4277 = vmatpush.bf16.msra.mxu0 %v3990
  %4278 = vmatpush.bf16.msra.mxu0 %v3989
  %4279 = vmatpush.bf16.msra.mxu0 %v3988
  %4280 = vmatpush.bf16.msra.mxu0 %v3987
  %4281 = vmatmul.bf16.gmra.mxu0 %v3157
  %v4282 = vpop.f32.mrf.mxu0
  %v4283 = vadd.f32 %v4270, %v4282
  %v4284 = vpop.f32.mrf.mxu0
  %4285 = vdwg.mxu0
  %4286 = vmatpush.bf16.msra.mxu0 %v4002
  %4287 = vmatpush.bf16.msra.mxu0 %v4001
  %4288 = vmatpush.bf16.msra.mxu0 %v4000
  %4289 = vmatpush.bf16.msra.mxu0 %v3999
  %4290 = vmatpush.bf16.msra.mxu0 %v3998
  %4291 = vmatpush.bf16.msra.mxu0 %v3997
  %4292 = vmatpush.bf16.msra.mxu0 %v3996
  %4293 = vmatpush.bf16.msra.mxu0 %v3995
  %4294 = vmatmul.bf16.gmra.mxu0 %v3158
  %v4295 = vpop.f32.mrf.mxu0
  %v4296 = vadd.f32 %v4283, %v4295
  %v4297 = vpop.f32.mrf.mxu0
  %4298 = vdwg.mxu0
  %4299 = vmatpush.bf16.msra.mxu0 %v4010
  %4300 = vmatpush.bf16.msra.mxu0 %v4009
  %4301 = vmatpush.bf16.msra.mxu0 %v4008
  %4302 = vmatpush.bf16.msra.mxu0 %v4007
  %4303 = vmatpush.bf16.msra.mxu0 %v4006
  %4304 = vmatpush.bf16.msra.mxu0 %v4005
  %4305 = vmatpush.bf16.msra.mxu0 %v4004
  %4306 = vmatpush.bf16.msra.mxu0 %v4003
  %4307 = vmatmul.bf16.gmra.mxu0 %v3159
  %v4308 = vpop.f32.mrf.mxu0
  %v4309 = vadd.f32 %v4296, %v4308
  %v4310 = vpop.f32.mrf.mxu0
  %4311 = vdwg.mxu0
  %4312 = vmatpush.bf16.msra.mxu0 %v4018
  %4313 = vmatpush.bf16.msra.mxu0 %v4017
  %4314 = vmatpush.bf16.msra.mxu0 %v4016
  %4315 = vmatpush.bf16.msra.mxu0 %v4015
  %4316 = vmatpush.bf16.msra.mxu0 %v4014
  %4317 = vmatpush.bf16.msra.mxu0 %v4013
  %4318 = vmatpush.bf16.msra.mxu0 %v4012
  %4319 = vmatpush.bf16.msra.mxu0 %v4011
  %4320 = vmatmul.bf16.gmra.mxu0 %v3160
  %v4321 = vpop.f32.mrf.mxu0
  %v4322 = vadd.f32 %v4309, %v4321
  %v4323 = vpop.f32.mrf.mxu0
  %4324 = vdwg.mxu0
  %4325 = vmatpush.bf16.msra.mxu0 %v4026
  %4326 = vmatpush.bf16.msra.mxu0 %v4025
  %4327 = vmatpush.bf16.msra.mxu0 %v4024
  %4328 = vmatpush.bf16.msra.mxu0 %v4023
  %4329 = vmatpush.bf16.msra.mxu0 %v4022
  %4330 = vmatpush.bf16.msra.mxu0 %v4021
  %4331 = vmatpush.bf16.msra.mxu0 %v4020
  %4332 = vmatpush.bf16.msra.mxu0 %v4019
  %4333 = vmatmul.bf16.gmra.mxu0 %v3161
  %v4334 = vpop.f32.mrf.mxu0
  %v4335 = vadd.f32 %v4322, %v4334
  %v4336 = vpop.f32.mrf.mxu0
  %4337 = vdwg.mxu0
  %4338 = vmatpush.bf16.msra.mxu0 %v4034
  %4339 = vmatpush.bf16.msra.mxu0 %v4033
  %4340 = vmatpush.bf16.msra.mxu0 %v4032
  %4341 = vmatpush.bf16.msra.mxu0 %v4031
  %4342 = vmatpush.bf16.msra.mxu0 %v4030
  %4343 = vmatpush.bf16.msra.mxu0 %v4029
  %4344 = vmatpush.bf16.msra.mxu0 %v4028
  %4345 = vmatpush.bf16.msra.mxu0 %v4027
  %4346 = vmatmul.bf16.gmra.mxu0 %v3162
  %v4347 = vpop.f32.mrf.mxu0
  %v4348 = vadd.f32 %v4335, %v4347
  %v4349 = vpop.f32.mrf.mxu0
  %4350 = vdwg.mxu0
  %4351 = vmatpush.bf16.msra.mxu0 %v4042
  %4352 = vmatpush.bf16.msra.mxu0 %v4041
  %4353 = vmatpush.bf16.msra.mxu0 %v4040
  %4354 = vmatpush.bf16.msra.mxu0 %v4039
  %4355 = vmatpush.bf16.msra.mxu0 %v4038
  %4356 = vmatpush.bf16.msra.mxu0 %v4037
  %4357 = vmatpush.bf16.msra.mxu0 %v4036
  %4358 = vmatpush.bf16.msra.mxu0 %v4035
  %4359 = vmatmul.bf16.gmra.mxu0 %v3163
  %v4360 = vpop.f32.mrf.mxu0
  %v4361 = vadd.f32 %v4348, %v4360
  %v4362 = vpop.f32.mrf.mxu0
  %4363 = vdwg.mxu0
  %4364 = vmatpush.bf16.msra.mxu0 %v4050
  %4365 = vmatpush.bf16.msra.mxu0 %v4049
  %4366 = vmatpush.bf16.msra.mxu0 %v4048
  %4367 = vmatpush.bf16.msra.mxu0 %v4047
  %4368 = vmatpush.bf16.msra.mxu0 %v4046
  %4369 = vmatpush.bf16.msra.mxu0 %v4045
  %4370 = vmatpush.bf16.msra.mxu0 %v4044
  %4371 = vmatpush.bf16.msra.mxu0 %v4043
  %4372 = vmatmul.bf16.gmra.mxu0 %v3164
  %v4373 = vpop.f32.mrf.mxu0
  %v4374 = vadd.f32 %v4361, %v4373
  %v4375 = vpop.f32.mrf.mxu0
  %4376 = vdwg.mxu0
  %4377 = vmatpush.bf16.msra.mxu0 %v4058
  %4378 = vmatpush.bf16.msra.mxu0 %v4057
  %4379 = vmatpush.bf16.msra.mxu0 %v4056
  %4380 = vmatpush.bf16.msra.mxu0 %v4055
  %4381 = vmatpush.bf16.msra.mxu0 %v4054
  %4382 = vmatpush.bf16.msra.mxu0 %v4053
  %4383 = vmatpush.bf16.msra.mxu0 %v4052
  %4384 = vmatpush.bf16.msra.mxu0 %v4051
  %4385 = vmatmul.bf16.gmra.mxu0 %v3165
  %v4386 = vpop.f32.mrf.mxu0
  %v4387 = vadd.f32 %v4374, %v4386
  %v4388 = vpop.f32.mrf.mxu0
  %4389 = vdwg.mxu0
  %4390 = vmatpush.bf16.msra.mxu0 %v4066
  %4391 = vmatpush.bf16.msra.mxu0 %v4065
  %4392 = vmatpush.bf16.msra.mxu0 %v4064
  %4393 = vmatpush.bf16.msra.mxu0 %v4063
  %4394 = vmatpush.bf16.msra.mxu0 %v4062
  %4395 = vmatpush.bf16.msra.mxu0 %v4061
  %4396 = vmatpush.bf16.msra.mxu0 %v4060
  %4397 = vmatpush.bf16.msra.mxu0 %v4059
  %4398 = vmatmul.bf16.gmra.mxu0 %v3166
  %v4399 = vpop.f32.mrf.mxu0
  %v4400 = vadd.f32 %v4387, %v4399
  %v4401 = vpop.f32.mrf.mxu0
  %4402 = vdwg.mxu0
  %v4403 = vpack.c.bf16 %v4400, %v4400
  %v4404 = vld [vmem:[%s5] sm:$0xf]
  %v4405 = vld [vmem:[%s5 + $0x4] sm:$0xf]
  %v4406 = vld [vmem:[%s5 + $0x8] sm:$0xf]
  %v4407 = vld [vmem:[%s5 + $0xc] sm:$0xf]
  %v4408 = vld [vmem:[%s5 + $0x10] sm:$0xf]
  %v4409 = vld [vmem:[%s5 + $0x14] sm:$0xf]
  %v4410 = vld [vmem:[%s5 + $0x18] sm:$0xf]
  %v4411 = vld [vmem:[%s5 + $0x1c] sm:$0xf]
  %v4412 = vld [vmem:[%s5 + $0x20] sm:$0xf]
  %v4413 = vld [vmem:[%s5 + $0x24] sm:$0xf]
  %v4414 = vld [vmem:[%s5 + $0x28] sm:$0xf]
  %v4415 = vld [vmem:[%s5 + $0x2c] sm:$0xf]
  %v4416 = vld [vmem:[%s5 + $0x30] sm:$0xf]
  %v4417 = vld [vmem:[%s5 + $0x34] sm:$0xf]
  %v4418 = vld [vmem:[%s5 + $0x38] sm:$0xf]
  %v4419 = vld [vmem:[%s5 + $0x3c] sm:$0xf]
  %v4420 = vld [vmem:[%s6] sm:$0x1]
  %v4422 = vperm.slane %v4420, 0
  %v4440 = vunpack.c.l.b16 %v4404
  %v4441 = vunpack.c.l.b16 %v4405
  %v4442 = vunpack.c.l.b16 %v4406
  %v4443 = vunpack.c.l.b16 %v4407
  %v4444 = vunpack.c.l.b16 %v4408
  %v4445 = vunpack.c.l.b16 %v4409
  %v4446 = vunpack.c.l.b16 %v4410
  %v4447 = vunpack.c.l.b16 %v4411
  %v4448 = vunpack.c.l.b16 %v4412
  %v4449 = vunpack.c.l.b16 %v4413
  %v4450 = vunpack.c.l.b16 %v4414
  %v4451 = vunpack.c.l.b16 %v4415
  %v4452 = vunpack.c.l.b16 %v4416
  %v4453 = vunpack.c.l.b16 %v4417
  %v4454 = vunpack.c.l.b16 %v4418
  %v4455 = vunpack.c.l.b16 %v4419
  %v4456 = vpack.c.b16 %v4441, %v4440
  %v4457 = vpack.c.b16 %v4443, %v4442
  %v4458 = vpack.c.b16 %v4445, %v4444
  %v4459 = vpack.c.b16 %v4447, %v4446
  %v4460 = vpack.c.b16 %v4449, %v4448
  %v4461 = vpack.c.b16 %v4451, %v4450
  %v4462 = vpack.c.b16 %v4453, %v4452
  %v4463 = vpack.c.b16 %v4455, %v4454
  %4472 = vmatpush.bf16.msra.mxu0 %v4463
  %4473 = vmatpush.bf16.msra.mxu0 %v4462
  %4474 = vmatpush.bf16.msra.mxu0 %v4461
  %4475 = vmatpush.bf16.msra.mxu0 %v4460
  %4476 = vmatpush.bf16.msra.mxu0 %v4459
  %4477 = vmatpush.bf16.msra.mxu0 %v4458
  %4478 = vmatpush.bf16.msra.mxu0 %v4457
  %4479 = vmatpush.bf16.msra.mxu0 %v4456
  %4480 = vmatmul.bf16.gmra.mxu0 %v4403
  %v4481 = vpop.f32.mrf.mxu0
  %v4482 = vadd.f32 %v4422, %v4481
  %v4483 = vpop.f32.mrf.mxu0
  %4484 = vdwg.mxu0
  %4485 = vst [vmem:[%s7] sm:$0xff] %v4482
  // Predicated region
  $region30: #{tudui_forward.5} parent=0 // pred_check
    _
  $region31: #{tudui_forward.5} parent=0 // pred_check_branch
    %4487 = sbr.rel (0) target = $region33
  $region32: #{tudui_forward.5} parent=0 // pred_region
    _
  $region33: #{tudui_forward.5} parent=0 // pred_fallthru
    _
  // Predicated region
  $region34: #{tudui_forward.5} parent=0 // pred_check
    _
  $region35: #{tudui_forward.5} parent=0 // pred_check_branch
    %4489 = sbr.rel (0) target = $region37
  $region36: #{tudui_forward.5} parent=0 // pred_region
    _
  $region37: #{tudui_forward.5} parent=0 // pred_fallthru
    _

</llo_original>
